<compile_context>
chip_gen: v7x
topology: tpu7x:2x2x1
jax: 0.10.0
libtpu: 0.0.40
codegen_flags: <defaults>
</compile_context>

<pallas_src>
import jax
import jax.numpy as jnp
from jax.experimental import pallas as pl
from jax.experimental.pallas import tpu as pltpu

# ---------------- problem constants (small, consistent with the module) ----------------
N = 2                 # batch
INC = 4               # inc
OUC = 8               # ouc
H = 16
W = 16
NLAYER = 3
GROWTH = 12
K = 5                 # Conv_factory kernel size
PAD = 4               # padding
DIL = 2               # dilation
EPS = 1e-5            # BatchNorm eps

C_LAYERS = tuple(INC + j * GROWTH for j in range(NLAYER))   # (4, 16, 28) per-layer C_in
C_CAT = INC + NLAYER * GROWTH                                # 40
HW = H * W                                                   # 256
NHW = N * HW                                                 # 512 lane-dense column count
HO, WO = H // 2, W // 2                                      # 8, 8
NHWO = N * HO * WO                                           # 128

# Packed conv-weight column offsets (128-aligned block starts; widths 100 / 400 / 700 / 40).
W_OFF = (0, 128, 640)
W1_OFF = 1408
W_TOTAL = W1_OFF + C_CAT                                     # 1448

# Packed per-channel parameter row offsets (8-aligned band starts) inside the (248, 1) column.
S_OFF = (0, 16, 48)        # BN scale  per Conv_factory layer
T_OFF = (8, 32, 80)        # BN shift  per Conv_factory layer
B_OFF = (192, 208, 224)    # conv bias per Conv_factory layer
S3_OFF, T3_OFF, BP_OFF = 112, 152, 240                        # tail BN scale/shift, 1x1 bias
P_ROWS = 248


def dense_down_kernel(x_ref, w_ref, p_ref, o_ref, cat_ref, col_ref):
    """Single-invocation fused kernel.

    x_ref:   (INC, NHW)        input, lane-dense (channels x N*H*W)
    w_ref:   (GROWTH, W_TOTAL) packed conv weights (tap-major (kh,kw,c_in)) + tail 1x1 conv
    p_ref:   (P_ROWS, 1)       packed folded-BN scale/shift + conv biases (column vector)
    o_ref:   (OUC, NHWO)       lane-dense output
    cat_ref: (C_CAT, NHW)      scratch: running channel concatenation
    col_ref: (25*C_max, NHW)   scratch: lane-dense im2col buffer
    """
    # ---- hoisted per-tap validity masks: depend only on (kh, kw), shared by all 3 layers ----
    col_idx = jax.lax.broadcasted_iota(jnp.int32, (1, NHW), 1)
    h_idx = (col_idx >> 4) & (W - 1)          # pixel row within the image   (0..15)
    w_idx = col_idx & (W - 1)                 # pixel column within the image (0..15)
    masks = []
    for kh in range(K):
        dh = kh * DIL - PAD
        for kw in range(K):
            dw = kw * DIL - PAD
            valid = ((h_idx >= -dh) & (h_idx < H - dh)
                     & (w_idx >= -dw) & (w_idx < W - dw))
            masks.append(jnp.where(valid, 1.0, 0.0).astype(jnp.float32))   # (1, 512) {0,1}

    # ---- running dense concatenation: original input occupies rows [0, INC) ----
    cat_ref[0:INC, :] = x_ref[...]

    for j, c_in in enumerate(C_LAYERS):
        scale = p_ref[S_OFF[j]:S_OFF[j] + c_in, :]
        shift = p_ref[T_OFF[j]:T_OFF[j] + c_in, :]
        bias = p_ref[B_OFF[j]:B_OFF[j] + GROWTH, :]

        # BatchNorm (eval, folded) + ReLU, lane-dense (c_in, 512)
        act = jnp.maximum(cat_ref[0:c_in, :] * scale + shift, 0.0)

        # Dilated 5x5 im2col via lane rotations + masks (reproduces zero padding; also
        # neutralizes wraparound across the batch boundary).  Tap-major rows: (kh,kw) outer.
        for kh in range(K):
            for kw in range(K):
                tap = kh * K + kw
                delta = (kh * DIL - PAD) * W + (kw * DIL - PAD)
                if delta == 0:
                    col_ref[tap * c_in:(tap + 1) * c_in, :] = act
                else:
                    rolled = pltpu.roll(act, shift=(-delta) % NHW, axis=1)
                    col_ref[tap * c_in:(tap + 1) * c_in, :] = rolled * masks[tap]

        # Whole dilated conv = ONE MXU matmul (12, 25*c_in) x (25*c_in, 512)
        w_j = w_ref[:, W_OFF[j]:W_OFF[j] + K * K * c_in]
        y = jnp.dot(w_j, col_ref[0:K * K * c_in, :],
                    preferred_element_type=jnp.float32) + bias
        # Dropout2d: identity in eval mode.

        # dense concatenation: append the 12 new channel rows
        row = INC + j * GROWTH
        cat_ref[row:row + GROWTH, :] = y

    # ---- tail: BN + ReLU + 1x1 conv (+ Dropout identity) ----
    s3 = p_ref[S3_OFF:S3_OFF + C_CAT, :]
    t3 = p_ref[T3_OFF:T3_OFF + C_CAT, :]
    bp = p_ref[BP_OFF:BP_OFF + OUC, :]
    act = jnp.maximum(cat_ref[...] * s3 + t3, 0.0)                            # (40, 512)
    w1 = w_ref[0:OUC, W1_OFF:W1_OFF + C_CAT]                                   # (8, 40)
    y = jnp.dot(w1, act, preferred_element_type=jnp.float32) + bp              # (8, 512)

    # ---- AvgPool2d(2,2) as a matmul; {0, 0.25} pooling matrix generated in-kernel ----
    i_idx = jax.lax.broadcasted_iota(jnp.int32, (NHW, NHWO), 0)    # input column index
    o_idx = jax.lax.broadcasted_iota(jnp.int32, (NHW, NHWO), 1)    # output column index
    n_i = i_idx >> 8                                               # // 256
    h_i = (i_idx >> 4) & (W - 1)
    w_i = i_idx & (W - 1)
    pool_col = (n_i << 6) + ((h_i >> 1) << 3) + (w_i >> 1)         # n*64 + (h//2)*8 + w//2
    pool = jnp.where(pool_col == o_idx, 0.25, 0.0).astype(jnp.float32)
    o_ref[...] = jnp.dot(y, pool, preferred_element_type=jnp.float32)          # (8, 128)


def pack_inputs(conv_params, tail_params):
    """Pack all weights into one lane-dense matrix and all per-channel params into one column."""
    wcat = jnp.zeros((GROWTH, W_TOTAL), jnp.float32)
    params = jnp.zeros((P_ROWS, 1), jnp.float32)
    for j, (scale, shift, w, b) in enumerate(conv_params):
        c_in = scale.shape[0]
        wj = jnp.transpose(w, (0, 2, 3, 1)).reshape(GROWTH, K * K * c_in)   # tap-major columns
        wcat = wcat.at[:, W_OFF[j]:W_OFF[j] + K * K * c_in].set(wj)
        params = params.at[S_OFF[j]:S_OFF[j] + c_in, 0].set(scale)
        params = params.at[T_OFF[j]:T_OFF[j] + c_in, 0].set(shift)
        params = params.at[B_OFF[j]:B_OFF[j] + GROWTH, 0].set(b)
    scale3, shift3, w1, b1 = tail_params
    wcat = wcat.at[0:OUC, W1_OFF:W1_OFF + C_CAT].set(w1.reshape(OUC, C_CAT))
    params = params.at[S3_OFF:S3_OFF + C_CAT, 0].set(scale3)
    params = params.at[T3_OFF:T3_OFF + C_CAT, 0].set(shift3)
    params = params.at[BP_OFF:BP_OFF + OUC, 0].set(b1)
    return wcat, params


def dense_down_pallas(x, conv_params, tail_params):
    """x: (N, INC, H, W) f32 -> (N, OUC, H//2, W//2) f32."""
    x2d = jnp.transpose(x, (1, 0, 2, 3)).reshape(INC, NHW)     # lane-dense (INC, N*H*W)
    wcat, params = pack_inputs(conv_params, tail_params)

    out2d = pl.pallas_call(
        dense_down_kernel,
        out_shape=jax.ShapeDtypeStruct((OUC, NHWO), jnp.float32),
        grid_spec=pltpu.PrefetchScalarGridSpec(
            num_scalar_prefetch=0,
            grid=(1,),
            in_specs=[
                pl.BlockSpec((INC, NHW), lambda i: (0, 0)),
                pl.BlockSpec((GROWTH, W_TOTAL), lambda i: (0, 0)),
                pl.BlockSpec((P_ROWS, 1), lambda i: (0, 0)),
            ],
            out_specs=pl.BlockSpec((OUC, NHWO), lambda i: (0, 0)),
            scratch_shapes=[
                pltpu.VMEM((C_CAT, NHW), jnp.float32),                   # running concat (40, 512)
                pltpu.VMEM((K * K * C_LAYERS[-1], NHW), jnp.float32),    # im2col buffer (700, 512)
            ],
        ),
        compiler_params=pltpu.CompilerParams(dimension_semantics=("arbitrary",)),
    )(x2d, wcat, params)

    # back to PyTorch NCHW layout
    return jnp.transpose(out2d.reshape(OUC, N, HO, WO), (1, 0, 2, 3))


def reference(x, conv_params, tail_params):
    """Plain-JAX reference of DenseDownBlock.forward (eval mode)."""
    hp = jax.lax.Precision.HIGHEST
    for (scale, shift, w, b) in conv_params:
        act = jnp.maximum(x * scale[None, :, None, None] + shift[None, :, None, None], 0.0)
        y = jax.lax.conv_general_dilated(
            act, w, window_strides=(1, 1), padding=((PAD, PAD), (PAD, PAD)),
            rhs_dilation=(DIL, DIL), dimension_numbers=("NCHW", "OIHW", "NCHW"),
            precision=hp) + b[None, :, None, None]
        x = jnp.concatenate([x, y], axis=1)
    scale3, shift3, w1, b1 = tail_params
    act = jnp.maximum(x * scale3[None, :, None, None] + shift3[None, :, None, None], 0.0)
    y = jax.lax.conv_general_dilated(
        act, w1, window_strides=(1, 1), padding="VALID",
        dimension_numbers=("NCHW", "OIHW", "NCHW"), precision=hp) + b1[None, :, None, None]
    return y.reshape(N, OUC, HO, 2, WO, 2).mean(axis=(3, 5))


if __name__ == "__main__":
    key = jax.random.PRNGKey(0)
    keys = jax.random.split(key, 16)

    def bn_fold(k, c):
        kg, kb, km, kv = jax.random.split(k, 4)
        gamma = 1.0 + 0.1 * jax.random.normal(kg, (c,), jnp.float32)
        beta = 0.1 * jax.random.normal(kb, (c,), jnp.float32)
        mean = 0.1 * jax.random.normal(km, (c,), jnp.float32)
        var = jnp.abs(1.0 + 0.1 * jax.random.normal(kv, (c,), jnp.float32))
        scale = gamma / jnp.sqrt(var + EPS)
        shift = beta - mean * scale
        return scale, shift

    # input
    x = jax.random.normal(keys[0], (N, INC, H, W), dtype=jnp.float32)

    # 3 Conv_factory layers: BN(c_in) params + Conv2d(c_in, 12, 5) params
    conv_params = []
    for j, c_in in enumerate(C_LAYERS):
        scale, shift = bn_fold(keys[1 + 3 * j], c_in)
        fan_in = c_in * K * K
        w = jax.random.normal(keys[2 + 3 * j], (GROWTH, c_in, K, K),
                              dtype=jnp.float32) / jnp.sqrt(fan_in)
        b = 0.05 * jax.random.normal(keys[3 + 3 * j], (GROWTH,), dtype=jnp.float32)
        conv_params.append((scale, shift, w, b))

    # tail: BN(40) + Conv2d(40, OUC, 1, 1)
    scale3, shift3 = bn_fold(keys[10], C_CAT)
    w1 = jax.random.normal(keys[11], (OUC, C_CAT, 1, 1), dtype=jnp.float32) / jnp.sqrt(C_CAT)
    b1 = 0.05 * jax.random.normal(keys[12], (OUC,), dtype=jnp.float32)
    tail_params = (scale3, shift3, w1, b1)

    out = dense_down_pallas(x, conv_params, tail_params)
    out = jax.block_until_ready(out)

    ref = reference(x, conv_params, tail_params)
    assert out.shape == (N, OUC, HO, WO), out.shape
    max_err = float(jnp.max(jnp.abs(out - ref)))
    assert jnp.allclose(out, ref, atol=1e-3, rtol=1e-3), max_err

    print("KERNEL_OK")
</pallas_src>

<mosaic_0001>
module attributes {stable_mosaic.version = 11 : i64} {
  func.func @dense_down_kernel(%arg0: i32, %arg1: memref<4x512xf32, #tpu.memory_space<vmem>>, %arg2: memref<12x1448xf32, #tpu.memory_space<vmem>>, %arg3: memref<248x1xf32, #tpu.memory_space<vmem>>, %arg4: memref<8x128xf32, #tpu.memory_space<vmem>>, %arg5: memref<40x512xf32, #tpu.memory_space<vmem>>, %arg6: memref<700x512xf32, #tpu.memory_space<vmem>>) attributes {dimension_semantics = [#tpu.dimension_semantics<arbitrary>], iteration_bounds = array<i64: 1>, scalar_prefetch = 0 : i64, scratch_operands = 2 : i64, tpu.core_type = #tpu.core_type<tc>, window_params = [{pipeline_mode = #tpu.pipeline_mode<synchronous>, transform_indices = @transform_0, window_bounds = array<i64: 4, 512>}, {pipeline_mode = #tpu.pipeline_mode<synchronous>, transform_indices = @transform_1, window_bounds = array<i64: 12, 1448>}, {pipeline_mode = #tpu.pipeline_mode<synchronous>, transform_indices = @transform_2, window_bounds = array<i64: 248, 1>}, {pipeline_mode = #tpu.pipeline_mode<synchronous>, transform_indices = @transform_3, window_bounds = array<i64: 8, 128>}]} {
    %0 = tpu.iota {dimensions = array<i32: 1>} : vector<1x512xi32>
    %c4_i32 = arith.constant 4 : i32
    %1 = vector.broadcast %c4_i32 : i32 to vector<1x512xi32>
    %2 = arith.shrsi %0, %1 : vector<1x512xi32>
    %c15_i32 = arith.constant 15 : i32
    %3 = vector.broadcast %c15_i32 : i32 to vector<1x512xi32>
    %4 = arith.andi %2, %3 : vector<1x512xi32>
    %c15_i32_0 = arith.constant 15 : i32
    %5 = vector.broadcast %c15_i32_0 : i32 to vector<1x512xi32>
    %6 = arith.andi %0, %5 : vector<1x512xi32>
    %c4_i32_1 = arith.constant 4 : i32
    %7 = vector.broadcast %c4_i32_1 : i32 to vector<1x512xi32>
    %8 = arith.cmpi sge, %4, %7 : vector<1x512xi32>
    %c20_i32 = arith.constant 20 : i32
    %9 = vector.broadcast %c20_i32 : i32 to vector<1x512xi32>
    %10 = arith.cmpi slt, %4, %9 : vector<1x512xi32>
    %11 = arith.andi %8, %10 : vector<1x512xi1>
    %c4_i32_2 = arith.constant 4 : i32
    %12 = vector.broadcast %c4_i32_2 : i32 to vector<1x512xi32>
    %13 = arith.cmpi sge, %6, %12 : vector<1x512xi32>
    %14 = arith.andi %11, %13 : vector<1x512xi1>
    %c20_i32_3 = arith.constant 20 : i32
    %15 = vector.broadcast %c20_i32_3 : i32 to vector<1x512xi32>
    %16 = arith.cmpi slt, %6, %15 : vector<1x512xi32>
    %17 = arith.andi %14, %16 : vector<1x512xi1>
    %cst = arith.constant 1.000000e+00 : f32
    %cst_4 = arith.constant 0.000000e+00 : f32
    %18 = vector.broadcast %cst : f32 to vector<1x512xf32>
    %19 = vector.broadcast %cst_4 : f32 to vector<1x512xf32>
    %20 = arith.select %17, %18, %19 : vector<1x512xi1>, vector<1x512xf32>
    %c4_i32_5 = arith.constant 4 : i32
    %21 = vector.broadcast %c4_i32_5 : i32 to vector<1x512xi32>
    %22 = arith.cmpi sge, %4, %21 : vector<1x512xi32>
    %c20_i32_6 = arith.constant 20 : i32
    %23 = vector.broadcast %c20_i32_6 : i32 to vector<1x512xi32>
    %24 = arith.cmpi slt, %4, %23 : vector<1x512xi32>
    %25 = arith.andi %22, %24 : vector<1x512xi1>
    %c2_i32 = arith.constant 2 : i32
    %26 = vector.broadcast %c2_i32 : i32 to vector<1x512xi32>
    %27 = arith.cmpi sge, %6, %26 : vector<1x512xi32>
    %28 = arith.andi %25, %27 : vector<1x512xi1>
    %c18_i32 = arith.constant 18 : i32
    %29 = vector.broadcast %c18_i32 : i32 to vector<1x512xi32>
    %30 = arith.cmpi slt, %6, %29 : vector<1x512xi32>
    %31 = arith.andi %28, %30 : vector<1x512xi1>
    %cst_7 = arith.constant 1.000000e+00 : f32
    %cst_8 = arith.constant 0.000000e+00 : f32
    %32 = vector.broadcast %cst_7 : f32 to vector<1x512xf32>
    %33 = vector.broadcast %cst_8 : f32 to vector<1x512xf32>
    %34 = arith.select %31, %32, %33 : vector<1x512xi1>, vector<1x512xf32>
    %c4_i32_9 = arith.constant 4 : i32
    %35 = vector.broadcast %c4_i32_9 : i32 to vector<1x512xi32>
    %36 = arith.cmpi sge, %4, %35 : vector<1x512xi32>
    %c20_i32_10 = arith.constant 20 : i32
    %37 = vector.broadcast %c20_i32_10 : i32 to vector<1x512xi32>
    %38 = arith.cmpi slt, %4, %37 : vector<1x512xi32>
    %39 = arith.andi %36, %38 : vector<1x512xi1>
    %c0_i32 = arith.constant 0 : i32
    %40 = vector.broadcast %c0_i32 : i32 to vector<1x512xi32>
    %41 = arith.cmpi sge, %6, %40 : vector<1x512xi32>
    %42 = arith.andi %39, %41 : vector<1x512xi1>
    %c16_i32 = arith.constant 16 : i32
    %43 = vector.broadcast %c16_i32 : i32 to vector<1x512xi32>
    %44 = arith.cmpi slt, %6, %43 : vector<1x512xi32>
    %45 = arith.andi %42, %44 : vector<1x512xi1>
    %cst_11 = arith.constant 1.000000e+00 : f32
    %cst_12 = arith.constant 0.000000e+00 : f32
    %46 = vector.broadcast %cst_11 : f32 to vector<1x512xf32>
    %47 = vector.broadcast %cst_12 : f32 to vector<1x512xf32>
    %48 = arith.select %45, %46, %47 : vector<1x512xi1>, vector<1x512xf32>
    %c4_i32_13 = arith.constant 4 : i32
    %49 = vector.broadcast %c4_i32_13 : i32 to vector<1x512xi32>
    %50 = arith.cmpi sge, %4, %49 : vector<1x512xi32>
    %c20_i32_14 = arith.constant 20 : i32
    %51 = vector.broadcast %c20_i32_14 : i32 to vector<1x512xi32>
    %52 = arith.cmpi slt, %4, %51 : vector<1x512xi32>
    %53 = arith.andi %50, %52 : vector<1x512xi1>
    %c-2_i32 = arith.constant -2 : i32
    %54 = vector.broadcast %c-2_i32 : i32 to vector<1x512xi32>
    %55 = arith.cmpi sge, %6, %54 : vector<1x512xi32>
    %56 = arith.andi %53, %55 : vector<1x512xi1>
    %c14_i32 = arith.constant 14 : i32
    %57 = vector.broadcast %c14_i32 : i32 to vector<1x512xi32>
    %58 = arith.cmpi slt, %6, %57 : vector<1x512xi32>
    %59 = arith.andi %56, %58 : vector<1x512xi1>
    %cst_15 = arith.constant 1.000000e+00 : f32
    %cst_16 = arith.constant 0.000000e+00 : f32
    %60 = vector.broadcast %cst_15 : f32 to vector<1x512xf32>
    %61 = vector.broadcast %cst_16 : f32 to vector<1x512xf32>
    %62 = arith.select %59, %60, %61 : vector<1x512xi1>, vector<1x512xf32>
    %c4_i32_17 = arith.constant 4 : i32
    %63 = vector.broadcast %c4_i32_17 : i32 to vector<1x512xi32>
    %64 = arith.cmpi sge, %4, %63 : vector<1x512xi32>
    %c20_i32_18 = arith.constant 20 : i32
    %65 = vector.broadcast %c20_i32_18 : i32 to vector<1x512xi32>
    %66 = arith.cmpi slt, %4, %65 : vector<1x512xi32>
    %67 = arith.andi %64, %66 : vector<1x512xi1>
    %c-4_i32 = arith.constant -4 : i32
    %68 = vector.broadcast %c-4_i32 : i32 to vector<1x512xi32>
    %69 = arith.cmpi sge, %6, %68 : vector<1x512xi32>
    %70 = arith.andi %67, %69 : vector<1x512xi1>
    %c12_i32 = arith.constant 12 : i32
    %71 = vector.broadcast %c12_i32 : i32 to vector<1x512xi32>
    %72 = arith.cmpi slt, %6, %71 : vector<1x512xi32>
    %73 = arith.andi %70, %72 : vector<1x512xi1>
    %cst_19 = arith.constant 1.000000e+00 : f32
    %cst_20 = arith.constant 0.000000e+00 : f32
    %74 = vector.broadcast %cst_19 : f32 to vector<1x512xf32>
    %75 = vector.broadcast %cst_20 : f32 to vector<1x512xf32>
    %76 = arith.select %73, %74, %75 : vector<1x512xi1>, vector<1x512xf32>
    %c2_i32_21 = arith.constant 2 : i32
    %77 = vector.broadcast %c2_i32_21 : i32 to vector<1x512xi32>
    %78 = arith.cmpi sge, %4, %77 : vector<1x512xi32>
    %c18_i32_22 = arith.constant 18 : i32
    %79 = vector.broadcast %c18_i32_22 : i32 to vector<1x512xi32>
    %80 = arith.cmpi slt, %4, %79 : vector<1x512xi32>
    %81 = arith.andi %78, %80 : vector<1x512xi1>
    %c4_i32_23 = arith.constant 4 : i32
    %82 = vector.broadcast %c4_i32_23 : i32 to vector<1x512xi32>
    %83 = arith.cmpi sge, %6, %82 : vector<1x512xi32>
    %84 = arith.andi %81, %83 : vector<1x512xi1>
    %c20_i32_24 = arith.constant 20 : i32
    %85 = vector.broadcast %c20_i32_24 : i32 to vector<1x512xi32>
    %86 = arith.cmpi slt, %6, %85 : vector<1x512xi32>
    %87 = arith.andi %84, %86 : vector<1x512xi1>
    %cst_25 = arith.constant 1.000000e+00 : f32
    %cst_26 = arith.constant 0.000000e+00 : f32
    %88 = vector.broadcast %cst_25 : f32 to vector<1x512xf32>
    %89 = vector.broadcast %cst_26 : f32 to vector<1x512xf32>
    %90 = arith.select %87, %88, %89 : vector<1x512xi1>, vector<1x512xf32>
    %c2_i32_27 = arith.constant 2 : i32
    %91 = vector.broadcast %c2_i32_27 : i32 to vector<1x512xi32>
    %92 = arith.cmpi sge, %4, %91 : vector<1x512xi32>
    %c18_i32_28 = arith.constant 18 : i32
    %93 = vector.broadcast %c18_i32_28 : i32 to vector<1x512xi32>
    %94 = arith.cmpi slt, %4, %93 : vector<1x512xi32>
    %95 = arith.andi %92, %94 : vector<1x512xi1>
    %c2_i32_29 = arith.constant 2 : i32
    %96 = vector.broadcast %c2_i32_29 : i32 to vector<1x512xi32>
    %97 = arith.cmpi sge, %6, %96 : vector<1x512xi32>
    %98 = arith.andi %95, %97 : vector<1x512xi1>
    %c18_i32_30 = arith.constant 18 : i32
    %99 = vector.broadcast %c18_i32_30 : i32 to vector<1x512xi32>
    %100 = arith.cmpi slt, %6, %99 : vector<1x512xi32>
    %101 = arith.andi %98, %100 : vector<1x512xi1>
    %cst_31 = arith.constant 1.000000e+00 : f32
    %cst_32 = arith.constant 0.000000e+00 : f32
    %102 = vector.broadcast %cst_31 : f32 to vector<1x512xf32>
    %103 = vector.broadcast %cst_32 : f32 to vector<1x512xf32>
    %104 = arith.select %101, %102, %103 : vector<1x512xi1>, vector<1x512xf32>
    %c2_i32_33 = arith.constant 2 : i32
    %105 = vector.broadcast %c2_i32_33 : i32 to vector<1x512xi32>
    %106 = arith.cmpi sge, %4, %105 : vector<1x512xi32>
    %c18_i32_34 = arith.constant 18 : i32
    %107 = vector.broadcast %c18_i32_34 : i32 to vector<1x512xi32>
    %108 = arith.cmpi slt, %4, %107 : vector<1x512xi32>
    %109 = arith.andi %106, %108 : vector<1x512xi1>
    %c0_i32_35 = arith.constant 0 : i32
    %110 = vector.broadcast %c0_i32_35 : i32 to vector<1x512xi32>
    %111 = arith.cmpi sge, %6, %110 : vector<1x512xi32>
    %112 = arith.andi %109, %111 : vector<1x512xi1>
    %c16_i32_36 = arith.constant 16 : i32
    %113 = vector.broadcast %c16_i32_36 : i32 to vector<1x512xi32>
    %114 = arith.cmpi slt, %6, %113 : vector<1x512xi32>
    %115 = arith.andi %112, %114 : vector<1x512xi1>
    %cst_37 = arith.constant 1.000000e+00 : f32
    %cst_38 = arith.constant 0.000000e+00 : f32
    %116 = vector.broadcast %cst_37 : f32 to vector<1x512xf32>
    %117 = vector.broadcast %cst_38 : f32 to vector<1x512xf32>
    %118 = arith.select %115, %116, %117 : vector<1x512xi1>, vector<1x512xf32>
    %c2_i32_39 = arith.constant 2 : i32
    %119 = vector.broadcast %c2_i32_39 : i32 to vector<1x512xi32>
    %120 = arith.cmpi sge, %4, %119 : vector<1x512xi32>
    %c18_i32_40 = arith.constant 18 : i32
    %121 = vector.broadcast %c18_i32_40 : i32 to vector<1x512xi32>
    %122 = arith.cmpi slt, %4, %121 : vector<1x512xi32>
    %123 = arith.andi %120, %122 : vector<1x512xi1>
    %c-2_i32_41 = arith.constant -2 : i32
    %124 = vector.broadcast %c-2_i32_41 : i32 to vector<1x512xi32>
    %125 = arith.cmpi sge, %6, %124 : vector<1x512xi32>
    %126 = arith.andi %123, %125 : vector<1x512xi1>
    %c14_i32_42 = arith.constant 14 : i32
    %127 = vector.broadcast %c14_i32_42 : i32 to vector<1x512xi32>
    %128 = arith.cmpi slt, %6, %127 : vector<1x512xi32>
    %129 = arith.andi %126, %128 : vector<1x512xi1>
    %cst_43 = arith.constant 1.000000e+00 : f32
    %cst_44 = arith.constant 0.000000e+00 : f32
    %130 = vector.broadcast %cst_43 : f32 to vector<1x512xf32>
    %131 = vector.broadcast %cst_44 : f32 to vector<1x512xf32>
    %132 = arith.select %129, %130, %131 : vector<1x512xi1>, vector<1x512xf32>
    %c2_i32_45 = arith.constant 2 : i32
    %133 = vector.broadcast %c2_i32_45 : i32 to vector<1x512xi32>
    %134 = arith.cmpi sge, %4, %133 : vector<1x512xi32>
    %c18_i32_46 = arith.constant 18 : i32
    %135 = vector.broadcast %c18_i32_46 : i32 to vector<1x512xi32>
    %136 = arith.cmpi slt, %4, %135 : vector<1x512xi32>
    %137 = arith.andi %134, %136 : vector<1x512xi1>
    %c-4_i32_47 = arith.constant -4 : i32
    %138 = vector.broadcast %c-4_i32_47 : i32 to vector<1x512xi32>
    %139 = arith.cmpi sge, %6, %138 : vector<1x512xi32>
    %140 = arith.andi %137, %139 : vector<1x512xi1>
    %c12_i32_48 = arith.constant 12 : i32
    %141 = vector.broadcast %c12_i32_48 : i32 to vector<1x512xi32>
    %142 = arith.cmpi slt, %6, %141 : vector<1x512xi32>
    %143 = arith.andi %140, %142 : vector<1x512xi1>
    %cst_49 = arith.constant 1.000000e+00 : f32
    %cst_50 = arith.constant 0.000000e+00 : f32
    %144 = vector.broadcast %cst_49 : f32 to vector<1x512xf32>
    %145 = vector.broadcast %cst_50 : f32 to vector<1x512xf32>
    %146 = arith.select %143, %144, %145 : vector<1x512xi1>, vector<1x512xf32>
    %c0_i32_51 = arith.constant 0 : i32
    %147 = vector.broadcast %c0_i32_51 : i32 to vector<1x512xi32>
    %148 = arith.cmpi sge, %4, %147 : vector<1x512xi32>
    %c16_i32_52 = arith.constant 16 : i32
    %149 = vector.broadcast %c16_i32_52 : i32 to vector<1x512xi32>
    %150 = arith.cmpi slt, %4, %149 : vector<1x512xi32>
    %151 = arith.andi %148, %150 : vector<1x512xi1>
    %c4_i32_53 = arith.constant 4 : i32
    %152 = vector.broadcast %c4_i32_53 : i32 to vector<1x512xi32>
    %153 = arith.cmpi sge, %6, %152 : vector<1x512xi32>
    %154 = arith.andi %151, %153 : vector<1x512xi1>
    %c20_i32_54 = arith.constant 20 : i32
    %155 = vector.broadcast %c20_i32_54 : i32 to vector<1x512xi32>
    %156 = arith.cmpi slt, %6, %155 : vector<1x512xi32>
    %157 = arith.andi %154, %156 : vector<1x512xi1>
    %cst_55 = arith.constant 1.000000e+00 : f32
    %cst_56 = arith.constant 0.000000e+00 : f32
    %158 = vector.broadcast %cst_55 : f32 to vector<1x512xf32>
    %159 = vector.broadcast %cst_56 : f32 to vector<1x512xf32>
    %160 = arith.select %157, %158, %159 : vector<1x512xi1>, vector<1x512xf32>
    %c0_i32_57 = arith.constant 0 : i32
    %161 = vector.broadcast %c0_i32_57 : i32 to vector<1x512xi32>
    %162 = arith.cmpi sge, %4, %161 : vector<1x512xi32>
    %c16_i32_58 = arith.constant 16 : i32
    %163 = vector.broadcast %c16_i32_58 : i32 to vector<1x512xi32>
    %164 = arith.cmpi slt, %4, %163 : vector<1x512xi32>
    %165 = arith.andi %162, %164 : vector<1x512xi1>
    %c2_i32_59 = arith.constant 2 : i32
    %166 = vector.broadcast %c2_i32_59 : i32 to vector<1x512xi32>
    %167 = arith.cmpi sge, %6, %166 : vector<1x512xi32>
    %168 = arith.andi %165, %167 : vector<1x512xi1>
    %c18_i32_60 = arith.constant 18 : i32
    %169 = vector.broadcast %c18_i32_60 : i32 to vector<1x512xi32>
    %170 = arith.cmpi slt, %6, %169 : vector<1x512xi32>
    %171 = arith.andi %168, %170 : vector<1x512xi1>
    %cst_61 = arith.constant 1.000000e+00 : f32
    %cst_62 = arith.constant 0.000000e+00 : f32
    %172 = vector.broadcast %cst_61 : f32 to vector<1x512xf32>
    %173 = vector.broadcast %cst_62 : f32 to vector<1x512xf32>
    %174 = arith.select %171, %172, %173 : vector<1x512xi1>, vector<1x512xf32>
    %c0_i32_63 = arith.constant 0 : i32
    %175 = vector.broadcast %c0_i32_63 : i32 to vector<1x512xi32>
    %176 = arith.cmpi sge, %4, %175 : vector<1x512xi32>
    %c16_i32_64 = arith.constant 16 : i32
    %177 = vector.broadcast %c16_i32_64 : i32 to vector<1x512xi32>
    %178 = arith.cmpi slt, %4, %177 : vector<1x512xi32>
    %179 = arith.andi %176, %178 : vector<1x512xi1>
    %c-2_i32_65 = arith.constant -2 : i32
    %180 = vector.broadcast %c-2_i32_65 : i32 to vector<1x512xi32>
    %181 = arith.cmpi sge, %6, %180 : vector<1x512xi32>
    %182 = arith.andi %179, %181 : vector<1x512xi1>
    %c14_i32_66 = arith.constant 14 : i32
    %183 = vector.broadcast %c14_i32_66 : i32 to vector<1x512xi32>
    %184 = arith.cmpi slt, %6, %183 : vector<1x512xi32>
    %185 = arith.andi %182, %184 : vector<1x512xi1>
    %cst_67 = arith.constant 1.000000e+00 : f32
    %cst_68 = arith.constant 0.000000e+00 : f32
    %186 = vector.broadcast %cst_67 : f32 to vector<1x512xf32>
    %187 = vector.broadcast %cst_68 : f32 to vector<1x512xf32>
    %188 = arith.select %185, %186, %187 : vector<1x512xi1>, vector<1x512xf32>
    %c0_i32_69 = arith.constant 0 : i32
    %189 = vector.broadcast %c0_i32_69 : i32 to vector<1x512xi32>
    %190 = arith.cmpi sge, %4, %189 : vector<1x512xi32>
    %c16_i32_70 = arith.constant 16 : i32
    %191 = vector.broadcast %c16_i32_70 : i32 to vector<1x512xi32>
    %192 = arith.cmpi slt, %4, %191 : vector<1x512xi32>
    %193 = arith.andi %190, %192 : vector<1x512xi1>
    %c-4_i32_71 = arith.constant -4 : i32
    %194 = vector.broadcast %c-4_i32_71 : i32 to vector<1x512xi32>
    %195 = arith.cmpi sge, %6, %194 : vector<1x512xi32>
    %196 = arith.andi %193, %195 : vector<1x512xi1>
    %c12_i32_72 = arith.constant 12 : i32
    %197 = vector.broadcast %c12_i32_72 : i32 to vector<1x512xi32>
    %198 = arith.cmpi slt, %6, %197 : vector<1x512xi32>
    %199 = arith.andi %196, %198 : vector<1x512xi1>
    %cst_73 = arith.constant 1.000000e+00 : f32
    %cst_74 = arith.constant 0.000000e+00 : f32
    %200 = vector.broadcast %cst_73 : f32 to vector<1x512xf32>
    %201 = vector.broadcast %cst_74 : f32 to vector<1x512xf32>
    %202 = arith.select %199, %200, %201 : vector<1x512xi1>, vector<1x512xf32>
    %c-2_i32_75 = arith.constant -2 : i32
    %203 = vector.broadcast %c-2_i32_75 : i32 to vector<1x512xi32>
    %204 = arith.cmpi sge, %4, %203 : vector<1x512xi32>
    %c14_i32_76 = arith.constant 14 : i32
    %205 = vector.broadcast %c14_i32_76 : i32 to vector<1x512xi32>
    %206 = arith.cmpi slt, %4, %205 : vector<1x512xi32>
    %207 = arith.andi %204, %206 : vector<1x512xi1>
    %c4_i32_77 = arith.constant 4 : i32
    %208 = vector.broadcast %c4_i32_77 : i32 to vector<1x512xi32>
    %209 = arith.cmpi sge, %6, %208 : vector<1x512xi32>
    %210 = arith.andi %207, %209 : vector<1x512xi1>
    %c20_i32_78 = arith.constant 20 : i32
    %211 = vector.broadcast %c20_i32_78 : i32 to vector<1x512xi32>
    %212 = arith.cmpi slt, %6, %211 : vector<1x512xi32>
    %213 = arith.andi %210, %212 : vector<1x512xi1>
    %cst_79 = arith.constant 1.000000e+00 : f32
    %cst_80 = arith.constant 0.000000e+00 : f32
    %214 = vector.broadcast %cst_79 : f32 to vector<1x512xf32>
    %215 = vector.broadcast %cst_80 : f32 to vector<1x512xf32>
    %216 = arith.select %213, %214, %215 : vector<1x512xi1>, vector<1x512xf32>
    %c-2_i32_81 = arith.constant -2 : i32
    %217 = vector.broadcast %c-2_i32_81 : i32 to vector<1x512xi32>
    %218 = arith.cmpi sge, %4, %217 : vector<1x512xi32>
    %c14_i32_82 = arith.constant 14 : i32
    %219 = vector.broadcast %c14_i32_82 : i32 to vector<1x512xi32>
    %220 = arith.cmpi slt, %4, %219 : vector<1x512xi32>
    %221 = arith.andi %218, %220 : vector<1x512xi1>
    %c2_i32_83 = arith.constant 2 : i32
    %222 = vector.broadcast %c2_i32_83 : i32 to vector<1x512xi32>
    %223 = arith.cmpi sge, %6, %222 : vector<1x512xi32>
    %224 = arith.andi %221, %223 : vector<1x512xi1>
    %c18_i32_84 = arith.constant 18 : i32
    %225 = vector.broadcast %c18_i32_84 : i32 to vector<1x512xi32>
    %226 = arith.cmpi slt, %6, %225 : vector<1x512xi32>
    %227 = arith.andi %224, %226 : vector<1x512xi1>
    %cst_85 = arith.constant 1.000000e+00 : f32
    %cst_86 = arith.constant 0.000000e+00 : f32
    %228 = vector.broadcast %cst_85 : f32 to vector<1x512xf32>
    %229 = vector.broadcast %cst_86 : f32 to vector<1x512xf32>
    %230 = arith.select %227, %228, %229 : vector<1x512xi1>, vector<1x512xf32>
    %c-2_i32_87 = arith.constant -2 : i32
    %231 = vector.broadcast %c-2_i32_87 : i32 to vector<1x512xi32>
    %232 = arith.cmpi sge, %4, %231 : vector<1x512xi32>
    %c14_i32_88 = arith.constant 14 : i32
    %233 = vector.broadcast %c14_i32_88 : i32 to vector<1x512xi32>
    %234 = arith.cmpi slt, %4, %233 : vector<1x512xi32>
    %235 = arith.andi %232, %234 : vector<1x512xi1>
    %c0_i32_89 = arith.constant 0 : i32
    %236 = vector.broadcast %c0_i32_89 : i32 to vector<1x512xi32>
    %237 = arith.cmpi sge, %6, %236 : vector<1x512xi32>
    %238 = arith.andi %235, %237 : vector<1x512xi1>
    %c16_i32_90 = arith.constant 16 : i32
    %239 = vector.broadcast %c16_i32_90 : i32 to vector<1x512xi32>
    %240 = arith.cmpi slt, %6, %239 : vector<1x512xi32>
    %241 = arith.andi %238, %240 : vector<1x512xi1>
    %cst_91 = arith.constant 1.000000e+00 : f32
    %cst_92 = arith.constant 0.000000e+00 : f32
    %242 = vector.broadcast %cst_91 : f32 to vector<1x512xf32>
    %243 = vector.broadcast %cst_92 : f32 to vector<1x512xf32>
    %244 = arith.select %241, %242, %243 : vector<1x512xi1>, vector<1x512xf32>
    %c-2_i32_93 = arith.constant -2 : i32
    %245 = vector.broadcast %c-2_i32_93 : i32 to vector<1x512xi32>
    %246 = arith.cmpi sge, %4, %245 : vector<1x512xi32>
    %c14_i32_94 = arith.constant 14 : i32
    %247 = vector.broadcast %c14_i32_94 : i32 to vector<1x512xi32>
    %248 = arith.cmpi slt, %4, %247 : vector<1x512xi32>
    %249 = arith.andi %246, %248 : vector<1x512xi1>
    %c-2_i32_95 = arith.constant -2 : i32
    %250 = vector.broadcast %c-2_i32_95 : i32 to vector<1x512xi32>
    %251 = arith.cmpi sge, %6, %250 : vector<1x512xi32>
    %252 = arith.andi %249, %251 : vector<1x512xi1>
    %c14_i32_96 = arith.constant 14 : i32
    %253 = vector.broadcast %c14_i32_96 : i32 to vector<1x512xi32>
    %254 = arith.cmpi slt, %6, %253 : vector<1x512xi32>
    %255 = arith.andi %252, %254 : vector<1x512xi1>
    %cst_97 = arith.constant 1.000000e+00 : f32
    %cst_98 = arith.constant 0.000000e+00 : f32
    %256 = vector.broadcast %cst_97 : f32 to vector<1x512xf32>
    %257 = vector.broadcast %cst_98 : f32 to vector<1x512xf32>
    %258 = arith.select %255, %256, %257 : vector<1x512xi1>, vector<1x512xf32>
    %c-2_i32_99 = arith.constant -2 : i32
    %259 = vector.broadcast %c-2_i32_99 : i32 to vector<1x512xi32>
    %260 = arith.cmpi sge, %4, %259 : vector<1x512xi32>
    %c14_i32_100 = arith.constant 14 : i32
    %261 = vector.broadcast %c14_i32_100 : i32 to vector<1x512xi32>
    %262 = arith.cmpi slt, %4, %261 : vector<1x512xi32>
    %263 = arith.andi %260, %262 : vector<1x512xi1>
    %c-4_i32_101 = arith.constant -4 : i32
    %264 = vector.broadcast %c-4_i32_101 : i32 to vector<1x512xi32>
    %265 = arith.cmpi sge, %6, %264 : vector<1x512xi32>
    %266 = arith.andi %263, %265 : vector<1x512xi1>
    %c12_i32_102 = arith.constant 12 : i32
    %267 = vector.broadcast %c12_i32_102 : i32 to vector<1x512xi32>
    %268 = arith.cmpi slt, %6, %267 : vector<1x512xi32>
    %269 = arith.andi %266, %268 : vector<1x512xi1>
    %cst_103 = arith.constant 1.000000e+00 : f32
    %cst_104 = arith.constant 0.000000e+00 : f32
    %270 = vector.broadcast %cst_103 : f32 to vector<1x512xf32>
    %271 = vector.broadcast %cst_104 : f32 to vector<1x512xf32>
    %272 = arith.select %269, %270, %271 : vector<1x512xi1>, vector<1x512xf32>
    %c-4_i32_105 = arith.constant -4 : i32
    %273 = vector.broadcast %c-4_i32_105 : i32 to vector<1x512xi32>
    %274 = arith.cmpi sge, %4, %273 : vector<1x512xi32>
    %c12_i32_106 = arith.constant 12 : i32
    %275 = vector.broadcast %c12_i32_106 : i32 to vector<1x512xi32>
    %276 = arith.cmpi slt, %4, %275 : vector<1x512xi32>
    %277 = arith.andi %274, %276 : vector<1x512xi1>
    %c4_i32_107 = arith.constant 4 : i32
    %278 = vector.broadcast %c4_i32_107 : i32 to vector<1x512xi32>
    %279 = arith.cmpi sge, %6, %278 : vector<1x512xi32>
    %280 = arith.andi %277, %279 : vector<1x512xi1>
    %c20_i32_108 = arith.constant 20 : i32
    %281 = vector.broadcast %c20_i32_108 : i32 to vector<1x512xi32>
    %282 = arith.cmpi slt, %6, %281 : vector<1x512xi32>
    %283 = arith.andi %280, %282 : vector<1x512xi1>
    %cst_109 = arith.constant 1.000000e+00 : f32
    %cst_110 = arith.constant 0.000000e+00 : f32
    %284 = vector.broadcast %cst_109 : f32 to vector<1x512xf32>
    %285 = vector.broadcast %cst_110 : f32 to vector<1x512xf32>
    %286 = arith.select %283, %284, %285 : vector<1x512xi1>, vector<1x512xf32>
    %c-4_i32_111 = arith.constant -4 : i32
    %287 = vector.broadcast %c-4_i32_111 : i32 to vector<1x512xi32>
    %288 = arith.cmpi sge, %4, %287 : vector<1x512xi32>
    %c12_i32_112 = arith.constant 12 : i32
    %289 = vector.broadcast %c12_i32_112 : i32 to vector<1x512xi32>
    %290 = arith.cmpi slt, %4, %289 : vector<1x512xi32>
    %291 = arith.andi %288, %290 : vector<1x512xi1>
    %c2_i32_113 = arith.constant 2 : i32
    %292 = vector.broadcast %c2_i32_113 : i32 to vector<1x512xi32>
    %293 = arith.cmpi sge, %6, %292 : vector<1x512xi32>
    %294 = arith.andi %291, %293 : vector<1x512xi1>
    %c18_i32_114 = arith.constant 18 : i32
    %295 = vector.broadcast %c18_i32_114 : i32 to vector<1x512xi32>
    %296 = arith.cmpi slt, %6, %295 : vector<1x512xi32>
    %297 = arith.andi %294, %296 : vector<1x512xi1>
    %cst_115 = arith.constant 1.000000e+00 : f32
    %cst_116 = arith.constant 0.000000e+00 : f32
    %298 = vector.broadcast %cst_115 : f32 to vector<1x512xf32>
    %299 = vector.broadcast %cst_116 : f32 to vector<1x512xf32>
    %300 = arith.select %297, %298, %299 : vector<1x512xi1>, vector<1x512xf32>
    %c-4_i32_117 = arith.constant -4 : i32
    %301 = vector.broadcast %c-4_i32_117 : i32 to vector<1x512xi32>
    %302 = arith.cmpi sge, %4, %301 : vector<1x512xi32>
    %c12_i32_118 = arith.constant 12 : i32
    %303 = vector.broadcast %c12_i32_118 : i32 to vector<1x512xi32>
    %304 = arith.cmpi slt, %4, %303 : vector<1x512xi32>
    %305 = arith.andi %302, %304 : vector<1x512xi1>
    %c0_i32_119 = arith.constant 0 : i32
    %306 = vector.broadcast %c0_i32_119 : i32 to vector<1x512xi32>
    %307 = arith.cmpi sge, %6, %306 : vector<1x512xi32>
    %308 = arith.andi %305, %307 : vector<1x512xi1>
    %c16_i32_120 = arith.constant 16 : i32
    %309 = vector.broadcast %c16_i32_120 : i32 to vector<1x512xi32>
    %310 = arith.cmpi slt, %6, %309 : vector<1x512xi32>
    %311 = arith.andi %308, %310 : vector<1x512xi1>
    %cst_121 = arith.constant 1.000000e+00 : f32
    %cst_122 = arith.constant 0.000000e+00 : f32
    %312 = vector.broadcast %cst_121 : f32 to vector<1x512xf32>
    %313 = vector.broadcast %cst_122 : f32 to vector<1x512xf32>
    %314 = arith.select %311, %312, %313 : vector<1x512xi1>, vector<1x512xf32>
    %c-4_i32_123 = arith.constant -4 : i32
    %315 = vector.broadcast %c-4_i32_123 : i32 to vector<1x512xi32>
    %316 = arith.cmpi sge, %4, %315 : vector<1x512xi32>
    %c12_i32_124 = arith.constant 12 : i32
    %317 = vector.broadcast %c12_i32_124 : i32 to vector<1x512xi32>
    %318 = arith.cmpi slt, %4, %317 : vector<1x512xi32>
    %319 = arith.andi %316, %318 : vector<1x512xi1>
    %c-2_i32_125 = arith.constant -2 : i32
    %320 = vector.broadcast %c-2_i32_125 : i32 to vector<1x512xi32>
    %321 = arith.cmpi sge, %6, %320 : vector<1x512xi32>
    %322 = arith.andi %319, %321 : vector<1x512xi1>
    %c14_i32_126 = arith.constant 14 : i32
    %323 = vector.broadcast %c14_i32_126 : i32 to vector<1x512xi32>
    %324 = arith.cmpi slt, %6, %323 : vector<1x512xi32>
    %325 = arith.andi %322, %324 : vector<1x512xi1>
    %cst_127 = arith.constant 1.000000e+00 : f32
    %cst_128 = arith.constant 0.000000e+00 : f32
    %326 = vector.broadcast %cst_127 : f32 to vector<1x512xf32>
    %327 = vector.broadcast %cst_128 : f32 to vector<1x512xf32>
    %328 = arith.select %325, %326, %327 : vector<1x512xi1>, vector<1x512xf32>
    %c-4_i32_129 = arith.constant -4 : i32
    %329 = vector.broadcast %c-4_i32_129 : i32 to vector<1x512xi32>
    %330 = arith.cmpi sge, %4, %329 : vector<1x512xi32>
    %c12_i32_130 = arith.constant 12 : i32
    %331 = vector.broadcast %c12_i32_130 : i32 to vector<1x512xi32>
    %332 = arith.cmpi slt, %4, %331 : vector<1x512xi32>
    %333 = arith.andi %330, %332 : vector<1x512xi1>
    %c-4_i32_131 = arith.constant -4 : i32
    %334 = vector.broadcast %c-4_i32_131 : i32 to vector<1x512xi32>
    %335 = arith.cmpi sge, %6, %334 : vector<1x512xi32>
    %336 = arith.andi %333, %335 : vector<1x512xi1>
    %c12_i32_132 = arith.constant 12 : i32
    %337 = vector.broadcast %c12_i32_132 : i32 to vector<1x512xi32>
    %338 = arith.cmpi slt, %6, %337 : vector<1x512xi32>
    %339 = arith.andi %336, %338 : vector<1x512xi1>
    %cst_133 = arith.constant 1.000000e+00 : f32
    %cst_134 = arith.constant 0.000000e+00 : f32
    %340 = vector.broadcast %cst_133 : f32 to vector<1x512xf32>
    %341 = vector.broadcast %cst_134 : f32 to vector<1x512xf32>
    %342 = arith.select %339, %340, %341 : vector<1x512xi1>, vector<1x512xf32>
    %c0 = arith.constant 0 : index
    %c0_135 = arith.constant 0 : index
    %343 = vector.load %arg1[%c0, %c0_135] : memref<4x512xf32, #tpu.memory_space<vmem>>, vector<4x512xf32>
    %c0_136 = arith.constant 0 : index
    %c0_137 = arith.constant 0 : index
    %344 = vector.load %arg5[%c0_136, %c0_137] : memref<40x512xf32, #tpu.memory_space<vmem>>, vector<4x512xf32>
    tpu.vector_store %arg5[%c0_136, %c0_137], %343 {strides = array<i32>} : memref<40x512xf32, #tpu.memory_space<vmem>>, vector<4x512xf32>,
    %c0_138 = arith.constant 0 : index
    %c0_139 = arith.constant 0 : index
    %345 = vector.load %arg3[%c0_138, %c0_139] : memref<248x1xf32, #tpu.memory_space<vmem>>, vector<4x1xf32>
    %c8 = arith.constant 8 : index
    %c0_140 = arith.constant 0 : index
    %346 = vector.load %arg3[%c8, %c0_140] : memref<248x1xf32, #tpu.memory_space<vmem>>, vector<4x1xf32>
    %c192 = arith.constant 192 : index
    %c0_141 = arith.constant 0 : index
    %347 = vector.load %arg3[%c192, %c0_141] : memref<248x1xf32, #tpu.memory_space<vmem>>, vector<12x1xf32>
    %c0_142 = arith.constant 0 : index
    %c0_143 = arith.constant 0 : index
    %348 = vector.load %arg5[%c0_142, %c0_143] : memref<40x512xf32, #tpu.memory_space<vmem>>, vector<4x512xf32>
    %349 = vector.broadcast %345 : vector<4x1xf32> to vector<4x512xf32>
    %350 = arith.mulf %348, %349 : vector<4x512xf32>
    %351 = vector.broadcast %346 : vector<4x1xf32> to vector<4x512xf32>
    %352 = arith.addf %350, %351 : vector<4x512xf32>
    %cst_144 = arith.constant 0.000000e+00 : f32
    %353 = vector.broadcast %cst_144 : f32 to vector<4x512xf32>
    %354 = arith.maximumf %352, %353 : vector<4x512xf32>
    %c68_i32 = arith.constant 68 : i32
    %355 = tpu.dynamic_rotate %354 by %c68_i32 dim 1 : vector<4x512xf32>, i32 -> vector<4x512xf32>
    %356 = vector.broadcast %20 : vector<1x512xf32> to vector<4x512xf32>
    %357 = arith.mulf %355, %356 : vector<4x512xf32>
    %c0_145 = arith.constant 0 : index
    %c0_146 = arith.constant 0 : index
    %358 = vector.load %arg6[%c0_145, %c0_146] : memref<700x512xf32, #tpu.memory_space<vmem>>, vector<4x512xf32>
    tpu.vector_store %arg6[%c0_145, %c0_146], %357 {strides = array<i32>} : memref<700x512xf32, #tpu.memory_space<vmem>>, vector<4x512xf32>,
    %c66_i32 = arith.constant 66 : i32
    %359 = tpu.dynamic_rotate %354 by %c66_i32 dim 1 : vector<4x512xf32>, i32 -> vector<4x512xf32>
    %360 = vector.broadcast %34 : vector<1x512xf32> to vector<4x512xf32>
    %361 = arith.mulf %359, %360 : vector<4x512xf32>
    %c4 = arith.constant 4 : index
    %c0_147 = arith.constant 0 : index
    %362 = vector.load %arg6[%c4, %c0_147] : memref<700x512xf32, #tpu.memory_space<vmem>>, vector<4x512xf32>
    tpu.vector_store %arg6[%c4, %c0_147], %361 {strides = array<i32>} : memref<700x512xf32, #tpu.memory_space<vmem>>, vector<4x512xf32>,
    %c64_i32 = arith.constant 64 : i32
    %363 = tpu.dynamic_rotate %354 by %c64_i32 dim 1 : vector<4x512xf32>, i32 -> vector<4x512xf32>
    %364 = vector.broadcast %48 : vector<1x512xf32> to vector<4x512xf32>
    %365 = arith.mulf %363, %364 : vector<4x512xf32>
    %c8_148 = arith.constant 8 : index
    %c0_149 = arith.constant 0 : index
    %366 = vector.load %arg6[%c8_148, %c0_149] : memref<700x512xf32, #tpu.memory_space<vmem>>, vector<4x512xf32>
    tpu.vector_store %arg6[%c8_148, %c0_149], %365 {strides = array<i32>} : memref<700x512xf32, #tpu.memory_space<vmem>>, vector<4x512xf32>,
    %c62_i32 = arith.constant 62 : i32
    %367 = tpu.dynamic_rotate %354 by %c62_i32 dim 1 : vector<4x512xf32>, i32 -> vector<4x512xf32>
    %368 = vector.broadcast %62 : vector<1x512xf32> to vector<4x512xf32>
    %369 = arith.mulf %367, %368 : vector<4x512xf32>
    %c12 = arith.constant 12 : index
    %c0_150 = arith.constant 0 : index
    %370 = vector.load %arg6[%c12, %c0_150] : memref<700x512xf32, #tpu.memory_space<vmem>>, vector<4x512xf32>
    tpu.vector_store %arg6[%c12, %c0_150], %369 {strides = array<i32>} : memref<700x512xf32, #tpu.memory_space<vmem>>, vector<4x512xf32>,
    %c60_i32 = arith.constant 60 : i32
    %371 = tpu.dynamic_rotate %354 by %c60_i32 dim 1 : vector<4x512xf32>, i32 -> vector<4x512xf32>
    %372 = vector.broadcast %76 : vector<1x512xf32> to vector<4x512xf32>
    %373 = arith.mulf %371, %372 : vector<4x512xf32>
    %c16 = arith.constant 16 : index
    %c0_151 = arith.constant 0 : index
    %374 = vector.load %arg6[%c16, %c0_151] : memref<700x512xf32, #tpu.memory_space<vmem>>, vector<4x512xf32>
    tpu.vector_store %arg6[%c16, %c0_151], %373 {strides = array<i32>} : memref<700x512xf32, #tpu.memory_space<vmem>>, vector<4x512xf32>,
    %c36_i32 = arith.constant 36 : i32
    %375 = tpu.dynamic_rotate %354 by %c36_i32 dim 1 : vector<4x512xf32>, i32 -> vector<4x512xf32>
    %376 = vector.broadcast %90 : vector<1x512xf32> to vector<4x512xf32>
    %377 = arith.mulf %375, %376 : vector<4x512xf32>
    %c20 = arith.constant 20 : index
    %c0_152 = arith.constant 0 : index
    %378 = vector.load %arg6[%c20, %c0_152] : memref<700x512xf32, #tpu.memory_space<vmem>>, vector<4x512xf32>
    tpu.vector_store %arg6[%c20, %c0_152], %377 {strides = array<i32>} : memref<700x512xf32, #tpu.memory_space<vmem>>, vector<4x512xf32>,
    %c34_i32 = arith.constant 34 : i32
    %379 = tpu.dynamic_rotate %354 by %c34_i32 dim 1 : vector<4x512xf32>, i32 -> vector<4x512xf32>
    %380 = vector.broadcast %104 : vector<1x512xf32> to vector<4x512xf32>
    %381 = arith.mulf %379, %380 : vector<4x512xf32>
    %c24 = arith.constant 24 : index
    %c0_153 = arith.constant 0 : index
    %382 = vector.load %arg6[%c24, %c0_153] : memref<700x512xf32, #tpu.memory_space<vmem>>, vector<4x512xf32>
    tpu.vector_store %arg6[%c24, %c0_153], %381 {strides = array<i32>} : memref<700x512xf32, #tpu.memory_space<vmem>>, vector<4x512xf32>,
    %c32_i32 = arith.constant 32 : i32
    %383 = tpu.dynamic_rotate %354 by %c32_i32 dim 1 : vector<4x512xf32>, i32 -> vector<4x512xf32>
    %384 = vector.broadcast %118 : vector<1x512xf32> to vector<4x512xf32>
    %385 = arith.mulf %383, %384 : vector<4x512xf32>
    %c28 = arith.constant 28 : index
    %c0_154 = arith.constant 0 : index
    %386 = vector.load %arg6[%c28, %c0_154] : memref<700x512xf32, #tpu.memory_space<vmem>>, vector<4x512xf32>
    tpu.vector_store %arg6[%c28, %c0_154], %385 {strides = array<i32>} : memref<700x512xf32, #tpu.memory_space<vmem>>, vector<4x512xf32>,
    %c30_i32 = arith.constant 30 : i32
    %387 = tpu.dynamic_rotate %354 by %c30_i32 dim 1 : vector<4x512xf32>, i32 -> vector<4x512xf32>
    %388 = vector.broadcast %132 : vector<1x512xf32> to vector<4x512xf32>
    %389 = arith.mulf %387, %388 : vector<4x512xf32>
    %c32 = arith.constant 32 : index
    %c0_155 = arith.constant 0 : index
    %390 = vector.load %arg6[%c32, %c0_155] : memref<700x512xf32, #tpu.memory_space<vmem>>, vector<4x512xf32>
    tpu.vector_store %arg6[%c32, %c0_155], %389 {strides = array<i32>} : memref<700x512xf32, #tpu.memory_space<vmem>>, vector<4x512xf32>,
    %c28_i32 = arith.constant 28 : i32
    %391 = tpu.dynamic_rotate %354 by %c28_i32 dim 1 : vector<4x512xf32>, i32 -> vector<4x512xf32>
    %392 = vector.broadcast %146 : vector<1x512xf32> to vector<4x512xf32>
    %393 = arith.mulf %391, %392 : vector<4x512xf32>
    %c36 = arith.constant 36 : index
    %c0_156 = arith.constant 0 : index
    %394 = vector.load %arg6[%c36, %c0_156] : memref<700x512xf32, #tpu.memory_space<vmem>>, vector<4x512xf32>
    tpu.vector_store %arg6[%c36, %c0_156], %393 {strides = array<i32>} : memref<700x512xf32, #tpu.memory_space<vmem>>, vector<4x512xf32>,
    %c4_i32_157 = arith.constant 4 : i32
    %395 = tpu.dynamic_rotate %354 by %c4_i32_157 dim 1 : vector<4x512xf32>, i32 -> vector<4x512xf32>
    %396 = vector.broadcast %160 : vector<1x512xf32> to vector<4x512xf32>
    %397 = arith.mulf %395, %396 : vector<4x512xf32>
    %c40 = arith.constant 40 : index
    %c0_158 = arith.constant 0 : index
    %398 = vector.load %arg6[%c40, %c0_158] : memref<700x512xf32, #tpu.memory_space<vmem>>, vector<4x512xf32>
    tpu.vector_store %arg6[%c40, %c0_158], %397 {strides = array<i32>} : memref<700x512xf32, #tpu.memory_space<vmem>>, vector<4x512xf32>,
    %c2_i32_159 = arith.constant 2 : i32
    %399 = tpu.dynamic_rotate %354 by %c2_i32_159 dim 1 : vector<4x512xf32>, i32 -> vector<4x512xf32>
    %400 = vector.broadcast %174 : vector<1x512xf32> to vector<4x512xf32>
    %401 = arith.mulf %399, %400 : vector<4x512xf32>
    %c44 = arith.constant 44 : index
    %c0_160 = arith.constant 0 : index
    %402 = vector.load %arg6[%c44, %c0_160] : memref<700x512xf32, #tpu.memory_space<vmem>>, vector<4x512xf32>
    tpu.vector_store %arg6[%c44, %c0_160], %401 {strides = array<i32>} : memref<700x512xf32, #tpu.memory_space<vmem>>, vector<4x512xf32>,
    %c48 = arith.constant 48 : index
    %c0_161 = arith.constant 0 : index
    %403 = vector.load %arg6[%c48, %c0_161] : memref<700x512xf32, #tpu.memory_space<vmem>>, vector<4x512xf32>
    tpu.vector_store %arg6[%c48, %c0_161], %354 {strides = array<i32>} : memref<700x512xf32, #tpu.memory_space<vmem>>, vector<4x512xf32>,
    %c510_i32 = arith.constant 510 : i32
    %404 = tpu.dynamic_rotate %354 by %c510_i32 dim 1 : vector<4x512xf32>, i32 -> vector<4x512xf32>
    %405 = vector.broadcast %188 : vector<1x512xf32> to vector<4x512xf32>
    %406 = arith.mulf %404, %405 : vector<4x512xf32>
    %c52 = arith.constant 52 : index
    %c0_162 = arith.constant 0 : index
    %407 = vector.load %arg6[%c52, %c0_162] : memref<700x512xf32, #tpu.memory_space<vmem>>, vector<4x512xf32>
    tpu.vector_store %arg6[%c52, %c0_162], %406 {strides = array<i32>} : memref<700x512xf32, #tpu.memory_space<vmem>>, vector<4x512xf32>,
    %c508_i32 = arith.constant 508 : i32
    %408 = tpu.dynamic_rotate %354 by %c508_i32 dim 1 : vector<4x512xf32>, i32 -> vector<4x512xf32>
    %409 = vector.broadcast %202 : vector<1x512xf32> to vector<4x512xf32>
    %410 = arith.mulf %408, %409 : vector<4x512xf32>
    %c56 = arith.constant 56 : index
    %c0_163 = arith.constant 0 : index
    %411 = vector.load %arg6[%c56, %c0_163] : memref<700x512xf32, #tpu.memory_space<vmem>>, vector<4x512xf32>
    tpu.vector_store %arg6[%c56, %c0_163], %410 {strides = array<i32>} : memref<700x512xf32, #tpu.memory_space<vmem>>, vector<4x512xf32>,
    %c484_i32 = arith.constant 484 : i32
    %412 = tpu.dynamic_rotate %354 by %c484_i32 dim 1 : vector<4x512xf32>, i32 -> vector<4x512xf32>
    %413 = vector.broadcast %216 : vector<1x512xf32> to vector<4x512xf32>
    %414 = arith.mulf %412, %413 : vector<4x512xf32>
    %c60 = arith.constant 60 : index
    %c0_164 = arith.constant 0 : index
    %415 = vector.load %arg6[%c60, %c0_164] : memref<700x512xf32, #tpu.memory_space<vmem>>, vector<4x512xf32>
    tpu.vector_store %arg6[%c60, %c0_164], %414 {strides = array<i32>} : memref<700x512xf32, #tpu.memory_space<vmem>>, vector<4x512xf32>,
    %c482_i32 = arith.constant 482 : i32
    %416 = tpu.dynamic_rotate %354 by %c482_i32 dim 1 : vector<4x512xf32>, i32 -> vector<4x512xf32>
    %417 = vector.broadcast %230 : vector<1x512xf32> to vector<4x512xf32>
    %418 = arith.mulf %416, %417 : vector<4x512xf32>
    %c64 = arith.constant 64 : index
    %c0_165 = arith.constant 0 : index
    %419 = vector.load %arg6[%c64, %c0_165] : memref<700x512xf32, #tpu.memory_space<vmem>>, vector<4x512xf32>
    tpu.vector_store %arg6[%c64, %c0_165], %418 {strides = array<i32>} : memref<700x512xf32, #tpu.memory_space<vmem>>, vector<4x512xf32>,
    %c480_i32 = arith.constant 480 : i32
    %420 = tpu.dynamic_rotate %354 by %c480_i32 dim 1 : vector<4x512xf32>, i32 -> vector<4x512xf32>
    %421 = vector.broadcast %244 : vector<1x512xf32> to vector<4x512xf32>
    %422 = arith.mulf %420, %421 : vector<4x512xf32>
    %c68 = arith.constant 68 : index
    %c0_166 = arith.constant 0 : index
    %423 = vector.load %arg6[%c68, %c0_166] : memref<700x512xf32, #tpu.memory_space<vmem>>, vector<4x512xf32>
    tpu.vector_store %arg6[%c68, %c0_166], %422 {strides = array<i32>} : memref<700x512xf32, #tpu.memory_space<vmem>>, vector<4x512xf32>,
    %c478_i32 = arith.constant 478 : i32
    %424 = tpu.dynamic_rotate %354 by %c478_i32 dim 1 : vector<4x512xf32>, i32 -> vector<4x512xf32>
    %425 = vector.broadcast %258 : vector<1x512xf32> to vector<4x512xf32>
    %426 = arith.mulf %424, %425 : vector<4x512xf32>
    %c72 = arith.constant 72 : index
    %c0_167 = arith.constant 0 : index
    %427 = vector.load %arg6[%c72, %c0_167] : memref<700x512xf32, #tpu.memory_space<vmem>>, vector<4x512xf32>
    tpu.vector_store %arg6[%c72, %c0_167], %426 {strides = array<i32>} : memref<700x512xf32, #tpu.memory_space<vmem>>, vector<4x512xf32>,
    %c476_i32 = arith.constant 476 : i32
    %428 = tpu.dynamic_rotate %354 by %c476_i32 dim 1 : vector<4x512xf32>, i32 -> vector<4x512xf32>
    %429 = vector.broadcast %272 : vector<1x512xf32> to vector<4x512xf32>
    %430 = arith.mulf %428, %429 : vector<4x512xf32>
    %c76 = arith.constant 76 : index
    %c0_168 = arith.constant 0 : index
    %431 = vector.load %arg6[%c76, %c0_168] : memref<700x512xf32, #tpu.memory_space<vmem>>, vector<4x512xf32>
    tpu.vector_store %arg6[%c76, %c0_168], %430 {strides = array<i32>} : memref<700x512xf32, #tpu.memory_space<vmem>>, vector<4x512xf32>,
    %c452_i32 = arith.constant 452 : i32
    %432 = tpu.dynamic_rotate %354 by %c452_i32 dim 1 : vector<4x512xf32>, i32 -> vector<4x512xf32>
    %433 = vector.broadcast %286 : vector<1x512xf32> to vector<4x512xf32>
    %434 = arith.mulf %432, %433 : vector<4x512xf32>
    %c80 = arith.constant 80 : index
    %c0_169 = arith.constant 0 : index
    %435 = vector.load %arg6[%c80, %c0_169] : memref<700x512xf32, #tpu.memory_space<vmem>>, vector<4x512xf32>
    tpu.vector_store %arg6[%c80, %c0_169], %434 {strides = array<i32>} : memref<700x512xf32, #tpu.memory_space<vmem>>, vector<4x512xf32>,
    %c450_i32 = arith.constant 450 : i32
    %436 = tpu.dynamic_rotate %354 by %c450_i32 dim 1 : vector<4x512xf32>, i32 -> vector<4x512xf32>
    %437 = vector.broadcast %300 : vector<1x512xf32> to vector<4x512xf32>
    %438 = arith.mulf %436, %437 : vector<4x512xf32>
    %c84 = arith.constant 84 : index
    %c0_170 = arith.constant 0 : index
    %439 = vector.load %arg6[%c84, %c0_170] : memref<700x512xf32, #tpu.memory_space<vmem>>, vector<4x512xf32>
    tpu.vector_store %arg6[%c84, %c0_170], %438 {strides = array<i32>} : memref<700x512xf32, #tpu.memory_space<vmem>>, vector<4x512xf32>,
    %c448_i32 = arith.constant 448 : i32
    %440 = tpu.dynamic_rotate %354 by %c448_i32 dim 1 : vector<4x512xf32>, i32 -> vector<4x512xf32>
    %441 = vector.broadcast %314 : vector<1x512xf32> to vector<4x512xf32>
    %442 = arith.mulf %440, %441 : vector<4x512xf32>
    %c88 = arith.constant 88 : index
    %c0_171 = arith.constant 0 : index
    %443 = vector.load %arg6[%c88, %c0_171] : memref<700x512xf32, #tpu.memory_space<vmem>>, vector<4x512xf32>
    tpu.vector_store %arg6[%c88, %c0_171], %442 {strides = array<i32>} : memref<700x512xf32, #tpu.memory_space<vmem>>, vector<4x512xf32>,
    %c446_i32 = arith.constant 446 : i32
    %444 = tpu.dynamic_rotate %354 by %c446_i32 dim 1 : vector<4x512xf32>, i32 -> vector<4x512xf32>
    %445 = vector.broadcast %328 : vector<1x512xf32> to vector<4x512xf32>
    %446 = arith.mulf %444, %445 : vector<4x512xf32>
    %c92 = arith.constant 92 : index
    %c0_172 = arith.constant 0 : index
    %447 = vector.load %arg6[%c92, %c0_172] : memref<700x512xf32, #tpu.memory_space<vmem>>, vector<4x512xf32>
    tpu.vector_store %arg6[%c92, %c0_172], %446 {strides = array<i32>} : memref<700x512xf32, #tpu.memory_space<vmem>>, vector<4x512xf32>,
    %c444_i32 = arith.constant 444 : i32
    %448 = tpu.dynamic_rotate %354 by %c444_i32 dim 1 : vector<4x512xf32>, i32 -> vector<4x512xf32>
    %449 = vector.broadcast %342 : vector<1x512xf32> to vector<4x512xf32>
    %450 = arith.mulf %448, %449 : vector<4x512xf32>
    %c96 = arith.constant 96 : index
    %c0_173 = arith.constant 0 : index
    %451 = vector.load %arg6[%c96, %c0_173] : memref<700x512xf32, #tpu.memory_space<vmem>>, vector<4x512xf32>
    tpu.vector_store %arg6[%c96, %c0_173], %450 {strides = array<i32>} : memref<700x512xf32, #tpu.memory_space<vmem>>, vector<4x512xf32>,
    %c0_174 = arith.constant 0 : index
    %c0_175 = arith.constant 0 : index
    %452 = vector.load %arg2[%c0_174, %c0_175] : memref<12x1448xf32, #tpu.memory_space<vmem>>, vector<12x100xf32>
    %c0_176 = arith.constant 0 : index
    %c0_177 = arith.constant 0 : index
    %453 = vector.load %arg6[%c0_176, %c0_177] : memref<700x512xf32, #tpu.memory_space<vmem>>, vector<100x512xf32>
    %cst_178 = arith.constant dense<0.000000e+00> : vector<12x512xf32>
    %454 = tpu.matmul %452, %453, %cst_178 {dimension_numbers = #tpu.dot_dimension_numbers<[1], [0], [0], [1], [0, 0, 1, 1], [], []>} : vector<12x100xf32>, vector<100x512xf32>, vector<12x512xf32> -> vector<12x512xf32>
    %455 = vector.broadcast %347 : vector<12x1xf32> to vector<12x512xf32>
    %456 = arith.addf %454, %455 : vector<12x512xf32>
    %c4_179 = arith.constant 4 : index
    %c0_180 = arith.constant 0 : index
    %457 = vector.load %arg5[%c4_179, %c0_180] : memref<40x512xf32, #tpu.memory_space<vmem>>, vector<12x512xf32>
    tpu.vector_store %arg5[%c4_179, %c0_180], %456 {strides = array<i32>} : memref<40x512xf32, #tpu.memory_space<vmem>>, vector<12x512xf32>,
    %c16_181 = arith.constant 16 : index
    %c0_182 = arith.constant 0 : index
    %458 = vector.load %arg3[%c16_181, %c0_182] : memref<248x1xf32, #tpu.memory_space<vmem>>, vector<16x1xf32>
    %c32_183 = arith.constant 32 : index
    %c0_184 = arith.constant 0 : index
    %459 = vector.load %arg3[%c32_183, %c0_184] : memref<248x1xf32, #tpu.memory_space<vmem>>, vector<16x1xf32>
    %c208 = arith.constant 208 : index
    %c0_185 = arith.constant 0 : index
    %460 = vector.load %arg3[%c208, %c0_185] : memref<248x1xf32, #tpu.memory_space<vmem>>, vector<12x1xf32>
    %c0_186 = arith.constant 0 : index
    %c0_187 = arith.constant 0 : index
    %461 = vector.load %arg5[%c0_186, %c0_187] : memref<40x512xf32, #tpu.memory_space<vmem>>, vector<16x512xf32>
    %462 = vector.broadcast %458 : vector<16x1xf32> to vector<16x512xf32>
    %463 = arith.mulf %461, %462 : vector<16x512xf32>
    %464 = vector.broadcast %459 : vector<16x1xf32> to vector<16x512xf32>
    %465 = arith.addf %463, %464 : vector<16x512xf32>
    %cst_188 = arith.constant 0.000000e+00 : f32
    %466 = vector.broadcast %cst_188 : f32 to vector<16x512xf32>
    %467 = arith.maximumf %465, %466 : vector<16x512xf32>
    %c68_i32_189 = arith.constant 68 : i32
    %468 = tpu.dynamic_rotate %467 by %c68_i32_189 dim 1 : vector<16x512xf32>, i32 -> vector<16x512xf32>
    %469 = vector.broadcast %20 : vector<1x512xf32> to vector<16x512xf32>
    %470 = arith.mulf %468, %469 : vector<16x512xf32>
    %c0_190 = arith.constant 0 : index
    %c0_191 = arith.constant 0 : index
    %471 = vector.load %arg6[%c0_190, %c0_191] : memref<700x512xf32, #tpu.memory_space<vmem>>, vector<16x512xf32>
    tpu.vector_store %arg6[%c0_190, %c0_191], %470 {strides = array<i32>} : memref<700x512xf32, #tpu.memory_space<vmem>>, vector<16x512xf32>,
    %c66_i32_192 = arith.constant 66 : i32
    %472 = tpu.dynamic_rotate %467 by %c66_i32_192 dim 1 : vector<16x512xf32>, i32 -> vector<16x512xf32>
    %473 = vector.broadcast %34 : vector<1x512xf32> to vector<16x512xf32>
    %474 = arith.mulf %472, %473 : vector<16x512xf32>
    %c16_193 = arith.constant 16 : index
    %c0_194 = arith.constant 0 : index
    %475 = vector.load %arg6[%c16_193, %c0_194] : memref<700x512xf32, #tpu.memory_space<vmem>>, vector<16x512xf32>
    tpu.vector_store %arg6[%c16_193, %c0_194], %474 {strides = array<i32>} : memref<700x512xf32, #tpu.memory_space<vmem>>, vector<16x512xf32>,
    %c64_i32_195 = arith.constant 64 : i32
    %476 = tpu.dynamic_rotate %467 by %c64_i32_195 dim 1 : vector<16x512xf32>, i32 -> vector<16x512xf32>
    %477 = vector.broadcast %48 : vector<1x512xf32> to vector<16x512xf32>
    %478 = arith.mulf %476, %477 : vector<16x512xf32>
    %c32_196 = arith.constant 32 : index
    %c0_197 = arith.constant 0 : index
    %479 = vector.load %arg6[%c32_196, %c0_197] : memref<700x512xf32, #tpu.memory_space<vmem>>, vector<16x512xf32>
    tpu.vector_store %arg6[%c32_196, %c0_197], %478 {strides = array<i32>} : memref<700x512xf32, #tpu.memory_space<vmem>>, vector<16x512xf32>,
    %c62_i32_198 = arith.constant 62 : i32
    %480 = tpu.dynamic_rotate %467 by %c62_i32_198 dim 1 : vector<16x512xf32>, i32 -> vector<16x512xf32>
    %481 = vector.broadcast %62 : vector<1x512xf32> to vector<16x512xf32>
    %482 = arith.mulf %480, %481 : vector<16x512xf32>
    %c48_199 = arith.constant 48 : index
    %c0_200 = arith.constant 0 : index
    %483 = vector.load %arg6[%c48_199, %c0_200] : memref<700x512xf32, #tpu.memory_space<vmem>>, vector<16x512xf32>
    tpu.vector_store %arg6[%c48_199, %c0_200], %482 {strides = array<i32>} : memref<700x512xf32, #tpu.memory_space<vmem>>, vector<16x512xf32>,
    %c60_i32_201 = arith.constant 60 : i32
    %484 = tpu.dynamic_rotate %467 by %c60_i32_201 dim 1 : vector<16x512xf32>, i32 -> vector<16x512xf32>
    %485 = vector.broadcast %76 : vector<1x512xf32> to vector<16x512xf32>
    %486 = arith.mulf %484, %485 : vector<16x512xf32>
    %c64_202 = arith.constant 64 : index
    %c0_203 = arith.constant 0 : index
    %487 = vector.load %arg6[%c64_202, %c0_203] : memref<700x512xf32, #tpu.memory_space<vmem>>, vector<16x512xf32>
    tpu.vector_store %arg6[%c64_202, %c0_203], %486 {strides = array<i32>} : memref<700x512xf32, #tpu.memory_space<vmem>>, vector<16x512xf32>,
    %c36_i32_204 = arith.constant 36 : i32
    %488 = tpu.dynamic_rotate %467 by %c36_i32_204 dim 1 : vector<16x512xf32>, i32 -> vector<16x512xf32>
    %489 = vector.broadcast %90 : vector<1x512xf32> to vector<16x512xf32>
    %490 = arith.mulf %488, %489 : vector<16x512xf32>
    %c80_205 = arith.constant 80 : index
    %c0_206 = arith.constant 0 : index
    %491 = vector.load %arg6[%c80_205, %c0_206] : memref<700x512xf32, #tpu.memory_space<vmem>>, vector<16x512xf32>
    tpu.vector_store %arg6[%c80_205, %c0_206], %490 {strides = array<i32>} : memref<700x512xf32, #tpu.memory_space<vmem>>, vector<16x512xf32>,
    %c34_i32_207 = arith.constant 34 : i32
    %492 = tpu.dynamic_rotate %467 by %c34_i32_207 dim 1 : vector<16x512xf32>, i32 -> vector<16x512xf32>
    %493 = vector.broadcast %104 : vector<1x512xf32> to vector<16x512xf32>
    %494 = arith.mulf %492, %493 : vector<16x512xf32>
    %c96_208 = arith.constant 96 : index
    %c0_209 = arith.constant 0 : index
    %495 = vector.load %arg6[%c96_208, %c0_209] : memref<700x512xf32, #tpu.memory_space<vmem>>, vector<16x512xf32>
    tpu.vector_store %arg6[%c96_208, %c0_209], %494 {strides = array<i32>} : memref<700x512xf32, #tpu.memory_space<vmem>>, vector<16x512xf32>,
    %c32_i32_210 = arith.constant 32 : i32
    %496 = tpu.dynamic_rotate %467 by %c32_i32_210 dim 1 : vector<16x512xf32>, i32 -> vector<16x512xf32>
    %497 = vector.broadcast %118 : vector<1x512xf32> to vector<16x512xf32>
    %498 = arith.mulf %496, %497 : vector<16x512xf32>
    %c112 = arith.constant 112 : index
    %c0_211 = arith.constant 0 : index
    %499 = vector.load %arg6[%c112, %c0_211] : memref<700x512xf32, #tpu.memory_space<vmem>>, vector<16x512xf32>
    tpu.vector_store %arg6[%c112, %c0_211], %498 {strides = array<i32>} : memref<700x512xf32, #tpu.memory_space<vmem>>, vector<16x512xf32>,
    %c30_i32_212 = arith.constant 30 : i32
    %500 = tpu.dynamic_rotate %467 by %c30_i32_212 dim 1 : vector<16x512xf32>, i32 -> vector<16x512xf32>
    %501 = vector.broadcast %132 : vector<1x512xf32> to vector<16x512xf32>
    %502 = arith.mulf %500, %501 : vector<16x512xf32>
    %c128 = arith.constant 128 : index
    %c0_213 = arith.constant 0 : index
    %503 = vector.load %arg6[%c128, %c0_213] : memref<700x512xf32, #tpu.memory_space<vmem>>, vector<16x512xf32>
    tpu.vector_store %arg6[%c128, %c0_213], %502 {strides = array<i32>} : memref<700x512xf32, #tpu.memory_space<vmem>>, vector<16x512xf32>,
    %c28_i32_214 = arith.constant 28 : i32
    %504 = tpu.dynamic_rotate %467 by %c28_i32_214 dim 1 : vector<16x512xf32>, i32 -> vector<16x512xf32>
    %505 = vector.broadcast %146 : vector<1x512xf32> to vector<16x512xf32>
    %506 = arith.mulf %504, %505 : vector<16x512xf32>
    %c144 = arith.constant 144 : index
    %c0_215 = arith.constant 0 : index
    %507 = vector.load %arg6[%c144, %c0_215] : memref<700x512xf32, #tpu.memory_space<vmem>>, vector<16x512xf32>
    tpu.vector_store %arg6[%c144, %c0_215], %506 {strides = array<i32>} : memref<700x512xf32, #tpu.memory_space<vmem>>, vector<16x512xf32>,
    %c4_i32_216 = arith.constant 4 : i32
    %508 = tpu.dynamic_rotate %467 by %c4_i32_216 dim 1 : vector<16x512xf32>, i32 -> vector<16x512xf32>
    %509 = vector.broadcast %160 : vector<1x512xf32> to vector<16x512xf32>
    %510 = arith.mulf %508, %509 : vector<16x512xf32>
    %c160 = arith.constant 160 : index
    %c0_217 = arith.constant 0 : index
    %511 = vector.load %arg6[%c160, %c0_217] : memref<700x512xf32, #tpu.memory_space<vmem>>, vector<16x512xf32>
    tpu.vector_store %arg6[%c160, %c0_217], %510 {strides = array<i32>} : memref<700x512xf32, #tpu.memory_space<vmem>>, vector<16x512xf32>,
    %c2_i32_218 = arith.constant 2 : i32
    %512 = tpu.dynamic_rotate %467 by %c2_i32_218 dim 1 : vector<16x512xf32>, i32 -> vector<16x512xf32>
    %513 = vector.broadcast %174 : vector<1x512xf32> to vector<16x512xf32>
    %514 = arith.mulf %512, %513 : vector<16x512xf32>
    %c176 = arith.constant 176 : index
    %c0_219 = arith.constant 0 : index
    %515 = vector.load %arg6[%c176, %c0_219] : memref<700x512xf32, #tpu.memory_space<vmem>>, vector<16x512xf32>
    tpu.vector_store %arg6[%c176, %c0_219], %514 {strides = array<i32>} : memref<700x512xf32, #tpu.memory_space<vmem>>, vector<16x512xf32>,
    %c192_220 = arith.constant 192 : index
    %c0_221 = arith.constant 0 : index
    %516 = vector.load %arg6[%c192_220, %c0_221] : memref<700x512xf32, #tpu.memory_space<vmem>>, vector<16x512xf32>
    tpu.vector_store %arg6[%c192_220, %c0_221], %467 {strides = array<i32>} : memref<700x512xf32, #tpu.memory_space<vmem>>, vector<16x512xf32>,
    %c510_i32_222 = arith.constant 510 : i32
    %517 = tpu.dynamic_rotate %467 by %c510_i32_222 dim 1 : vector<16x512xf32>, i32 -> vector<16x512xf32>
    %518 = vector.broadcast %188 : vector<1x512xf32> to vector<16x512xf32>
    %519 = arith.mulf %517, %518 : vector<16x512xf32>
    %c208_223 = arith.constant 208 : index
    %c0_224 = arith.constant 0 : index
    %520 = vector.load %arg6[%c208_223, %c0_224] : memref<700x512xf32, #tpu.memory_space<vmem>>, vector<16x512xf32>
    tpu.vector_store %arg6[%c208_223, %c0_224], %519 {strides = array<i32>} : memref<700x512xf32, #tpu.memory_space<vmem>>, vector<16x512xf32>,
    %c508_i32_225 = arith.constant 508 : i32
    %521 = tpu.dynamic_rotate %467 by %c508_i32_225 dim 1 : vector<16x512xf32>, i32 -> vector<16x512xf32>
    %522 = vector.broadcast %202 : vector<1x512xf32> to vector<16x512xf32>
    %523 = arith.mulf %521, %522 : vector<16x512xf32>
    %c224 = arith.constant 224 : index
    %c0_226 = arith.constant 0 : index
    %524 = vector.load %arg6[%c224, %c0_226] : memref<700x512xf32, #tpu.memory_space<vmem>>, vector<16x512xf32>
    tpu.vector_store %arg6[%c224, %c0_226], %523 {strides = array<i32>} : memref<700x512xf32, #tpu.memory_space<vmem>>, vector<16x512xf32>,
    %c484_i32_227 = arith.constant 484 : i32
    %525 = tpu.dynamic_rotate %467 by %c484_i32_227 dim 1 : vector<16x512xf32>, i32 -> vector<16x512xf32>
    %526 = vector.broadcast %216 : vector<1x512xf32> to vector<16x512xf32>
    %527 = arith.mulf %525, %526 : vector<16x512xf32>
    %c240 = arith.constant 240 : index
    %c0_228 = arith.constant 0 : index
    %528 = vector.load %arg6[%c240, %c0_228] : memref<700x512xf32, #tpu.memory_space<vmem>>, vector<16x512xf32>
    tpu.vector_store %arg6[%c240, %c0_228], %527 {strides = array<i32>} : memref<700x512xf32, #tpu.memory_space<vmem>>, vector<16x512xf32>,
    %c482_i32_229 = arith.constant 482 : i32
    %529 = tpu.dynamic_rotate %467 by %c482_i32_229 dim 1 : vector<16x512xf32>, i32 -> vector<16x512xf32>
    %530 = vector.broadcast %230 : vector<1x512xf32> to vector<16x512xf32>
    %531 = arith.mulf %529, %530 : vector<16x512xf32>
    %c256 = arith.constant 256 : index
    %c0_230 = arith.constant 0 : index
    %532 = vector.load %arg6[%c256, %c0_230] : memref<700x512xf32, #tpu.memory_space<vmem>>, vector<16x512xf32>
    tpu.vector_store %arg6[%c256, %c0_230], %531 {strides = array<i32>} : memref<700x512xf32, #tpu.memory_space<vmem>>, vector<16x512xf32>,
    %c480_i32_231 = arith.constant 480 : i32
    %533 = tpu.dynamic_rotate %467 by %c480_i32_231 dim 1 : vector<16x512xf32>, i32 -> vector<16x512xf32>
    %534 = vector.broadcast %244 : vector<1x512xf32> to vector<16x512xf32>
    %535 = arith.mulf %533, %534 : vector<16x512xf32>
    %c272 = arith.constant 272 : index
    %c0_232 = arith.constant 0 : index
    %536 = vector.load %arg6[%c272, %c0_232] : memref<700x512xf32, #tpu.memory_space<vmem>>, vector<16x512xf32>
    tpu.vector_store %arg6[%c272, %c0_232], %535 {strides = array<i32>} : memref<700x512xf32, #tpu.memory_space<vmem>>, vector<16x512xf32>,
    %c478_i32_233 = arith.constant 478 : i32
    %537 = tpu.dynamic_rotate %467 by %c478_i32_233 dim 1 : vector<16x512xf32>, i32 -> vector<16x512xf32>
    %538 = vector.broadcast %258 : vector<1x512xf32> to vector<16x512xf32>
    %539 = arith.mulf %537, %538 : vector<16x512xf32>
    %c288 = arith.constant 288 : index
    %c0_234 = arith.constant 0 : index
    %540 = vector.load %arg6[%c288, %c0_234] : memref<700x512xf32, #tpu.memory_space<vmem>>, vector<16x512xf32>
    tpu.vector_store %arg6[%c288, %c0_234], %539 {strides = array<i32>} : memref<700x512xf32, #tpu.memory_space<vmem>>, vector<16x512xf32>,
    %c476_i32_235 = arith.constant 476 : i32
    %541 = tpu.dynamic_rotate %467 by %c476_i32_235 dim 1 : vector<16x512xf32>, i32 -> vector<16x512xf32>
    %542 = vector.broadcast %272 : vector<1x512xf32> to vector<16x512xf32>
    %543 = arith.mulf %541, %542 : vector<16x512xf32>
    %c304 = arith.constant 304 : index
    %c0_236 = arith.constant 0 : index
    %544 = vector.load %arg6[%c304, %c0_236] : memref<700x512xf32, #tpu.memory_space<vmem>>, vector<16x512xf32>
    tpu.vector_store %arg6[%c304, %c0_236], %543 {strides = array<i32>} : memref<700x512xf32, #tpu.memory_space<vmem>>, vector<16x512xf32>,
    %c452_i32_237 = arith.constant 452 : i32
    %545 = tpu.dynamic_rotate %467 by %c452_i32_237 dim 1 : vector<16x512xf32>, i32 -> vector<16x512xf32>
    %546 = vector.broadcast %286 : vector<1x512xf32> to vector<16x512xf32>
    %547 = arith.mulf %545, %546 : vector<16x512xf32>
    %c320 = arith.constant 320 : index
    %c0_238 = arith.constant 0 : index
    %548 = vector.load %arg6[%c320, %c0_238] : memref<700x512xf32, #tpu.memory_space<vmem>>, vector<16x512xf32>
    tpu.vector_store %arg6[%c320, %c0_238], %547 {strides = array<i32>} : memref<700x512xf32, #tpu.memory_space<vmem>>, vector<16x512xf32>,
    %c450_i32_239 = arith.constant 450 : i32
    %549 = tpu.dynamic_rotate %467 by %c450_i32_239 dim 1 : vector<16x512xf32>, i32 -> vector<16x512xf32>
    %550 = vector.broadcast %300 : vector<1x512xf32> to vector<16x512xf32>
    %551 = arith.mulf %549, %550 : vector<16x512xf32>
    %c336 = arith.constant 336 : index
    %c0_240 = arith.constant 0 : index
    %552 = vector.load %arg6[%c336, %c0_240] : memref<700x512xf32, #tpu.memory_space<vmem>>, vector<16x512xf32>
    tpu.vector_store %arg6[%c336, %c0_240], %551 {strides = array<i32>} : memref<700x512xf32, #tpu.memory_space<vmem>>, vector<16x512xf32>,
    %c448_i32_241 = arith.constant 448 : i32
    %553 = tpu.dynamic_rotate %467 by %c448_i32_241 dim 1 : vector<16x512xf32>, i32 -> vector<16x512xf32>
    %554 = vector.broadcast %314 : vector<1x512xf32> to vector<16x512xf32>
    %555 = arith.mulf %553, %554 : vector<16x512xf32>
    %c352 = arith.constant 352 : index
    %c0_242 = arith.constant 0 : index
    %556 = vector.load %arg6[%c352, %c0_242] : memref<700x512xf32, #tpu.memory_space<vmem>>, vector<16x512xf32>
    tpu.vector_store %arg6[%c352, %c0_242], %555 {strides = array<i32>} : memref<700x512xf32, #tpu.memory_space<vmem>>, vector<16x512xf32>,
    %c446_i32_243 = arith.constant 446 : i32
    %557 = tpu.dynamic_rotate %467 by %c446_i32_243 dim 1 : vector<16x512xf32>, i32 -> vector<16x512xf32>
    %558 = vector.broadcast %328 : vector<1x512xf32> to vector<16x512xf32>
    %559 = arith.mulf %557, %558 : vector<16x512xf32>
    %c368 = arith.constant 368 : index
    %c0_244 = arith.constant 0 : index
    %560 = vector.load %arg6[%c368, %c0_244] : memref<700x512xf32, #tpu.memory_space<vmem>>, vector<16x512xf32>
    tpu.vector_store %arg6[%c368, %c0_244], %559 {strides = array<i32>} : memref<700x512xf32, #tpu.memory_space<vmem>>, vector<16x512xf32>,
    %c444_i32_245 = arith.constant 444 : i32
    %561 = tpu.dynamic_rotate %467 by %c444_i32_245 dim 1 : vector<16x512xf32>, i32 -> vector<16x512xf32>
    %562 = vector.broadcast %342 : vector<1x512xf32> to vector<16x512xf32>
    %563 = arith.mulf %561, %562 : vector<16x512xf32>
    %c384 = arith.constant 384 : index
    %c0_246 = arith.constant 0 : index
    %564 = vector.load %arg6[%c384, %c0_246] : memref<700x512xf32, #tpu.memory_space<vmem>>, vector<16x512xf32>
    tpu.vector_store %arg6[%c384, %c0_246], %563 {strides = array<i32>} : memref<700x512xf32, #tpu.memory_space<vmem>>, vector<16x512xf32>,
    %c0_247 = arith.constant 0 : index
    %c128_248 = arith.constant 128 : index
    %565 = vector.load %arg2[%c0_247, %c128_248] : memref<12x1448xf32, #tpu.memory_space<vmem>>, vector<12x400xf32>
    %c0_249 = arith.constant 0 : index
    %c0_250 = arith.constant 0 : index
    %566 = vector.load %arg6[%c0_249, %c0_250] : memref<700x512xf32, #tpu.memory_space<vmem>>, vector<400x512xf32>
    %cst_251 = arith.constant dense<0.000000e+00> : vector<12x512xf32>
    %567 = tpu.matmul %565, %566, %cst_251 {dimension_numbers = #tpu.dot_dimension_numbers<[1], [0], [0], [1], [0, 0, 1, 1], [], []>} : vector<12x400xf32>, vector<400x512xf32>, vector<12x512xf32> -> vector<12x512xf32>
    %568 = vector.broadcast %460 : vector<12x1xf32> to vector<12x512xf32>
    %569 = arith.addf %567, %568 : vector<12x512xf32>
    %c16_252 = arith.constant 16 : index
    %c0_253 = arith.constant 0 : index
    %570 = vector.load %arg5[%c16_252, %c0_253] : memref<40x512xf32, #tpu.memory_space<vmem>>, vector<12x512xf32>
    tpu.vector_store %arg5[%c16_252, %c0_253], %569 {strides = array<i32>} : memref<40x512xf32, #tpu.memory_space<vmem>>, vector<12x512xf32>,
    %c48_254 = arith.constant 48 : index
    %c0_255 = arith.constant 0 : index
    %571 = vector.load %arg3[%c48_254, %c0_255] : memref<248x1xf32, #tpu.memory_space<vmem>>, vector<28x1xf32>
    %c80_256 = arith.constant 80 : index
    %c0_257 = arith.constant 0 : index
    %572 = vector.load %arg3[%c80_256, %c0_257] : memref<248x1xf32, #tpu.memory_space<vmem>>, vector<28x1xf32>
    %c224_258 = arith.constant 224 : index
    %c0_259 = arith.constant 0 : index
    %573 = vector.load %arg3[%c224_258, %c0_259] : memref<248x1xf32, #tpu.memory_space<vmem>>, vector<12x1xf32>
    %c0_260 = arith.constant 0 : index
    %c0_261 = arith.constant 0 : index
    %574 = vector.load %arg5[%c0_260, %c0_261] : memref<40x512xf32, #tpu.memory_space<vmem>>, vector<28x512xf32>
    %575 = vector.broadcast %571 : vector<28x1xf32> to vector<28x512xf32>
    %576 = arith.mulf %574, %575 : vector<28x512xf32>
    %577 = vector.broadcast %572 : vector<28x1xf32> to vector<28x512xf32>
    %578 = arith.addf %576, %577 : vector<28x512xf32>
    %cst_262 = arith.constant 0.000000e+00 : f32
    %579 = vector.broadcast %cst_262 : f32 to vector<28x512xf32>
    %580 = arith.maximumf %578, %579 : vector<28x512xf32>
    %c68_i32_263 = arith.constant 68 : i32
    %581 = tpu.dynamic_rotate %580 by %c68_i32_263 dim 1 : vector<28x512xf32>, i32 -> vector<28x512xf32>
    %582 = vector.broadcast %20 : vector<1x512xf32> to vector<28x512xf32>
    %583 = arith.mulf %581, %582 : vector<28x512xf32>
    %c0_264 = arith.constant 0 : index
    %c0_265 = arith.constant 0 : index
    %584 = vector.load %arg6[%c0_264, %c0_265] : memref<700x512xf32, #tpu.memory_space<vmem>>, vector<28x512xf32>
    tpu.vector_store %arg6[%c0_264, %c0_265], %583 {strides = array<i32>} : memref<700x512xf32, #tpu.memory_space<vmem>>, vector<28x512xf32>,
    %c66_i32_266 = arith.constant 66 : i32
    %585 = tpu.dynamic_rotate %580 by %c66_i32_266 dim 1 : vector<28x512xf32>, i32 -> vector<28x512xf32>
    %586 = vector.broadcast %34 : vector<1x512xf32> to vector<28x512xf32>
    %587 = arith.mulf %585, %586 : vector<28x512xf32>
    %c28_267 = arith.constant 28 : index
    %c0_268 = arith.constant 0 : index
    %588 = vector.load %arg6[%c28_267, %c0_268] : memref<700x512xf32, #tpu.memory_space<vmem>>, vector<28x512xf32>
    tpu.vector_store %arg6[%c28_267, %c0_268], %587 {strides = array<i32>} : memref<700x512xf32, #tpu.memory_space<vmem>>, vector<28x512xf32>,
    %c64_i32_269 = arith.constant 64 : i32
    %589 = tpu.dynamic_rotate %580 by %c64_i32_269 dim 1 : vector<28x512xf32>, i32 -> vector<28x512xf32>
    %590 = vector.broadcast %48 : vector<1x512xf32> to vector<28x512xf32>
    %591 = arith.mulf %589, %590 : vector<28x512xf32>
    %c56_270 = arith.constant 56 : index
    %c0_271 = arith.constant 0 : index
    %592 = vector.load %arg6[%c56_270, %c0_271] : memref<700x512xf32, #tpu.memory_space<vmem>>, vector<28x512xf32>
    tpu.vector_store %arg6[%c56_270, %c0_271], %591 {strides = array<i32>} : memref<700x512xf32, #tpu.memory_space<vmem>>, vector<28x512xf32>,
    %c62_i32_272 = arith.constant 62 : i32
    %593 = tpu.dynamic_rotate %580 by %c62_i32_272 dim 1 : vector<28x512xf32>, i32 -> vector<28x512xf32>
    %594 = vector.broadcast %62 : vector<1x512xf32> to vector<28x512xf32>
    %595 = arith.mulf %593, %594 : vector<28x512xf32>
    %c84_273 = arith.constant 84 : index
    %c0_274 = arith.constant 0 : index
    %596 = vector.load %arg6[%c84_273, %c0_274] : memref<700x512xf32, #tpu.memory_space<vmem>>, vector<28x512xf32>
    tpu.vector_store %arg6[%c84_273, %c0_274], %595 {strides = array<i32>} : memref<700x512xf32, #tpu.memory_space<vmem>>, vector<28x512xf32>,
    %c60_i32_275 = arith.constant 60 : i32
    %597 = tpu.dynamic_rotate %580 by %c60_i32_275 dim 1 : vector<28x512xf32>, i32 -> vector<28x512xf32>
    %598 = vector.broadcast %76 : vector<1x512xf32> to vector<28x512xf32>
    %599 = arith.mulf %597, %598 : vector<28x512xf32>
    %c112_276 = arith.constant 112 : index
    %c0_277 = arith.constant 0 : index
    %600 = vector.load %arg6[%c112_276, %c0_277] : memref<700x512xf32, #tpu.memory_space<vmem>>, vector<28x512xf32>
    tpu.vector_store %arg6[%c112_276, %c0_277], %599 {strides = array<i32>} : memref<700x512xf32, #tpu.memory_space<vmem>>, vector<28x512xf32>,
    %c36_i32_278 = arith.constant 36 : i32
    %601 = tpu.dynamic_rotate %580 by %c36_i32_278 dim 1 : vector<28x512xf32>, i32 -> vector<28x512xf32>
    %602 = vector.broadcast %90 : vector<1x512xf32> to vector<28x512xf32>
    %603 = arith.mulf %601, %602 : vector<28x512xf32>
    %c140 = arith.constant 140 : index
    %c0_279 = arith.constant 0 : index
    %604 = vector.load %arg6[%c140, %c0_279] : memref<700x512xf32, #tpu.memory_space<vmem>>, vector<28x512xf32>
    tpu.vector_store %arg6[%c140, %c0_279], %603 {strides = array<i32>} : memref<700x512xf32, #tpu.memory_space<vmem>>, vector<28x512xf32>,
    %c34_i32_280 = arith.constant 34 : i32
    %605 = tpu.dynamic_rotate %580 by %c34_i32_280 dim 1 : vector<28x512xf32>, i32 -> vector<28x512xf32>
    %606 = vector.broadcast %104 : vector<1x512xf32> to vector<28x512xf32>
    %607 = arith.mulf %605, %606 : vector<28x512xf32>
    %c168 = arith.constant 168 : index
    %c0_281 = arith.constant 0 : index
    %608 = vector.load %arg6[%c168, %c0_281] : memref<700x512xf32, #tpu.memory_space<vmem>>, vector<28x512xf32>
    tpu.vector_store %arg6[%c168, %c0_281], %607 {strides = array<i32>} : memref<700x512xf32, #tpu.memory_space<vmem>>, vector<28x512xf32>,
    %c32_i32_282 = arith.constant 32 : i32
    %609 = tpu.dynamic_rotate %580 by %c32_i32_282 dim 1 : vector<28x512xf32>, i32 -> vector<28x512xf32>
    %610 = vector.broadcast %118 : vector<1x512xf32> to vector<28x512xf32>
    %611 = arith.mulf %609, %610 : vector<28x512xf32>
    %c196 = arith.constant 196 : index
    %c0_283 = arith.constant 0 : index
    %612 = vector.load %arg6[%c196, %c0_283] : memref<700x512xf32, #tpu.memory_space<vmem>>, vector<28x512xf32>
    tpu.vector_store %arg6[%c196, %c0_283], %611 {strides = array<i32>} : memref<700x512xf32, #tpu.memory_space<vmem>>, vector<28x512xf32>,
    %c30_i32_284 = arith.constant 30 : i32
    %613 = tpu.dynamic_rotate %580 by %c30_i32_284 dim 1 : vector<28x512xf32>, i32 -> vector<28x512xf32>
    %614 = vector.broadcast %132 : vector<1x512xf32> to vector<28x512xf32>
    %615 = arith.mulf %613, %614 : vector<28x512xf32>
    %c224_285 = arith.constant 224 : index
    %c0_286 = arith.constant 0 : index
    %616 = vector.load %arg6[%c224_285, %c0_286] : memref<700x512xf32, #tpu.memory_space<vmem>>, vector<28x512xf32>
    tpu.vector_store %arg6[%c224_285, %c0_286], %615 {strides = array<i32>} : memref<700x512xf32, #tpu.memory_space<vmem>>, vector<28x512xf32>,
    %c28_i32_287 = arith.constant 28 : i32
    %617 = tpu.dynamic_rotate %580 by %c28_i32_287 dim 1 : vector<28x512xf32>, i32 -> vector<28x512xf32>
    %618 = vector.broadcast %146 : vector<1x512xf32> to vector<28x512xf32>
    %619 = arith.mulf %617, %618 : vector<28x512xf32>
    %c252 = arith.constant 252 : index
    %c0_288 = arith.constant 0 : index
    %620 = vector.load %arg6[%c252, %c0_288] : memref<700x512xf32, #tpu.memory_space<vmem>>, vector<28x512xf32>
    tpu.vector_store %arg6[%c252, %c0_288], %619 {strides = array<i32>} : memref<700x512xf32, #tpu.memory_space<vmem>>, vector<28x512xf32>,
    %c4_i32_289 = arith.constant 4 : i32
    %621 = tpu.dynamic_rotate %580 by %c4_i32_289 dim 1 : vector<28x512xf32>, i32 -> vector<28x512xf32>
    %622 = vector.broadcast %160 : vector<1x512xf32> to vector<28x512xf32>
    %623 = arith.mulf %621, %622 : vector<28x512xf32>
    %c280 = arith.constant 280 : index
    %c0_290 = arith.constant 0 : index
    %624 = vector.load %arg6[%c280, %c0_290] : memref<700x512xf32, #tpu.memory_space<vmem>>, vector<28x512xf32>
    tpu.vector_store %arg6[%c280, %c0_290], %623 {strides = array<i32>} : memref<700x512xf32, #tpu.memory_space<vmem>>, vector<28x512xf32>,
    %c2_i32_291 = arith.constant 2 : i32
    %625 = tpu.dynamic_rotate %580 by %c2_i32_291 dim 1 : vector<28x512xf32>, i32 -> vector<28x512xf32>
    %626 = vector.broadcast %174 : vector<1x512xf32> to vector<28x512xf32>
    %627 = arith.mulf %625, %626 : vector<28x512xf32>
    %c308 = arith.constant 308 : index
    %c0_292 = arith.constant 0 : index
    %628 = vector.load %arg6[%c308, %c0_292] : memref<700x512xf32, #tpu.memory_space<vmem>>, vector<28x512xf32>
    tpu.vector_store %arg6[%c308, %c0_292], %627 {strides = array<i32>} : memref<700x512xf32, #tpu.memory_space<vmem>>, vector<28x512xf32>,
    %c336_293 = arith.constant 336 : index
    %c0_294 = arith.constant 0 : index
    %629 = vector.load %arg6[%c336_293, %c0_294] : memref<700x512xf32, #tpu.memory_space<vmem>>, vector<28x512xf32>
    tpu.vector_store %arg6[%c336_293, %c0_294], %580 {strides = array<i32>} : memref<700x512xf32, #tpu.memory_space<vmem>>, vector<28x512xf32>,
    %c510_i32_295 = arith.constant 510 : i32
    %630 = tpu.dynamic_rotate %580 by %c510_i32_295 dim 1 : vector<28x512xf32>, i32 -> vector<28x512xf32>
    %631 = vector.broadcast %188 : vector<1x512xf32> to vector<28x512xf32>
    %632 = arith.mulf %630, %631 : vector<28x512xf32>
    %c364 = arith.constant 364 : index
    %c0_296 = arith.constant 0 : index
    %633 = vector.load %arg6[%c364, %c0_296] : memref<700x512xf32, #tpu.memory_space<vmem>>, vector<28x512xf32>
    tpu.vector_store %arg6[%c364, %c0_296], %632 {strides = array<i32>} : memref<700x512xf32, #tpu.memory_space<vmem>>, vector<28x512xf32>,
    %c508_i32_297 = arith.constant 508 : i32
    %634 = tpu.dynamic_rotate %580 by %c508_i32_297 dim 1 : vector<28x512xf32>, i32 -> vector<28x512xf32>
    %635 = vector.broadcast %202 : vector<1x512xf32> to vector<28x512xf32>
    %636 = arith.mulf %634, %635 : vector<28x512xf32>
    %c392 = arith.constant 392 : index
    %c0_298 = arith.constant 0 : index
    %637 = vector.load %arg6[%c392, %c0_298] : memref<700x512xf32, #tpu.memory_space<vmem>>, vector<28x512xf32>
    tpu.vector_store %arg6[%c392, %c0_298], %636 {strides = array<i32>} : memref<700x512xf32, #tpu.memory_space<vmem>>, vector<28x512xf32>,
    %c484_i32_299 = arith.constant 484 : i32
    %638 = tpu.dynamic_rotate %580 by %c484_i32_299 dim 1 : vector<28x512xf32>, i32 -> vector<28x512xf32>
    %639 = vector.broadcast %216 : vector<1x512xf32> to vector<28x512xf32>
    %640 = arith.mulf %638, %639 : vector<28x512xf32>
    %c420 = arith.constant 420 : index
    %c0_300 = arith.constant 0 : index
    %641 = vector.load %arg6[%c420, %c0_300] : memref<700x512xf32, #tpu.memory_space<vmem>>, vector<28x512xf32>
    tpu.vector_store %arg6[%c420, %c0_300], %640 {strides = array<i32>} : memref<700x512xf32, #tpu.memory_space<vmem>>, vector<28x512xf32>,
    %c482_i32_301 = arith.constant 482 : i32
    %642 = tpu.dynamic_rotate %580 by %c482_i32_301 dim 1 : vector<28x512xf32>, i32 -> vector<28x512xf32>
    %643 = vector.broadcast %230 : vector<1x512xf32> to vector<28x512xf32>
    %644 = arith.mulf %642, %643 : vector<28x512xf32>
    %c448 = arith.constant 448 : index
    %c0_302 = arith.constant 0 : index
    %645 = vector.load %arg6[%c448, %c0_302] : memref<700x512xf32, #tpu.memory_space<vmem>>, vector<28x512xf32>
    tpu.vector_store %arg6[%c448, %c0_302], %644 {strides = array<i32>} : memref<700x512xf32, #tpu.memory_space<vmem>>, vector<28x512xf32>,
    %c480_i32_303 = arith.constant 480 : i32
    %646 = tpu.dynamic_rotate %580 by %c480_i32_303 dim 1 : vector<28x512xf32>, i32 -> vector<28x512xf32>
    %647 = vector.broadcast %244 : vector<1x512xf32> to vector<28x512xf32>
    %648 = arith.mulf %646, %647 : vector<28x512xf32>
    %c476 = arith.constant 476 : index
    %c0_304 = arith.constant 0 : index
    %649 = vector.load %arg6[%c476, %c0_304] : memref<700x512xf32, #tpu.memory_space<vmem>>, vector<28x512xf32>
    tpu.vector_store %arg6[%c476, %c0_304], %648 {strides = array<i32>} : memref<700x512xf32, #tpu.memory_space<vmem>>, vector<28x512xf32>,
    %c478_i32_305 = arith.constant 478 : i32
    %650 = tpu.dynamic_rotate %580 by %c478_i32_305 dim 1 : vector<28x512xf32>, i32 -> vector<28x512xf32>
    %651 = vector.broadcast %258 : vector<1x512xf32> to vector<28x512xf32>
    %652 = arith.mulf %650, %651 : vector<28x512xf32>
    %c504 = arith.constant 504 : index
    %c0_306 = arith.constant 0 : index
    %653 = vector.load %arg6[%c504, %c0_306] : memref<700x512xf32, #tpu.memory_space<vmem>>, vector<28x512xf32>
    tpu.vector_store %arg6[%c504, %c0_306], %652 {strides = array<i32>} : memref<700x512xf32, #tpu.memory_space<vmem>>, vector<28x512xf32>,
    %c476_i32_307 = arith.constant 476 : i32
    %654 = tpu.dynamic_rotate %580 by %c476_i32_307 dim 1 : vector<28x512xf32>, i32 -> vector<28x512xf32>
    %655 = vector.broadcast %272 : vector<1x512xf32> to vector<28x512xf32>
    %656 = arith.mulf %654, %655 : vector<28x512xf32>
    %c532 = arith.constant 532 : index
    %c0_308 = arith.constant 0 : index
    %657 = vector.load %arg6[%c532, %c0_308] : memref<700x512xf32, #tpu.memory_space<vmem>>, vector<28x512xf32>
    tpu.vector_store %arg6[%c532, %c0_308], %656 {strides = array<i32>} : memref<700x512xf32, #tpu.memory_space<vmem>>, vector<28x512xf32>,
    %c452_i32_309 = arith.constant 452 : i32
    %658 = tpu.dynamic_rotate %580 by %c452_i32_309 dim 1 : vector<28x512xf32>, i32 -> vector<28x512xf32>
    %659 = vector.broadcast %286 : vector<1x512xf32> to vector<28x512xf32>
    %660 = arith.mulf %658, %659 : vector<28x512xf32>
    %c560 = arith.constant 560 : index
    %c0_310 = arith.constant 0 : index
    %661 = vector.load %arg6[%c560, %c0_310] : memref<700x512xf32, #tpu.memory_space<vmem>>, vector<28x512xf32>
    tpu.vector_store %arg6[%c560, %c0_310], %660 {strides = array<i32>} : memref<700x512xf32, #tpu.memory_space<vmem>>, vector<28x512xf32>,
    %c450_i32_311 = arith.constant 450 : i32
    %662 = tpu.dynamic_rotate %580 by %c450_i32_311 dim 1 : vector<28x512xf32>, i32 -> vector<28x512xf32>
    %663 = vector.broadcast %300 : vector<1x512xf32> to vector<28x512xf32>
    %664 = arith.mulf %662, %663 : vector<28x512xf32>
    %c588 = arith.constant 588 : index
    %c0_312 = arith.constant 0 : index
    %665 = vector.load %arg6[%c588, %c0_312] : memref<700x512xf32, #tpu.memory_space<vmem>>, vector<28x512xf32>
    tpu.vector_store %arg6[%c588, %c0_312], %664 {strides = array<i32>} : memref<700x512xf32, #tpu.memory_space<vmem>>, vector<28x512xf32>,
    %c448_i32_313 = arith.constant 448 : i32
    %666 = tpu.dynamic_rotate %580 by %c448_i32_313 dim 1 : vector<28x512xf32>, i32 -> vector<28x512xf32>
    %667 = vector.broadcast %314 : vector<1x512xf32> to vector<28x512xf32>
    %668 = arith.mulf %666, %667 : vector<28x512xf32>
    %c616 = arith.constant 616 : index
    %c0_314 = arith.constant 0 : index
    %669 = vector.load %arg6[%c616, %c0_314] : memref<700x512xf32, #tpu.memory_space<vmem>>, vector<28x512xf32>
    tpu.vector_store %arg6[%c616, %c0_314], %668 {strides = array<i32>} : memref<700x512xf32, #tpu.memory_space<vmem>>, vector<28x512xf32>,
    %c446_i32_315 = arith.constant 446 : i32
    %670 = tpu.dynamic_rotate %580 by %c446_i32_315 dim 1 : vector<28x512xf32>, i32 -> vector<28x512xf32>
    %671 = vector.broadcast %328 : vector<1x512xf32> to vector<28x512xf32>
    %672 = arith.mulf %670, %671 : vector<28x512xf32>
    %c644 = arith.constant 644 : index
    %c0_316 = arith.constant 0 : index
    %673 = vector.load %arg6[%c644, %c0_316] : memref<700x512xf32, #tpu.memory_space<vmem>>, vector<28x512xf32>
    tpu.vector_store %arg6[%c644, %c0_316], %672 {strides = array<i32>} : memref<700x512xf32, #tpu.memory_space<vmem>>, vector<28x512xf32>,
    %c444_i32_317 = arith.constant 444 : i32
    %674 = tpu.dynamic_rotate %580 by %c444_i32_317 dim 1 : vector<28x512xf32>, i32 -> vector<28x512xf32>
    %675 = vector.broadcast %342 : vector<1x512xf32> to vector<28x512xf32>
    %676 = arith.mulf %674, %675 : vector<28x512xf32>
    %c672 = arith.constant 672 : index
    %c0_318 = arith.constant 0 : index
    %677 = vector.load %arg6[%c672, %c0_318] : memref<700x512xf32, #tpu.memory_space<vmem>>, vector<28x512xf32>
    tpu.vector_store %arg6[%c672, %c0_318], %676 {strides = array<i32>} : memref<700x512xf32, #tpu.memory_space<vmem>>, vector<28x512xf32>,
    %c0_319 = arith.constant 0 : index
    %c640 = arith.constant 640 : index
    %678 = vector.load %arg2[%c0_319, %c640] : memref<12x1448xf32, #tpu.memory_space<vmem>>, vector<12x700xf32>
    %c0_320 = arith.constant 0 : index
    %c0_321 = arith.constant 0 : index
    %679 = vector.load %arg6[%c0_320, %c0_321] : memref<700x512xf32, #tpu.memory_space<vmem>>, vector<700x512xf32>
    %cst_322 = arith.constant dense<0.000000e+00> : vector<12x512xf32>
    %680 = tpu.matmul %678, %679, %cst_322 {dimension_numbers = #tpu.dot_dimension_numbers<[1], [0], [0], [1], [0, 0, 1, 1], [], []>} : vector<12x700xf32>, vector<700x512xf32>, vector<12x512xf32> -> vector<12x512xf32>
    %681 = vector.broadcast %573 : vector<12x1xf32> to vector<12x512xf32>
    %682 = arith.addf %680, %681 : vector<12x512xf32>
    %c28_323 = arith.constant 28 : index
    %c0_324 = arith.constant 0 : index
    %683 = vector.load %arg5[%c28_323, %c0_324] : memref<40x512xf32, #tpu.memory_space<vmem>>, vector<12x512xf32>
    tpu.vector_store %arg5[%c28_323, %c0_324], %682 {strides = array<i32>} : memref<40x512xf32, #tpu.memory_space<vmem>>, vector<12x512xf32>,
    %c112_325 = arith.constant 112 : index
    %c0_326 = arith.constant 0 : index
    %684 = vector.load %arg3[%c112_325, %c0_326] : memref<248x1xf32, #tpu.memory_space<vmem>>, vector<40x1xf32>
    %c152 = arith.constant 152 : index
    %c0_327 = arith.constant 0 : index
    %685 = vector.load %arg3[%c152, %c0_327] : memref<248x1xf32, #tpu.memory_space<vmem>>, vector<40x1xf32>
    %c240_328 = arith.constant 240 : index
    %c0_329 = arith.constant 0 : index
    %686 = vector.load %arg3[%c240_328, %c0_329] : memref<248x1xf32, #tpu.memory_space<vmem>>, vector<8x1xf32>
    %c0_330 = arith.constant 0 : index
    %c0_331 = arith.constant 0 : index
    %687 = vector.load %arg5[%c0_330, %c0_331] : memref<40x512xf32, #tpu.memory_space<vmem>>, vector<40x512xf32>
    %688 = vector.broadcast %684 : vector<40x1xf32> to vector<40x512xf32>
    %689 = arith.mulf %687, %688 : vector<40x512xf32>
    %690 = vector.broadcast %685 : vector<40x1xf32> to vector<40x512xf32>
    %691 = arith.addf %689, %690 : vector<40x512xf32>
    %cst_332 = arith.constant 0.000000e+00 : f32
    %692 = vector.broadcast %cst_332 : f32 to vector<40x512xf32>
    %693 = arith.maximumf %691, %692 : vector<40x512xf32>
    %c0_333 = arith.constant 0 : index
    %c1408 = arith.constant 1408 : index
    %694 = vector.load %arg2[%c0_333, %c1408] : memref<12x1448xf32, #tpu.memory_space<vmem>>, vector<8x40xf32>
    %cst_334 = arith.constant dense<0.000000e+00> : vector<8x512xf32>
    %695 = tpu.matmul %694, %693, %cst_334 {dimension_numbers = #tpu.dot_dimension_numbers<[1], [0], [0], [1], [0, 0, 1, 1], [], []>} : vector<8x40xf32>, vector<40x512xf32>, vector<8x512xf32> -> vector<8x512xf32>
    %696 = vector.broadcast %686 : vector<8x1xf32> to vector<8x512xf32>
    %697 = arith.addf %695, %696 : vector<8x512xf32>
    %698 = tpu.iota {dimensions = array<i32: 0>} : vector<512x128xi32>
    %699 = tpu.iota {dimensions = array<i32: 1>} : vector<512x128xi32>
    %c8_i32 = arith.constant 8 : i32
    %700 = vector.broadcast %c8_i32 : i32 to vector<512x128xi32>
    %701 = arith.shrsi %698, %700 : vector<512x128xi32>
    %c4_i32_335 = arith.constant 4 : i32
    %702 = vector.broadcast %c4_i32_335 : i32 to vector<512x128xi32>
    %703 = arith.shrsi %698, %702 : vector<512x128xi32>
    %c15_i32_336 = arith.constant 15 : i32
    %704 = vector.broadcast %c15_i32_336 : i32 to vector<512x128xi32>
    %705 = arith.andi %703, %704 : vector<512x128xi32>
    %c15_i32_337 = arith.constant 15 : i32
    %706 = vector.broadcast %c15_i32_337 : i32 to vector<512x128xi32>
    %707 = arith.andi %698, %706 : vector<512x128xi32>
    %c6_i32 = arith.constant 6 : i32
    %708 = vector.broadcast %c6_i32 : i32 to vector<512x128xi32>
    %709 = arith.shli %701, %708 : vector<512x128xi32>
    %c1_i32 = arith.constant 1 : i32
    %710 = vector.broadcast %c1_i32 : i32 to vector<512x128xi32>
    %711 = arith.shrsi %705, %710 : vector<512x128xi32>
    %c3_i32 = arith.constant 3 : i32
    %712 = vector.broadcast %c3_i32 : i32 to vector<512x128xi32>
    %713 = arith.shli %711, %712 : vector<512x128xi32>
    %714 = arith.addi %709, %713 : vector<512x128xi32>
    %c1_i32_338 = arith.constant 1 : i32
    %715 = vector.broadcast %c1_i32_338 : i32 to vector<512x128xi32>
    %716 = arith.shrsi %707, %715 : vector<512x128xi32>
    %717 = arith.addi %714, %716 : vector<512x128xi32>
    %718 = arith.cmpi eq, %717, %699 : vector<512x128xi32>
    %cst_339 = arith.constant 2.500000e-01 : f32
    %cst_340 = arith.constant 0.000000e+00 : f32
    %719 = vector.broadcast %cst_339 : f32 to vector<512x128xf32>
    %720 = vector.broadcast %cst_340 : f32 to vector<512x128xf32>
    %721 = arith.select %718, %719, %720 : vector<512x128xi1>, vector<512x128xf32>
    %cst_341 = arith.constant dense<0.000000e+00> : vector<8x128xf32>
    %722 = tpu.matmul %697, %721, %cst_341 {dimension_numbers = #tpu.dot_dimension_numbers<[1], [0], [0], [1], [0, 0, 1, 1], [], []>} : vector<8x512xf32>, vector<512x128xf32>, vector<8x128xf32> -> vector<8x128xf32>
    %c0_342 = arith.constant 0 : index
    %c0_343 = arith.constant 0 : index
    %723 = vector.load %arg4[%c0_342, %c0_343] : memref<8x128xf32, #tpu.memory_space<vmem>>, vector<8x128xf32>
    tpu.vector_store %arg4[%c0_342, %c0_343], %722 {strides = array<i32>} : memref<8x128xf32, #tpu.memory_space<vmem>>, vector<8x128xf32>,
    return
  }
  func.func @transform_0(%arg0: i32) -> (i32, i32) {
    %c0_i32 = arith.constant 0 : i32
    %c0_i32_0 = arith.constant 0 : i32
    %c0_i32_1 = arith.constant 0 : i32
    return %c0_i32, %c0_i32_0 : i32, i32
  }
  func.func @transform_1(%arg0: i32) -> (i32, i32) {
    %c0_i32 = arith.constant 0 : i32
    %c0_i32_0 = arith.constant 0 : i32
    %c0_i32_1 = arith.constant 0 : i32
    return %c0_i32, %c0_i32_0 : i32, i32
  }
  func.func @transform_2(%arg0: i32) -> (i32, i32) {
    %c0_i32 = arith.constant 0 : i32
    %c0_i32_0 = arith.constant 0 : i32
    %c0_i32_1 = arith.constant 0 : i32
    return %c0_i32, %c0_i32_0 : i32, i32
  }
  func.func @transform_3(%arg0: i32) -> (i32, i32) {
    %c0_i32 = arith.constant 0 : i32
    %c0_i32_0 = arith.constant 0 : i32
    %c0_i32_1 = arith.constant 0 : i32
    return %c0_i32, %c0_i32_0 : i32, i32
  }
}

</mosaic_0001>

<llo_original>
// kernel: tpu_custom_call.1
$region0: #{tpu_custom_call.1}
  #allocation0 [shape = 'u32[]', space=smem, size = 0x4, offset = 0x4, fixed_abs, tag = 'smem constant byte address 0x4 - core index']
  #allocation1 [shape = 'u32[144,128]{1,0:T(1,128)}', space=vmem, size = 0x12000, scoped, tag = 'internal scratch']
  #allocation2 [shape = 'f32[40,512]{1,0:T(8,128)}', space=vmem, size = 0x14000, scoped, tag = 'scratch operand']
  #allocation3 [shape = 'f32[700,512]{1,0:T(8,128)}', space=vmem, size = 0x160000, scoped, tag = 'scratch operand']
  %s0 = inlined_call_operand.vmem [shape: f32[4,512], index: 0, kind: input, shape index: {}]
  %s1 = inlined_call_operand.vmem [shape: f32[12,1448], index: 1, kind: input, shape index: {}]
  %s2 = inlined_call_operand.vmem [shape: f32[248,1], index: 2, kind: input, shape index: {}]
  %s3 = inlined_call_operand.hbm [shape: f32[8,128], index: 3, kind: output, shape index: {}]
  %s4 = sld [smem:[#allocation0]]
  $region22: #{tpu_custom_call.1} parent=0
    _
  %s6 = ssub.s32 1, %s4
  %s7 = scalar_select 0, %s6, %s4
  $region1: #{tpu_custom_call.1} parent=0
    #allocation4 [shape = 'u8[4096]{0}', space=vmem, size = 0x1000, scoped, tag = 'output window, operand 0, single buffered']
    #allocation5 [shape = 's32[1]{0}', space=sflag, size = 0x4, scoped, tag = 'scoped memory for tpu_custom_call.1']
    %8 = vsyncpa [#allocation5], 0
    // Predicated region
    $region2: #{tpu_custom_call.1} parent=1 // pred_check
      _
    $region3: #{tpu_custom_call.1} parent=1 // pred_check_branch
      %10 = sbr.rel (0) target = $region5
    $region4: #{tpu_custom_call.1} parent=1 // pred_region
      _
    $region5: #{tpu_custom_call.1} parent=1 // pred_fallthru
      _
    // Predicated region
    $region6: #{tpu_custom_call.1} parent=1 // pred_check
      _
    $region7: #{tpu_custom_call.1} parent=1 // pred_check_branch
      %12 = sbr.rel (0) target = $region9
    $region8: #{tpu_custom_call.1} parent=1 // pred_region
      _
    $region9: #{tpu_custom_call.1} parent=1 // pred_fallthru
      _
    // Predicated region
    $region10: #{tpu_custom_call.1} parent=1 // pred_check
      _
    $region11: #{tpu_custom_call.1} parent=1 // pred_check_branch
      %14 = sbr.rel (0) target = $region13
    $region12: #{tpu_custom_call.1} parent=1 // pred_region
      _
    $region13: #{tpu_custom_call.1} parent=1 // pred_fallthru
      _
    %v15 = vlaneseq
    %v16 = vand.u32 %v15, 127
    %v17 = vadd.s32 %v16, 128
    %v18 = vadd.s32 %v16, 256
    %v19 = vadd.s32 %v16, 384
    %v20 = vshra.s32 %v16, 4
    %v21 = vshra.s32 %v17, 4
    %v22 = vshra.s32 %v18, 4
    %v23 = vshra.s32 %v19, 4
    %v24 = vand.u32 %v20, 15
    %v25 = vand.u32 %v21, 15
    %v26 = vand.u32 %v22, 15
    %v27 = vand.u32 %v23, 15
    %v28 = vand.u32 %v16, 15
    %v29 = vand.u32 %v17, 15
    %v30 = vand.u32 %v18, 15
    %v31 = vand.u32 %v19, 15
    %vm32 = vcmp.ge.s32.totalorder %v24, 4
    %vm33 = vcmp.ge.s32.totalorder %v25, 4
    %vm34 = vcmp.ge.s32.totalorder %v26, 4
    %vm35 = vcmp.ge.s32.totalorder %v27, 4
    %vm36 = vcmp.lt.s32.totalorder %v24, 20
    %vm37 = vcmp.lt.s32.totalorder %v25, 20
    %vm38 = vcmp.lt.s32.totalorder %v26, 20
    %vm39 = vcmp.lt.s32.totalorder %v27, 20
    %vm40 = vmand %vm32, %vm36
    %vm41 = vmand %vm33, %vm37
    %vm42 = vmand %vm34, %vm38
    %vm43 = vmand %vm35, %vm39
    %vm44 = vcmp.ge.s32.totalorder %v28, 4
    %vm45 = vcmp.ge.s32.totalorder %v29, 4
    %vm46 = vcmp.ge.s32.totalorder %v30, 4
    %vm47 = vcmp.ge.s32.totalorder %v31, 4
    %vm48 = vmand %vm40, %vm44
    %vm49 = vmand %vm41, %vm45
    %vm50 = vmand %vm42, %vm46
    %vm51 = vmand %vm43, %vm47
    %vm52 = vcmp.lt.s32.totalorder %v28, 20
    %vm53 = vcmp.lt.s32.totalorder %v29, 20
    %vm54 = vcmp.lt.s32.totalorder %v30, 20
    %vm55 = vcmp.lt.s32.totalorder %v31, 20
    %vm56 = vmand %vm48, %vm52
    %vm57 = vmand %vm49, %vm53
    %vm58 = vmand %vm50, %vm54
    %vm59 = vmand %vm51, %vm55
    %v60 = vsel %vm56, 1.0, 0.0
    %v61 = vsel %vm57, 1.0, 0.0
    %v62 = vsel %vm58, 1.0, 0.0
    %v63 = vsel %vm59, 1.0, 0.0
    %vm64 = vcmp.ge.s32.totalorder %v28, 2
    %vm65 = vcmp.ge.s32.totalorder %v29, 2
    %vm66 = vcmp.ge.s32.totalorder %v30, 2
    %vm67 = vcmp.ge.s32.totalorder %v31, 2
    %vm68 = vmand %vm40, %vm64
    %vm69 = vmand %vm41, %vm65
    %vm70 = vmand %vm42, %vm66
    %vm71 = vmand %vm43, %vm67
    %vm72 = vcmp.lt.s32.totalorder %v28, 18
    %vm73 = vcmp.lt.s32.totalorder %v29, 18
    %vm74 = vcmp.lt.s32.totalorder %v30, 18
    %vm75 = vcmp.lt.s32.totalorder %v31, 18
    %vm76 = vmand %vm68, %vm72
    %vm77 = vmand %vm69, %vm73
    %vm78 = vmand %vm70, %vm74
    %vm79 = vmand %vm71, %vm75
    %v80 = vsel %vm76, 1.0, 0.0
    %v81 = vsel %vm77, 1.0, 0.0
    %v82 = vsel %vm78, 1.0, 0.0
    %v83 = vsel %vm79, 1.0, 0.0
    %vm84 = vcmp.ge.s32.totalorder %v28, 0
    %vm85 = vcmp.ge.s32.totalorder %v29, 0
    %vm86 = vcmp.ge.s32.totalorder %v30, 0
    %vm87 = vcmp.ge.s32.totalorder %v31, 0
    %vm88 = vmand %vm40, %vm84
    %vm89 = vmand %vm41, %vm85
    %vm90 = vmand %vm42, %vm86
    %vm91 = vmand %vm43, %vm87
    %vm92 = vcmp.lt.s32.totalorder %v28, 16
    %vm93 = vcmp.lt.s32.totalorder %v29, 16
    %vm94 = vcmp.lt.s32.totalorder %v30, 16
    %vm95 = vcmp.lt.s32.totalorder %v31, 16
    %vm96 = vmand %vm88, %vm92
    %vm97 = vmand %vm89, %vm93
    %vm98 = vmand %vm90, %vm94
    %vm99 = vmand %vm91, %vm95
    %v100 = vsel %vm96, 1.0, 0.0
    %v101 = vsel %vm97, 1.0, 0.0
    %v102 = vsel %vm98, 1.0, 0.0
    %v103 = vsel %vm99, 1.0, 0.0
    %vm104 = vcmp.ge.s32.totalorder %v28, 4294967294
    %vm105 = vcmp.ge.s32.totalorder %v29, 4294967294
    %vm106 = vcmp.ge.s32.totalorder %v30, 4294967294
    %vm107 = vcmp.ge.s32.totalorder %v31, 4294967294
    %vm108 = vmand %vm40, %vm104
    %vm109 = vmand %vm41, %vm105
    %vm110 = vmand %vm42, %vm106
    %vm111 = vmand %vm43, %vm107
    %vm112 = vcmp.lt.s32.totalorder %v28, 14
    %vm113 = vcmp.lt.s32.totalorder %v29, 14
    %vm114 = vcmp.lt.s32.totalorder %v30, 14
    %vm115 = vcmp.lt.s32.totalorder %v31, 14
    %vm116 = vmand %vm108, %vm112
    %vm117 = vmand %vm109, %vm113
    %vm118 = vmand %vm110, %vm114
    %vm119 = vmand %vm111, %vm115
    %v120 = vsel %vm116, 1.0, 0.0
    %v121 = vsel %vm117, 1.0, 0.0
    %v122 = vsel %vm118, 1.0, 0.0
    %v123 = vsel %vm119, 1.0, 0.0
    %vm124 = vcmp.ge.s32.totalorder %v28, 4294967292
    %vm125 = vcmp.ge.s32.totalorder %v29, 4294967292
    %vm126 = vcmp.ge.s32.totalorder %v30, 4294967292
    %vm127 = vcmp.ge.s32.totalorder %v31, 4294967292
    %vm128 = vmand %vm40, %vm124
    %vm129 = vmand %vm41, %vm125
    %vm130 = vmand %vm42, %vm126
    %vm131 = vmand %vm43, %vm127
    %vm132 = vcmp.lt.s32.totalorder %v28, 12
    %vm133 = vcmp.lt.s32.totalorder %v29, 12
    %vm134 = vcmp.lt.s32.totalorder %v30, 12
    %vm135 = vcmp.lt.s32.totalorder %v31, 12
    %vm136 = vmand %vm128, %vm132
    %vm137 = vmand %vm129, %vm133
    %vm138 = vmand %vm130, %vm134
    %vm139 = vmand %vm131, %vm135
    %v140 = vsel %vm136, 1.0, 0.0
    %v141 = vsel %vm137, 1.0, 0.0
    %v142 = vsel %vm138, 1.0, 0.0
    %v143 = vsel %vm139, 1.0, 0.0
    %vm144 = vcmp.ge.s32.totalorder %v24, 2
    %vm145 = vcmp.ge.s32.totalorder %v25, 2
    %vm146 = vcmp.ge.s32.totalorder %v26, 2
    %vm147 = vcmp.ge.s32.totalorder %v27, 2
    %vm148 = vcmp.lt.s32.totalorder %v24, 18
    %vm149 = vcmp.lt.s32.totalorder %v25, 18
    %vm150 = vcmp.lt.s32.totalorder %v26, 18
    %vm151 = vcmp.lt.s32.totalorder %v27, 18
    %vm152 = vmand %vm144, %vm148
    %vm153 = vmand %vm145, %vm149
    %vm154 = vmand %vm146, %vm150
    %vm155 = vmand %vm147, %vm151
    %vm156 = vmand %vm152, %vm44
    %vm157 = vmand %vm153, %vm45
    %vm158 = vmand %vm154, %vm46
    %vm159 = vmand %vm155, %vm47
    %vm160 = vmand %vm156, %vm52
    %vm161 = vmand %vm157, %vm53
    %vm162 = vmand %vm158, %vm54
    %vm163 = vmand %vm159, %vm55
    %v164 = vsel %vm160, 1.0, 0.0
    %v165 = vsel %vm161, 1.0, 0.0
    %v166 = vsel %vm162, 1.0, 0.0
    %v167 = vsel %vm163, 1.0, 0.0
    %vm168 = vmand %vm152, %vm64
    %vm169 = vmand %vm153, %vm65
    %vm170 = vmand %vm154, %vm66
    %vm171 = vmand %vm155, %vm67
    %vm172 = vmand %vm168, %vm72
    %vm173 = vmand %vm169, %vm73
    %vm174 = vmand %vm170, %vm74
    %vm175 = vmand %vm171, %vm75
    %v176 = vsel %vm172, 1.0, 0.0
    %v177 = vsel %vm173, 1.0, 0.0
    %v178 = vsel %vm174, 1.0, 0.0
    %v179 = vsel %vm175, 1.0, 0.0
    %vm180 = vmand %vm152, %vm84
    %vm181 = vmand %vm153, %vm85
    %vm182 = vmand %vm154, %vm86
    %vm183 = vmand %vm155, %vm87
    %vm184 = vmand %vm180, %vm92
    %vm185 = vmand %vm181, %vm93
    %vm186 = vmand %vm182, %vm94
    %vm187 = vmand %vm183, %vm95
    %v188 = vsel %vm184, 1.0, 0.0
    %v189 = vsel %vm185, 1.0, 0.0
    %v190 = vsel %vm186, 1.0, 0.0
    %v191 = vsel %vm187, 1.0, 0.0
    %vm192 = vmand %vm152, %vm104
    %vm193 = vmand %vm153, %vm105
    %vm194 = vmand %vm154, %vm106
    %vm195 = vmand %vm155, %vm107
    %vm196 = vmand %vm192, %vm112
    %vm197 = vmand %vm193, %vm113
    %vm198 = vmand %vm194, %vm114
    %vm199 = vmand %vm195, %vm115
    %v200 = vsel %vm196, 1.0, 0.0
    %v201 = vsel %vm197, 1.0, 0.0
    %v202 = vsel %vm198, 1.0, 0.0
    %v203 = vsel %vm199, 1.0, 0.0
    %vm204 = vmand %vm152, %vm124
    %vm205 = vmand %vm153, %vm125
    %vm206 = vmand %vm154, %vm126
    %vm207 = vmand %vm155, %vm127
    %vm208 = vmand %vm204, %vm132
    %vm209 = vmand %vm205, %vm133
    %vm210 = vmand %vm206, %vm134
    %vm211 = vmand %vm207, %vm135
    %v212 = vsel %vm208, 1.0, 0.0
    %v213 = vsel %vm209, 1.0, 0.0
    %v214 = vsel %vm210, 1.0, 0.0
    %v215 = vsel %vm211, 1.0, 0.0
    %vm216 = vcmp.ge.s32.totalorder %v24, 0
    %vm217 = vcmp.ge.s32.totalorder %v25, 0
    %vm218 = vcmp.ge.s32.totalorder %v26, 0
    %vm219 = vcmp.ge.s32.totalorder %v27, 0
    %vm220 = vcmp.lt.s32.totalorder %v24, 16
    %vm221 = vcmp.lt.s32.totalorder %v25, 16
    %vm222 = vcmp.lt.s32.totalorder %v26, 16
    %vm223 = vcmp.lt.s32.totalorder %v27, 16
    %vm224 = vmand %vm216, %vm220
    %vm225 = vmand %vm217, %vm221
    %vm226 = vmand %vm218, %vm222
    %vm227 = vmand %vm219, %vm223
    %vm228 = vmand %vm224, %vm44
    %vm229 = vmand %vm225, %vm45
    %vm230 = vmand %vm226, %vm46
    %vm231 = vmand %vm227, %vm47
    %vm232 = vmand %vm228, %vm52
    %vm233 = vmand %vm229, %vm53
    %vm234 = vmand %vm230, %vm54
    %vm235 = vmand %vm231, %vm55
    %v236 = vsel %vm232, 1.0, 0.0
    %v237 = vsel %vm233, 1.0, 0.0
    %v238 = vsel %vm234, 1.0, 0.0
    %v239 = vsel %vm235, 1.0, 0.0
    %vm240 = vmand %vm224, %vm64
    %vm241 = vmand %vm225, %vm65
    %vm242 = vmand %vm226, %vm66
    %vm243 = vmand %vm227, %vm67
    %vm244 = vmand %vm240, %vm72
    %vm245 = vmand %vm241, %vm73
    %vm246 = vmand %vm242, %vm74
    %vm247 = vmand %vm243, %vm75
    %v248 = vsel %vm244, 1.0, 0.0
    %v249 = vsel %vm245, 1.0, 0.0
    %v250 = vsel %vm246, 1.0, 0.0
    %v251 = vsel %vm247, 1.0, 0.0
    %vm252 = vmand %vm224, %vm104
    %vm253 = vmand %vm225, %vm105
    %vm254 = vmand %vm226, %vm106
    %vm255 = vmand %vm227, %vm107
    %vm256 = vmand %vm252, %vm112
    %vm257 = vmand %vm253, %vm113
    %vm258 = vmand %vm254, %vm114
    %vm259 = vmand %vm255, %vm115
    %v260 = vsel %vm256, 1.0, 0.0
    %v261 = vsel %vm257, 1.0, 0.0
    %v262 = vsel %vm258, 1.0, 0.0
    %v263 = vsel %vm259, 1.0, 0.0
    %vm264 = vmand %vm224, %vm124
    %vm265 = vmand %vm225, %vm125
    %vm266 = vmand %vm226, %vm126
    %vm267 = vmand %vm227, %vm127
    %vm268 = vmand %vm264, %vm132
    %vm269 = vmand %vm265, %vm133
    %vm270 = vmand %vm266, %vm134
    %vm271 = vmand %vm267, %vm135
    %v272 = vsel %vm268, 1.0, 0.0
    %v273 = vsel %vm269, 1.0, 0.0
    %v274 = vsel %vm270, 1.0, 0.0
    %v275 = vsel %vm271, 1.0, 0.0
    %vm276 = vcmp.ge.s32.totalorder %v24, 4294967294
    %vm277 = vcmp.ge.s32.totalorder %v25, 4294967294
    %vm278 = vcmp.ge.s32.totalorder %v26, 4294967294
    %vm279 = vcmp.ge.s32.totalorder %v27, 4294967294
    %vm280 = vcmp.lt.s32.totalorder %v24, 14
    %vm281 = vcmp.lt.s32.totalorder %v25, 14
    %vm282 = vcmp.lt.s32.totalorder %v26, 14
    %vm283 = vcmp.lt.s32.totalorder %v27, 14
    %vm284 = vmand %vm276, %vm280
    %vm285 = vmand %vm277, %vm281
    %vm286 = vmand %vm278, %vm282
    %vm287 = vmand %vm279, %vm283
    %vm288 = vmand %vm284, %vm44
    %vm289 = vmand %vm285, %vm45
    %vm290 = vmand %vm286, %vm46
    %vm291 = vmand %vm287, %vm47
    %vm292 = vmand %vm288, %vm52
    %vm293 = vmand %vm289, %vm53
    %vm294 = vmand %vm290, %vm54
    %vm295 = vmand %vm291, %vm55
    %v296 = vsel %vm292, 1.0, 0.0
    %v297 = vsel %vm293, 1.0, 0.0
    %v298 = vsel %vm294, 1.0, 0.0
    %v299 = vsel %vm295, 1.0, 0.0
    %vm300 = vmand %vm284, %vm64
    %vm301 = vmand %vm285, %vm65
    %vm302 = vmand %vm286, %vm66
    %vm303 = vmand %vm287, %vm67
    %vm304 = vmand %vm300, %vm72
    %vm305 = vmand %vm301, %vm73
    %vm306 = vmand %vm302, %vm74
    %vm307 = vmand %vm303, %vm75
    %v308 = vsel %vm304, 1.0, 0.0
    %v309 = vsel %vm305, 1.0, 0.0
    %v310 = vsel %vm306, 1.0, 0.0
    %v311 = vsel %vm307, 1.0, 0.0
    %vm312 = vmand %vm284, %vm84
    %vm313 = vmand %vm285, %vm85
    %vm314 = vmand %vm286, %vm86
    %vm315 = vmand %vm287, %vm87
    %vm316 = vmand %vm312, %vm92
    %vm317 = vmand %vm313, %vm93
    %vm318 = vmand %vm314, %vm94
    %vm319 = vmand %vm315, %vm95
    %v320 = vsel %vm316, 1.0, 0.0
    %v321 = vsel %vm317, 1.0, 0.0
    %v322 = vsel %vm318, 1.0, 0.0
    %v323 = vsel %vm319, 1.0, 0.0
    %vm324 = vmand %vm284, %vm104
    %vm325 = vmand %vm285, %vm105
    %vm326 = vmand %vm286, %vm106
    %vm327 = vmand %vm287, %vm107
    %vm328 = vmand %vm324, %vm112
    %vm329 = vmand %vm325, %vm113
    %vm330 = vmand %vm326, %vm114
    %vm331 = vmand %vm327, %vm115
    %v332 = vsel %vm328, 1.0, 0.0
    %v333 = vsel %vm329, 1.0, 0.0
    %v334 = vsel %vm330, 1.0, 0.0
    %v335 = vsel %vm331, 1.0, 0.0
    %vm336 = vmand %vm284, %vm124
    %vm337 = vmand %vm285, %vm125
    %vm338 = vmand %vm286, %vm126
    %vm339 = vmand %vm287, %vm127
    %vm340 = vmand %vm336, %vm132
    %vm341 = vmand %vm337, %vm133
    %vm342 = vmand %vm338, %vm134
    %vm343 = vmand %vm339, %vm135
    %v344 = vsel %vm340, 1.0, 0.0
    %v345 = vsel %vm341, 1.0, 0.0
    %v346 = vsel %vm342, 1.0, 0.0
    %v347 = vsel %vm343, 1.0, 0.0
    %vm348 = vcmp.ge.s32.totalorder %v24, 4294967292
    %vm349 = vcmp.ge.s32.totalorder %v25, 4294967292
    %vm350 = vcmp.ge.s32.totalorder %v26, 4294967292
    %vm351 = vcmp.ge.s32.totalorder %v27, 4294967292
    %vm352 = vcmp.lt.s32.totalorder %v24, 12
    %vm353 = vcmp.lt.s32.totalorder %v25, 12
    %vm354 = vcmp.lt.s32.totalorder %v26, 12
    %vm355 = vcmp.lt.s32.totalorder %v27, 12
    %vm356 = vmand %vm348, %vm352
    %vm357 = vmand %vm349, %vm353
    %vm358 = vmand %vm350, %vm354
    %vm359 = vmand %vm351, %vm355
    %vm360 = vmand %vm356, %vm44
    %vm361 = vmand %vm357, %vm45
    %vm362 = vmand %vm358, %vm46
    %vm363 = vmand %vm359, %vm47
    %vm364 = vmand %vm360, %vm52
    %vm365 = vmand %vm361, %vm53
    %vm366 = vmand %vm362, %vm54
    %vm367 = vmand %vm363, %vm55
    %v368 = vsel %vm364, 1.0, 0.0
    %v369 = vsel %vm365, 1.0, 0.0
    %v370 = vsel %vm366, 1.0, 0.0
    %v371 = vsel %vm367, 1.0, 0.0
    %vm372 = vmand %vm356, %vm64
    %vm373 = vmand %vm357, %vm65
    %vm374 = vmand %vm358, %vm66
    %vm375 = vmand %vm359, %vm67
    %vm376 = vmand %vm372, %vm72
    %vm377 = vmand %vm373, %vm73
    %vm378 = vmand %vm374, %vm74
    %vm379 = vmand %vm375, %vm75
    %v380 = vsel %vm376, 1.0, 0.0
    %v381 = vsel %vm377, 1.0, 0.0
    %v382 = vsel %vm378, 1.0, 0.0
    %v383 = vsel %vm379, 1.0, 0.0
    %vm384 = vmand %vm356, %vm84
    %vm385 = vmand %vm357, %vm85
    %vm386 = vmand %vm358, %vm86
    %vm387 = vmand %vm359, %vm87
    %vm388 = vmand %vm384, %vm92
    %vm389 = vmand %vm385, %vm93
    %vm390 = vmand %vm386, %vm94
    %vm391 = vmand %vm387, %vm95
    %v392 = vsel %vm388, 1.0, 0.0
    %v393 = vsel %vm389, 1.0, 0.0
    %v394 = vsel %vm390, 1.0, 0.0
    %v395 = vsel %vm391, 1.0, 0.0
    %vm396 = vmand %vm356, %vm104
    %vm397 = vmand %vm357, %vm105
    %vm398 = vmand %vm358, %vm106
    %vm399 = vmand %vm359, %vm107
    %vm400 = vmand %vm396, %vm112
    %vm401 = vmand %vm397, %vm113
    %vm402 = vmand %vm398, %vm114
    %vm403 = vmand %vm399, %vm115
    %v404 = vsel %vm400, 1.0, 0.0
    %v405 = vsel %vm401, 1.0, 0.0
    %v406 = vsel %vm402, 1.0, 0.0
    %v407 = vsel %vm403, 1.0, 0.0
    %vm408 = vmand %vm356, %vm124
    %vm409 = vmand %vm357, %vm125
    %vm410 = vmand %vm358, %vm126
    %vm411 = vmand %vm359, %vm127
    %vm412 = vmand %vm408, %vm132
    %vm413 = vmand %vm409, %vm133
    %vm414 = vmand %vm410, %vm134
    %vm415 = vmand %vm411, %vm135
    %v416 = vsel %vm412, 1.0, 0.0
    %v417 = vsel %vm413, 1.0, 0.0
    %v418 = vsel %vm414, 1.0, 0.0
    %v419 = vsel %vm415, 1.0, 0.0
    %v420 = vld [vmem:[%s0] sm:$0xff]
    %v421 = vld [vmem:[%s0 + $0x8] sm:$0xff]
    %v424 = vcombine.high %v420, %v420
    %v425 = vcombine.high %v421, %v421
    %428 = vst [vmem:[#allocation2] sm:$0xf] %v420
    %429 = vst [vmem:[#allocation2 + $0x8] sm:$0xf] %v424
    %430 = vst [vmem:[#allocation2 + $0x10] sm:$0xf] %v421
    %431 = vst [vmem:[#allocation2 + $0x18] sm:$0xf] %v425
    %v432 = vld [vmem:[%s2] sm:$0xf]
    %v433 = vld [vmem:[%s2 + $0x8] sm:$0xf]
    %v434 = vld [vmem:[%s2 + $0xc0] sm:$0xff]
    %v435 = vld [vmem:[%s2 + $0xc8] sm:$0xf]
    %v436 = vld [vmem:[#allocation2] sm:$0xf]
    %v437 = vld [vmem:[#allocation2 + $0x8] sm:$0xf]
    %v438 = vld [vmem:[#allocation2 + $0x10] sm:$0xf]
    %v439 = vld [vmem:[#allocation2 + $0x18] sm:$0xf]
    %441 = vset.pattern.permute.xlu0 0
    %442 = vperm.xlu0 %441, %v432
    %v443 = vpop.permute.xlu0 %442
    %v445 = vmul.f32 %v436, %v443
    %v446 = vmul.f32 %v437, %v443
    %v447 = vmul.f32 %v438, %v443
    %v448 = vmul.f32 %v439, %v443
    %450 = vset.pattern.permute.xlu0 0
    %451 = vperm.xlu0 %450, %v433
    %v452 = vpop.permute.xlu0 %451
    %v454 = vadd.f32 %v445, %v452
    %v455 = vadd.f32 %v446, %v452
    %v456 = vadd.f32 %v447, %v452
    %v457 = vadd.f32 %v448, %v452
    %v458 = vmax.f32 %v454, 0.0
    %v459 = vmax.f32 %v455, 0.0
    %v460 = vmax.f32 %v456, 0.0
    %v461 = vmax.f32 %v457, 0.0
    %462 = vrot.lane.b32.xlu0 %v458, 68
    %v463 = vpop.permute.xlu0 %462
    %464 = vrot.lane.b32.xlu0 %v459, 68
    %v465 = vpop.permute.xlu0 %464
    %466 = vrot.lane.b32.xlu0 %v460, 68
    %v467 = vpop.permute.xlu0 %466
    %468 = vrot.lane.b32.xlu0 %v461, 68
    %v469 = vpop.permute.xlu0 %468
    %vm470 = vcmp.lt.s32.totalorder %v16, 68
    %v471 = vsel %vm470, %v467, %v469
    %v472 = vsel %vm470, %v465, %v467
    %v473 = vsel %vm470, %v463, %v465
    %v474 = vsel %vm470, %v469, %v463
    %v475 = vmul.f32 %v474, %v60
    %v476 = vmul.f32 %v473, %v61
    %v477 = vmul.f32 %v472, %v62
    %v478 = vmul.f32 %v471, %v63
    %479 = vst [vmem:[#allocation3] sm:$0xf] %v475
    %480 = vst [vmem:[#allocation3 + $0x8] sm:$0xf] %v476
    %481 = vst [vmem:[#allocation3 + $0x10] sm:$0xf] %v477
    %482 = vst [vmem:[#allocation3 + $0x18] sm:$0xf] %v478
    %483 = vrot.lane.b32.xlu0 %v458, 66
    %v484 = vpop.permute.xlu0 %483
    %485 = vrot.lane.b32.xlu0 %v459, 66
    %v486 = vpop.permute.xlu0 %485
    %487 = vrot.lane.b32.xlu0 %v460, 66
    %v488 = vpop.permute.xlu0 %487
    %489 = vrot.lane.b32.xlu0 %v461, 66
    %v490 = vpop.permute.xlu0 %489
    %vm491 = vcmp.lt.s32.totalorder %v16, 66
    %v492 = vsel %vm491, %v488, %v490
    %v493 = vsel %vm491, %v486, %v488
    %v494 = vsel %vm491, %v484, %v486
    %v495 = vsel %vm491, %v490, %v484
    %v496 = vmul.f32 %v495, %v80
    %v497 = vmul.f32 %v494, %v81
    %v498 = vmul.f32 %v493, %v82
    %v499 = vmul.f32 %v492, %v83
    %v504 = vrot.slane %v496, 4
    %v505 = vrot.slane %v497, 4
    %v506 = vrot.slane %v498, 4
    %v507 = vrot.slane %v499, 4
    %512 = vst [vmem:[#allocation3] sm:$0xf0] %v504
    %513 = vst [vmem:[#allocation3 + $0x8] sm:$0xf0] %v505
    %514 = vst [vmem:[#allocation3 + $0x10] sm:$0xf0] %v506
    %515 = vst [vmem:[#allocation3 + $0x18] sm:$0xf0] %v507
    %516 = vrot.lane.b32.xlu0 %v458, 64
    %v517 = vpop.permute.xlu0 %516
    %518 = vrot.lane.b32.xlu0 %v459, 64
    %v519 = vpop.permute.xlu0 %518
    %520 = vrot.lane.b32.xlu0 %v460, 64
    %v521 = vpop.permute.xlu0 %520
    %522 = vrot.lane.b32.xlu0 %v461, 64
    %v523 = vpop.permute.xlu0 %522
    %vm524 = vcmp.lt.s32.totalorder %v16, 64
    %v525 = vsel %vm524, %v521, %v523
    %v526 = vsel %vm524, %v519, %v521
    %v527 = vsel %vm524, %v517, %v519
    %v528 = vsel %vm524, %v523, %v517
    %v529 = vmul.f32 %v528, %v100
    %v530 = vmul.f32 %v527, %v101
    %v531 = vmul.f32 %v526, %v102
    %v532 = vmul.f32 %v525, %v103
    %533 = vst [vmem:[#allocation3 + $0x20] sm:$0xf] %v529
    %534 = vst [vmem:[#allocation3 + $0x28] sm:$0xf] %v530
    %535 = vst [vmem:[#allocation3 + $0x30] sm:$0xf] %v531
    %536 = vst [vmem:[#allocation3 + $0x38] sm:$0xf] %v532
    %537 = vrot.lane.b32.xlu0 %v458, 62
    %v538 = vpop.permute.xlu0 %537
    %539 = vrot.lane.b32.xlu0 %v459, 62
    %v540 = vpop.permute.xlu0 %539
    %541 = vrot.lane.b32.xlu0 %v460, 62
    %v542 = vpop.permute.xlu0 %541
    %543 = vrot.lane.b32.xlu0 %v461, 62
    %v544 = vpop.permute.xlu0 %543
    %vm545 = vcmp.lt.s32.totalorder %v16, 62
    %v546 = vsel %vm545, %v542, %v544
    %v547 = vsel %vm545, %v540, %v542
    %v548 = vsel %vm545, %v538, %v540
    %v549 = vsel %vm545, %v544, %v538
    %v550 = vmul.f32 %v549, %v120
    %v551 = vmul.f32 %v548, %v121
    %v552 = vmul.f32 %v547, %v122
    %v553 = vmul.f32 %v546, %v123
    %v558 = vrot.slane %v550, 4
    %v559 = vrot.slane %v551, 4
    %v560 = vrot.slane %v552, 4
    %v561 = vrot.slane %v553, 4
    %566 = vst [vmem:[#allocation3 + $0x20] sm:$0xf0] %v558
    %567 = vst [vmem:[#allocation3 + $0x28] sm:$0xf0] %v559
    %568 = vst [vmem:[#allocation3 + $0x30] sm:$0xf0] %v560
    %569 = vst [vmem:[#allocation3 + $0x38] sm:$0xf0] %v561
    %570 = vrot.lane.b32.xlu0 %v458, 60
    %v571 = vpop.permute.xlu0 %570
    %572 = vrot.lane.b32.xlu0 %v459, 60
    %v573 = vpop.permute.xlu0 %572
    %574 = vrot.lane.b32.xlu0 %v460, 60
    %v575 = vpop.permute.xlu0 %574
    %576 = vrot.lane.b32.xlu0 %v461, 60
    %v577 = vpop.permute.xlu0 %576
    %vm578 = vcmp.lt.s32.totalorder %v16, 60
    %v579 = vsel %vm578, %v575, %v577
    %v580 = vsel %vm578, %v573, %v575
    %v581 = vsel %vm578, %v571, %v573
    %v582 = vsel %vm578, %v577, %v571
    %v583 = vmul.f32 %v582, %v140
    %v584 = vmul.f32 %v581, %v141
    %v585 = vmul.f32 %v580, %v142
    %v586 = vmul.f32 %v579, %v143
    %587 = vst [vmem:[#allocation3 + $0x40] sm:$0xf] %v583
    %588 = vst [vmem:[#allocation3 + $0x48] sm:$0xf] %v584
    %589 = vst [vmem:[#allocation3 + $0x50] sm:$0xf] %v585
    %590 = vst [vmem:[#allocation3 + $0x58] sm:$0xf] %v586
    %591 = vrot.lane.b32.xlu0 %v458, 36
    %v592 = vpop.permute.xlu0 %591
    %593 = vrot.lane.b32.xlu0 %v459, 36
    %v594 = vpop.permute.xlu0 %593
    %595 = vrot.lane.b32.xlu0 %v460, 36
    %v596 = vpop.permute.xlu0 %595
    %597 = vrot.lane.b32.xlu0 %v461, 36
    %v598 = vpop.permute.xlu0 %597
    %vm599 = vcmp.lt.s32.totalorder %v16, 36
    %v600 = vsel %vm599, %v596, %v598
    %v601 = vsel %vm599, %v594, %v596
    %v602 = vsel %vm599, %v592, %v594
    %v603 = vsel %vm599, %v598, %v592
    %v604 = vmul.f32 %v603, %v164
    %v605 = vmul.f32 %v602, %v165
    %v606 = vmul.f32 %v601, %v166
    %v607 = vmul.f32 %v600, %v167
    %v612 = vrot.slane %v604, 4
    %v613 = vrot.slane %v605, 4
    %v614 = vrot.slane %v606, 4
    %v615 = vrot.slane %v607, 4
    %620 = vst [vmem:[#allocation3 + $0x40] sm:$0xf0] %v612
    %621 = vst [vmem:[#allocation3 + $0x48] sm:$0xf0] %v613
    %622 = vst [vmem:[#allocation3 + $0x50] sm:$0xf0] %v614
    %623 = vst [vmem:[#allocation3 + $0x58] sm:$0xf0] %v615
    %624 = vrot.lane.b32.xlu0 %v458, 34
    %v625 = vpop.permute.xlu0 %624
    %626 = vrot.lane.b32.xlu0 %v459, 34
    %v627 = vpop.permute.xlu0 %626
    %628 = vrot.lane.b32.xlu0 %v460, 34
    %v629 = vpop.permute.xlu0 %628
    %630 = vrot.lane.b32.xlu0 %v461, 34
    %v631 = vpop.permute.xlu0 %630
    %vm632 = vcmp.lt.s32.totalorder %v16, 34
    %v633 = vsel %vm632, %v629, %v631
    %v634 = vsel %vm632, %v627, %v629
    %v635 = vsel %vm632, %v625, %v627
    %v636 = vsel %vm632, %v631, %v625
    %v637 = vmul.f32 %v636, %v176
    %v638 = vmul.f32 %v635, %v177
    %v639 = vmul.f32 %v634, %v178
    %v640 = vmul.f32 %v633, %v179
    %641 = vst [vmem:[#allocation3 + $0x60] sm:$0xf] %v637
    %642 = vst [vmem:[#allocation3 + $0x68] sm:$0xf] %v638
    %643 = vst [vmem:[#allocation3 + $0x70] sm:$0xf] %v639
    %644 = vst [vmem:[#allocation3 + $0x78] sm:$0xf] %v640
    %645 = vrot.lane.b32.xlu0 %v458, 32
    %v646 = vpop.permute.xlu0 %645
    %647 = vrot.lane.b32.xlu0 %v459, 32
    %v648 = vpop.permute.xlu0 %647
    %649 = vrot.lane.b32.xlu0 %v460, 32
    %v650 = vpop.permute.xlu0 %649
    %651 = vrot.lane.b32.xlu0 %v461, 32
    %v652 = vpop.permute.xlu0 %651
    %vm653 = vcmp.lt.s32.totalorder %v16, 32
    %v654 = vsel %vm653, %v650, %v652
    %v655 = vsel %vm653, %v648, %v650
    %v656 = vsel %vm653, %v646, %v648
    %v657 = vsel %vm653, %v652, %v646
    %v658 = vmul.f32 %v657, %v188
    %v659 = vmul.f32 %v656, %v189
    %v660 = vmul.f32 %v655, %v190
    %v661 = vmul.f32 %v654, %v191
    %v666 = vrot.slane %v658, 4
    %v667 = vrot.slane %v659, 4
    %v668 = vrot.slane %v660, 4
    %v669 = vrot.slane %v661, 4
    %674 = vst [vmem:[#allocation3 + $0x60] sm:$0xf0] %v666
    %675 = vst [vmem:[#allocation3 + $0x68] sm:$0xf0] %v667
    %676 = vst [vmem:[#allocation3 + $0x70] sm:$0xf0] %v668
    %677 = vst [vmem:[#allocation3 + $0x78] sm:$0xf0] %v669
    %678 = vrot.lane.b32.xlu0 %v458, 30
    %v679 = vpop.permute.xlu0 %678
    %680 = vrot.lane.b32.xlu0 %v459, 30
    %v681 = vpop.permute.xlu0 %680
    %682 = vrot.lane.b32.xlu0 %v460, 30
    %v683 = vpop.permute.xlu0 %682
    %684 = vrot.lane.b32.xlu0 %v461, 30
    %v685 = vpop.permute.xlu0 %684
    %vm686 = vcmp.lt.s32.totalorder %v16, 30
    %v687 = vsel %vm686, %v683, %v685
    %v688 = vsel %vm686, %v681, %v683
    %v689 = vsel %vm686, %v679, %v681
    %v690 = vsel %vm686, %v685, %v679
    %v691 = vmul.f32 %v690, %v200
    %v692 = vmul.f32 %v689, %v201
    %v693 = vmul.f32 %v688, %v202
    %v694 = vmul.f32 %v687, %v203
    %695 = vst [vmem:[#allocation3 + $0x80] sm:$0xf] %v691
    %696 = vst [vmem:[#allocation3 + $0x88] sm:$0xf] %v692
    %697 = vst [vmem:[#allocation3 + $0x90] sm:$0xf] %v693
    %698 = vst [vmem:[#allocation3 + $0x98] sm:$0xf] %v694
    %699 = vrot.lane.b32.xlu0 %v458, 28
    %v700 = vpop.permute.xlu0 %699
    %701 = vrot.lane.b32.xlu0 %v459, 28
    %v702 = vpop.permute.xlu0 %701
    %703 = vrot.lane.b32.xlu0 %v460, 28
    %v704 = vpop.permute.xlu0 %703
    %705 = vrot.lane.b32.xlu0 %v461, 28
    %v706 = vpop.permute.xlu0 %705
    %vm707 = vcmp.lt.s32.totalorder %v16, 28
    %v708 = vsel %vm707, %v704, %v706
    %v709 = vsel %vm707, %v702, %v704
    %v710 = vsel %vm707, %v700, %v702
    %v711 = vsel %vm707, %v706, %v700
    %v712 = vmul.f32 %v711, %v212
    %v713 = vmul.f32 %v710, %v213
    %v714 = vmul.f32 %v709, %v214
    %v715 = vmul.f32 %v708, %v215
    %v720 = vrot.slane %v712, 4
    %v721 = vrot.slane %v713, 4
    %v722 = vrot.slane %v714, 4
    %v723 = vrot.slane %v715, 4
    %728 = vst [vmem:[#allocation3 + $0x80] sm:$0xf0] %v720
    %729 = vst [vmem:[#allocation3 + $0x88] sm:$0xf0] %v721
    %730 = vst [vmem:[#allocation3 + $0x90] sm:$0xf0] %v722
    %731 = vst [vmem:[#allocation3 + $0x98] sm:$0xf0] %v723
    %732 = vrot.lane.b32.xlu0 %v458, 4
    %v733 = vpop.permute.xlu0 %732
    %734 = vrot.lane.b32.xlu0 %v459, 4
    %v735 = vpop.permute.xlu0 %734
    %736 = vrot.lane.b32.xlu0 %v460, 4
    %v737 = vpop.permute.xlu0 %736
    %738 = vrot.lane.b32.xlu0 %v461, 4
    %v739 = vpop.permute.xlu0 %738
    %vm740 = vcmp.lt.s32.totalorder %v16, 4
    %v741 = vsel %vm740, %v737, %v739
    %v742 = vsel %vm740, %v735, %v737
    %v743 = vsel %vm740, %v733, %v735
    %v744 = vsel %vm740, %v739, %v733
    %v745 = vmul.f32 %v744, %v236
    %v746 = vmul.f32 %v743, %v237
    %v747 = vmul.f32 %v742, %v238
    %v748 = vmul.f32 %v741, %v239
    %749 = vst [vmem:[#allocation3 + $0xa0] sm:$0xf] %v745
    %750 = vst [vmem:[#allocation3 + $0xa8] sm:$0xf] %v746
    %751 = vst [vmem:[#allocation3 + $0xb0] sm:$0xf] %v747
    %752 = vst [vmem:[#allocation3 + $0xb8] sm:$0xf] %v748
    %753 = vrot.lane.b32.xlu0 %v458, 2
    %v754 = vpop.permute.xlu0 %753
    %755 = vrot.lane.b32.xlu0 %v459, 2
    %v756 = vpop.permute.xlu0 %755
    %757 = vrot.lane.b32.xlu0 %v460, 2
    %v758 = vpop.permute.xlu0 %757
    %759 = vrot.lane.b32.xlu0 %v461, 2
    %v760 = vpop.permute.xlu0 %759
    %vm761 = vcmp.lt.s32.totalorder %v16, 2
    %v762 = vsel %vm761, %v758, %v760
    %v763 = vsel %vm761, %v756, %v758
    %v764 = vsel %vm761, %v754, %v756
    %v765 = vsel %vm761, %v760, %v754
    %v766 = vmul.f32 %v765, %v248
    %v767 = vmul.f32 %v764, %v249
    %v768 = vmul.f32 %v763, %v250
    %v769 = vmul.f32 %v762, %v251
    %v774 = vrot.slane %v766, 4
    %v775 = vrot.slane %v767, 4
    %v776 = vrot.slane %v768, 4
    %v777 = vrot.slane %v769, 4
    %782 = vst [vmem:[#allocation3 + $0xa0] sm:$0xf0] %v774
    %783 = vst [vmem:[#allocation3 + $0xa8] sm:$0xf0] %v775
    %784 = vst [vmem:[#allocation3 + $0xb0] sm:$0xf0] %v776
    %785 = vst [vmem:[#allocation3 + $0xb8] sm:$0xf0] %v777
    %786 = vst [vmem:[#allocation3 + $0xc0] sm:$0xf] %v458
    %787 = vst [vmem:[#allocation3 + $0xc8] sm:$0xf] %v459
    %788 = vst [vmem:[#allocation3 + $0xd0] sm:$0xf] %v460
    %789 = vst [vmem:[#allocation3 + $0xd8] sm:$0xf] %v461
    %790 = vrot.lane.b32.xlu0 %v458, 126
    %v791 = vpop.permute.xlu0 %790
    %792 = vrot.lane.b32.xlu0 %v459, 126
    %v793 = vpop.permute.xlu0 %792
    %794 = vrot.lane.b32.xlu0 %v460, 126
    %v795 = vpop.permute.xlu0 %794
    %796 = vrot.lane.b32.xlu0 %v461, 126
    %v797 = vpop.permute.xlu0 %796
    %vm798 = vcmp.lt.s32.totalorder %v16, 126
    %v799 = vsel %vm798, %v795, %v797
    %v800 = vsel %vm798, %v793, %v795
    %v801 = vsel %vm798, %v791, %v793
    %v802 = vsel %vm798, %v797, %v791
    %v803 = vmul.f32 %v801, %v260
    %v804 = vmul.f32 %v800, %v261
    %v805 = vmul.f32 %v799, %v262
    %v806 = vmul.f32 %v802, %v263
    %v811 = vrot.slane %v803, 4
    %v812 = vrot.slane %v804, 4
    %v813 = vrot.slane %v805, 4
    %v814 = vrot.slane %v806, 4
    %819 = vst [vmem:[#allocation3 + $0xc0] sm:$0xf0] %v811
    %820 = vst [vmem:[#allocation3 + $0xc8] sm:$0xf0] %v812
    %821 = vst [vmem:[#allocation3 + $0xd0] sm:$0xf0] %v813
    %822 = vst [vmem:[#allocation3 + $0xd8] sm:$0xf0] %v814
    %823 = vrot.lane.b32.xlu0 %v458, 124
    %v824 = vpop.permute.xlu0 %823
    %825 = vrot.lane.b32.xlu0 %v459, 124
    %v826 = vpop.permute.xlu0 %825
    %827 = vrot.lane.b32.xlu0 %v460, 124
    %v828 = vpop.permute.xlu0 %827
    %829 = vrot.lane.b32.xlu0 %v461, 124
    %v830 = vpop.permute.xlu0 %829
    %vm831 = vcmp.lt.s32.totalorder %v16, 124
    %v832 = vsel %vm831, %v828, %v830
    %v833 = vsel %vm831, %v826, %v828
    %v834 = vsel %vm831, %v824, %v826
    %v835 = vsel %vm831, %v830, %v824
    %v836 = vmul.f32 %v834, %v272
    %v837 = vmul.f32 %v833, %v273
    %v838 = vmul.f32 %v832, %v274
    %v839 = vmul.f32 %v835, %v275
    %840 = vst [vmem:[#allocation3 + $0xe0] sm:$0xf] %v836
    %841 = vst [vmem:[#allocation3 + $0xe8] sm:$0xf] %v837
    %842 = vst [vmem:[#allocation3 + $0xf0] sm:$0xf] %v838
    %843 = vst [vmem:[#allocation3 + $0xf8] sm:$0xf] %v839
    %844 = vrot.lane.b32.xlu0 %v458, 100
    %v845 = vpop.permute.xlu0 %844
    %846 = vrot.lane.b32.xlu0 %v459, 100
    %v847 = vpop.permute.xlu0 %846
    %848 = vrot.lane.b32.xlu0 %v460, 100
    %v849 = vpop.permute.xlu0 %848
    %850 = vrot.lane.b32.xlu0 %v461, 100
    %v851 = vpop.permute.xlu0 %850
    %vm852 = vcmp.lt.s32.totalorder %v16, 100
    %v853 = vsel %vm852, %v849, %v851
    %v854 = vsel %vm852, %v847, %v849
    %v855 = vsel %vm852, %v845, %v847
    %v856 = vsel %vm852, %v851, %v845
    %v857 = vmul.f32 %v855, %v296
    %v858 = vmul.f32 %v854, %v297
    %v859 = vmul.f32 %v853, %v298
    %v860 = vmul.f32 %v856, %v299
    %v865 = vrot.slane %v857, 4
    %v866 = vrot.slane %v858, 4
    %v867 = vrot.slane %v859, 4
    %v868 = vrot.slane %v860, 4
    %873 = vst [vmem:[#allocation3 + $0xe0] sm:$0xf0] %v865
    %874 = vst [vmem:[#allocation3 + $0xe8] sm:$0xf0] %v866
    %875 = vst [vmem:[#allocation3 + $0xf0] sm:$0xf0] %v867
    %876 = vst [vmem:[#allocation3 + $0xf8] sm:$0xf0] %v868
    %877 = vrot.lane.b32.xlu0 %v458, 98
    %v878 = vpop.permute.xlu0 %877
    %879 = vrot.lane.b32.xlu0 %v459, 98
    %v880 = vpop.permute.xlu0 %879
    %881 = vrot.lane.b32.xlu0 %v460, 98
    %v882 = vpop.permute.xlu0 %881
    %883 = vrot.lane.b32.xlu0 %v461, 98
    %v884 = vpop.permute.xlu0 %883
    %vm885 = vcmp.lt.s32.totalorder %v16, 98
    %v886 = vsel %vm885, %v882, %v884
    %v887 = vsel %vm885, %v880, %v882
    %v888 = vsel %vm885, %v878, %v880
    %v889 = vsel %vm885, %v884, %v878
    %v890 = vmul.f32 %v888, %v308
    %v891 = vmul.f32 %v887, %v309
    %v892 = vmul.f32 %v886, %v310
    %v893 = vmul.f32 %v889, %v311
    %894 = vst [vmem:[#allocation3 + $0x100] sm:$0xf] %v890
    %895 = vst [vmem:[#allocation3 + $0x108] sm:$0xf] %v891
    %896 = vst [vmem:[#allocation3 + $0x110] sm:$0xf] %v892
    %897 = vst [vmem:[#allocation3 + $0x118] sm:$0xf] %v893
    %898 = vrot.lane.b32.xlu0 %v458, 96
    %v899 = vpop.permute.xlu0 %898
    %900 = vrot.lane.b32.xlu0 %v459, 96
    %v901 = vpop.permute.xlu0 %900
    %902 = vrot.lane.b32.xlu0 %v460, 96
    %v903 = vpop.permute.xlu0 %902
    %904 = vrot.lane.b32.xlu0 %v461, 96
    %v905 = vpop.permute.xlu0 %904
    %vm906 = vcmp.lt.s32.totalorder %v16, 96
    %v907 = vsel %vm906, %v903, %v905
    %v908 = vsel %vm906, %v901, %v903
    %v909 = vsel %vm906, %v899, %v901
    %v910 = vsel %vm906, %v905, %v899
    %v911 = vmul.f32 %v909, %v320
    %v912 = vmul.f32 %v908, %v321
    %v913 = vmul.f32 %v907, %v322
    %v914 = vmul.f32 %v910, %v323
    %v919 = vrot.slane %v911, 4
    %v920 = vrot.slane %v912, 4
    %v921 = vrot.slane %v913, 4
    %v922 = vrot.slane %v914, 4
    %927 = vst [vmem:[#allocation3 + $0x100] sm:$0xf0] %v919
    %928 = vst [vmem:[#allocation3 + $0x108] sm:$0xf0] %v920
    %929 = vst [vmem:[#allocation3 + $0x110] sm:$0xf0] %v921
    %930 = vst [vmem:[#allocation3 + $0x118] sm:$0xf0] %v922
    %931 = vrot.lane.b32.xlu0 %v458, 94
    %v932 = vpop.permute.xlu0 %931
    %933 = vrot.lane.b32.xlu0 %v459, 94
    %v934 = vpop.permute.xlu0 %933
    %935 = vrot.lane.b32.xlu0 %v460, 94
    %v936 = vpop.permute.xlu0 %935
    %937 = vrot.lane.b32.xlu0 %v461, 94
    %v938 = vpop.permute.xlu0 %937
    %vm939 = vcmp.lt.s32.totalorder %v16, 94
    %v940 = vsel %vm939, %v936, %v938
    %v941 = vsel %vm939, %v934, %v936
    %v942 = vsel %vm939, %v932, %v934
    %v943 = vsel %vm939, %v938, %v932
    %v944 = vmul.f32 %v942, %v332
    %v945 = vmul.f32 %v941, %v333
    %v946 = vmul.f32 %v940, %v334
    %v947 = vmul.f32 %v943, %v335
    %948 = vst [vmem:[#allocation3 + $0x120] sm:$0xf] %v944
    %949 = vst [vmem:[#allocation3 + $0x128] sm:$0xf] %v945
    %950 = vst [vmem:[#allocation3 + $0x130] sm:$0xf] %v946
    %951 = vst [vmem:[#allocation3 + $0x138] sm:$0xf] %v947
    %952 = vrot.lane.b32.xlu0 %v458, 92
    %v953 = vpop.permute.xlu0 %952
    %954 = vrot.lane.b32.xlu0 %v459, 92
    %v955 = vpop.permute.xlu0 %954
    %956 = vrot.lane.b32.xlu0 %v460, 92
    %v957 = vpop.permute.xlu0 %956
    %958 = vrot.lane.b32.xlu0 %v461, 92
    %v959 = vpop.permute.xlu0 %958
    %vm960 = vcmp.lt.s32.totalorder %v16, 92
    %v961 = vsel %vm960, %v957, %v959
    %v962 = vsel %vm960, %v955, %v957
    %v963 = vsel %vm960, %v953, %v955
    %v964 = vsel %vm960, %v959, %v953
    %v965 = vmul.f32 %v963, %v344
    %v966 = vmul.f32 %v962, %v345
    %v967 = vmul.f32 %v961, %v346
    %v968 = vmul.f32 %v964, %v347
    %v973 = vrot.slane %v965, 4
    %v974 = vrot.slane %v966, 4
    %v975 = vrot.slane %v967, 4
    %v976 = vrot.slane %v968, 4
    %981 = vst [vmem:[#allocation3 + $0x120] sm:$0xf0] %v973
    %982 = vst [vmem:[#allocation3 + $0x128] sm:$0xf0] %v974
    %983 = vst [vmem:[#allocation3 + $0x130] sm:$0xf0] %v975
    %984 = vst [vmem:[#allocation3 + $0x138] sm:$0xf0] %v976
    %v985 = vmul.f32 %v473, %v368
    %v986 = vmul.f32 %v472, %v369
    %v987 = vmul.f32 %v471, %v370
    %v988 = vmul.f32 %v474, %v371
    %989 = vst [vmem:[#allocation3 + $0x140] sm:$0xf] %v985
    %990 = vst [vmem:[#allocation3 + $0x148] sm:$0xf] %v986
    %991 = vst [vmem:[#allocation3 + $0x150] sm:$0xf] %v987
    %992 = vst [vmem:[#allocation3 + $0x158] sm:$0xf] %v988
    %v993 = vmul.f32 %v494, %v380
    %v994 = vmul.f32 %v493, %v381
    %v995 = vmul.f32 %v492, %v382
    %v996 = vmul.f32 %v495, %v383
    %v1001 = vrot.slane %v993, 4
    %v1002 = vrot.slane %v994, 4
    %v1003 = vrot.slane %v995, 4
    %v1004 = vrot.slane %v996, 4
    %1009 = vst [vmem:[#allocation3 + $0x140] sm:$0xf0] %v1001
    %1010 = vst [vmem:[#allocation3 + $0x148] sm:$0xf0] %v1002
    %1011 = vst [vmem:[#allocation3 + $0x150] sm:$0xf0] %v1003
    %1012 = vst [vmem:[#allocation3 + $0x158] sm:$0xf0] %v1004
    %v1013 = vmul.f32 %v527, %v392
    %v1014 = vmul.f32 %v526, %v393
    %v1015 = vmul.f32 %v525, %v394
    %v1016 = vmul.f32 %v528, %v395
    %1017 = vst [vmem:[#allocation3 + $0x160] sm:$0xf] %v1013
    %1018 = vst [vmem:[#allocation3 + $0x168] sm:$0xf] %v1014
    %1019 = vst [vmem:[#allocation3 + $0x170] sm:$0xf] %v1015
    %1020 = vst [vmem:[#allocation3 + $0x178] sm:$0xf] %v1016
    %v1021 = vmul.f32 %v548, %v404
    %v1022 = vmul.f32 %v547, %v405
    %v1023 = vmul.f32 %v546, %v406
    %v1024 = vmul.f32 %v549, %v407
    %v1029 = vrot.slane %v1021, 4
    %v1030 = vrot.slane %v1022, 4
    %v1031 = vrot.slane %v1023, 4
    %v1032 = vrot.slane %v1024, 4
    %1037 = vst [vmem:[#allocation3 + $0x160] sm:$0xf0] %v1029
    %1038 = vst [vmem:[#allocation3 + $0x168] sm:$0xf0] %v1030
    %1039 = vst [vmem:[#allocation3 + $0x170] sm:$0xf0] %v1031
    %1040 = vst [vmem:[#allocation3 + $0x178] sm:$0xf0] %v1032
    %v1041 = vmul.f32 %v581, %v416
    %v1042 = vmul.f32 %v580, %v417
    %v1043 = vmul.f32 %v579, %v418
    %v1044 = vmul.f32 %v582, %v419
    %1045 = vst [vmem:[#allocation3 + $0x180] sm:$0xf] %v1041
    %1046 = vst [vmem:[#allocation3 + $0x188] sm:$0xf] %v1042
    %1047 = vst [vmem:[#allocation3 + $0x190] sm:$0xf] %v1043
    %1048 = vst [vmem:[#allocation3 + $0x198] sm:$0xf] %v1044
    %v1049 = vld [vmem:[%s1] sm:$0xff]
    %v1050 = vld [vmem:[%s1 + $0x60] sm:$0xf]
    %v1051 = vld [vmem:[#allocation3] sm:$0xff]
    %v1052 = vld [vmem:[#allocation3 + $0x8] sm:$0xff]
    %v1053 = vld [vmem:[#allocation3 + $0x10] sm:$0xff]
    %v1054 = vld [vmem:[#allocation3 + $0x18] sm:$0xff]
    %v1055 = vld [vmem:[#allocation3 + $0x20] sm:$0xff]
    %v1056 = vld [vmem:[#allocation3 + $0x28] sm:$0xff]
    %v1057 = vld [vmem:[#allocation3 + $0x30] sm:$0xff]
    %v1058 = vld [vmem:[#allocation3 + $0x38] sm:$0xff]
    %v1059 = vld [vmem:[#allocation3 + $0x40] sm:$0xff]
    %v1060 = vld [vmem:[#allocation3 + $0x48] sm:$0xff]
    %v1061 = vld [vmem:[#allocation3 + $0x50] sm:$0xff]
    %v1062 = vld [vmem:[#allocation3 + $0x58] sm:$0xff]
    %v1063 = vld [vmem:[#allocation3 + $0x60] sm:$0xff]
    %v1064 = vld [vmem:[#allocation3 + $0x68] sm:$0xff]
    %v1065 = vld [vmem:[#allocation3 + $0x70] sm:$0xff]
    %v1066 = vld [vmem:[#allocation3 + $0x78] sm:$0xff]
    %v1067 = vld [vmem:[#allocation3 + $0x80] sm:$0xff]
    %v1068 = vld [vmem:[#allocation3 + $0x88] sm:$0xff]
    %v1069 = vld [vmem:[#allocation3 + $0x90] sm:$0xff]
    %v1070 = vld [vmem:[#allocation3 + $0x98] sm:$0xff]
    %v1071 = vld [vmem:[#allocation3 + $0xa0] sm:$0xff]
    %v1072 = vld [vmem:[#allocation3 + $0xa8] sm:$0xff]
    %v1073 = vld [vmem:[#allocation3 + $0xb0] sm:$0xff]
    %v1074 = vld [vmem:[#allocation3 + $0xb8] sm:$0xff]
    %v1075 = vld [vmem:[#allocation3 + $0xc0] sm:$0xff]
    %v1076 = vld [vmem:[#allocation3 + $0xc8] sm:$0xff]
    %v1077 = vld [vmem:[#allocation3 + $0xd0] sm:$0xff]
    %v1078 = vld [vmem:[#allocation3 + $0xd8] sm:$0xff]
    %v1079 = vld [vmem:[#allocation3 + $0xe0] sm:$0xff]
    %v1080 = vld [vmem:[#allocation3 + $0xe8] sm:$0xff]
    %v1081 = vld [vmem:[#allocation3 + $0xf0] sm:$0xff]
    %v1082 = vld [vmem:[#allocation3 + $0xf8] sm:$0xff]
    %v1083 = vld [vmem:[#allocation3 + $0x100] sm:$0xff]
    %v1084 = vld [vmem:[#allocation3 + $0x108] sm:$0xff]
    %v1085 = vld [vmem:[#allocation3 + $0x110] sm:$0xff]
    %v1086 = vld [vmem:[#allocation3 + $0x118] sm:$0xff]
    %v1087 = vld [vmem:[#allocation3 + $0x120] sm:$0xff]
    %v1088 = vld [vmem:[#allocation3 + $0x128] sm:$0xff]
    %v1089 = vld [vmem:[#allocation3 + $0x130] sm:$0xff]
    %v1090 = vld [vmem:[#allocation3 + $0x138] sm:$0xff]
    %v1091 = vld [vmem:[#allocation3 + $0x140] sm:$0xff]
    %v1092 = vld [vmem:[#allocation3 + $0x148] sm:$0xff]
    %v1093 = vld [vmem:[#allocation3 + $0x150] sm:$0xff]
    %v1094 = vld [vmem:[#allocation3 + $0x158] sm:$0xff]
    %v1095 = vld [vmem:[#allocation3 + $0x160] sm:$0xff]
    %v1096 = vld [vmem:[#allocation3 + $0x168] sm:$0xff]
    %v1097 = vld [vmem:[#allocation3 + $0x170] sm:$0xff]
    %v1098 = vld [vmem:[#allocation3 + $0x178] sm:$0xff]
    %v1099 = vld [vmem:[#allocation3 + $0x180] sm:$0xf]
    %v1100 = vld [vmem:[#allocation3 + $0x188] sm:$0xf]
    %v1101 = vld [vmem:[#allocation3 + $0x190] sm:$0xf]
    %v1102 = vld [vmem:[#allocation3 + $0x198] sm:$0xf]
    %1104 = vset.pattern.permute.xlu0 0
    %1105 = vperm.xlu0 %1104, %v434
    %v1106 = vpop.permute.xlu0 %1105
    %1109 = vset.pattern.permute.xlu0 0
    %1110 = vperm.xlu0 %1109, %v435
    %v1111 = vpop.permute.xlu0 %1110
    %vm1113 = vcmask 818176
    %v1115 = vsel %vm1113, %v1049, 0
    %v1118 = vsel %vm1113, %v1050, 0
    %vm1120 = vcmask 1043456
    %v1122 = vsel %vm1120, %v1099, 0
    %v1125 = vsel %vm1120, %v1100, 0
    %v1128 = vsel %vm1120, %v1101, 0
    %v1131 = vsel %vm1120, %v1102, 0
    %1133 = vmatprep.subr.mxu0 %v1052
    %1134 = vmatpush1.msra.mxu0 %v1051
    %1135 = vmatprep.subr.mxu0 %v1056
    %1136 = vmatpush1.msra.mxu0 %v1055
    %1137 = vmatprep.subr.mxu0 %v1060
    %1138 = vmatpush1.msra.mxu0 %v1059
    %1139 = vmatprep.subr.mxu0 %v1064
    %1140 = vmatpush1.msra.mxu0 %v1063
    %1141 = vmatprep.subr.mxu0 %v1068
    %1142 = vmatpush1.msra.mxu0 %v1067
    %1143 = vmatprep.subr.mxu0 %v1072
    %1144 = vmatpush1.msra.mxu0 %v1071
    %1145 = vmatprep.subr.mxu0 %v1076
    %1146 = vmatpush1.msra.mxu0 %v1075
    %1147 = vmatprep.subr.mxu0 %v1080
    %1148 = vmatpush1.msra.mxu0 %v1079
    %1149 = vmatprep.subr.mxu0 %v1084
    %1150 = vmatpush1.msra.mxu0 %v1083
    %1151 = vmatprep.subr.mxu0 %v1088
    %1152 = vmatpush1.msra.mxu0 %v1087
    %1153 = vmatprep.subr.mxu0 %v1092
    %1154 = vmatpush1.msra.mxu0 %v1091
    %1155 = vmatprep.subr.mxu0 %v1096
    %1156 = vmatpush1.msra.mxu0 %v1095
    %1157 = vmatprep.subr.mxu0 %v1125
    %1158 = vmatpush1.msra.mxu0 %v1122
    %1159 = vmatprep.subr.mxu0 0.0
    %1160 = vmatpush1.msra.mxu0 0.0
    %1161 = vmatprep.subr.mxu0 0.0
    %1162 = vmatpush1.msra.mxu0 0.0
    %1163 = vmatprep.subr.mxu0 0.0
    %1164 = vmatpush1.msra.mxu0 0.0
    %1165 = vmatprep.subr.mxu0 0.0
    %1166 = vmatpush1.msra.mxu0 0.0
    %1167 = vmatprep.subr.mxu0 0.0
    %1168 = vmatpush1.msra.mxu0 0.0
    %1169 = vmatprep.subr.mxu0 0.0
    %1170 = vmatpush1.msra.mxu0 0.0
    %1171 = vmatprep.subr.mxu0 0.0
    %1172 = vmatpush1.msra.mxu0 0.0
    %1173 = vmatprep.subr.mxu0 0.0
    %1174 = vmatpush1.msra.mxu0 0.0
    %1175 = vmatprep.subr.mxu0 0.0
    %1176 = vmatpush1.msra.mxu0 0.0
    %1177 = vmatprep.subr.mxu0 0.0
    %1178 = vmatpush1.msra.mxu0 0.0
    %1179 = vmatprep.subr.mxu0 0.0
    %1180 = vmatpush1.msra.mxu0 0.0
    %1181 = vmatprep.subr.mxu0 0.0
    %1182 = vmatpush1.msra.mxu0 0.0
    %1183 = vmatprep.subr.mxu0 0.0
    %1184 = vmatpush1.msra.mxu0 0.0
    %1185 = vmatprep.subr.mxu0 0.0
    %1186 = vmatpush1.msra.mxu0 0.0
    %1187 = vmatprep.subr.mxu0 0.0
    %1188 = vmatpush1.msra.mxu0 0.0
    %1189 = vmatprep.subr.mxu0 0.0
    %1190 = vmatpush1.msra.mxu0 0.0
    %1191 = vmatprep.subr.mxu0 0.0
    %1192 = vmatpush1.msra.mxu0 0.0
    %1193 = vmatprep.subr.mxu0 0.0
    %1194 = vmatpush1.msra.mxu0 0.0
    %1195 = vmatprep.subr.mxu0 0.0
    %1196 = vmatpush1.msra.mxu0 0.0
    %1197 = vmatprep.mubr.f32.mxu0 0.0
    %1198 = vmatmul.mubr.f32.gmra.mrb[0].mxu0 %v1115
    %v1199 = vpop.f32.mrb[0].mxu0
    %v1200 = vadd.f32 %v1106, %v1199
    %v1201 = vpop.f32.mrb[0].mxu0
    %v1202 = vadd.f32 %v1106, %v1201
    %1203 = vmatprep.mubr.f32.mxu0 0.0
    %1204 = vmatmul.mubr.f32.gmra.mrb[0].mxu0 %v1118
    %v1205 = vpop.f32.mrb[0].mxu0
    %v1206 = vadd.f32 %v1111, %v1205
    %v1207 = vpop.f32.mrb[0].mxu0
    %v1208 = vadd.f32 %v1111, %v1207
    %1209 = vdwg.mxu0
    %1210 = vmatprep.subr.mxu0 %v1054
    %1211 = vmatpush1.msra.mxu0 %v1053
    %1212 = vmatprep.subr.mxu0 %v1058
    %1213 = vmatpush1.msra.mxu0 %v1057
    %1214 = vmatprep.subr.mxu0 %v1062
    %1215 = vmatpush1.msra.mxu0 %v1061
    %1216 = vmatprep.subr.mxu0 %v1066
    %1217 = vmatpush1.msra.mxu0 %v1065
    %1218 = vmatprep.subr.mxu0 %v1070
    %1219 = vmatpush1.msra.mxu0 %v1069
    %1220 = vmatprep.subr.mxu0 %v1074
    %1221 = vmatpush1.msra.mxu0 %v1073
    %1222 = vmatprep.subr.mxu0 %v1078
    %1223 = vmatpush1.msra.mxu0 %v1077
    %1224 = vmatprep.subr.mxu0 %v1082
    %1225 = vmatpush1.msra.mxu0 %v1081
    %1226 = vmatprep.subr.mxu0 %v1086
    %1227 = vmatpush1.msra.mxu0 %v1085
    %1228 = vmatprep.subr.mxu0 %v1090
    %1229 = vmatpush1.msra.mxu0 %v1089
    %1230 = vmatprep.subr.mxu0 %v1094
    %1231 = vmatpush1.msra.mxu0 %v1093
    %1232 = vmatprep.subr.mxu0 %v1098
    %1233 = vmatpush1.msra.mxu0 %v1097
    %1234 = vmatprep.subr.mxu0 %v1131
    %1235 = vmatpush1.msra.mxu0 %v1128
    %1236 = vmatprep.subr.mxu0 0.0
    %1237 = vmatpush1.msra.mxu0 0.0
    %1238 = vmatprep.subr.mxu0 0.0
    %1239 = vmatpush1.msra.mxu0 0.0
    %1240 = vmatprep.subr.mxu0 0.0
    %1241 = vmatpush1.msra.mxu0 0.0
    %1242 = vmatprep.subr.mxu0 0.0
    %1243 = vmatpush1.msra.mxu0 0.0
    %1244 = vmatprep.subr.mxu0 0.0
    %1245 = vmatpush1.msra.mxu0 0.0
    %1246 = vmatprep.subr.mxu0 0.0
    %1247 = vmatpush1.msra.mxu0 0.0
    %1248 = vmatprep.subr.mxu0 0.0
    %1249 = vmatpush1.msra.mxu0 0.0
    %1250 = vmatprep.subr.mxu0 0.0
    %1251 = vmatpush1.msra.mxu0 0.0
    %1252 = vmatprep.subr.mxu0 0.0
    %1253 = vmatpush1.msra.mxu0 0.0
    %1254 = vmatprep.subr.mxu0 0.0
    %1255 = vmatpush1.msra.mxu0 0.0
    %1256 = vmatprep.subr.mxu0 0.0
    %1257 = vmatpush1.msra.mxu0 0.0
    %1258 = vmatprep.subr.mxu0 0.0
    %1259 = vmatpush1.msra.mxu0 0.0
    %1260 = vmatprep.subr.mxu0 0.0
    %1261 = vmatpush1.msra.mxu0 0.0
    %1262 = vmatprep.subr.mxu0 0.0
    %1263 = vmatpush1.msra.mxu0 0.0
    %1264 = vmatprep.subr.mxu0 0.0
    %1265 = vmatpush1.msra.mxu0 0.0
    %1266 = vmatprep.subr.mxu0 0.0
    %1267 = vmatpush1.msra.mxu0 0.0
    %1268 = vmatprep.subr.mxu0 0.0
    %1269 = vmatpush1.msra.mxu0 0.0
    %1270 = vmatprep.subr.mxu0 0.0
    %1271 = vmatpush1.msra.mxu0 0.0
    %1272 = vmatprep.subr.mxu0 0.0
    %1273 = vmatpush1.msra.mxu0 0.0
    %1274 = vmatprep.mubr.f32.mxu0 0.0
    %1275 = vmatmul.mubr.f32.gmra.mrb[0].mxu0 %v1115
    %v1276 = vpop.f32.mrb[0].mxu0
    %v1277 = vadd.f32 %v1106, %v1276
    %v1278 = vpop.f32.mrb[0].mxu0
    %v1279 = vadd.f32 %v1106, %v1278
    %1280 = vmatprep.mubr.f32.mxu0 0.0
    %1281 = vmatmul.mubr.f32.gmra.mrb[0].mxu0 %v1118
    %v1282 = vpop.f32.mrb[0].mxu0
    %v1283 = vadd.f32 %v1111, %v1282
    %v1284 = vpop.f32.mrb[0].mxu0
    %v1285 = vadd.f32 %v1111, %v1284
    %1286 = vdwg.mxu0
    %v1295 = vrot.slane %v1200, 4
    %v1296 = vrot.slane %v1202, 4
    %v1297 = vrot.slane %v1277, 4
    %v1298 = vrot.slane %v1279, 4
    %v1299 = vrot.slane %v1206, 4
    %v1300 = vsel %vm1120, %v1295, %v1299
    %v1301 = vrot.slane %v1208, 4
    %v1302 = vsel %vm1120, %v1296, %v1301
    %v1303 = vrot.slane %v1283, 4
    %v1304 = vsel %vm1120, %v1297, %v1303
    %v1305 = vrot.slane %v1285, 4
    %v1306 = vsel %vm1120, %v1298, %v1305
    %1315 = vst [vmem:[#allocation2] sm:$0xf0] %v1295
    %1316 = vst [vmem:[#allocation2 + $0x8] sm:$0xf0] %v1296
    %1317 = vst [vmem:[#allocation2 + $0x10] sm:$0xf0] %v1297
    %1318 = vst [vmem:[#allocation2 + $0x18] sm:$0xf0] %v1298
    %1319 = vst [vmem:[#allocation2 + $0x20] sm:$0xff] %v1300
    %1320 = vst [vmem:[#allocation2 + $0x28] sm:$0xff] %v1302
    %1321 = vst [vmem:[#allocation2 + $0x30] sm:$0xff] %v1304
    %1322 = vst [vmem:[#allocation2 + $0x38] sm:$0xff] %v1306
    %v1323 = vld [vmem:[%s2 + $0x10] sm:$0xff]
    %v1324 = vld [vmem:[%s2 + $0x18] sm:$0xff]
    %v1325 = vld [vmem:[%s2 + $0x20] sm:$0xff]
    %v1326 = vld [vmem:[%s2 + $0x28] sm:$0xff]
    %v1327 = vld [vmem:[%s2 + $0xd0] sm:$0xff]
    %v1328 = vld [vmem:[%s2 + $0xd8] sm:$0xf]
    %v1329 = vld [vmem:[#allocation2] sm:$0xff]
    %v1330 = vld [vmem:[#allocation2 + $0x8] sm:$0xff]
    %v1331 = vld [vmem:[#allocation2 + $0x10] sm:$0xff]
    %v1332 = vld [vmem:[#allocation2 + $0x18] sm:$0xff]
    %v1333 = vld [vmem:[#allocation2 + $0x20] sm:$0xff]
    %v1334 = vld [vmem:[#allocation2 + $0x28] sm:$0xff]
    %v1335 = vld [vmem:[#allocation2 + $0x30] sm:$0xff]
    %v1336 = vld [vmem:[#allocation2 + $0x38] sm:$0xff]
    %1338 = vset.pattern.permute.xlu0 0
    %1339 = vperm.xlu0 %1338, %v1323
    %v1340 = vpop.permute.xlu0 %1339
    %1343 = vset.pattern.permute.xlu0 0
    %1344 = vperm.xlu0 %1343, %v1324
    %v1345 = vpop.permute.xlu0 %1344
    %v1347 = vmul.f32 %v1329, %v1340
    %v1348 = vmul.f32 %v1330, %v1340
    %v1349 = vmul.f32 %v1331, %v1340
    %v1350 = vmul.f32 %v1332, %v1340
    %v1351 = vmul.f32 %v1333, %v1345
    %v1352 = vmul.f32 %v1334, %v1345
    %v1353 = vmul.f32 %v1335, %v1345
    %v1354 = vmul.f32 %v1336, %v1345
    %1356 = vset.pattern.permute.xlu0 0
    %1357 = vperm.xlu0 %1356, %v1325
    %v1358 = vpop.permute.xlu0 %1357
    %1361 = vset.pattern.permute.xlu0 0
    %1362 = vperm.xlu0 %1361, %v1326
    %v1363 = vpop.permute.xlu0 %1362
    %v1365 = vadd.f32 %v1347, %v1358
    %v1366 = vadd.f32 %v1348, %v1358
    %v1367 = vadd.f32 %v1349, %v1358
    %v1368 = vadd.f32 %v1350, %v1358
    %v1369 = vadd.f32 %v1351, %v1363
    %v1370 = vadd.f32 %v1352, %v1363
    %v1371 = vadd.f32 %v1353, %v1363
    %v1372 = vadd.f32 %v1354, %v1363
    %v1373 = vmax.f32 %v1365, 0.0
    %v1374 = vmax.f32 %v1366, 0.0
    %v1375 = vmax.f32 %v1367, 0.0
    %v1376 = vmax.f32 %v1368, 0.0
    %v1377 = vmax.f32 %v1369, 0.0
    %v1378 = vmax.f32 %v1370, 0.0
    %v1379 = vmax.f32 %v1371, 0.0
    %v1380 = vmax.f32 %v1372, 0.0
    %1381 = vrot.lane.b32.xlu0 %v1373, 68
    %v1382 = vpop.permute.xlu0 %1381
    %1383 = vrot.lane.b32.xlu0 %v1377, 68
    %v1384 = vpop.permute.xlu0 %1383
    %1385 = vrot.lane.b32.xlu0 %v1374, 68
    %v1386 = vpop.permute.xlu0 %1385
    %1387 = vrot.lane.b32.xlu0 %v1378, 68
    %v1388 = vpop.permute.xlu0 %1387
    %1389 = vrot.lane.b32.xlu0 %v1375, 68
    %v1390 = vpop.permute.xlu0 %1389
    %1391 = vrot.lane.b32.xlu0 %v1379, 68
    %v1392 = vpop.permute.xlu0 %1391
    %1393 = vrot.lane.b32.xlu0 %v1376, 68
    %v1394 = vpop.permute.xlu0 %1393
    %1395 = vrot.lane.b32.xlu0 %v1380, 68
    %v1396 = vpop.permute.xlu0 %1395
    %v1397 = vsel %vm470, %v1390, %v1394
    %v1398 = vsel %vm470, %v1392, %v1396
    %v1399 = vsel %vm470, %v1386, %v1390
    %v1400 = vsel %vm470, %v1388, %v1392
    %v1401 = vsel %vm470, %v1382, %v1386
    %v1402 = vsel %vm470, %v1384, %v1388
    %v1403 = vsel %vm470, %v1394, %v1382
    %v1404 = vsel %vm470, %v1396, %v1384
    %v1405 = vmul.f32 %v1403, %v60
    %v1406 = vmul.f32 %v1401, %v61
    %v1407 = vmul.f32 %v1399, %v62
    %v1408 = vmul.f32 %v1397, %v63
    %v1409 = vmul.f32 %v1404, %v60
    %v1410 = vmul.f32 %v1402, %v61
    %v1411 = vmul.f32 %v1400, %v62
    %v1412 = vmul.f32 %v1398, %v63
    %1413 = vst [vmem:[#allocation3] sm:$0xff] %v1405
    %1414 = vst [vmem:[#allocation3 + $0x8] sm:$0xff] %v1406
    %1415 = vst [vmem:[#allocation3 + $0x10] sm:$0xff] %v1407
    %1416 = vst [vmem:[#allocation3 + $0x18] sm:$0xff] %v1408
    %1417 = vst [vmem:[#allocation3 + $0x20] sm:$0xff] %v1409
    %1418 = vst [vmem:[#allocation3 + $0x28] sm:$0xff] %v1410
    %1419 = vst [vmem:[#allocation3 + $0x30] sm:$0xff] %v1411
    %1420 = vst [vmem:[#allocation3 + $0x38] sm:$0xff] %v1412
    %1421 = vrot.lane.b32.xlu0 %v1373, 66
    %v1422 = vpop.permute.xlu0 %1421
    %1423 = vrot.lane.b32.xlu0 %v1377, 66
    %v1424 = vpop.permute.xlu0 %1423
    %1425 = vrot.lane.b32.xlu0 %v1374, 66
    %v1426 = vpop.permute.xlu0 %1425
    %1427 = vrot.lane.b32.xlu0 %v1378, 66
    %v1428 = vpop.permute.xlu0 %1427
    %1429 = vrot.lane.b32.xlu0 %v1375, 66
    %v1430 = vpop.permute.xlu0 %1429
    %1431 = vrot.lane.b32.xlu0 %v1379, 66
    %v1432 = vpop.permute.xlu0 %1431
    %1433 = vrot.lane.b32.xlu0 %v1376, 66
    %v1434 = vpop.permute.xlu0 %1433
    %1435 = vrot.lane.b32.xlu0 %v1380, 66
    %v1436 = vpop.permute.xlu0 %1435
    %v1437 = vsel %vm491, %v1430, %v1434
    %v1438 = vsel %vm491, %v1432, %v1436
    %v1439 = vsel %vm491, %v1426, %v1430
    %v1440 = vsel %vm491, %v1428, %v1432
    %v1441 = vsel %vm491, %v1422, %v1426
    %v1442 = vsel %vm491, %v1424, %v1428
    %v1443 = vsel %vm491, %v1434, %v1422
    %v1444 = vsel %vm491, %v1436, %v1424
    %v1445 = vmul.f32 %v1443, %v80
    %v1446 = vmul.f32 %v1441, %v81
    %v1447 = vmul.f32 %v1439, %v82
    %v1448 = vmul.f32 %v1437, %v83
    %v1449 = vmul.f32 %v1444, %v80
    %v1450 = vmul.f32 %v1442, %v81
    %v1451 = vmul.f32 %v1440, %v82
    %v1452 = vmul.f32 %v1438, %v83
    %1453 = vst [vmem:[#allocation3 + $0x40] sm:$0xff] %v1445
    %1454 = vst [vmem:[#allocation3 + $0x48] sm:$0xff] %v1446
    %1455 = vst [vmem:[#allocation3 + $0x50] sm:$0xff] %v1447
    %1456 = vst [vmem:[#allocation3 + $0x58] sm:$0xff] %v1448
    %1457 = vst [vmem:[#allocation3 + $0x60] sm:$0xff] %v1449
    %1458 = vst [vmem:[#allocation3 + $0x68] sm:$0xff] %v1450
    %1459 = vst [vmem:[#allocation3 + $0x70] sm:$0xff] %v1451
    %1460 = vst [vmem:[#allocation3 + $0x78] sm:$0xff] %v1452
    %1461 = vrot.lane.b32.xlu0 %v1373, 64
    %v1462 = vpop.permute.xlu0 %1461
    %1463 = vrot.lane.b32.xlu0 %v1377, 64
    %v1464 = vpop.permute.xlu0 %1463
    %1465 = vrot.lane.b32.xlu0 %v1374, 64
    %v1466 = vpop.permute.xlu0 %1465
    %1467 = vrot.lane.b32.xlu0 %v1378, 64
    %v1468 = vpop.permute.xlu0 %1467
    %1469 = vrot.lane.b32.xlu0 %v1375, 64
    %v1470 = vpop.permute.xlu0 %1469
    %1471 = vrot.lane.b32.xlu0 %v1379, 64
    %v1472 = vpop.permute.xlu0 %1471
    %1473 = vrot.lane.b32.xlu0 %v1376, 64
    %v1474 = vpop.permute.xlu0 %1473
    %1475 = vrot.lane.b32.xlu0 %v1380, 64
    %v1476 = vpop.permute.xlu0 %1475
    %v1477 = vsel %vm524, %v1470, %v1474
    %v1478 = vsel %vm524, %v1472, %v1476
    %v1479 = vsel %vm524, %v1466, %v1470
    %v1480 = vsel %vm524, %v1468, %v1472
    %v1481 = vsel %vm524, %v1462, %v1466
    %v1482 = vsel %vm524, %v1464, %v1468
    %v1483 = vsel %vm524, %v1474, %v1462
    %v1484 = vsel %vm524, %v1476, %v1464
    %v1485 = vmul.f32 %v1483, %v100
    %v1486 = vmul.f32 %v1481, %v101
    %v1487 = vmul.f32 %v1479, %v102
    %v1488 = vmul.f32 %v1477, %v103
    %v1489 = vmul.f32 %v1484, %v100
    %v1490 = vmul.f32 %v1482, %v101
    %v1491 = vmul.f32 %v1480, %v102
    %v1492 = vmul.f32 %v1478, %v103
    %1493 = vst [vmem:[#allocation3 + $0x80] sm:$0xff] %v1485
    %1494 = vst [vmem:[#allocation3 + $0x88] sm:$0xff] %v1486
    %1495 = vst [vmem:[#allocation3 + $0x90] sm:$0xff] %v1487
    %1496 = vst [vmem:[#allocation3 + $0x98] sm:$0xff] %v1488
    %1497 = vst [vmem:[#allocation3 + $0xa0] sm:$0xff] %v1489
    %1498 = vst [vmem:[#allocation3 + $0xa8] sm:$0xff] %v1490
    %1499 = vst [vmem:[#allocation3 + $0xb0] sm:$0xff] %v1491
    %1500 = vst [vmem:[#allocation3 + $0xb8] sm:$0xff] %v1492
    %1501 = vrot.lane.b32.xlu0 %v1373, 62
    %v1502 = vpop.permute.xlu0 %1501
    %1503 = vrot.lane.b32.xlu0 %v1377, 62
    %v1504 = vpop.permute.xlu0 %1503
    %1505 = vrot.lane.b32.xlu0 %v1374, 62
    %v1506 = vpop.permute.xlu0 %1505
    %1507 = vrot.lane.b32.xlu0 %v1378, 62
    %v1508 = vpop.permute.xlu0 %1507
    %1509 = vrot.lane.b32.xlu0 %v1375, 62
    %v1510 = vpop.permute.xlu0 %1509
    %1511 = vrot.lane.b32.xlu0 %v1379, 62
    %v1512 = vpop.permute.xlu0 %1511
    %1513 = vrot.lane.b32.xlu0 %v1376, 62
    %v1514 = vpop.permute.xlu0 %1513
    %1515 = vrot.lane.b32.xlu0 %v1380, 62
    %v1516 = vpop.permute.xlu0 %1515
    %v1517 = vsel %vm545, %v1510, %v1514
    %v1518 = vsel %vm545, %v1512, %v1516
    %v1519 = vsel %vm545, %v1506, %v1510
    %v1520 = vsel %vm545, %v1508, %v1512
    %v1521 = vsel %vm545, %v1502, %v1506
    %v1522 = vsel %vm545, %v1504, %v1508
    %v1523 = vsel %vm545, %v1514, %v1502
    %v1524 = vsel %vm545, %v1516, %v1504
    %v1525 = vmul.f32 %v1523, %v120
    %v1526 = vmul.f32 %v1521, %v121
    %v1527 = vmul.f32 %v1519, %v122
    %v1528 = vmul.f32 %v1517, %v123
    %v1529 = vmul.f32 %v1524, %v120
    %v1530 = vmul.f32 %v1522, %v121
    %v1531 = vmul.f32 %v1520, %v122
    %v1532 = vmul.f32 %v1518, %v123
    %1533 = vst [vmem:[#allocation3 + $0xc0] sm:$0xff] %v1525
    %1534 = vst [vmem:[#allocation3 + $0xc8] sm:$0xff] %v1526
    %1535 = vst [vmem:[#allocation3 + $0xd0] sm:$0xff] %v1527
    %1536 = vst [vmem:[#allocation3 + $0xd8] sm:$0xff] %v1528
    %1537 = vst [vmem:[#allocation3 + $0xe0] sm:$0xff] %v1529
    %1538 = vst [vmem:[#allocation3 + $0xe8] sm:$0xff] %v1530
    %1539 = vst [vmem:[#allocation3 + $0xf0] sm:$0xff] %v1531
    %1540 = vst [vmem:[#allocation3 + $0xf8] sm:$0xff] %v1532
    %1541 = vrot.lane.b32.xlu0 %v1373, 60
    %v1542 = vpop.permute.xlu0 %1541
    %1543 = vrot.lane.b32.xlu0 %v1377, 60
    %v1544 = vpop.permute.xlu0 %1543
    %1545 = vrot.lane.b32.xlu0 %v1374, 60
    %v1546 = vpop.permute.xlu0 %1545
    %1547 = vrot.lane.b32.xlu0 %v1378, 60
    %v1548 = vpop.permute.xlu0 %1547
    %1549 = vrot.lane.b32.xlu0 %v1375, 60
    %v1550 = vpop.permute.xlu0 %1549
    %1551 = vrot.lane.b32.xlu0 %v1379, 60
    %v1552 = vpop.permute.xlu0 %1551
    %1553 = vrot.lane.b32.xlu0 %v1376, 60
    %v1554 = vpop.permute.xlu0 %1553
    %1555 = vrot.lane.b32.xlu0 %v1380, 60
    %v1556 = vpop.permute.xlu0 %1555
    %v1557 = vsel %vm578, %v1550, %v1554
    %v1558 = vsel %vm578, %v1552, %v1556
    %v1559 = vsel %vm578, %v1546, %v1550
    %v1560 = vsel %vm578, %v1548, %v1552
    %v1561 = vsel %vm578, %v1542, %v1546
    %v1562 = vsel %vm578, %v1544, %v1548
    %v1563 = vsel %vm578, %v1554, %v1542
    %v1564 = vsel %vm578, %v1556, %v1544
    %v1565 = vmul.f32 %v1563, %v140
    %v1566 = vmul.f32 %v1561, %v141
    %v1567 = vmul.f32 %v1559, %v142
    %v1568 = vmul.f32 %v1557, %v143
    %v1569 = vmul.f32 %v1564, %v140
    %v1570 = vmul.f32 %v1562, %v141
    %v1571 = vmul.f32 %v1560, %v142
    %v1572 = vmul.f32 %v1558, %v143
    %1573 = vst [vmem:[#allocation3 + $0x100] sm:$0xff] %v1565
    %1574 = vst [vmem:[#allocation3 + $0x108] sm:$0xff] %v1566
    %1575 = vst [vmem:[#allocation3 + $0x110] sm:$0xff] %v1567
    %1576 = vst [vmem:[#allocation3 + $0x118] sm:$0xff] %v1568
    %1577 = vst [vmem:[#allocation3 + $0x120] sm:$0xff] %v1569
    %1578 = vst [vmem:[#allocation3 + $0x128] sm:$0xff] %v1570
    %1579 = vst [vmem:[#allocation3 + $0x130] sm:$0xff] %v1571
    %1580 = vst [vmem:[#allocation3 + $0x138] sm:$0xff] %v1572
    %1581 = vrot.lane.b32.xlu0 %v1373, 36
    %v1582 = vpop.permute.xlu0 %1581
    %1583 = vrot.lane.b32.xlu0 %v1377, 36
    %v1584 = vpop.permute.xlu0 %1583
    %1585 = vrot.lane.b32.xlu0 %v1374, 36
    %v1586 = vpop.permute.xlu0 %1585
    %1587 = vrot.lane.b32.xlu0 %v1378, 36
    %v1588 = vpop.permute.xlu0 %1587
    %1589 = vrot.lane.b32.xlu0 %v1375, 36
    %v1590 = vpop.permute.xlu0 %1589
    %1591 = vrot.lane.b32.xlu0 %v1379, 36
    %v1592 = vpop.permute.xlu0 %1591
    %1593 = vrot.lane.b32.xlu0 %v1376, 36
    %v1594 = vpop.permute.xlu0 %1593
    %1595 = vrot.lane.b32.xlu0 %v1380, 36
    %v1596 = vpop.permute.xlu0 %1595
    %v1597 = vsel %vm599, %v1590, %v1594
    %v1598 = vsel %vm599, %v1592, %v1596
    %v1599 = vsel %vm599, %v1586, %v1590
    %v1600 = vsel %vm599, %v1588, %v1592
    %v1601 = vsel %vm599, %v1582, %v1586
    %v1602 = vsel %vm599, %v1584, %v1588
    %v1603 = vsel %vm599, %v1594, %v1582
    %v1604 = vsel %vm599, %v1596, %v1584
    %v1605 = vmul.f32 %v1603, %v164
    %v1606 = vmul.f32 %v1601, %v165
    %v1607 = vmul.f32 %v1599, %v166
    %v1608 = vmul.f32 %v1597, %v167
    %v1609 = vmul.f32 %v1604, %v164
    %v1610 = vmul.f32 %v1602, %v165
    %v1611 = vmul.f32 %v1600, %v166
    %v1612 = vmul.f32 %v1598, %v167
    %1613 = vst [vmem:[#allocation3 + $0x140] sm:$0xff] %v1605
    %1614 = vst [vmem:[#allocation3 + $0x148] sm:$0xff] %v1606
    %1615 = vst [vmem:[#allocation3 + $0x150] sm:$0xff] %v1607
    %1616 = vst [vmem:[#allocation3 + $0x158] sm:$0xff] %v1608
    %1617 = vst [vmem:[#allocation3 + $0x160] sm:$0xff] %v1609
    %1618 = vst [vmem:[#allocation3 + $0x168] sm:$0xff] %v1610
    %1619 = vst [vmem:[#allocation3 + $0x170] sm:$0xff] %v1611
    %1620 = vst [vmem:[#allocation3 + $0x178] sm:$0xff] %v1612
    %1621 = vrot.lane.b32.xlu0 %v1373, 34
    %v1622 = vpop.permute.xlu0 %1621
    %1623 = vrot.lane.b32.xlu0 %v1377, 34
    %v1624 = vpop.permute.xlu0 %1623
    %1625 = vrot.lane.b32.xlu0 %v1374, 34
    %v1626 = vpop.permute.xlu0 %1625
    %1627 = vrot.lane.b32.xlu0 %v1378, 34
    %v1628 = vpop.permute.xlu0 %1627
    %1629 = vrot.lane.b32.xlu0 %v1375, 34
    %v1630 = vpop.permute.xlu0 %1629
    %1631 = vrot.lane.b32.xlu0 %v1379, 34
    %v1632 = vpop.permute.xlu0 %1631
    %1633 = vrot.lane.b32.xlu0 %v1376, 34
    %v1634 = vpop.permute.xlu0 %1633
    %1635 = vrot.lane.b32.xlu0 %v1380, 34
    %v1636 = vpop.permute.xlu0 %1635
    %v1637 = vsel %vm632, %v1630, %v1634
    %v1638 = vsel %vm632, %v1632, %v1636
    %v1639 = vsel %vm632, %v1626, %v1630
    %v1640 = vsel %vm632, %v1628, %v1632
    %v1641 = vsel %vm632, %v1622, %v1626
    %v1642 = vsel %vm632, %v1624, %v1628
    %v1643 = vsel %vm632, %v1634, %v1622
    %v1644 = vsel %vm632, %v1636, %v1624
    %v1645 = vmul.f32 %v1643, %v176
    %v1646 = vmul.f32 %v1641, %v177
    %v1647 = vmul.f32 %v1639, %v178
    %v1648 = vmul.f32 %v1637, %v179
    %v1649 = vmul.f32 %v1644, %v176
    %v1650 = vmul.f32 %v1642, %v177
    %v1651 = vmul.f32 %v1640, %v178
    %v1652 = vmul.f32 %v1638, %v179
    %1653 = vst [vmem:[#allocation3 + $0x180] sm:$0xff] %v1645
    %1654 = vst [vmem:[#allocation3 + $0x188] sm:$0xff] %v1646
    %1655 = vst [vmem:[#allocation3 + $0x190] sm:$0xff] %v1647
    %1656 = vst [vmem:[#allocation3 + $0x198] sm:$0xff] %v1648
    %1657 = vst [vmem:[#allocation3 + $0x1a0] sm:$0xff] %v1649
    %1658 = vst [vmem:[#allocation3 + $0x1a8] sm:$0xff] %v1650
    %1659 = vst [vmem:[#allocation3 + $0x1b0] sm:$0xff] %v1651
    %1660 = vst [vmem:[#allocation3 + $0x1b8] sm:$0xff] %v1652
    %1661 = vrot.lane.b32.xlu0 %v1373, 32
    %v1662 = vpop.permute.xlu0 %1661
    %1663 = vrot.lane.b32.xlu0 %v1377, 32
    %v1664 = vpop.permute.xlu0 %1663
    %1665 = vrot.lane.b32.xlu0 %v1374, 32
    %v1666 = vpop.permute.xlu0 %1665
    %1667 = vrot.lane.b32.xlu0 %v1378, 32
    %v1668 = vpop.permute.xlu0 %1667
    %1669 = vrot.lane.b32.xlu0 %v1375, 32
    %v1670 = vpop.permute.xlu0 %1669
    %1671 = vrot.lane.b32.xlu0 %v1379, 32
    %v1672 = vpop.permute.xlu0 %1671
    %1673 = vrot.lane.b32.xlu0 %v1376, 32
    %v1674 = vpop.permute.xlu0 %1673
    %1675 = vrot.lane.b32.xlu0 %v1380, 32
    %v1676 = vpop.permute.xlu0 %1675
    %v1677 = vsel %vm653, %v1670, %v1674
    %v1678 = vsel %vm653, %v1672, %v1676
    %v1679 = vsel %vm653, %v1666, %v1670
    %v1680 = vsel %vm653, %v1668, %v1672
    %v1681 = vsel %vm653, %v1662, %v1666
    %v1682 = vsel %vm653, %v1664, %v1668
    %v1683 = vsel %vm653, %v1674, %v1662
    %v1684 = vsel %vm653, %v1676, %v1664
    %v1685 = vmul.f32 %v1683, %v188
    %v1686 = vmul.f32 %v1681, %v189
    %v1687 = vmul.f32 %v1679, %v190
    %v1688 = vmul.f32 %v1677, %v191
    %v1689 = vmul.f32 %v1684, %v188
    %v1690 = vmul.f32 %v1682, %v189
    %v1691 = vmul.f32 %v1680, %v190
    %v1692 = vmul.f32 %v1678, %v191
    %1693 = vst [vmem:[#allocation3 + $0x1c0] sm:$0xff] %v1685
    %1694 = vst [vmem:[#allocation3 + $0x1c8] sm:$0xff] %v1686
    %1695 = vst [vmem:[#allocation3 + $0x1d0] sm:$0xff] %v1687
    %1696 = vst [vmem:[#allocation3 + $0x1d8] sm:$0xff] %v1688
    %1697 = vst [vmem:[#allocation3 + $0x1e0] sm:$0xff] %v1689
    %1698 = vst [vmem:[#allocation3 + $0x1e8] sm:$0xff] %v1690
    %1699 = vst [vmem:[#allocation3 + $0x1f0] sm:$0xff] %v1691
    %1700 = vst [vmem:[#allocation3 + $0x1f8] sm:$0xff] %v1692
    %1701 = vrot.lane.b32.xlu0 %v1373, 30
    %v1702 = vpop.permute.xlu0 %1701
    %1703 = vrot.lane.b32.xlu0 %v1377, 30
    %v1704 = vpop.permute.xlu0 %1703
    %1705 = vrot.lane.b32.xlu0 %v1374, 30
    %v1706 = vpop.permute.xlu0 %1705
    %1707 = vrot.lane.b32.xlu0 %v1378, 30
    %v1708 = vpop.permute.xlu0 %1707
    %1709 = vrot.lane.b32.xlu0 %v1375, 30
    %v1710 = vpop.permute.xlu0 %1709
    %1711 = vrot.lane.b32.xlu0 %v1379, 30
    %v1712 = vpop.permute.xlu0 %1711
    %1713 = vrot.lane.b32.xlu0 %v1376, 30
    %v1714 = vpop.permute.xlu0 %1713
    %1715 = vrot.lane.b32.xlu0 %v1380, 30
    %v1716 = vpop.permute.xlu0 %1715
    %v1717 = vsel %vm686, %v1710, %v1714
    %v1718 = vsel %vm686, %v1712, %v1716
    %v1719 = vsel %vm686, %v1706, %v1710
    %v1720 = vsel %vm686, %v1708, %v1712
    %v1721 = vsel %vm686, %v1702, %v1706
    %v1722 = vsel %vm686, %v1704, %v1708
    %v1723 = vsel %vm686, %v1714, %v1702
    %v1724 = vsel %vm686, %v1716, %v1704
    %v1725 = vmul.f32 %v1723, %v200
    %v1726 = vmul.f32 %v1721, %v201
    %v1727 = vmul.f32 %v1719, %v202
    %v1728 = vmul.f32 %v1717, %v203
    %v1729 = vmul.f32 %v1724, %v200
    %v1730 = vmul.f32 %v1722, %v201
    %v1731 = vmul.f32 %v1720, %v202
    %v1732 = vmul.f32 %v1718, %v203
    %1733 = vst [vmem:[#allocation3 + $0x200] sm:$0xff] %v1725
    %1734 = vst [vmem:[#allocation3 + $0x208] sm:$0xff] %v1726
    %1735 = vst [vmem:[#allocation3 + $0x210] sm:$0xff] %v1727
    %1736 = vst [vmem:[#allocation3 + $0x218] sm:$0xff] %v1728
    %1737 = vst [vmem:[#allocation3 + $0x220] sm:$0xff] %v1729
    %1738 = vst [vmem:[#allocation3 + $0x228] sm:$0xff] %v1730
    %1739 = vst [vmem:[#allocation3 + $0x230] sm:$0xff] %v1731
    %1740 = vst [vmem:[#allocation3 + $0x238] sm:$0xff] %v1732
    %1741 = vrot.lane.b32.xlu0 %v1373, 28
    %v1742 = vpop.permute.xlu0 %1741
    %1743 = vrot.lane.b32.xlu0 %v1377, 28
    %v1744 = vpop.permute.xlu0 %1743
    %1745 = vrot.lane.b32.xlu0 %v1374, 28
    %v1746 = vpop.permute.xlu0 %1745
    %1747 = vrot.lane.b32.xlu0 %v1378, 28
    %v1748 = vpop.permute.xlu0 %1747
    %1749 = vrot.lane.b32.xlu0 %v1375, 28
    %v1750 = vpop.permute.xlu0 %1749
    %1751 = vrot.lane.b32.xlu0 %v1379, 28
    %v1752 = vpop.permute.xlu0 %1751
    %1753 = vrot.lane.b32.xlu0 %v1376, 28
    %v1754 = vpop.permute.xlu0 %1753
    %1755 = vrot.lane.b32.xlu0 %v1380, 28
    %v1756 = vpop.permute.xlu0 %1755
    %v1757 = vsel %vm707, %v1750, %v1754
    %v1758 = vsel %vm707, %v1752, %v1756
    %v1759 = vsel %vm707, %v1746, %v1750
    %v1760 = vsel %vm707, %v1748, %v1752
    %v1761 = vsel %vm707, %v1742, %v1746
    %v1762 = vsel %vm707, %v1744, %v1748
    %v1763 = vsel %vm707, %v1754, %v1742
    %v1764 = vsel %vm707, %v1756, %v1744
    %v1765 = vmul.f32 %v1763, %v212
    %v1766 = vmul.f32 %v1761, %v213
    %v1767 = vmul.f32 %v1759, %v214
    %v1768 = vmul.f32 %v1757, %v215
    %v1769 = vmul.f32 %v1764, %v212
    %v1770 = vmul.f32 %v1762, %v213
    %v1771 = vmul.f32 %v1760, %v214
    %v1772 = vmul.f32 %v1758, %v215
    %1773 = vst [vmem:[#allocation3 + $0x240] sm:$0xff] %v1765
    %1774 = vst [vmem:[#allocation3 + $0x248] sm:$0xff] %v1766
    %1775 = vst [vmem:[#allocation3 + $0x250] sm:$0xff] %v1767
    %1776 = vst [vmem:[#allocation3 + $0x258] sm:$0xff] %v1768
    %1777 = vst [vmem:[#allocation3 + $0x260] sm:$0xff] %v1769
    %1778 = vst [vmem:[#allocation3 + $0x268] sm:$0xff] %v1770
    %1779 = vst [vmem:[#allocation3 + $0x270] sm:$0xff] %v1771
    %1780 = vst [vmem:[#allocation3 + $0x278] sm:$0xff] %v1772
    %1781 = vrot.lane.b32.xlu0 %v1373, 4
    %v1782 = vpop.permute.xlu0 %1781
    %1783 = vrot.lane.b32.xlu0 %v1377, 4
    %v1784 = vpop.permute.xlu0 %1783
    %1785 = vrot.lane.b32.xlu0 %v1374, 4
    %v1786 = vpop.permute.xlu0 %1785
    %1787 = vrot.lane.b32.xlu0 %v1378, 4
    %v1788 = vpop.permute.xlu0 %1787
    %1789 = vrot.lane.b32.xlu0 %v1375, 4
    %v1790 = vpop.permute.xlu0 %1789
    %1791 = vrot.lane.b32.xlu0 %v1379, 4
    %v1792 = vpop.permute.xlu0 %1791
    %1793 = vrot.lane.b32.xlu0 %v1376, 4
    %v1794 = vpop.permute.xlu0 %1793
    %1795 = vrot.lane.b32.xlu0 %v1380, 4
    %v1796 = vpop.permute.xlu0 %1795
    %v1797 = vsel %vm740, %v1790, %v1794
    %v1798 = vsel %vm740, %v1792, %v1796
    %v1799 = vsel %vm740, %v1786, %v1790
    %v1800 = vsel %vm740, %v1788, %v1792
    %v1801 = vsel %vm740, %v1782, %v1786
    %v1802 = vsel %vm740, %v1784, %v1788
    %v1803 = vsel %vm740, %v1794, %v1782
    %v1804 = vsel %vm740, %v1796, %v1784
    %v1805 = vmul.f32 %v1803, %v236
    %v1806 = vmul.f32 %v1801, %v237
    %v1807 = vmul.f32 %v1799, %v238
    %v1808 = vmul.f32 %v1797, %v239
    %v1809 = vmul.f32 %v1804, %v236
    %v1810 = vmul.f32 %v1802, %v237
    %v1811 = vmul.f32 %v1800, %v238
    %v1812 = vmul.f32 %v1798, %v239
    %1813 = vst [vmem:[#allocation3 + $0x280] sm:$0xff] %v1805
    %1814 = vst [vmem:[#allocation3 + $0x288] sm:$0xff] %v1806
    %1815 = vst [vmem:[#allocation3 + $0x290] sm:$0xff] %v1807
    %1816 = vst [vmem:[#allocation3 + $0x298] sm:$0xff] %v1808
    %1817 = vst [vmem:[#allocation3 + $0x2a0] sm:$0xff] %v1809
    %1818 = vst [vmem:[#allocation3 + $0x2a8] sm:$0xff] %v1810
    %1819 = vst [vmem:[#allocation3 + $0x2b0] sm:$0xff] %v1811
    %1820 = vst [vmem:[#allocation3 + $0x2b8] sm:$0xff] %v1812
    %1821 = vrot.lane.b32.xlu0 %v1373, 2
    %v1822 = vpop.permute.xlu0 %1821
    %1823 = vrot.lane.b32.xlu0 %v1377, 2
    %v1824 = vpop.permute.xlu0 %1823
    %1825 = vrot.lane.b32.xlu0 %v1374, 2
    %v1826 = vpop.permute.xlu0 %1825
    %1827 = vrot.lane.b32.xlu0 %v1378, 2
    %v1828 = vpop.permute.xlu0 %1827
    %1829 = vrot.lane.b32.xlu0 %v1375, 2
    %v1830 = vpop.permute.xlu0 %1829
    %1831 = vrot.lane.b32.xlu0 %v1379, 2
    %v1832 = vpop.permute.xlu0 %1831
    %1833 = vrot.lane.b32.xlu0 %v1376, 2
    %v1834 = vpop.permute.xlu0 %1833
    %1835 = vrot.lane.b32.xlu0 %v1380, 2
    %v1836 = vpop.permute.xlu0 %1835
    %v1837 = vsel %vm761, %v1830, %v1834
    %v1838 = vsel %vm761, %v1832, %v1836
    %v1839 = vsel %vm761, %v1826, %v1830
    %v1840 = vsel %vm761, %v1828, %v1832
    %v1841 = vsel %vm761, %v1822, %v1826
    %v1842 = vsel %vm761, %v1824, %v1828
    %v1843 = vsel %vm761, %v1834, %v1822
    %v1844 = vsel %vm761, %v1836, %v1824
    %v1845 = vmul.f32 %v1843, %v248
    %v1846 = vmul.f32 %v1841, %v249
    %v1847 = vmul.f32 %v1839, %v250
    %v1848 = vmul.f32 %v1837, %v251
    %v1849 = vmul.f32 %v1844, %v248
    %v1850 = vmul.f32 %v1842, %v249
    %v1851 = vmul.f32 %v1840, %v250
    %v1852 = vmul.f32 %v1838, %v251
    %1853 = vst [vmem:[#allocation3 + $0x2c0] sm:$0xff] %v1845
    %1854 = vst [vmem:[#allocation3 + $0x2c8] sm:$0xff] %v1846
    %1855 = vst [vmem:[#allocation3 + $0x2d0] sm:$0xff] %v1847
    %1856 = vst [vmem:[#allocation3 + $0x2d8] sm:$0xff] %v1848
    %1857 = vst [vmem:[#allocation3 + $0x2e0] sm:$0xff] %v1849
    %1858 = vst [vmem:[#allocation3 + $0x2e8] sm:$0xff] %v1850
    %1859 = vst [vmem:[#allocation3 + $0x2f0] sm:$0xff] %v1851
    %1860 = vst [vmem:[#allocation3 + $0x2f8] sm:$0xff] %v1852
    %1861 = vst [vmem:[#allocation3 + $0x300] sm:$0xff] %v1373
    %1862 = vst [vmem:[#allocation3 + $0x308] sm:$0xff] %v1374
    %1863 = vst [vmem:[#allocation3 + $0x310] sm:$0xff] %v1375
    %1864 = vst [vmem:[#allocation3 + $0x318] sm:$0xff] %v1376
    %1865 = vst [vmem:[#allocation3 + $0x320] sm:$0xff] %v1377
    %1866 = vst [vmem:[#allocation3 + $0x328] sm:$0xff] %v1378
    %1867 = vst [vmem:[#allocation3 + $0x330] sm:$0xff] %v1379
    %1868 = vst [vmem:[#allocation3 + $0x338] sm:$0xff] %v1380
    %1869 = vrot.lane.b32.xlu0 %v1373, 126
    %v1870 = vpop.permute.xlu0 %1869
    %1871 = vrot.lane.b32.xlu0 %v1377, 126
    %v1872 = vpop.permute.xlu0 %1871
    %1873 = vrot.lane.b32.xlu0 %v1374, 126
    %v1874 = vpop.permute.xlu0 %1873
    %1875 = vrot.lane.b32.xlu0 %v1378, 126
    %v1876 = vpop.permute.xlu0 %1875
    %1877 = vrot.lane.b32.xlu0 %v1375, 126
    %v1878 = vpop.permute.xlu0 %1877
    %1879 = vrot.lane.b32.xlu0 %v1379, 126
    %v1880 = vpop.permute.xlu0 %1879
    %1881 = vrot.lane.b32.xlu0 %v1376, 126
    %v1882 = vpop.permute.xlu0 %1881
    %1883 = vrot.lane.b32.xlu0 %v1380, 126
    %v1884 = vpop.permute.xlu0 %1883
    %v1885 = vsel %vm798, %v1878, %v1882
    %v1886 = vsel %vm798, %v1880, %v1884
    %v1887 = vsel %vm798, %v1874, %v1878
    %v1888 = vsel %vm798, %v1876, %v1880
    %v1889 = vsel %vm798, %v1870, %v1874
    %v1890 = vsel %vm798, %v1872, %v1876
    %v1891 = vsel %vm798, %v1882, %v1870
    %v1892 = vsel %vm798, %v1884, %v1872
    %v1893 = vmul.f32 %v1889, %v260
    %v1894 = vmul.f32 %v1887, %v261
    %v1895 = vmul.f32 %v1885, %v262
    %v1896 = vmul.f32 %v1891, %v263
    %v1897 = vmul.f32 %v1890, %v260
    %v1898 = vmul.f32 %v1888, %v261
    %v1899 = vmul.f32 %v1886, %v262
    %v1900 = vmul.f32 %v1892, %v263
    %1901 = vst [vmem:[#allocation3 + $0x340] sm:$0xff] %v1893
    %1902 = vst [vmem:[#allocation3 + $0x348] sm:$0xff] %v1894
    %1903 = vst [vmem:[#allocation3 + $0x350] sm:$0xff] %v1895
    %1904 = vst [vmem:[#allocation3 + $0x358] sm:$0xff] %v1896
    %1905 = vst [vmem:[#allocation3 + $0x360] sm:$0xff] %v1897
    %1906 = vst [vmem:[#allocation3 + $0x368] sm:$0xff] %v1898
    %1907 = vst [vmem:[#allocation3 + $0x370] sm:$0xff] %v1899
    %1908 = vst [vmem:[#allocation3 + $0x378] sm:$0xff] %v1900
    %1909 = vrot.lane.b32.xlu0 %v1373, 124
    %v1910 = vpop.permute.xlu0 %1909
    %1911 = vrot.lane.b32.xlu0 %v1377, 124
    %v1912 = vpop.permute.xlu0 %1911
    %1913 = vrot.lane.b32.xlu0 %v1374, 124
    %v1914 = vpop.permute.xlu0 %1913
    %1915 = vrot.lane.b32.xlu0 %v1378, 124
    %v1916 = vpop.permute.xlu0 %1915
    %1917 = vrot.lane.b32.xlu0 %v1375, 124
    %v1918 = vpop.permute.xlu0 %1917
    %1919 = vrot.lane.b32.xlu0 %v1379, 124
    %v1920 = vpop.permute.xlu0 %1919
    %1921 = vrot.lane.b32.xlu0 %v1376, 124
    %v1922 = vpop.permute.xlu0 %1921
    %1923 = vrot.lane.b32.xlu0 %v1380, 124
    %v1924 = vpop.permute.xlu0 %1923
    %v1925 = vsel %vm831, %v1918, %v1922
    %v1926 = vsel %vm831, %v1920, %v1924
    %v1927 = vsel %vm831, %v1914, %v1918
    %v1928 = vsel %vm831, %v1916, %v1920
    %v1929 = vsel %vm831, %v1910, %v1914
    %v1930 = vsel %vm831, %v1912, %v1916
    %v1931 = vsel %vm831, %v1922, %v1910
    %v1932 = vsel %vm831, %v1924, %v1912
    %v1933 = vmul.f32 %v1929, %v272
    %v1934 = vmul.f32 %v1927, %v273
    %v1935 = vmul.f32 %v1925, %v274
    %v1936 = vmul.f32 %v1931, %v275
    %v1937 = vmul.f32 %v1930, %v272
    %v1938 = vmul.f32 %v1928, %v273
    %v1939 = vmul.f32 %v1926, %v274
    %v1940 = vmul.f32 %v1932, %v275
    %1941 = vst [vmem:[#allocation3 + $0x380] sm:$0xff] %v1933
    %1942 = vst [vmem:[#allocation3 + $0x388] sm:$0xff] %v1934
    %1943 = vst [vmem:[#allocation3 + $0x390] sm:$0xff] %v1935
    %1944 = vst [vmem:[#allocation3 + $0x398] sm:$0xff] %v1936
    %1945 = vst [vmem:[#allocation3 + $0x3a0] sm:$0xff] %v1937
    %1946 = vst [vmem:[#allocation3 + $0x3a8] sm:$0xff] %v1938
    %1947 = vst [vmem:[#allocation3 + $0x3b0] sm:$0xff] %v1939
    %1948 = vst [vmem:[#allocation3 + $0x3b8] sm:$0xff] %v1940
    %1949 = vrot.lane.b32.xlu0 %v1373, 100
    %v1950 = vpop.permute.xlu0 %1949
    %1951 = vrot.lane.b32.xlu0 %v1377, 100
    %v1952 = vpop.permute.xlu0 %1951
    %1953 = vrot.lane.b32.xlu0 %v1374, 100
    %v1954 = vpop.permute.xlu0 %1953
    %1955 = vrot.lane.b32.xlu0 %v1378, 100
    %v1956 = vpop.permute.xlu0 %1955
    %1957 = vrot.lane.b32.xlu0 %v1375, 100
    %v1958 = vpop.permute.xlu0 %1957
    %1959 = vrot.lane.b32.xlu0 %v1379, 100
    %v1960 = vpop.permute.xlu0 %1959
    %1961 = vrot.lane.b32.xlu0 %v1376, 100
    %v1962 = vpop.permute.xlu0 %1961
    %1963 = vrot.lane.b32.xlu0 %v1380, 100
    %v1964 = vpop.permute.xlu0 %1963
    %v1965 = vsel %vm852, %v1958, %v1962
    %v1966 = vsel %vm852, %v1960, %v1964
    %v1967 = vsel %vm852, %v1954, %v1958
    %v1968 = vsel %vm852, %v1956, %v1960
    %v1969 = vsel %vm852, %v1950, %v1954
    %v1970 = vsel %vm852, %v1952, %v1956
    %v1971 = vsel %vm852, %v1962, %v1950
    %v1972 = vsel %vm852, %v1964, %v1952
    %v1973 = vmul.f32 %v1969, %v296
    %v1974 = vmul.f32 %v1967, %v297
    %v1975 = vmul.f32 %v1965, %v298
    %v1976 = vmul.f32 %v1971, %v299
    %v1977 = vmul.f32 %v1970, %v296
    %v1978 = vmul.f32 %v1968, %v297
    %v1979 = vmul.f32 %v1966, %v298
    %v1980 = vmul.f32 %v1972, %v299
    %1981 = vst [vmem:[#allocation3 + $0x3c0] sm:$0xff] %v1973
    %1982 = vst [vmem:[#allocation3 + $0x3c8] sm:$0xff] %v1974
    %1983 = vst [vmem:[#allocation3 + $0x3d0] sm:$0xff] %v1975
    %1984 = vst [vmem:[#allocation3 + $0x3d8] sm:$0xff] %v1976
    %1985 = vst [vmem:[#allocation3 + $0x3e0] sm:$0xff] %v1977
    %1986 = vst [vmem:[#allocation3 + $0x3e8] sm:$0xff] %v1978
    %1987 = vst [vmem:[#allocation3 + $0x3f0] sm:$0xff] %v1979
    %1988 = vst [vmem:[#allocation3 + $0x3f8] sm:$0xff] %v1980
    %1989 = vrot.lane.b32.xlu0 %v1373, 98
    %v1990 = vpop.permute.xlu0 %1989
    %1991 = vrot.lane.b32.xlu0 %v1377, 98
    %v1992 = vpop.permute.xlu0 %1991
    %1993 = vrot.lane.b32.xlu0 %v1374, 98
    %v1994 = vpop.permute.xlu0 %1993
    %1995 = vrot.lane.b32.xlu0 %v1378, 98
    %v1996 = vpop.permute.xlu0 %1995
    %1997 = vrot.lane.b32.xlu0 %v1375, 98
    %v1998 = vpop.permute.xlu0 %1997
    %1999 = vrot.lane.b32.xlu0 %v1379, 98
    %v2000 = vpop.permute.xlu0 %1999
    %2001 = vrot.lane.b32.xlu0 %v1376, 98
    %v2002 = vpop.permute.xlu0 %2001
    %2003 = vrot.lane.b32.xlu0 %v1380, 98
    %v2004 = vpop.permute.xlu0 %2003
    %v2005 = vsel %vm885, %v1998, %v2002
    %v2006 = vsel %vm885, %v2000, %v2004
    %v2007 = vsel %vm885, %v1994, %v1998
    %v2008 = vsel %vm885, %v1996, %v2000
    %v2009 = vsel %vm885, %v1990, %v1994
    %v2010 = vsel %vm885, %v1992, %v1996
    %v2011 = vsel %vm885, %v2002, %v1990
    %v2012 = vsel %vm885, %v2004, %v1992
    %v2013 = vmul.f32 %v2009, %v308
    %v2014 = vmul.f32 %v2007, %v309
    %v2015 = vmul.f32 %v2005, %v310
    %v2016 = vmul.f32 %v2011, %v311
    %v2017 = vmul.f32 %v2010, %v308
    %v2018 = vmul.f32 %v2008, %v309
    %v2019 = vmul.f32 %v2006, %v310
    %v2020 = vmul.f32 %v2012, %v311
    %2021 = vst [vmem:[#allocation3 + $0x400] sm:$0xff] %v2013
    %2022 = vst [vmem:[#allocation3 + $0x408] sm:$0xff] %v2014
    %2023 = vst [vmem:[#allocation3 + $0x410] sm:$0xff] %v2015
    %2024 = vst [vmem:[#allocation3 + $0x418] sm:$0xff] %v2016
    %2025 = vst [vmem:[#allocation3 + $0x420] sm:$0xff] %v2017
    %2026 = vst [vmem:[#allocation3 + $0x428] sm:$0xff] %v2018
    %2027 = vst [vmem:[#allocation3 + $0x430] sm:$0xff] %v2019
    %2028 = vst [vmem:[#allocation3 + $0x438] sm:$0xff] %v2020
    %2029 = vrot.lane.b32.xlu0 %v1373, 96
    %v2030 = vpop.permute.xlu0 %2029
    %2031 = vrot.lane.b32.xlu0 %v1377, 96
    %v2032 = vpop.permute.xlu0 %2031
    %2033 = vrot.lane.b32.xlu0 %v1374, 96
    %v2034 = vpop.permute.xlu0 %2033
    %2035 = vrot.lane.b32.xlu0 %v1378, 96
    %v2036 = vpop.permute.xlu0 %2035
    %2037 = vrot.lane.b32.xlu0 %v1375, 96
    %v2038 = vpop.permute.xlu0 %2037
    %2039 = vrot.lane.b32.xlu0 %v1379, 96
    %v2040 = vpop.permute.xlu0 %2039
    %2041 = vrot.lane.b32.xlu0 %v1376, 96
    %v2042 = vpop.permute.xlu0 %2041
    %2043 = vrot.lane.b32.xlu0 %v1380, 96
    %v2044 = vpop.permute.xlu0 %2043
    %v2045 = vsel %vm906, %v2038, %v2042
    %v2046 = vsel %vm906, %v2040, %v2044
    %v2047 = vsel %vm906, %v2034, %v2038
    %v2048 = vsel %vm906, %v2036, %v2040
    %v2049 = vsel %vm906, %v2030, %v2034
    %v2050 = vsel %vm906, %v2032, %v2036
    %v2051 = vsel %vm906, %v2042, %v2030
    %v2052 = vsel %vm906, %v2044, %v2032
    %v2053 = vmul.f32 %v2049, %v320
    %v2054 = vmul.f32 %v2047, %v321
    %v2055 = vmul.f32 %v2045, %v322
    %v2056 = vmul.f32 %v2051, %v323
    %v2057 = vmul.f32 %v2050, %v320
    %v2058 = vmul.f32 %v2048, %v321
    %v2059 = vmul.f32 %v2046, %v322
    %v2060 = vmul.f32 %v2052, %v323
    %2061 = vst [vmem:[#allocation3 + $0x440] sm:$0xff] %v2053
    %2062 = vst [vmem:[#allocation3 + $0x448] sm:$0xff] %v2054
    %2063 = vst [vmem:[#allocation3 + $0x450] sm:$0xff] %v2055
    %2064 = vst [vmem:[#allocation3 + $0x458] sm:$0xff] %v2056
    %2065 = vst [vmem:[#allocation3 + $0x460] sm:$0xff] %v2057
    %2066 = vst [vmem:[#allocation3 + $0x468] sm:$0xff] %v2058
    %2067 = vst [vmem:[#allocation3 + $0x470] sm:$0xff] %v2059
    %2068 = vst [vmem:[#allocation3 + $0x478] sm:$0xff] %v2060
    %2069 = vrot.lane.b32.xlu0 %v1373, 94
    %v2070 = vpop.permute.xlu0 %2069
    %2071 = vrot.lane.b32.xlu0 %v1377, 94
    %v2072 = vpop.permute.xlu0 %2071
    %2073 = vrot.lane.b32.xlu0 %v1374, 94
    %v2074 = vpop.permute.xlu0 %2073
    %2075 = vrot.lane.b32.xlu0 %v1378, 94
    %v2076 = vpop.permute.xlu0 %2075
    %2077 = vrot.lane.b32.xlu0 %v1375, 94
    %v2078 = vpop.permute.xlu0 %2077
    %2079 = vrot.lane.b32.xlu0 %v1379, 94
    %v2080 = vpop.permute.xlu0 %2079
    %2081 = vrot.lane.b32.xlu0 %v1376, 94
    %v2082 = vpop.permute.xlu0 %2081
    %2083 = vrot.lane.b32.xlu0 %v1380, 94
    %v2084 = vpop.permute.xlu0 %2083
    %v2085 = vsel %vm939, %v2078, %v2082
    %v2086 = vsel %vm939, %v2080, %v2084
    %v2087 = vsel %vm939, %v2074, %v2078
    %v2088 = vsel %vm939, %v2076, %v2080
    %v2089 = vsel %vm939, %v2070, %v2074
    %v2090 = vsel %vm939, %v2072, %v2076
    %v2091 = vsel %vm939, %v2082, %v2070
    %v2092 = vsel %vm939, %v2084, %v2072
    %v2093 = vmul.f32 %v2089, %v332
    %v2094 = vmul.f32 %v2087, %v333
    %v2095 = vmul.f32 %v2085, %v334
    %v2096 = vmul.f32 %v2091, %v335
    %v2097 = vmul.f32 %v2090, %v332
    %v2098 = vmul.f32 %v2088, %v333
    %v2099 = vmul.f32 %v2086, %v334
    %v2100 = vmul.f32 %v2092, %v335
    %2101 = vst [vmem:[#allocation3 + $0x480] sm:$0xff] %v2093
    %2102 = vst [vmem:[#allocation3 + $0x488] sm:$0xff] %v2094
    %2103 = vst [vmem:[#allocation3 + $0x490] sm:$0xff] %v2095
    %2104 = vst [vmem:[#allocation3 + $0x498] sm:$0xff] %v2096
    %2105 = vst [vmem:[#allocation3 + $0x4a0] sm:$0xff] %v2097
    %2106 = vst [vmem:[#allocation3 + $0x4a8] sm:$0xff] %v2098
    %2107 = vst [vmem:[#allocation3 + $0x4b0] sm:$0xff] %v2099
    %2108 = vst [vmem:[#allocation3 + $0x4b8] sm:$0xff] %v2100
    %2109 = vrot.lane.b32.xlu0 %v1373, 92
    %v2110 = vpop.permute.xlu0 %2109
    %2111 = vrot.lane.b32.xlu0 %v1377, 92
    %v2112 = vpop.permute.xlu0 %2111
    %2113 = vrot.lane.b32.xlu0 %v1374, 92
    %v2114 = vpop.permute.xlu0 %2113
    %2115 = vrot.lane.b32.xlu0 %v1378, 92
    %v2116 = vpop.permute.xlu0 %2115
    %2117 = vrot.lane.b32.xlu0 %v1375, 92
    %v2118 = vpop.permute.xlu0 %2117
    %2119 = vrot.lane.b32.xlu0 %v1379, 92
    %v2120 = vpop.permute.xlu0 %2119
    %2121 = vrot.lane.b32.xlu0 %v1376, 92
    %v2122 = vpop.permute.xlu0 %2121
    %2123 = vrot.lane.b32.xlu0 %v1380, 92
    %v2124 = vpop.permute.xlu0 %2123
    %v2125 = vsel %vm960, %v2118, %v2122
    %v2126 = vsel %vm960, %v2120, %v2124
    %v2127 = vsel %vm960, %v2114, %v2118
    %v2128 = vsel %vm960, %v2116, %v2120
    %v2129 = vsel %vm960, %v2110, %v2114
    %v2130 = vsel %vm960, %v2112, %v2116
    %v2131 = vsel %vm960, %v2122, %v2110
    %v2132 = vsel %vm960, %v2124, %v2112
    %v2133 = vmul.f32 %v2129, %v344
    %v2134 = vmul.f32 %v2127, %v345
    %v2135 = vmul.f32 %v2125, %v346
    %v2136 = vmul.f32 %v2131, %v347
    %v2137 = vmul.f32 %v2130, %v344
    %v2138 = vmul.f32 %v2128, %v345
    %v2139 = vmul.f32 %v2126, %v346
    %v2140 = vmul.f32 %v2132, %v347
    %2141 = vst [vmem:[#allocation3 + $0x4c0] sm:$0xff] %v2133
    %2142 = vst [vmem:[#allocation3 + $0x4c8] sm:$0xff] %v2134
    %2143 = vst [vmem:[#allocation3 + $0x4d0] sm:$0xff] %v2135
    %2144 = vst [vmem:[#allocation3 + $0x4d8] sm:$0xff] %v2136
    %2145 = vst [vmem:[#allocation3 + $0x4e0] sm:$0xff] %v2137
    %2146 = vst [vmem:[#allocation3 + $0x4e8] sm:$0xff] %v2138
    %2147 = vst [vmem:[#allocation3 + $0x4f0] sm:$0xff] %v2139
    %2148 = vst [vmem:[#allocation3 + $0x4f8] sm:$0xff] %v2140
    %v2149 = vmul.f32 %v1401, %v368
    %v2150 = vmul.f32 %v1399, %v369
    %v2151 = vmul.f32 %v1397, %v370
    %v2152 = vmul.f32 %v1403, %v371
    %v2153 = vmul.f32 %v1402, %v368
    %v2154 = vmul.f32 %v1400, %v369
    %v2155 = vmul.f32 %v1398, %v370
    %v2156 = vmul.f32 %v1404, %v371
    %2157 = vst [vmem:[#allocation3 + $0x500] sm:$0xff] %v2149
    %2158 = vst [vmem:[#allocation3 + $0x508] sm:$0xff] %v2150
    %2159 = vst [vmem:[#allocation3 + $0x510] sm:$0xff] %v2151
    %2160 = vst [vmem:[#allocation3 + $0x518] sm:$0xff] %v2152
    %2161 = vst [vmem:[#allocation3 + $0x520] sm:$0xff] %v2153
    %2162 = vst [vmem:[#allocation3 + $0x528] sm:$0xff] %v2154
    %2163 = vst [vmem:[#allocation3 + $0x530] sm:$0xff] %v2155
    %2164 = vst [vmem:[#allocation3 + $0x538] sm:$0xff] %v2156
    %v2165 = vmul.f32 %v1441, %v380
    %v2166 = vmul.f32 %v1439, %v381
    %v2167 = vmul.f32 %v1437, %v382
    %v2168 = vmul.f32 %v1443, %v383
    %v2169 = vmul.f32 %v1442, %v380
    %v2170 = vmul.f32 %v1440, %v381
    %v2171 = vmul.f32 %v1438, %v382
    %v2172 = vmul.f32 %v1444, %v383
    %2173 = vst [vmem:[#allocation3 + $0x540] sm:$0xff] %v2165
    %2174 = vst [vmem:[#allocation3 + $0x548] sm:$0xff] %v2166
    %2175 = vst [vmem:[#allocation3 + $0x550] sm:$0xff] %v2167
    %2176 = vst [vmem:[#allocation3 + $0x558] sm:$0xff] %v2168
    %2177 = vst [vmem:[#allocation3 + $0x560] sm:$0xff] %v2169
    %2178 = vst [vmem:[#allocation3 + $0x568] sm:$0xff] %v2170
    %2179 = vst [vmem:[#allocation3 + $0x570] sm:$0xff] %v2171
    %2180 = vst [vmem:[#allocation3 + $0x578] sm:$0xff] %v2172
    %v2181 = vmul.f32 %v1481, %v392
    %v2182 = vmul.f32 %v1479, %v393
    %v2183 = vmul.f32 %v1477, %v394
    %v2184 = vmul.f32 %v1483, %v395
    %v2185 = vmul.f32 %v1482, %v392
    %v2186 = vmul.f32 %v1480, %v393
    %v2187 = vmul.f32 %v1478, %v394
    %v2188 = vmul.f32 %v1484, %v395
    %2189 = vst [vmem:[#allocation3 + $0x580] sm:$0xff] %v2181
    %2190 = vst [vmem:[#allocation3 + $0x588] sm:$0xff] %v2182
    %2191 = vst [vmem:[#allocation3 + $0x590] sm:$0xff] %v2183
    %2192 = vst [vmem:[#allocation3 + $0x598] sm:$0xff] %v2184
    %2193 = vst [vmem:[#allocation3 + $0x5a0] sm:$0xff] %v2185
    %2194 = vst [vmem:[#allocation3 + $0x5a8] sm:$0xff] %v2186
    %2195 = vst [vmem:[#allocation3 + $0x5b0] sm:$0xff] %v2187
    %2196 = vst [vmem:[#allocation3 + $0x5b8] sm:$0xff] %v2188
    %v2197 = vmul.f32 %v1521, %v404
    %v2198 = vmul.f32 %v1519, %v405
    %v2199 = vmul.f32 %v1517, %v406
    %v2200 = vmul.f32 %v1523, %v407
    %v2201 = vmul.f32 %v1522, %v404
    %v2202 = vmul.f32 %v1520, %v405
    %v2203 = vmul.f32 %v1518, %v406
    %v2204 = vmul.f32 %v1524, %v407
    %2205 = vst [vmem:[#allocation3 + $0x5c0] sm:$0xff] %v2197
    %2206 = vst [vmem:[#allocation3 + $0x5c8] sm:$0xff] %v2198
    %2207 = vst [vmem:[#allocation3 + $0x5d0] sm:$0xff] %v2199
    %2208 = vst [vmem:[#allocation3 + $0x5d8] sm:$0xff] %v2200
    %2209 = vst [vmem:[#allocation3 + $0x5e0] sm:$0xff] %v2201
    %2210 = vst [vmem:[#allocation3 + $0x5e8] sm:$0xff] %v2202
    %2211 = vst [vmem:[#allocation3 + $0x5f0] sm:$0xff] %v2203
    %2212 = vst [vmem:[#allocation3 + $0x5f8] sm:$0xff] %v2204
    %v2213 = vmul.f32 %v1561, %v416
    %v2214 = vmul.f32 %v1559, %v417
    %v2215 = vmul.f32 %v1557, %v418
    %v2216 = vmul.f32 %v1563, %v419
    %v2217 = vmul.f32 %v1562, %v416
    %v2218 = vmul.f32 %v1560, %v417
    %v2219 = vmul.f32 %v1558, %v418
    %v2220 = vmul.f32 %v1564, %v419
    %2221 = vst [vmem:[#allocation3 + $0x600] sm:$0xff] %v2213
    %2222 = vst [vmem:[#allocation3 + $0x608] sm:$0xff] %v2214
    %2223 = vst [vmem:[#allocation3 + $0x610] sm:$0xff] %v2215
    %2224 = vst [vmem:[#allocation3 + $0x618] sm:$0xff] %v2216
    %2225 = vst [vmem:[#allocation3 + $0x620] sm:$0xff] %v2217
    %2226 = vst [vmem:[#allocation3 + $0x628] sm:$0xff] %v2218
    %2227 = vst [vmem:[#allocation3 + $0x630] sm:$0xff] %v2219
    %2228 = vst [vmem:[#allocation3 + $0x638] sm:$0xff] %v2220
    %v2229 = vld [vmem:[%s1 + $0x8] sm:$0xff]
    %v2230 = vld [vmem:[%s1 + $0x10] sm:$0xff]
    %v2231 = vld [vmem:[%s1 + $0x18] sm:$0xff]
    %v2232 = vld [vmem:[%s1 + $0x20] sm:$0xff]
    %v2233 = vld [vmem:[%s1 + $0x68] sm:$0xf]
    %v2234 = vld [vmem:[%s1 + $0x70] sm:$0xf]
    %v2235 = vld [vmem:[%s1 + $0x78] sm:$0xf]
    %v2236 = vld [vmem:[%s1 + $0x80] sm:$0xf]
    %v2237 = vld [vmem:[#allocation3] sm:$0xff]
    %v2238 = vld [vmem:[#allocation3 + $0x8] sm:$0xff]
    %v2239 = vld [vmem:[#allocation3 + $0x10] sm:$0xff]
    %v2240 = vld [vmem:[#allocation3 + $0x18] sm:$0xff]
    %v2241 = vld [vmem:[#allocation3 + $0x20] sm:$0xff]
    %v2242 = vld [vmem:[#allocation3 + $0x28] sm:$0xff]
    %v2243 = vld [vmem:[#allocation3 + $0x30] sm:$0xff]
    %v2244 = vld [vmem:[#allocation3 + $0x38] sm:$0xff]
    %v2245 = vld [vmem:[#allocation3 + $0x40] sm:$0xff]
    %v2246 = vld [vmem:[#allocation3 + $0x48] sm:$0xff]
    %v2247 = vld [vmem:[#allocation3 + $0x50] sm:$0xff]
    %v2248 = vld [vmem:[#allocation3 + $0x58] sm:$0xff]
    %v2249 = vld [vmem:[#allocation3 + $0x60] sm:$0xff]
    %v2250 = vld [vmem:[#allocation3 + $0x68] sm:$0xff]
    %v2251 = vld [vmem:[#allocation3 + $0x70] sm:$0xff]
    %v2252 = vld [vmem:[#allocation3 + $0x78] sm:$0xff]
    %v2253 = vld [vmem:[#allocation3 + $0x80] sm:$0xff]
    %v2254 = vld [vmem:[#allocation3 + $0x88] sm:$0xff]
    %v2255 = vld [vmem:[#allocation3 + $0x90] sm:$0xff]
    %v2256 = vld [vmem:[#allocation3 + $0x98] sm:$0xff]
    %v2257 = vld [vmem:[#allocation3 + $0xa0] sm:$0xff]
    %v2258 = vld [vmem:[#allocation3 + $0xa8] sm:$0xff]
    %v2259 = vld [vmem:[#allocation3 + $0xb0] sm:$0xff]
    %v2260 = vld [vmem:[#allocation3 + $0xb8] sm:$0xff]
    %v2261 = vld [vmem:[#allocation3 + $0xc0] sm:$0xff]
    %v2262 = vld [vmem:[#allocation3 + $0xc8] sm:$0xff]
    %v2263 = vld [vmem:[#allocation3 + $0xd0] sm:$0xff]
    %v2264 = vld [vmem:[#allocation3 + $0xd8] sm:$0xff]
    %v2265 = vld [vmem:[#allocation3 + $0xe0] sm:$0xff]
    %v2266 = vld [vmem:[#allocation3 + $0xe8] sm:$0xff]
    %v2267 = vld [vmem:[#allocation3 + $0xf0] sm:$0xff]
    %v2268 = vld [vmem:[#allocation3 + $0xf8] sm:$0xff]
    %v2269 = vld [vmem:[#allocation3 + $0x100] sm:$0xff]
    %v2270 = vld [vmem:[#allocation3 + $0x108] sm:$0xff]
    %v2271 = vld [vmem:[#allocation3 + $0x110] sm:$0xff]
    %v2272 = vld [vmem:[#allocation3 + $0x118] sm:$0xff]
    %v2273 = vld [vmem:[#allocation3 + $0x120] sm:$0xff]
    %v2274 = vld [vmem:[#allocation3 + $0x128] sm:$0xff]
    %v2275 = vld [vmem:[#allocation3 + $0x130] sm:$0xff]
    %v2276 = vld [vmem:[#allocation3 + $0x138] sm:$0xff]
    %v2277 = vld [vmem:[#allocation3 + $0x140] sm:$0xff]
    %v2278 = vld [vmem:[#allocation3 + $0x148] sm:$0xff]
    %v2279 = vld [vmem:[#allocation3 + $0x150] sm:$0xff]
    %v2280 = vld [vmem:[#allocation3 + $0x158] sm:$0xff]
    %v2281 = vld [vmem:[#allocation3 + $0x160] sm:$0xff]
    %v2282 = vld [vmem:[#allocation3 + $0x168] sm:$0xff]
    %v2283 = vld [vmem:[#allocation3 + $0x170] sm:$0xff]
    %v2284 = vld [vmem:[#allocation3 + $0x178] sm:$0xff]
    %v2285 = vld [vmem:[#allocation3 + $0x180] sm:$0xff]
    %v2286 = vld [vmem:[#allocation3 + $0x188] sm:$0xff]
    %v2287 = vld [vmem:[#allocation3 + $0x190] sm:$0xff]
    %v2288 = vld [vmem:[#allocation3 + $0x198] sm:$0xff]
    %v2289 = vld [vmem:[#allocation3 + $0x1a0] sm:$0xff]
    %v2290 = vld [vmem:[#allocation3 + $0x1a8] sm:$0xff]
    %v2291 = vld [vmem:[#allocation3 + $0x1b0] sm:$0xff]
    %v2292 = vld [vmem:[#allocation3 + $0x1b8] sm:$0xff]
    %v2293 = vld [vmem:[#allocation3 + $0x1c0] sm:$0xff]
    %v2294 = vld [vmem:[#allocation3 + $0x1c8] sm:$0xff]
    %v2295 = vld [vmem:[#allocation3 + $0x1d0] sm:$0xff]
    %v2296 = vld [vmem:[#allocation3 + $0x1d8] sm:$0xff]
    %v2297 = vld [vmem:[#allocation3 + $0x1e0] sm:$0xff]
    %v2298 = vld [vmem:[#allocation3 + $0x1e8] sm:$0xff]
    %v2299 = vld [vmem:[#allocation3 + $0x1f0] sm:$0xff]
    %v2300 = vld [vmem:[#allocation3 + $0x1f8] sm:$0xff]
    %v2301 = vld [vmem:[#allocation3 + $0x200] sm:$0xff]
    %v2302 = vld [vmem:[#allocation3 + $0x208] sm:$0xff]
    %v2303 = vld [vmem:[#allocation3 + $0x210] sm:$0xff]
    %v2304 = vld [vmem:[#allocation3 + $0x218] sm:$0xff]
    %v2305 = vld [vmem:[#allocation3 + $0x220] sm:$0xff]
    %v2306 = vld [vmem:[#allocation3 + $0x228] sm:$0xff]
    %v2307 = vld [vmem:[#allocation3 + $0x230] sm:$0xff]
    %v2308 = vld [vmem:[#allocation3 + $0x238] sm:$0xff]
    %v2309 = vld [vmem:[#allocation3 + $0x240] sm:$0xff]
    %v2310 = vld [vmem:[#allocation3 + $0x248] sm:$0xff]
    %v2311 = vld [vmem:[#allocation3 + $0x250] sm:$0xff]
    %v2312 = vld [vmem:[#allocation3 + $0x258] sm:$0xff]
    %v2313 = vld [vmem:[#allocation3 + $0x260] sm:$0xff]
    %v2314 = vld [vmem:[#allocation3 + $0x268] sm:$0xff]
    %v2315 = vld [vmem:[#allocation3 + $0x270] sm:$0xff]
    %v2316 = vld [vmem:[#allocation3 + $0x278] sm:$0xff]
    %v2317 = vld [vmem:[#allocation3 + $0x280] sm:$0xff]
    %v2318 = vld [vmem:[#allocation3 + $0x288] sm:$0xff]
    %v2319 = vld [vmem:[#allocation3 + $0x290] sm:$0xff]
    %v2320 = vld [vmem:[#allocation3 + $0x298] sm:$0xff]
    %v2321 = vld [vmem:[#allocation3 + $0x2a0] sm:$0xff]
    %v2322 = vld [vmem:[#allocation3 + $0x2a8] sm:$0xff]
    %v2323 = vld [vmem:[#allocation3 + $0x2b0] sm:$0xff]
    %v2324 = vld [vmem:[#allocation3 + $0x2b8] sm:$0xff]
    %v2325 = vld [vmem:[#allocation3 + $0x2c0] sm:$0xff]
    %v2326 = vld [vmem:[#allocation3 + $0x2c8] sm:$0xff]
    %v2327 = vld [vmem:[#allocation3 + $0x2d0] sm:$0xff]
    %v2328 = vld [vmem:[#allocation3 + $0x2d8] sm:$0xff]
    %v2329 = vld [vmem:[#allocation3 + $0x2e0] sm:$0xff]
    %v2330 = vld [vmem:[#allocation3 + $0x2e8] sm:$0xff]
    %v2331 = vld [vmem:[#allocation3 + $0x2f0] sm:$0xff]
    %v2332 = vld [vmem:[#allocation3 + $0x2f8] sm:$0xff]
    %v2333 = vld [vmem:[#allocation3 + $0x300] sm:$0xff]
    %v2334 = vld [vmem:[#allocation3 + $0x308] sm:$0xff]
    %v2335 = vld [vmem:[#allocation3 + $0x310] sm:$0xff]
    %v2336 = vld [vmem:[#allocation3 + $0x318] sm:$0xff]
    %v2337 = vld [vmem:[#allocation3 + $0x320] sm:$0xff]
    %v2338 = vld [vmem:[#allocation3 + $0x328] sm:$0xff]
    %v2339 = vld [vmem:[#allocation3 + $0x330] sm:$0xff]
    %v2340 = vld [vmem:[#allocation3 + $0x338] sm:$0xff]
    %v2341 = vld [vmem:[#allocation3 + $0x340] sm:$0xff]
    %v2342 = vld [vmem:[#allocation3 + $0x348] sm:$0xff]
    %v2343 = vld [vmem:[#allocation3 + $0x350] sm:$0xff]
    %v2344 = vld [vmem:[#allocation3 + $0x358] sm:$0xff]
    %v2345 = vld [vmem:[#allocation3 + $0x360] sm:$0xff]
    %v2346 = vld [vmem:[#allocation3 + $0x368] sm:$0xff]
    %v2347 = vld [vmem:[#allocation3 + $0x370] sm:$0xff]
    %v2348 = vld [vmem:[#allocation3 + $0x378] sm:$0xff]
    %v2349 = vld [vmem:[#allocation3 + $0x380] sm:$0xff]
    %v2350 = vld [vmem:[#allocation3 + $0x388] sm:$0xff]
    %v2351 = vld [vmem:[#allocation3 + $0x390] sm:$0xff]
    %v2352 = vld [vmem:[#allocation3 + $0x398] sm:$0xff]
    %v2353 = vld [vmem:[#allocation3 + $0x3a0] sm:$0xff]
    %v2354 = vld [vmem:[#allocation3 + $0x3a8] sm:$0xff]
    %v2355 = vld [vmem:[#allocation3 + $0x3b0] sm:$0xff]
    %v2356 = vld [vmem:[#allocation3 + $0x3b8] sm:$0xff]
    %v2357 = vld [vmem:[#allocation3 + $0x3c0] sm:$0xff]
    %v2358 = vld [vmem:[#allocation3 + $0x3c8] sm:$0xff]
    %v2359 = vld [vmem:[#allocation3 + $0x3d0] sm:$0xff]
    %v2360 = vld [vmem:[#allocation3 + $0x3d8] sm:$0xff]
    %v2361 = vld [vmem:[#allocation3 + $0x3e0] sm:$0xff]
    %v2362 = vld [vmem:[#allocation3 + $0x3e8] sm:$0xff]
    %v2363 = vld [vmem:[#allocation3 + $0x3f0] sm:$0xff]
    %v2364 = vld [vmem:[#allocation3 + $0x3f8] sm:$0xff]
    %v2365 = vld [vmem:[#allocation3 + $0x400] sm:$0xff]
    %v2366 = vld [vmem:[#allocation3 + $0x408] sm:$0xff]
    %v2367 = vld [vmem:[#allocation3 + $0x410] sm:$0xff]
    %v2368 = vld [vmem:[#allocation3 + $0x418] sm:$0xff]
    %v2369 = vld [vmem:[#allocation3 + $0x420] sm:$0xff]
    %v2370 = vld [vmem:[#allocation3 + $0x428] sm:$0xff]
    %v2371 = vld [vmem:[#allocation3 + $0x430] sm:$0xff]
    %v2372 = vld [vmem:[#allocation3 + $0x438] sm:$0xff]
    %v2373 = vld [vmem:[#allocation3 + $0x440] sm:$0xff]
    %v2374 = vld [vmem:[#allocation3 + $0x448] sm:$0xff]
    %v2375 = vld [vmem:[#allocation3 + $0x450] sm:$0xff]
    %v2376 = vld [vmem:[#allocation3 + $0x458] sm:$0xff]
    %v2377 = vld [vmem:[#allocation3 + $0x460] sm:$0xff]
    %v2378 = vld [vmem:[#allocation3 + $0x468] sm:$0xff]
    %v2379 = vld [vmem:[#allocation3 + $0x470] sm:$0xff]
    %v2380 = vld [vmem:[#allocation3 + $0x478] sm:$0xff]
    %v2381 = vld [vmem:[#allocation3 + $0x480] sm:$0xff]
    %v2382 = vld [vmem:[#allocation3 + $0x488] sm:$0xff]
    %v2383 = vld [vmem:[#allocation3 + $0x490] sm:$0xff]
    %v2384 = vld [vmem:[#allocation3 + $0x498] sm:$0xff]
    %v2385 = vld [vmem:[#allocation3 + $0x4a0] sm:$0xff]
    %v2386 = vld [vmem:[#allocation3 + $0x4a8] sm:$0xff]
    %v2387 = vld [vmem:[#allocation3 + $0x4b0] sm:$0xff]
    %v2388 = vld [vmem:[#allocation3 + $0x4b8] sm:$0xff]
    %v2389 = vld [vmem:[#allocation3 + $0x4c0] sm:$0xff]
    %v2390 = vld [vmem:[#allocation3 + $0x4c8] sm:$0xff]
    %v2391 = vld [vmem:[#allocation3 + $0x4d0] sm:$0xff]
    %v2392 = vld [vmem:[#allocation3 + $0x4d8] sm:$0xff]
    %v2393 = vld [vmem:[#allocation3 + $0x4e0] sm:$0xff]
    %v2394 = vld [vmem:[#allocation3 + $0x4e8] sm:$0xff]
    %v2395 = vld [vmem:[#allocation3 + $0x4f0] sm:$0xff]
    %v2396 = vld [vmem:[#allocation3 + $0x4f8] sm:$0xff]
    %v2397 = vld [vmem:[#allocation3 + $0x500] sm:$0xff]
    %v2398 = vld [vmem:[#allocation3 + $0x508] sm:$0xff]
    %v2399 = vld [vmem:[#allocation3 + $0x510] sm:$0xff]
    %v2400 = vld [vmem:[#allocation3 + $0x518] sm:$0xff]
    %v2401 = vld [vmem:[#allocation3 + $0x520] sm:$0xff]
    %v2402 = vld [vmem:[#allocation3 + $0x528] sm:$0xff]
    %v2403 = vld [vmem:[#allocation3 + $0x530] sm:$0xff]
    %v2404 = vld [vmem:[#allocation3 + $0x538] sm:$0xff]
    %v2405 = vld [vmem:[#allocation3 + $0x540] sm:$0xff]
    %v2406 = vld [vmem:[#allocation3 + $0x548] sm:$0xff]
    %v2407 = vld [vmem:[#allocation3 + $0x550] sm:$0xff]
    %v2408 = vld [vmem:[#allocation3 + $0x558] sm:$0xff]
    %v2409 = vld [vmem:[#allocation3 + $0x560] sm:$0xff]
    %v2410 = vld [vmem:[#allocation3 + $0x568] sm:$0xff]
    %v2411 = vld [vmem:[#allocation3 + $0x570] sm:$0xff]
    %v2412 = vld [vmem:[#allocation3 + $0x578] sm:$0xff]
    %v2413 = vld [vmem:[#allocation3 + $0x580] sm:$0xff]
    %v2414 = vld [vmem:[#allocation3 + $0x588] sm:$0xff]
    %v2415 = vld [vmem:[#allocation3 + $0x590] sm:$0xff]
    %v2416 = vld [vmem:[#allocation3 + $0x598] sm:$0xff]
    %v2417 = vld [vmem:[#allocation3 + $0x5a0] sm:$0xff]
    %v2418 = vld [vmem:[#allocation3 + $0x5a8] sm:$0xff]
    %v2419 = vld [vmem:[#allocation3 + $0x5b0] sm:$0xff]
    %v2420 = vld [vmem:[#allocation3 + $0x5b8] sm:$0xff]
    %v2421 = vld [vmem:[#allocation3 + $0x5c0] sm:$0xff]
    %v2422 = vld [vmem:[#allocation3 + $0x5c8] sm:$0xff]
    %v2423 = vld [vmem:[#allocation3 + $0x5d0] sm:$0xff]
    %v2424 = vld [vmem:[#allocation3 + $0x5d8] sm:$0xff]
    %v2425 = vld [vmem:[#allocation3 + $0x5e0] sm:$0xff]
    %v2426 = vld [vmem:[#allocation3 + $0x5e8] sm:$0xff]
    %v2427 = vld [vmem:[#allocation3 + $0x5f0] sm:$0xff]
    %v2428 = vld [vmem:[#allocation3 + $0x5f8] sm:$0xff]
    %v2429 = vld [vmem:[#allocation3 + $0x600] sm:$0xff]
    %v2430 = vld [vmem:[#allocation3 + $0x608] sm:$0xff]
    %v2431 = vld [vmem:[#allocation3 + $0x610] sm:$0xff]
    %v2432 = vld [vmem:[#allocation3 + $0x618] sm:$0xff]
    %v2433 = vld [vmem:[#allocation3 + $0x620] sm:$0xff]
    %v2434 = vld [vmem:[#allocation3 + $0x628] sm:$0xff]
    %v2435 = vld [vmem:[#allocation3 + $0x630] sm:$0xff]
    %v2436 = vld [vmem:[#allocation3 + $0x638] sm:$0xff]
    %2438 = vset.pattern.permute.xlu0 0
    %2439 = vperm.xlu0 %2438, %v1327
    %v2440 = vpop.permute.xlu0 %2439
    %2443 = vset.pattern.permute.xlu0 0
    %2444 = vperm.xlu0 %2443, %v1328
    %v2445 = vpop.permute.xlu0 %2444
    %vm2447 = vcmask 130048
    %v2449 = vsel %vm2447, %v2232, 0
    %v2452 = vsel %vm2447, %v2236, 0
    %2454 = vmatprep.subr.mxu0 %v2238
    %2455 = vmatpush1.msra.mxu0 %v2237
    %2456 = vmatprep.subr.mxu0 %v2242
    %2457 = vmatpush1.msra.mxu0 %v2241
    %2458 = vmatprep.subr.mxu0 %v2246
    %2459 = vmatpush1.msra.mxu0 %v2245
    %2460 = vmatprep.subr.mxu0 %v2250
    %2461 = vmatpush1.msra.mxu0 %v2249
    %2462 = vmatprep.subr.mxu0 %v2254
    %2463 = vmatpush1.msra.mxu0 %v2253
    %2464 = vmatprep.subr.mxu0 %v2258
    %2465 = vmatpush1.msra.mxu0 %v2257
    %2466 = vmatprep.subr.mxu0 %v2262
    %2467 = vmatpush1.msra.mxu0 %v2261
    %2468 = vmatprep.subr.mxu0 %v2266
    %2469 = vmatpush1.msra.mxu0 %v2265
    %2470 = vmatprep.subr.mxu0 %v2270
    %2471 = vmatpush1.msra.mxu0 %v2269
    %2472 = vmatprep.subr.mxu0 %v2274
    %2473 = vmatpush1.msra.mxu0 %v2273
    %2474 = vmatprep.subr.mxu0 %v2278
    %2475 = vmatpush1.msra.mxu0 %v2277
    %2476 = vmatprep.subr.mxu0 %v2282
    %2477 = vmatpush1.msra.mxu0 %v2281
    %2478 = vmatprep.subr.mxu0 %v2286
    %2479 = vmatpush1.msra.mxu0 %v2285
    %2480 = vmatprep.subr.mxu0 %v2290
    %2481 = vmatpush1.msra.mxu0 %v2289
    %2482 = vmatprep.subr.mxu0 %v2294
    %2483 = vmatpush1.msra.mxu0 %v2293
    %2484 = vmatprep.subr.mxu0 %v2298
    %2485 = vmatpush1.msra.mxu0 %v2297
    %2486 = vmatprep.subr.mxu0 %v2302
    %2487 = vmatpush1.msra.mxu0 %v2301
    %2488 = vmatprep.subr.mxu0 %v2306
    %2489 = vmatpush1.msra.mxu0 %v2305
    %2490 = vmatprep.subr.mxu0 %v2310
    %2491 = vmatpush1.msra.mxu0 %v2309
    %2492 = vmatprep.subr.mxu0 %v2314
    %2493 = vmatpush1.msra.mxu0 %v2313
    %2494 = vmatprep.subr.mxu0 %v2318
    %2495 = vmatpush1.msra.mxu0 %v2317
    %2496 = vmatprep.subr.mxu0 %v2322
    %2497 = vmatpush1.msra.mxu0 %v2321
    %2498 = vmatprep.subr.mxu0 %v2326
    %2499 = vmatpush1.msra.mxu0 %v2325
    %2500 = vmatprep.subr.mxu0 %v2330
    %2501 = vmatpush1.msra.mxu0 %v2329
    %2502 = vmatprep.subr.mxu0 %v2334
    %2503 = vmatpush1.msra.mxu0 %v2333
    %2504 = vmatprep.subr.mxu0 %v2338
    %2505 = vmatpush1.msra.mxu0 %v2337
    %2506 = vmatprep.subr.mxu0 %v2342
    %2507 = vmatpush1.msra.mxu0 %v2341
    %2508 = vmatprep.subr.mxu0 %v2346
    %2509 = vmatpush1.msra.mxu0 %v2345
    %2510 = vmatprep.subr.mxu0 %v2350
    %2511 = vmatpush1.msra.mxu0 %v2349
    %2512 = vmatprep.subr.mxu0 %v2354
    %2513 = vmatpush1.msra.mxu0 %v2353
    %2514 = vmatprep.subr.mxu0 %v2358
    %2515 = vmatpush1.msra.mxu0 %v2357
    %2516 = vmatprep.subr.mxu0 %v2362
    %2517 = vmatpush1.msra.mxu0 %v2361
    %2518 = vmatprep.mubr.f32.mxu0 %v2230
    %2519 = vmatmul.mubr.f32.gmra.mrb[0].mxu0 %v2229
    %v2520 = vpop.f32.mrb[0].mxu0
    %v2521 = vadd.f32 %v2440, %v2520
    %v2522 = vpop.f32.mrb[0].mxu0
    %v2523 = vadd.f32 %v2440, %v2522
    %2524 = vmatprep.mubr.f32.mxu0 %v2234
    %2525 = vmatmul.mubr.f32.gmra.mrb[0].mxu0 %v2233
    %v2526 = vpop.f32.mrb[0].mxu0
    %v2527 = vadd.f32 %v2445, %v2526
    %v2528 = vpop.f32.mrb[0].mxu0
    %v2529 = vadd.f32 %v2445, %v2528
    %2530 = vdwg.mxu0
    %2531 = vmatprep.subr.mxu0 %v2366
    %2532 = vmatpush1.msra.mxu0 %v2365
    %2533 = vmatprep.subr.mxu0 %v2370
    %2534 = vmatpush1.msra.mxu0 %v2369
    %2535 = vmatprep.subr.mxu0 %v2374
    %2536 = vmatpush1.msra.mxu0 %v2373
    %2537 = vmatprep.subr.mxu0 %v2378
    %2538 = vmatpush1.msra.mxu0 %v2377
    %2539 = vmatprep.subr.mxu0 %v2382
    %2540 = vmatpush1.msra.mxu0 %v2381
    %2541 = vmatprep.subr.mxu0 %v2386
    %2542 = vmatpush1.msra.mxu0 %v2385
    %2543 = vmatprep.subr.mxu0 %v2390
    %2544 = vmatpush1.msra.mxu0 %v2389
    %2545 = vmatprep.subr.mxu0 %v2394
    %2546 = vmatpush1.msra.mxu0 %v2393
    %2547 = vmatprep.subr.mxu0 %v2398
    %2548 = vmatpush1.msra.mxu0 %v2397
    %2549 = vmatprep.subr.mxu0 %v2402
    %2550 = vmatpush1.msra.mxu0 %v2401
    %2551 = vmatprep.subr.mxu0 %v2406
    %2552 = vmatpush1.msra.mxu0 %v2405
    %2553 = vmatprep.subr.mxu0 %v2410
    %2554 = vmatpush1.msra.mxu0 %v2409
    %2555 = vmatprep.subr.mxu0 %v2414
    %2556 = vmatpush1.msra.mxu0 %v2413
    %2557 = vmatprep.subr.mxu0 %v2418
    %2558 = vmatpush1.msra.mxu0 %v2417
    %2559 = vmatprep.subr.mxu0 %v2422
    %2560 = vmatpush1.msra.mxu0 %v2421
    %2561 = vmatprep.subr.mxu0 %v2426
    %2562 = vmatpush1.msra.mxu0 %v2425
    %2563 = vmatprep.subr.mxu0 %v2430
    %2564 = vmatpush1.msra.mxu0 %v2429
    %2565 = vmatprep.subr.mxu0 %v2434
    %2566 = vmatpush1.msra.mxu0 %v2433
    %2567 = vmatprep.subr.mxu0 0.0
    %2568 = vmatpush1.msra.mxu0 0.0
    %2569 = vmatprep.subr.mxu0 0.0
    %2570 = vmatpush1.msra.mxu0 0.0
    %2571 = vmatprep.subr.mxu0 0.0
    %2572 = vmatpush1.msra.mxu0 0.0
    %2573 = vmatprep.subr.mxu0 0.0
    %2574 = vmatpush1.msra.mxu0 0.0
    %2575 = vmatprep.subr.mxu0 0.0
    %2576 = vmatpush1.msra.mxu0 0.0
    %2577 = vmatprep.subr.mxu0 0.0
    %2578 = vmatpush1.msra.mxu0 0.0
    %2579 = vmatprep.subr.mxu0 0.0
    %2580 = vmatpush1.msra.mxu0 0.0
    %2581 = vmatprep.subr.mxu0 0.0
    %2582 = vmatpush1.msra.mxu0 0.0
    %2583 = vmatprep.subr.mxu0 0.0
    %2584 = vmatpush1.msra.mxu0 0.0
    %2585 = vmatprep.subr.mxu0 0.0
    %2586 = vmatpush1.msra.mxu0 0.0
    %2587 = vmatprep.subr.mxu0 0.0
    %2588 = vmatpush1.msra.mxu0 0.0
    %2589 = vmatprep.subr.mxu0 0.0
    %2590 = vmatpush1.msra.mxu0 0.0
    %2591 = vmatprep.subr.mxu0 0.0
    %2592 = vmatpush1.msra.mxu0 0.0
    %2593 = vmatprep.subr.mxu0 0.0
    %2594 = vmatpush1.msra.mxu0 0.0
    %2595 = vmatprep.mubr.f32.mxu0 %v2449
    %2596 = vmatmul.mubr.f32.gmra.mrb[0].mxu0 %v2231
    %v2597 = vpop.f32.mrb[0].mxu0
    %v2598 = vadd.f32 %v2521, %v2597
    %v2599 = vpop.f32.mrb[0].mxu0
    %v2600 = vadd.f32 %v2523, %v2599
    %2601 = vmatprep.mubr.f32.mxu0 %v2452
    %2602 = vmatmul.mubr.f32.gmra.mrb[0].mxu0 %v2235
    %v2603 = vpop.f32.mrb[0].mxu0
    %v2604 = vadd.f32 %v2527, %v2603
    %v2605 = vpop.f32.mrb[0].mxu0
    %v2606 = vadd.f32 %v2529, %v2605
    %2607 = vdwg.mxu0
    %2608 = vmatprep.subr.mxu0 %v2240
    %2609 = vmatpush1.msra.mxu0 %v2239
    %2610 = vmatprep.subr.mxu0 %v2244
    %2611 = vmatpush1.msra.mxu0 %v2243
    %2612 = vmatprep.subr.mxu0 %v2248
    %2613 = vmatpush1.msra.mxu0 %v2247
    %2614 = vmatprep.subr.mxu0 %v2252
    %2615 = vmatpush1.msra.mxu0 %v2251
    %2616 = vmatprep.subr.mxu0 %v2256
    %2617 = vmatpush1.msra.mxu0 %v2255
    %2618 = vmatprep.subr.mxu0 %v2260
    %2619 = vmatpush1.msra.mxu0 %v2259
    %2620 = vmatprep.subr.mxu0 %v2264
    %2621 = vmatpush1.msra.mxu0 %v2263
    %2622 = vmatprep.subr.mxu0 %v2268
    %2623 = vmatpush1.msra.mxu0 %v2267
    %2624 = vmatprep.subr.mxu0 %v2272
    %2625 = vmatpush1.msra.mxu0 %v2271
    %2626 = vmatprep.subr.mxu0 %v2276
    %2627 = vmatpush1.msra.mxu0 %v2275
    %2628 = vmatprep.subr.mxu0 %v2280
    %2629 = vmatpush1.msra.mxu0 %v2279
    %2630 = vmatprep.subr.mxu0 %v2284
    %2631 = vmatpush1.msra.mxu0 %v2283
    %2632 = vmatprep.subr.mxu0 %v2288
    %2633 = vmatpush1.msra.mxu0 %v2287
    %2634 = vmatprep.subr.mxu0 %v2292
    %2635 = vmatpush1.msra.mxu0 %v2291
    %2636 = vmatprep.subr.mxu0 %v2296
    %2637 = vmatpush1.msra.mxu0 %v2295
    %2638 = vmatprep.subr.mxu0 %v2300
    %2639 = vmatpush1.msra.mxu0 %v2299
    %2640 = vmatprep.subr.mxu0 %v2304
    %2641 = vmatpush1.msra.mxu0 %v2303
    %2642 = vmatprep.subr.mxu0 %v2308
    %2643 = vmatpush1.msra.mxu0 %v2307
    %2644 = vmatprep.subr.mxu0 %v2312
    %2645 = vmatpush1.msra.mxu0 %v2311
    %2646 = vmatprep.subr.mxu0 %v2316
    %2647 = vmatpush1.msra.mxu0 %v2315
    %2648 = vmatprep.subr.mxu0 %v2320
    %2649 = vmatpush1.msra.mxu0 %v2319
    %2650 = vmatprep.subr.mxu0 %v2324
    %2651 = vmatpush1.msra.mxu0 %v2323
    %2652 = vmatprep.subr.mxu0 %v2328
    %2653 = vmatpush1.msra.mxu0 %v2327
    %2654 = vmatprep.subr.mxu0 %v2332
    %2655 = vmatpush1.msra.mxu0 %v2331
    %2656 = vmatprep.subr.mxu0 %v2336
    %2657 = vmatpush1.msra.mxu0 %v2335
    %2658 = vmatprep.subr.mxu0 %v2340
    %2659 = vmatpush1.msra.mxu0 %v2339
    %2660 = vmatprep.subr.mxu0 %v2344
    %2661 = vmatpush1.msra.mxu0 %v2343
    %2662 = vmatprep.subr.mxu0 %v2348
    %2663 = vmatpush1.msra.mxu0 %v2347
    %2664 = vmatprep.subr.mxu0 %v2352
    %2665 = vmatpush1.msra.mxu0 %v2351
    %2666 = vmatprep.subr.mxu0 %v2356
    %2667 = vmatpush1.msra.mxu0 %v2355
    %2668 = vmatprep.subr.mxu0 %v2360
    %2669 = vmatpush1.msra.mxu0 %v2359
    %2670 = vmatprep.subr.mxu0 %v2364
    %2671 = vmatpush1.msra.mxu0 %v2363
    %2672 = vmatprep.mubr.f32.mxu0 %v2230
    %2673 = vmatmul.mubr.f32.gmra.mrb[0].mxu0 %v2229
    %v2674 = vpop.f32.mrb[0].mxu0
    %v2675 = vadd.f32 %v2440, %v2674
    %v2676 = vpop.f32.mrb[0].mxu0
    %v2677 = vadd.f32 %v2440, %v2676
    %2678 = vmatprep.mubr.f32.mxu0 %v2234
    %2679 = vmatmul.mubr.f32.gmra.mrb[0].mxu0 %v2233
    %v2680 = vpop.f32.mrb[0].mxu0
    %v2681 = vadd.f32 %v2445, %v2680
    %v2682 = vpop.f32.mrb[0].mxu0
    %v2683 = vadd.f32 %v2445, %v2682
    %2684 = vdwg.mxu0
    %2685 = vmatprep.subr.mxu0 %v2368
    %2686 = vmatpush1.msra.mxu0 %v2367
    %2687 = vmatprep.subr.mxu0 %v2372
    %2688 = vmatpush1.msra.mxu0 %v2371
    %2689 = vmatprep.subr.mxu0 %v2376
    %2690 = vmatpush1.msra.mxu0 %v2375
    %2691 = vmatprep.subr.mxu0 %v2380
    %2692 = vmatpush1.msra.mxu0 %v2379
    %2693 = vmatprep.subr.mxu0 %v2384
    %2694 = vmatpush1.msra.mxu0 %v2383
    %2695 = vmatprep.subr.mxu0 %v2388
    %2696 = vmatpush1.msra.mxu0 %v2387
    %2697 = vmatprep.subr.mxu0 %v2392
    %2698 = vmatpush1.msra.mxu0 %v2391
    %2699 = vmatprep.subr.mxu0 %v2396
    %2700 = vmatpush1.msra.mxu0 %v2395
    %2701 = vmatprep.subr.mxu0 %v2400
    %2702 = vmatpush1.msra.mxu0 %v2399
    %2703 = vmatprep.subr.mxu0 %v2404
    %2704 = vmatpush1.msra.mxu0 %v2403
    %2705 = vmatprep.subr.mxu0 %v2408
    %2706 = vmatpush1.msra.mxu0 %v2407
    %2707 = vmatprep.subr.mxu0 %v2412
    %2708 = vmatpush1.msra.mxu0 %v2411
    %2709 = vmatprep.subr.mxu0 %v2416
    %2710 = vmatpush1.msra.mxu0 %v2415
    %2711 = vmatprep.subr.mxu0 %v2420
    %2712 = vmatpush1.msra.mxu0 %v2419
    %2713 = vmatprep.subr.mxu0 %v2424
    %2714 = vmatpush1.msra.mxu0 %v2423
    %2715 = vmatprep.subr.mxu0 %v2428
    %2716 = vmatpush1.msra.mxu0 %v2427
    %2717 = vmatprep.subr.mxu0 %v2432
    %2718 = vmatpush1.msra.mxu0 %v2431
    %2719 = vmatprep.subr.mxu0 %v2436
    %2720 = vmatpush1.msra.mxu0 %v2435
    %2721 = vmatprep.subr.mxu0 0.0
    %2722 = vmatpush1.msra.mxu0 0.0
    %2723 = vmatprep.subr.mxu0 0.0
    %2724 = vmatpush1.msra.mxu0 0.0
    %2725 = vmatprep.subr.mxu0 0.0
    %2726 = vmatpush1.msra.mxu0 0.0
    %2727 = vmatprep.subr.mxu0 0.0
    %2728 = vmatpush1.msra.mxu0 0.0
    %2729 = vmatprep.subr.mxu0 0.0
    %2730 = vmatpush1.msra.mxu0 0.0
    %2731 = vmatprep.subr.mxu0 0.0
    %2732 = vmatpush1.msra.mxu0 0.0
    %2733 = vmatprep.subr.mxu0 0.0
    %2734 = vmatpush1.msra.mxu0 0.0
    %2735 = vmatprep.subr.mxu0 0.0
    %2736 = vmatpush1.msra.mxu0 0.0
    %2737 = vmatprep.subr.mxu0 0.0
    %2738 = vmatpush1.msra.mxu0 0.0
    %2739 = vmatprep.subr.mxu0 0.0
    %2740 = vmatpush1.msra.mxu0 0.0
    %2741 = vmatprep.subr.mxu0 0.0
    %2742 = vmatpush1.msra.mxu0 0.0
    %2743 = vmatprep.subr.mxu0 0.0
    %2744 = vmatpush1.msra.mxu0 0.0
    %2745 = vmatprep.subr.mxu0 0.0
    %2746 = vmatpush1.msra.mxu0 0.0
    %2747 = vmatprep.subr.mxu0 0.0
    %2748 = vmatpush1.msra.mxu0 0.0
    %2749 = vmatprep.mubr.f32.mxu0 %v2449
    %2750 = vmatmul.mubr.f32.gmra.mrb[0].mxu0 %v2231
    %v2751 = vpop.f32.mrb[0].mxu0
    %v2752 = vadd.f32 %v2675, %v2751
    %v2753 = vpop.f32.mrb[0].mxu0
    %v2754 = vadd.f32 %v2677, %v2753
    %2755 = vmatprep.mubr.f32.mxu0 %v2452
    %2756 = vmatmul.mubr.f32.gmra.mrb[0].mxu0 %v2235
    %v2757 = vpop.f32.mrb[0].mxu0
    %v2758 = vadd.f32 %v2681, %v2757
    %v2759 = vpop.f32.mrb[0].mxu0
    %v2760 = vadd.f32 %v2683, %v2759
    %2761 = vdwg.mxu0
    %2762 = vst [vmem:[#allocation2 + $0x40] sm:$0xff] %v2598
    %2763 = vst [vmem:[#allocation2 + $0x48] sm:$0xff] %v2600
    %2764 = vst [vmem:[#allocation2 + $0x50] sm:$0xff] %v2752
    %2765 = vst [vmem:[#allocation2 + $0x58] sm:$0xff] %v2754
    %2766 = vst [vmem:[#allocation2 + $0x60] sm:$0xf] %v2604
    %2767 = vst [vmem:[#allocation2 + $0x68] sm:$0xf] %v2606
    %2768 = vst [vmem:[#allocation2 + $0x70] sm:$0xf] %v2758
    %2769 = vst [vmem:[#allocation2 + $0x78] sm:$0xf] %v2760
    %v2770 = vld [vmem:[%s2 + $0x30] sm:$0xff]
    %v2771 = vld [vmem:[%s2 + $0x38] sm:$0xff]
    %v2772 = vld [vmem:[%s2 + $0x40] sm:$0xff]
    %v2773 = vld [vmem:[%s2 + $0x48] sm:$0xf]
    %v2774 = vld [vmem:[%s2 + $0x50] sm:$0xff]
    %v2775 = vld [vmem:[%s2 + $0x58] sm:$0xff]
    %v2776 = vld [vmem:[%s2 + $0x60] sm:$0xff]
    %v2777 = vld [vmem:[%s2 + $0x68] sm:$0xf]
    %v2778 = vld [vmem:[%s2 + $0xe0] sm:$0xff]
    %v2779 = vld [vmem:[%s2 + $0xe8] sm:$0xf]
    %v2780 = vld [vmem:[#allocation2] sm:$0xff]
    %v2781 = vld [vmem:[#allocation2 + $0x8] sm:$0xff]
    %v2782 = vld [vmem:[#allocation2 + $0x10] sm:$0xff]
    %v2783 = vld [vmem:[#allocation2 + $0x18] sm:$0xff]
    %v2784 = vld [vmem:[#allocation2 + $0x20] sm:$0xff]
    %v2785 = vld [vmem:[#allocation2 + $0x28] sm:$0xff]
    %v2786 = vld [vmem:[#allocation2 + $0x30] sm:$0xff]
    %v2787 = vld [vmem:[#allocation2 + $0x38] sm:$0xff]
    %v2788 = vld [vmem:[#allocation2 + $0x40] sm:$0xff]
    %v2789 = vld [vmem:[#allocation2 + $0x48] sm:$0xff]
    %v2790 = vld [vmem:[#allocation2 + $0x50] sm:$0xff]
    %v2791 = vld [vmem:[#allocation2 + $0x58] sm:$0xff]
    %v2792 = vld [vmem:[#allocation2 + $0x60] sm:$0xf]
    %v2793 = vld [vmem:[#allocation2 + $0x68] sm:$0xf]
    %v2794 = vld [vmem:[#allocation2 + $0x70] sm:$0xf]
    %v2795 = vld [vmem:[#allocation2 + $0x78] sm:$0xf]
    %2797 = vset.pattern.permute.xlu0 0
    %2798 = vperm.xlu0 %2797, %v2770
    %v2799 = vpop.permute.xlu0 %2798
    %2802 = vset.pattern.permute.xlu0 0
    %2803 = vperm.xlu0 %2802, %v2771
    %v2804 = vpop.permute.xlu0 %2803
    %2807 = vset.pattern.permute.xlu0 0
    %2808 = vperm.xlu0 %2807, %v2772
    %v2809 = vpop.permute.xlu0 %2808
    %2812 = vset.pattern.permute.xlu0 0
    %2813 = vperm.xlu0 %2812, %v2773
    %v2814 = vpop.permute.xlu0 %2813
    %v2816 = vmul.f32 %v2780, %v2799
    %v2817 = vmul.f32 %v2781, %v2799
    %v2818 = vmul.f32 %v2782, %v2799
    %v2819 = vmul.f32 %v2783, %v2799
    %v2820 = vmul.f32 %v2784, %v2804
    %v2821 = vmul.f32 %v2785, %v2804
    %v2822 = vmul.f32 %v2786, %v2804
    %v2823 = vmul.f32 %v2787, %v2804
    %v2824 = vmul.f32 %v2788, %v2809
    %v2825 = vmul.f32 %v2789, %v2809
    %v2826 = vmul.f32 %v2790, %v2809
    %v2827 = vmul.f32 %v2791, %v2809
    %v2828 = vmul.f32 %v2792, %v2814
    %v2829 = vmul.f32 %v2793, %v2814
    %v2830 = vmul.f32 %v2794, %v2814
    %v2831 = vmul.f32 %v2795, %v2814
    %2833 = vset.pattern.permute.xlu0 0
    %2834 = vperm.xlu0 %2833, %v2774
    %v2835 = vpop.permute.xlu0 %2834
    %2838 = vset.pattern.permute.xlu0 0
    %2839 = vperm.xlu0 %2838, %v2775
    %v2840 = vpop.permute.xlu0 %2839
    %2843 = vset.pattern.permute.xlu0 0
    %2844 = vperm.xlu0 %2843, %v2776
    %v2845 = vpop.permute.xlu0 %2844
    %2848 = vset.pattern.permute.xlu0 0
    %2849 = vperm.xlu0 %2848, %v2777
    %v2850 = vpop.permute.xlu0 %2849
    %v2852 = vadd.f32 %v2816, %v2835
    %v2853 = vadd.f32 %v2817, %v2835
    %v2854 = vadd.f32 %v2818, %v2835
    %v2855 = vadd.f32 %v2819, %v2835
    %v2856 = vadd.f32 %v2820, %v2840
    %v2857 = vadd.f32 %v2821, %v2840
    %v2858 = vadd.f32 %v2822, %v2840
    %v2859 = vadd.f32 %v2823, %v2840
    %v2860 = vadd.f32 %v2824, %v2845
    %v2861 = vadd.f32 %v2825, %v2845
    %v2862 = vadd.f32 %v2826, %v2845
    %v2863 = vadd.f32 %v2827, %v2845
    %v2864 = vadd.f32 %v2828, %v2850
    %v2865 = vadd.f32 %v2829, %v2850
    %v2866 = vadd.f32 %v2830, %v2850
    %v2867 = vadd.f32 %v2831, %v2850
    %v2868 = vmax.f32 %v2852, 0.0
    %v2869 = vmax.f32 %v2853, 0.0
    %v2870 = vmax.f32 %v2854, 0.0
    %v2871 = vmax.f32 %v2855, 0.0
    %v2872 = vmax.f32 %v2856, 0.0
    %v2873 = vmax.f32 %v2857, 0.0
    %v2874 = vmax.f32 %v2858, 0.0
    %v2875 = vmax.f32 %v2859, 0.0
    %v2876 = vmax.f32 %v2860, 0.0
    %v2877 = vmax.f32 %v2861, 0.0
    %v2878 = vmax.f32 %v2862, 0.0
    %v2879 = vmax.f32 %v2863, 0.0
    %v2880 = vmax.f32 %v2864, 0.0
    %v2881 = vmax.f32 %v2865, 0.0
    %v2882 = vmax.f32 %v2866, 0.0
    %v2883 = vmax.f32 %v2867, 0.0
    %2884 = vrot.lane.b32.xlu0 %v2868, 68
    %v2885 = vpop.permute.xlu0 %2884
    %2886 = vrot.lane.b32.xlu0 %v2872, 68
    %v2887 = vpop.permute.xlu0 %2886
    %2888 = vrot.lane.b32.xlu0 %v2876, 68
    %v2889 = vpop.permute.xlu0 %2888
    %2890 = vrot.lane.b32.xlu0 %v2880, 68
    %v2891 = vpop.permute.xlu0 %2890
    %2892 = vrot.lane.b32.xlu0 %v2869, 68
    %v2893 = vpop.permute.xlu0 %2892
    %2894 = vrot.lane.b32.xlu0 %v2873, 68
    %v2895 = vpop.permute.xlu0 %2894
    %2896 = vrot.lane.b32.xlu0 %v2877, 68
    %v2897 = vpop.permute.xlu0 %2896
    %2898 = vrot.lane.b32.xlu0 %v2881, 68
    %v2899 = vpop.permute.xlu0 %2898
    %2900 = vrot.lane.b32.xlu0 %v2870, 68
    %v2901 = vpop.permute.xlu0 %2900
    %2902 = vrot.lane.b32.xlu0 %v2874, 68
    %v2903 = vpop.permute.xlu0 %2902
    %2904 = vrot.lane.b32.xlu0 %v2878, 68
    %v2905 = vpop.permute.xlu0 %2904
    %2906 = vrot.lane.b32.xlu0 %v2882, 68
    %v2907 = vpop.permute.xlu0 %2906
    %2908 = vrot.lane.b32.xlu0 %v2871, 68
    %v2909 = vpop.permute.xlu0 %2908
    %2910 = vrot.lane.b32.xlu0 %v2875, 68
    %v2911 = vpop.permute.xlu0 %2910
    %2912 = vrot.lane.b32.xlu0 %v2879, 68
    %v2913 = vpop.permute.xlu0 %2912
    %2914 = vrot.lane.b32.xlu0 %v2883, 68
    %v2915 = vpop.permute.xlu0 %2914
    %v2916 = vsel %vm470, %v2901, %v2909
    %v2917 = vsel %vm470, %v2903, %v2911
    %v2918 = vsel %vm470, %v2905, %v2913
    %v2919 = vsel %vm470, %v2907, %v2915
    %v2920 = vsel %vm470, %v2893, %v2901
    %v2921 = vsel %vm470, %v2895, %v2903
    %v2922 = vsel %vm470, %v2897, %v2905
    %v2923 = vsel %vm470, %v2899, %v2907
    %v2924 = vsel %vm470, %v2885, %v2893
    %v2925 = vsel %vm470, %v2887, %v2895
    %v2926 = vsel %vm470, %v2889, %v2897
    %v2927 = vsel %vm470, %v2891, %v2899
    %v2928 = vsel %vm470, %v2909, %v2885
    %v2929 = vsel %vm470, %v2911, %v2887
    %v2930 = vsel %vm470, %v2913, %v2889
    %v2931 = vsel %vm470, %v2915, %v2891
    %v2932 = vmul.f32 %v2928, %v60
    %v2933 = vmul.f32 %v2924, %v61
    %v2934 = vmul.f32 %v2920, %v62
    %v2935 = vmul.f32 %v2916, %v63
    %v2936 = vmul.f32 %v2929, %v60
    %v2937 = vmul.f32 %v2925, %v61
    %v2938 = vmul.f32 %v2921, %v62
    %v2939 = vmul.f32 %v2917, %v63
    %v2940 = vmul.f32 %v2930, %v60
    %v2941 = vmul.f32 %v2926, %v61
    %v2942 = vmul.f32 %v2922, %v62
    %v2943 = vmul.f32 %v2918, %v63
    %v2944 = vmul.f32 %v2931, %v60
    %v2945 = vmul.f32 %v2927, %v61
    %v2946 = vmul.f32 %v2923, %v62
    %v2947 = vmul.f32 %v2919, %v63
    %2948 = vst [vmem:[#allocation3] sm:$0xff] %v2932
    %2949 = vst [vmem:[#allocation3 + $0x8] sm:$0xff] %v2933
    %2950 = vst [vmem:[#allocation3 + $0x10] sm:$0xff] %v2934
    %2951 = vst [vmem:[#allocation3 + $0x18] sm:$0xff] %v2935
    %2952 = vst [vmem:[#allocation3 + $0x20] sm:$0xff] %v2936
    %2953 = vst [vmem:[#allocation3 + $0x28] sm:$0xff] %v2937
    %2954 = vst [vmem:[#allocation3 + $0x30] sm:$0xff] %v2938
    %2955 = vst [vmem:[#allocation3 + $0x38] sm:$0xff] %v2939
    %2956 = vst [vmem:[#allocation3 + $0x40] sm:$0xff] %v2940
    %2957 = vst [vmem:[#allocation3 + $0x48] sm:$0xff] %v2941
    %2958 = vst [vmem:[#allocation3 + $0x50] sm:$0xff] %v2942
    %2959 = vst [vmem:[#allocation3 + $0x58] sm:$0xff] %v2943
    %2960 = vst [vmem:[#allocation3 + $0x60] sm:$0xf] %v2944
    %2961 = vst [vmem:[#allocation3 + $0x68] sm:$0xf] %v2945
    %2962 = vst [vmem:[#allocation3 + $0x70] sm:$0xf] %v2946
    %2963 = vst [vmem:[#allocation3 + $0x78] sm:$0xf] %v2947
    %2964 = vrot.lane.b32.xlu0 %v2868, 66
    %v2965 = vpop.permute.xlu0 %2964
    %2966 = vrot.lane.b32.xlu0 %v2872, 66
    %v2967 = vpop.permute.xlu0 %2966
    %2968 = vrot.lane.b32.xlu0 %v2876, 66
    %v2969 = vpop.permute.xlu0 %2968
    %2970 = vrot.lane.b32.xlu0 %v2880, 66
    %v2971 = vpop.permute.xlu0 %2970
    %2972 = vrot.lane.b32.xlu0 %v2869, 66
    %v2973 = vpop.permute.xlu0 %2972
    %2974 = vrot.lane.b32.xlu0 %v2873, 66
    %v2975 = vpop.permute.xlu0 %2974
    %2976 = vrot.lane.b32.xlu0 %v2877, 66
    %v2977 = vpop.permute.xlu0 %2976
    %2978 = vrot.lane.b32.xlu0 %v2881, 66
    %v2979 = vpop.permute.xlu0 %2978
    %2980 = vrot.lane.b32.xlu0 %v2870, 66
    %v2981 = vpop.permute.xlu0 %2980
    %2982 = vrot.lane.b32.xlu0 %v2874, 66
    %v2983 = vpop.permute.xlu0 %2982
    %2984 = vrot.lane.b32.xlu0 %v2878, 66
    %v2985 = vpop.permute.xlu0 %2984
    %2986 = vrot.lane.b32.xlu0 %v2882, 66
    %v2987 = vpop.permute.xlu0 %2986
    %2988 = vrot.lane.b32.xlu0 %v2871, 66
    %v2989 = vpop.permute.xlu0 %2988
    %2990 = vrot.lane.b32.xlu0 %v2875, 66
    %v2991 = vpop.permute.xlu0 %2990
    %2992 = vrot.lane.b32.xlu0 %v2879, 66
    %v2993 = vpop.permute.xlu0 %2992
    %2994 = vrot.lane.b32.xlu0 %v2883, 66
    %v2995 = vpop.permute.xlu0 %2994
    %v2996 = vsel %vm491, %v2981, %v2989
    %v2997 = vsel %vm491, %v2983, %v2991
    %v2998 = vsel %vm491, %v2985, %v2993
    %v2999 = vsel %vm491, %v2987, %v2995
    %v3000 = vsel %vm491, %v2973, %v2981
    %v3001 = vsel %vm491, %v2975, %v2983
    %v3002 = vsel %vm491, %v2977, %v2985
    %v3003 = vsel %vm491, %v2979, %v2987
    %v3004 = vsel %vm491, %v2965, %v2973
    %v3005 = vsel %vm491, %v2967, %v2975
    %v3006 = vsel %vm491, %v2969, %v2977
    %v3007 = vsel %vm491, %v2971, %v2979
    %v3008 = vsel %vm491, %v2989, %v2965
    %v3009 = vsel %vm491, %v2991, %v2967
    %v3010 = vsel %vm491, %v2993, %v2969
    %v3011 = vsel %vm491, %v2995, %v2971
    %v3012 = vmul.f32 %v3008, %v80
    %v3013 = vmul.f32 %v3004, %v81
    %v3014 = vmul.f32 %v3000, %v82
    %v3015 = vmul.f32 %v2996, %v83
    %v3016 = vmul.f32 %v3009, %v80
    %v3017 = vmul.f32 %v3005, %v81
    %v3018 = vmul.f32 %v3001, %v82
    %v3019 = vmul.f32 %v2997, %v83
    %v3020 = vmul.f32 %v3010, %v80
    %v3021 = vmul.f32 %v3006, %v81
    %v3022 = vmul.f32 %v3002, %v82
    %v3023 = vmul.f32 %v2998, %v83
    %v3024 = vmul.f32 %v3011, %v80
    %v3025 = vmul.f32 %v3007, %v81
    %v3026 = vmul.f32 %v3003, %v82
    %v3027 = vmul.f32 %v2999, %v83
    %v3044 = vrot.slane %v3012, 4
    %v3045 = vrot.slane %v3013, 4
    %v3046 = vrot.slane %v3014, 4
    %v3047 = vrot.slane %v3015, 4
    %v3048 = vrot.slane %v3016, 4
    %v3049 = vsel %vm1120, %v3044, %v3048
    %v3050 = vrot.slane %v3017, 4
    %v3051 = vsel %vm1120, %v3045, %v3050
    %v3052 = vrot.slane %v3018, 4
    %v3053 = vsel %vm1120, %v3046, %v3052
    %v3054 = vrot.slane %v3019, 4
    %v3055 = vsel %vm1120, %v3047, %v3054
    %v3056 = vrot.slane %v3020, 4
    %v3057 = vsel %vm1120, %v3048, %v3056
    %v3058 = vrot.slane %v3021, 4
    %v3059 = vsel %vm1120, %v3050, %v3058
    %v3060 = vrot.slane %v3022, 4
    %v3061 = vsel %vm1120, %v3052, %v3060
    %v3062 = vrot.slane %v3023, 4
    %v3063 = vsel %vm1120, %v3054, %v3062
    %v3064 = vrot.slane %v3024, 4
    %v3065 = vsel %vm1120, %v3056, %v3064
    %v3066 = vrot.slane %v3025, 4
    %v3067 = vsel %vm1120, %v3058, %v3066
    %v3068 = vrot.slane %v3026, 4
    %v3069 = vsel %vm1120, %v3060, %v3068
    %v3070 = vrot.slane %v3027, 4
    %v3071 = vsel %vm1120, %v3062, %v3070
    %3088 = vst [vmem:[#allocation3 + $0x60] sm:$0xf0] %v3044
    %3089 = vst [vmem:[#allocation3 + $0x68] sm:$0xf0] %v3045
    %3090 = vst [vmem:[#allocation3 + $0x70] sm:$0xf0] %v3046
    %3091 = vst [vmem:[#allocation3 + $0x78] sm:$0xf0] %v3047
    %3092 = vst [vmem:[#allocation3 + $0x80] sm:$0xff] %v3049
    %3093 = vst [vmem:[#allocation3 + $0x88] sm:$0xff] %v3051
    %3094 = vst [vmem:[#allocation3 + $0x90] sm:$0xff] %v3053
    %3095 = vst [vmem:[#allocation3 + $0x98] sm:$0xff] %v3055
    %3096 = vst [vmem:[#allocation3 + $0xa0] sm:$0xff] %v3057
    %3097 = vst [vmem:[#allocation3 + $0xa8] sm:$0xff] %v3059
    %3098 = vst [vmem:[#allocation3 + $0xb0] sm:$0xff] %v3061
    %3099 = vst [vmem:[#allocation3 + $0xb8] sm:$0xff] %v3063
    %3100 = vst [vmem:[#allocation3 + $0xc0] sm:$0xff] %v3065
    %3101 = vst [vmem:[#allocation3 + $0xc8] sm:$0xff] %v3067
    %3102 = vst [vmem:[#allocation3 + $0xd0] sm:$0xff] %v3069
    %3103 = vst [vmem:[#allocation3 + $0xd8] sm:$0xff] %v3071
    %3104 = vrot.lane.b32.xlu0 %v2868, 64
    %v3105 = vpop.permute.xlu0 %3104
    %3106 = vrot.lane.b32.xlu0 %v2872, 64
    %v3107 = vpop.permute.xlu0 %3106
    %3108 = vrot.lane.b32.xlu0 %v2876, 64
    %v3109 = vpop.permute.xlu0 %3108
    %3110 = vrot.lane.b32.xlu0 %v2880, 64
    %v3111 = vpop.permute.xlu0 %3110
    %3112 = vrot.lane.b32.xlu0 %v2869, 64
    %v3113 = vpop.permute.xlu0 %3112
    %3114 = vrot.lane.b32.xlu0 %v2873, 64
    %v3115 = vpop.permute.xlu0 %3114
    %3116 = vrot.lane.b32.xlu0 %v2877, 64
    %v3117 = vpop.permute.xlu0 %3116
    %3118 = vrot.lane.b32.xlu0 %v2881, 64
    %v3119 = vpop.permute.xlu0 %3118
    %3120 = vrot.lane.b32.xlu0 %v2870, 64
    %v3121 = vpop.permute.xlu0 %3120
    %3122 = vrot.lane.b32.xlu0 %v2874, 64
    %v3123 = vpop.permute.xlu0 %3122
    %3124 = vrot.lane.b32.xlu0 %v2878, 64
    %v3125 = vpop.permute.xlu0 %3124
    %3126 = vrot.lane.b32.xlu0 %v2882, 64
    %v3127 = vpop.permute.xlu0 %3126
    %3128 = vrot.lane.b32.xlu0 %v2871, 64
    %v3129 = vpop.permute.xlu0 %3128
    %3130 = vrot.lane.b32.xlu0 %v2875, 64
    %v3131 = vpop.permute.xlu0 %3130
    %3132 = vrot.lane.b32.xlu0 %v2879, 64
    %v3133 = vpop.permute.xlu0 %3132
    %3134 = vrot.lane.b32.xlu0 %v2883, 64
    %v3135 = vpop.permute.xlu0 %3134
    %v3136 = vsel %vm524, %v3121, %v3129
    %v3137 = vsel %vm524, %v3123, %v3131
    %v3138 = vsel %vm524, %v3125, %v3133
    %v3139 = vsel %vm524, %v3127, %v3135
    %v3140 = vsel %vm524, %v3113, %v3121
    %v3141 = vsel %vm524, %v3115, %v3123
    %v3142 = vsel %vm524, %v3117, %v3125
    %v3143 = vsel %vm524, %v3119, %v3127
    %v3144 = vsel %vm524, %v3105, %v3113
    %v3145 = vsel %vm524, %v3107, %v3115
    %v3146 = vsel %vm524, %v3109, %v3117
    %v3147 = vsel %vm524, %v3111, %v3119
    %v3148 = vsel %vm524, %v3129, %v3105
    %v3149 = vsel %vm524, %v3131, %v3107
    %v3150 = vsel %vm524, %v3133, %v3109
    %v3151 = vsel %vm524, %v3135, %v3111
    %v3152 = vmul.f32 %v3148, %v100
    %v3153 = vmul.f32 %v3144, %v101
    %v3154 = vmul.f32 %v3140, %v102
    %v3155 = vmul.f32 %v3136, %v103
    %v3156 = vmul.f32 %v3149, %v100
    %v3157 = vmul.f32 %v3145, %v101
    %v3158 = vmul.f32 %v3141, %v102
    %v3159 = vmul.f32 %v3137, %v103
    %v3160 = vmul.f32 %v3150, %v100
    %v3161 = vmul.f32 %v3146, %v101
    %v3162 = vmul.f32 %v3142, %v102
    %v3163 = vmul.f32 %v3138, %v103
    %v3164 = vmul.f32 %v3151, %v100
    %v3165 = vmul.f32 %v3147, %v101
    %v3166 = vmul.f32 %v3143, %v102
    %v3167 = vmul.f32 %v3139, %v103
    %3168 = vst [vmem:[#allocation3 + $0xe0] sm:$0xff] %v3152
    %3169 = vst [vmem:[#allocation3 + $0xe8] sm:$0xff] %v3153
    %3170 = vst [vmem:[#allocation3 + $0xf0] sm:$0xff] %v3154
    %3171 = vst [vmem:[#allocation3 + $0xf8] sm:$0xff] %v3155
    %3172 = vst [vmem:[#allocation3 + $0x100] sm:$0xff] %v3156
    %3173 = vst [vmem:[#allocation3 + $0x108] sm:$0xff] %v3157
    %3174 = vst [vmem:[#allocation3 + $0x110] sm:$0xff] %v3158
    %3175 = vst [vmem:[#allocation3 + $0x118] sm:$0xff] %v3159
    %3176 = vst [vmem:[#allocation3 + $0x120] sm:$0xff] %v3160
    %3177 = vst [vmem:[#allocation3 + $0x128] sm:$0xff] %v3161
    %3178 = vst [vmem:[#allocation3 + $0x130] sm:$0xff] %v3162
    %3179 = vst [vmem:[#allocation3 + $0x138] sm:$0xff] %v3163
    %3180 = vst [vmem:[#allocation3 + $0x140] sm:$0xf] %v3164
    %3181 = vst [vmem:[#allocation3 + $0x148] sm:$0xf] %v3165
    %3182 = vst [vmem:[#allocation3 + $0x150] sm:$0xf] %v3166
    %3183 = vst [vmem:[#allocation3 + $0x158] sm:$0xf] %v3167
    %3184 = vrot.lane.b32.xlu0 %v2868, 62
    %v3185 = vpop.permute.xlu0 %3184
    %3186 = vrot.lane.b32.xlu0 %v2872, 62
    %v3187 = vpop.permute.xlu0 %3186
    %3188 = vrot.lane.b32.xlu0 %v2876, 62
    %v3189 = vpop.permute.xlu0 %3188
    %3190 = vrot.lane.b32.xlu0 %v2880, 62
    %v3191 = vpop.permute.xlu0 %3190
    %3192 = vrot.lane.b32.xlu0 %v2869, 62
    %v3193 = vpop.permute.xlu0 %3192
    %3194 = vrot.lane.b32.xlu0 %v2873, 62
    %v3195 = vpop.permute.xlu0 %3194
    %3196 = vrot.lane.b32.xlu0 %v2877, 62
    %v3197 = vpop.permute.xlu0 %3196
    %3198 = vrot.lane.b32.xlu0 %v2881, 62
    %v3199 = vpop.permute.xlu0 %3198
    %3200 = vrot.lane.b32.xlu0 %v2870, 62
    %v3201 = vpop.permute.xlu0 %3200
    %3202 = vrot.lane.b32.xlu0 %v2874, 62
    %v3203 = vpop.permute.xlu0 %3202
    %3204 = vrot.lane.b32.xlu0 %v2878, 62
    %v3205 = vpop.permute.xlu0 %3204
    %3206 = vrot.lane.b32.xlu0 %v2882, 62
    %v3207 = vpop.permute.xlu0 %3206
    %3208 = vrot.lane.b32.xlu0 %v2871, 62
    %v3209 = vpop.permute.xlu0 %3208
    %3210 = vrot.lane.b32.xlu0 %v2875, 62
    %v3211 = vpop.permute.xlu0 %3210
    %3212 = vrot.lane.b32.xlu0 %v2879, 62
    %v3213 = vpop.permute.xlu0 %3212
    %3214 = vrot.lane.b32.xlu0 %v2883, 62
    %v3215 = vpop.permute.xlu0 %3214
    %v3216 = vsel %vm545, %v3201, %v3209
    %v3217 = vsel %vm545, %v3203, %v3211
    %v3218 = vsel %vm545, %v3205, %v3213
    %v3219 = vsel %vm545, %v3207, %v3215
    %v3220 = vsel %vm545, %v3193, %v3201
    %v3221 = vsel %vm545, %v3195, %v3203
    %v3222 = vsel %vm545, %v3197, %v3205
    %v3223 = vsel %vm545, %v3199, %v3207
    %v3224 = vsel %vm545, %v3185, %v3193
    %v3225 = vsel %vm545, %v3187, %v3195
    %v3226 = vsel %vm545, %v3189, %v3197
    %v3227 = vsel %vm545, %v3191, %v3199
    %v3228 = vsel %vm545, %v3209, %v3185
    %v3229 = vsel %vm545, %v3211, %v3187
    %v3230 = vsel %vm545, %v3213, %v3189
    %v3231 = vsel %vm545, %v3215, %v3191
    %v3232 = vmul.f32 %v3228, %v120
    %v3233 = vmul.f32 %v3224, %v121
    %v3234 = vmul.f32 %v3220, %v122
    %v3235 = vmul.f32 %v3216, %v123
    %v3236 = vmul.f32 %v3229, %v120
    %v3237 = vmul.f32 %v3225, %v121
    %v3238 = vmul.f32 %v3221, %v122
    %v3239 = vmul.f32 %v3217, %v123
    %v3240 = vmul.f32 %v3230, %v120
    %v3241 = vmul.f32 %v3226, %v121
    %v3242 = vmul.f32 %v3222, %v122
    %v3243 = vmul.f32 %v3218, %v123
    %v3244 = vmul.f32 %v3231, %v120
    %v3245 = vmul.f32 %v3227, %v121
    %v3246 = vmul.f32 %v3223, %v122
    %v3247 = vmul.f32 %v3219, %v123
    %v3264 = vrot.slane %v3232, 4
    %v3265 = vrot.slane %v3233, 4
    %v3266 = vrot.slane %v3234, 4
    %v3267 = vrot.slane %v3235, 4
    %v3268 = vrot.slane %v3236, 4
    %v3269 = vsel %vm1120, %v3264, %v3268
    %v3270 = vrot.slane %v3237, 4
    %v3271 = vsel %vm1120, %v3265, %v3270
    %v3272 = vrot.slane %v3238, 4
    %v3273 = vsel %vm1120, %v3266, %v3272
    %v3274 = vrot.slane %v3239, 4
    %v3275 = vsel %vm1120, %v3267, %v3274
    %v3276 = vrot.slane %v3240, 4
    %v3277 = vsel %vm1120, %v3268, %v3276
    %v3278 = vrot.slane %v3241, 4
    %v3279 = vsel %vm1120, %v3270, %v3278
    %v3280 = vrot.slane %v3242, 4
    %v3281 = vsel %vm1120, %v3272, %v3280
    %v3282 = vrot.slane %v3243, 4
    %v3283 = vsel %vm1120, %v3274, %v3282
    %v3284 = vrot.slane %v3244, 4
    %v3285 = vsel %vm1120, %v3276, %v3284
    %v3286 = vrot.slane %v3245, 4
    %v3287 = vsel %vm1120, %v3278, %v3286
    %v3288 = vrot.slane %v3246, 4
    %v3289 = vsel %vm1120, %v3280, %v3288
    %v3290 = vrot.slane %v3247, 4
    %v3291 = vsel %vm1120, %v3282, %v3290
    %3308 = vst [vmem:[#allocation3 + $0x140] sm:$0xf0] %v3264
    %3309 = vst [vmem:[#allocation3 + $0x148] sm:$0xf0] %v3265
    %3310 = vst [vmem:[#allocation3 + $0x150] sm:$0xf0] %v3266
    %3311 = vst [vmem:[#allocation3 + $0x158] sm:$0xf0] %v3267
    %3312 = vst [vmem:[#allocation3 + $0x160] sm:$0xff] %v3269
    %3313 = vst [vmem:[#allocation3 + $0x168] sm:$0xff] %v3271
    %3314 = vst [vmem:[#allocation3 + $0x170] sm:$0xff] %v3273
    %3315 = vst [vmem:[#allocation3 + $0x178] sm:$0xff] %v3275
    %3316 = vst [vmem:[#allocation3 + $0x180] sm:$0xff] %v3277
    %3317 = vst [vmem:[#allocation3 + $0x188] sm:$0xff] %v3279
    %3318 = vst [vmem:[#allocation3 + $0x190] sm:$0xff] %v3281
    %3319 = vst [vmem:[#allocation3 + $0x198] sm:$0xff] %v3283
    %3320 = vst [vmem:[#allocation3 + $0x1a0] sm:$0xff] %v3285
    %3321 = vst [vmem:[#allocation3 + $0x1a8] sm:$0xff] %v3287
    %3322 = vst [vmem:[#allocation3 + $0x1b0] sm:$0xff] %v3289
    %3323 = vst [vmem:[#allocation3 + $0x1b8] sm:$0xff] %v3291
    %3324 = vrot.lane.b32.xlu0 %v2868, 60
    %v3325 = vpop.permute.xlu0 %3324
    %3326 = vrot.lane.b32.xlu0 %v2872, 60
    %v3327 = vpop.permute.xlu0 %3326
    %3328 = vrot.lane.b32.xlu0 %v2876, 60
    %v3329 = vpop.permute.xlu0 %3328
    %3330 = vrot.lane.b32.xlu0 %v2880, 60
    %v3331 = vpop.permute.xlu0 %3330
    %3332 = vrot.lane.b32.xlu0 %v2869, 60
    %v3333 = vpop.permute.xlu0 %3332
    %3334 = vrot.lane.b32.xlu0 %v2873, 60
    %v3335 = vpop.permute.xlu0 %3334
    %3336 = vrot.lane.b32.xlu0 %v2877, 60
    %v3337 = vpop.permute.xlu0 %3336
    %3338 = vrot.lane.b32.xlu0 %v2881, 60
    %v3339 = vpop.permute.xlu0 %3338
    %3340 = vrot.lane.b32.xlu0 %v2870, 60
    %v3341 = vpop.permute.xlu0 %3340
    %3342 = vrot.lane.b32.xlu0 %v2874, 60
    %v3343 = vpop.permute.xlu0 %3342
    %3344 = vrot.lane.b32.xlu0 %v2878, 60
    %v3345 = vpop.permute.xlu0 %3344
    %3346 = vrot.lane.b32.xlu0 %v2882, 60
    %v3347 = vpop.permute.xlu0 %3346
    %3348 = vrot.lane.b32.xlu0 %v2871, 60
    %v3349 = vpop.permute.xlu0 %3348
    %3350 = vrot.lane.b32.xlu0 %v2875, 60
    %v3351 = vpop.permute.xlu0 %3350
    %3352 = vrot.lane.b32.xlu0 %v2879, 60
    %v3353 = vpop.permute.xlu0 %3352
    %3354 = vrot.lane.b32.xlu0 %v2883, 60
    %v3355 = vpop.permute.xlu0 %3354
    %v3356 = vsel %vm578, %v3341, %v3349
    %v3357 = vsel %vm578, %v3343, %v3351
    %v3358 = vsel %vm578, %v3345, %v3353
    %v3359 = vsel %vm578, %v3347, %v3355
    %v3360 = vsel %vm578, %v3333, %v3341
    %v3361 = vsel %vm578, %v3335, %v3343
    %v3362 = vsel %vm578, %v3337, %v3345
    %v3363 = vsel %vm578, %v3339, %v3347
    %v3364 = vsel %vm578, %v3325, %v3333
    %v3365 = vsel %vm578, %v3327, %v3335
    %v3366 = vsel %vm578, %v3329, %v3337
    %v3367 = vsel %vm578, %v3331, %v3339
    %v3368 = vsel %vm578, %v3349, %v3325
    %v3369 = vsel %vm578, %v3351, %v3327
    %v3370 = vsel %vm578, %v3353, %v3329
    %v3371 = vsel %vm578, %v3355, %v3331
    %v3372 = vmul.f32 %v3368, %v140
    %v3373 = vmul.f32 %v3364, %v141
    %v3374 = vmul.f32 %v3360, %v142
    %v3375 = vmul.f32 %v3356, %v143
    %v3376 = vmul.f32 %v3369, %v140
    %v3377 = vmul.f32 %v3365, %v141
    %v3378 = vmul.f32 %v3361, %v142
    %v3379 = vmul.f32 %v3357, %v143
    %v3380 = vmul.f32 %v3370, %v140
    %v3381 = vmul.f32 %v3366, %v141
    %v3382 = vmul.f32 %v3362, %v142
    %v3383 = vmul.f32 %v3358, %v143
    %v3384 = vmul.f32 %v3371, %v140
    %v3385 = vmul.f32 %v3367, %v141
    %v3386 = vmul.f32 %v3363, %v142
    %v3387 = vmul.f32 %v3359, %v143
    %3388 = vst [vmem:[#allocation3 + $0x1c0] sm:$0xff] %v3372
    %3389 = vst [vmem:[#allocation3 + $0x1c8] sm:$0xff] %v3373
    %3390 = vst [vmem:[#allocation3 + $0x1d0] sm:$0xff] %v3374
    %3391 = vst [vmem:[#allocation3 + $0x1d8] sm:$0xff] %v3375
    %3392 = vst [vmem:[#allocation3 + $0x1e0] sm:$0xff] %v3376
    %3393 = vst [vmem:[#allocation3 + $0x1e8] sm:$0xff] %v3377
    %3394 = vst [vmem:[#allocation3 + $0x1f0] sm:$0xff] %v3378
    %3395 = vst [vmem:[#allocation3 + $0x1f8] sm:$0xff] %v3379
    %3396 = vst [vmem:[#allocation3 + $0x200] sm:$0xff] %v3380
    %3397 = vst [vmem:[#allocation3 + $0x208] sm:$0xff] %v3381
    %3398 = vst [vmem:[#allocation3 + $0x210] sm:$0xff] %v3382
    %3399 = vst [vmem:[#allocation3 + $0x218] sm:$0xff] %v3383
    %3400 = vst [vmem:[#allocation3 + $0x220] sm:$0xf] %v3384
    %3401 = vst [vmem:[#allocation3 + $0x228] sm:$0xf] %v3385
    %3402 = vst [vmem:[#allocation3 + $0x230] sm:$0xf] %v3386
    %3403 = vst [vmem:[#allocation3 + $0x238] sm:$0xf] %v3387
    %3404 = vrot.lane.b32.xlu0 %v2868, 36
    %v3405 = vpop.permute.xlu0 %3404
    %3406 = vrot.lane.b32.xlu0 %v2872, 36
    %v3407 = vpop.permute.xlu0 %3406
    %3408 = vrot.lane.b32.xlu0 %v2876, 36
    %v3409 = vpop.permute.xlu0 %3408
    %3410 = vrot.lane.b32.xlu0 %v2880, 36
    %v3411 = vpop.permute.xlu0 %3410
    %3412 = vrot.lane.b32.xlu0 %v2869, 36
    %v3413 = vpop.permute.xlu0 %3412
    %3414 = vrot.lane.b32.xlu0 %v2873, 36
    %v3415 = vpop.permute.xlu0 %3414
    %3416 = vrot.lane.b32.xlu0 %v2877, 36
    %v3417 = vpop.permute.xlu0 %3416
    %3418 = vrot.lane.b32.xlu0 %v2881, 36
    %v3419 = vpop.permute.xlu0 %3418
    %3420 = vrot.lane.b32.xlu0 %v2870, 36
    %v3421 = vpop.permute.xlu0 %3420
    %3422 = vrot.lane.b32.xlu0 %v2874, 36
    %v3423 = vpop.permute.xlu0 %3422
    %3424 = vrot.lane.b32.xlu0 %v2878, 36
    %v3425 = vpop.permute.xlu0 %3424
    %3426 = vrot.lane.b32.xlu0 %v2882, 36
    %v3427 = vpop.permute.xlu0 %3426
    %3428 = vrot.lane.b32.xlu0 %v2871, 36
    %v3429 = vpop.permute.xlu0 %3428
    %3430 = vrot.lane.b32.xlu0 %v2875, 36
    %v3431 = vpop.permute.xlu0 %3430
    %3432 = vrot.lane.b32.xlu0 %v2879, 36
    %v3433 = vpop.permute.xlu0 %3432
    %3434 = vrot.lane.b32.xlu0 %v2883, 36
    %v3435 = vpop.permute.xlu0 %3434
    %v3436 = vsel %vm599, %v3421, %v3429
    %v3437 = vsel %vm599, %v3423, %v3431
    %v3438 = vsel %vm599, %v3425, %v3433
    %v3439 = vsel %vm599, %v3427, %v3435
    %v3440 = vsel %vm599, %v3413, %v3421
    %v3441 = vsel %vm599, %v3415, %v3423
    %v3442 = vsel %vm599, %v3417, %v3425
    %v3443 = vsel %vm599, %v3419, %v3427
    %v3444 = vsel %vm599, %v3405, %v3413
    %v3445 = vsel %vm599, %v3407, %v3415
    %v3446 = vsel %vm599, %v3409, %v3417
    %v3447 = vsel %vm599, %v3411, %v3419
    %v3448 = vsel %vm599, %v3429, %v3405
    %v3449 = vsel %vm599, %v3431, %v3407
    %v3450 = vsel %vm599, %v3433, %v3409
    %v3451 = vsel %vm599, %v3435, %v3411
    %v3452 = vmul.f32 %v3448, %v164
    %v3453 = vmul.f32 %v3444, %v165
    %v3454 = vmul.f32 %v3440, %v166
    %v3455 = vmul.f32 %v3436, %v167
    %v3456 = vmul.f32 %v3449, %v164
    %v3457 = vmul.f32 %v3445, %v165
    %v3458 = vmul.f32 %v3441, %v166
    %v3459 = vmul.f32 %v3437, %v167
    %v3460 = vmul.f32 %v3450, %v164
    %v3461 = vmul.f32 %v3446, %v165
    %v3462 = vmul.f32 %v3442, %v166
    %v3463 = vmul.f32 %v3438, %v167
    %v3464 = vmul.f32 %v3451, %v164
    %v3465 = vmul.f32 %v3447, %v165
    %v3466 = vmul.f32 %v3443, %v166
    %v3467 = vmul.f32 %v3439, %v167
    %v3484 = vrot.slane %v3452, 4
    %v3485 = vrot.slane %v3453, 4
    %v3486 = vrot.slane %v3454, 4
    %v3487 = vrot.slane %v3455, 4
    %v3488 = vrot.slane %v3456, 4
    %v3489 = vsel %vm1120, %v3484, %v3488
    %v3490 = vrot.slane %v3457, 4
    %v3491 = vsel %vm1120, %v3485, %v3490
    %v3492 = vrot.slane %v3458, 4
    %v3493 = vsel %vm1120, %v3486, %v3492
    %v3494 = vrot.slane %v3459, 4
    %v3495 = vsel %vm1120, %v3487, %v3494
    %v3496 = vrot.slane %v3460, 4
    %v3497 = vsel %vm1120, %v3488, %v3496
    %v3498 = vrot.slane %v3461, 4
    %v3499 = vsel %vm1120, %v3490, %v3498
    %v3500 = vrot.slane %v3462, 4
    %v3501 = vsel %vm1120, %v3492, %v3500
    %v3502 = vrot.slane %v3463, 4
    %v3503 = vsel %vm1120, %v3494, %v3502
    %v3504 = vrot.slane %v3464, 4
    %v3505 = vsel %vm1120, %v3496, %v3504
    %v3506 = vrot.slane %v3465, 4
    %v3507 = vsel %vm1120, %v3498, %v3506
    %v3508 = vrot.slane %v3466, 4
    %v3509 = vsel %vm1120, %v3500, %v3508
    %v3510 = vrot.slane %v3467, 4
    %v3511 = vsel %vm1120, %v3502, %v3510
    %3528 = vst [vmem:[#allocation3 + $0x220] sm:$0xf0] %v3484
    %3529 = vst [vmem:[#allocation3 + $0x228] sm:$0xf0] %v3485
    %3530 = vst [vmem:[#allocation3 + $0x230] sm:$0xf0] %v3486
    %3531 = vst [vmem:[#allocation3 + $0x238] sm:$0xf0] %v3487
    %3532 = vst [vmem:[#allocation3 + $0x240] sm:$0xff] %v3489
    %3533 = vst [vmem:[#allocation3 + $0x248] sm:$0xff] %v3491
    %3534 = vst [vmem:[#allocation3 + $0x250] sm:$0xff] %v3493
    %3535 = vst [vmem:[#allocation3 + $0x258] sm:$0xff] %v3495
    %3536 = vst [vmem:[#allocation3 + $0x260] sm:$0xff] %v3497
    %3537 = vst [vmem:[#allocation3 + $0x268] sm:$0xff] %v3499
    %3538 = vst [vmem:[#allocation3 + $0x270] sm:$0xff] %v3501
    %3539 = vst [vmem:[#allocation3 + $0x278] sm:$0xff] %v3503
    %3540 = vst [vmem:[#allocation3 + $0x280] sm:$0xff] %v3505
    %3541 = vst [vmem:[#allocation3 + $0x288] sm:$0xff] %v3507
    %3542 = vst [vmem:[#allocation3 + $0x290] sm:$0xff] %v3509
    %3543 = vst [vmem:[#allocation3 + $0x298] sm:$0xff] %v3511
    %3544 = vrot.lane.b32.xlu0 %v2868, 34
    %v3545 = vpop.permute.xlu0 %3544
    %3546 = vrot.lane.b32.xlu0 %v2872, 34
    %v3547 = vpop.permute.xlu0 %3546
    %3548 = vrot.lane.b32.xlu0 %v2876, 34
    %v3549 = vpop.permute.xlu0 %3548
    %3550 = vrot.lane.b32.xlu0 %v2880, 34
    %v3551 = vpop.permute.xlu0 %3550
    %3552 = vrot.lane.b32.xlu0 %v2869, 34
    %v3553 = vpop.permute.xlu0 %3552
    %3554 = vrot.lane.b32.xlu0 %v2873, 34
    %v3555 = vpop.permute.xlu0 %3554
    %3556 = vrot.lane.b32.xlu0 %v2877, 34
    %v3557 = vpop.permute.xlu0 %3556
    %3558 = vrot.lane.b32.xlu0 %v2881, 34
    %v3559 = vpop.permute.xlu0 %3558
    %3560 = vrot.lane.b32.xlu0 %v2870, 34
    %v3561 = vpop.permute.xlu0 %3560
    %3562 = vrot.lane.b32.xlu0 %v2874, 34
    %v3563 = vpop.permute.xlu0 %3562
    %3564 = vrot.lane.b32.xlu0 %v2878, 34
    %v3565 = vpop.permute.xlu0 %3564
    %3566 = vrot.lane.b32.xlu0 %v2882, 34
    %v3567 = vpop.permute.xlu0 %3566
    %3568 = vrot.lane.b32.xlu0 %v2871, 34
    %v3569 = vpop.permute.xlu0 %3568
    %3570 = vrot.lane.b32.xlu0 %v2875, 34
    %v3571 = vpop.permute.xlu0 %3570
    %3572 = vrot.lane.b32.xlu0 %v2879, 34
    %v3573 = vpop.permute.xlu0 %3572
    %3574 = vrot.lane.b32.xlu0 %v2883, 34
    %v3575 = vpop.permute.xlu0 %3574
    %v3576 = vsel %vm632, %v3561, %v3569
    %v3577 = vsel %vm632, %v3563, %v3571
    %v3578 = vsel %vm632, %v3565, %v3573
    %v3579 = vsel %vm632, %v3567, %v3575
    %v3580 = vsel %vm632, %v3553, %v3561
    %v3581 = vsel %vm632, %v3555, %v3563
    %v3582 = vsel %vm632, %v3557, %v3565
    %v3583 = vsel %vm632, %v3559, %v3567
    %v3584 = vsel %vm632, %v3545, %v3553
    %v3585 = vsel %vm632, %v3547, %v3555
    %v3586 = vsel %vm632, %v3549, %v3557
    %v3587 = vsel %vm632, %v3551, %v3559
    %v3588 = vsel %vm632, %v3569, %v3545
    %v3589 = vsel %vm632, %v3571, %v3547
    %v3590 = vsel %vm632, %v3573, %v3549
    %v3591 = vsel %vm632, %v3575, %v3551
    %v3592 = vmul.f32 %v3588, %v176
    %v3593 = vmul.f32 %v3584, %v177
    %v3594 = vmul.f32 %v3580, %v178
    %v3595 = vmul.f32 %v3576, %v179
    %v3596 = vmul.f32 %v3589, %v176
    %v3597 = vmul.f32 %v3585, %v177
    %v3598 = vmul.f32 %v3581, %v178
    %v3599 = vmul.f32 %v3577, %v179
    %v3600 = vmul.f32 %v3590, %v176
    %v3601 = vmul.f32 %v3586, %v177
    %v3602 = vmul.f32 %v3582, %v178
    %v3603 = vmul.f32 %v3578, %v179
    %v3604 = vmul.f32 %v3591, %v176
    %v3605 = vmul.f32 %v3587, %v177
    %v3606 = vmul.f32 %v3583, %v178
    %v3607 = vmul.f32 %v3579, %v179
    %3608 = vst [vmem:[#allocation3 + $0x2a0] sm:$0xff] %v3592
    %3609 = vst [vmem:[#allocation3 + $0x2a8] sm:$0xff] %v3593
    %3610 = vst [vmem:[#allocation3 + $0x2b0] sm:$0xff] %v3594
    %3611 = vst [vmem:[#allocation3 + $0x2b8] sm:$0xff] %v3595
    %3612 = vst [vmem:[#allocation3 + $0x2c0] sm:$0xff] %v3596
    %3613 = vst [vmem:[#allocation3 + $0x2c8] sm:$0xff] %v3597
    %3614 = vst [vmem:[#allocation3 + $0x2d0] sm:$0xff] %v3598
    %3615 = vst [vmem:[#allocation3 + $0x2d8] sm:$0xff] %v3599
    %3616 = vst [vmem:[#allocation3 + $0x2e0] sm:$0xff] %v3600
    %3617 = vst [vmem:[#allocation3 + $0x2e8] sm:$0xff] %v3601
    %3618 = vst [vmem:[#allocation3 + $0x2f0] sm:$0xff] %v3602
    %3619 = vst [vmem:[#allocation3 + $0x2f8] sm:$0xff] %v3603
    %3620 = vst [vmem:[#allocation3 + $0x300] sm:$0xf] %v3604
    %3621 = vst [vmem:[#allocation3 + $0x308] sm:$0xf] %v3605
    %3622 = vst [vmem:[#allocation3 + $0x310] sm:$0xf] %v3606
    %3623 = vst [vmem:[#allocation3 + $0x318] sm:$0xf] %v3607
    %3624 = vrot.lane.b32.xlu0 %v2868, 32
    %v3625 = vpop.permute.xlu0 %3624
    %3626 = vrot.lane.b32.xlu0 %v2872, 32
    %v3627 = vpop.permute.xlu0 %3626
    %3628 = vrot.lane.b32.xlu0 %v2876, 32
    %v3629 = vpop.permute.xlu0 %3628
    %3630 = vrot.lane.b32.xlu0 %v2880, 32
    %v3631 = vpop.permute.xlu0 %3630
    %3632 = vrot.lane.b32.xlu0 %v2869, 32
    %v3633 = vpop.permute.xlu0 %3632
    %3634 = vrot.lane.b32.xlu0 %v2873, 32
    %v3635 = vpop.permute.xlu0 %3634
    %3636 = vrot.lane.b32.xlu0 %v2877, 32
    %v3637 = vpop.permute.xlu0 %3636
    %3638 = vrot.lane.b32.xlu0 %v2881, 32
    %v3639 = vpop.permute.xlu0 %3638
    %3640 = vrot.lane.b32.xlu0 %v2870, 32
    %v3641 = vpop.permute.xlu0 %3640
    %3642 = vrot.lane.b32.xlu0 %v2874, 32
    %v3643 = vpop.permute.xlu0 %3642
    %3644 = vrot.lane.b32.xlu0 %v2878, 32
    %v3645 = vpop.permute.xlu0 %3644
    %3646 = vrot.lane.b32.xlu0 %v2882, 32
    %v3647 = vpop.permute.xlu0 %3646
    %3648 = vrot.lane.b32.xlu0 %v2871, 32
    %v3649 = vpop.permute.xlu0 %3648
    %3650 = vrot.lane.b32.xlu0 %v2875, 32
    %v3651 = vpop.permute.xlu0 %3650
    %3652 = vrot.lane.b32.xlu0 %v2879, 32
    %v3653 = vpop.permute.xlu0 %3652
    %3654 = vrot.lane.b32.xlu0 %v2883, 32
    %v3655 = vpop.permute.xlu0 %3654
    %v3656 = vsel %vm653, %v3641, %v3649
    %v3657 = vsel %vm653, %v3643, %v3651
    %v3658 = vsel %vm653, %v3645, %v3653
    %v3659 = vsel %vm653, %v3647, %v3655
    %v3660 = vsel %vm653, %v3633, %v3641
    %v3661 = vsel %vm653, %v3635, %v3643
    %v3662 = vsel %vm653, %v3637, %v3645
    %v3663 = vsel %vm653, %v3639, %v3647
    %v3664 = vsel %vm653, %v3625, %v3633
    %v3665 = vsel %vm653, %v3627, %v3635
    %v3666 = vsel %vm653, %v3629, %v3637
    %v3667 = vsel %vm653, %v3631, %v3639
    %v3668 = vsel %vm653, %v3649, %v3625
    %v3669 = vsel %vm653, %v3651, %v3627
    %v3670 = vsel %vm653, %v3653, %v3629
    %v3671 = vsel %vm653, %v3655, %v3631
    %v3672 = vmul.f32 %v3668, %v188
    %v3673 = vmul.f32 %v3664, %v189
    %v3674 = vmul.f32 %v3660, %v190
    %v3675 = vmul.f32 %v3656, %v191
    %v3676 = vmul.f32 %v3669, %v188
    %v3677 = vmul.f32 %v3665, %v189
    %v3678 = vmul.f32 %v3661, %v190
    %v3679 = vmul.f32 %v3657, %v191
    %v3680 = vmul.f32 %v3670, %v188
    %v3681 = vmul.f32 %v3666, %v189
    %v3682 = vmul.f32 %v3662, %v190
    %v3683 = vmul.f32 %v3658, %v191
    %v3684 = vmul.f32 %v3671, %v188
    %v3685 = vmul.f32 %v3667, %v189
    %v3686 = vmul.f32 %v3663, %v190
    %v3687 = vmul.f32 %v3659, %v191
    %v3704 = vrot.slane %v3672, 4
    %v3705 = vrot.slane %v3673, 4
    %v3706 = vrot.slane %v3674, 4
    %v3707 = vrot.slane %v3675, 4
    %v3708 = vrot.slane %v3676, 4
    %v3709 = vsel %vm1120, %v3704, %v3708
    %v3710 = vrot.slane %v3677, 4
    %v3711 = vsel %vm1120, %v3705, %v3710
    %v3712 = vrot.slane %v3678, 4
    %v3713 = vsel %vm1120, %v3706, %v3712
    %v3714 = vrot.slane %v3679, 4
    %v3715 = vsel %vm1120, %v3707, %v3714
    %v3716 = vrot.slane %v3680, 4
    %v3717 = vsel %vm1120, %v3708, %v3716
    %v3718 = vrot.slane %v3681, 4
    %v3719 = vsel %vm1120, %v3710, %v3718
    %v3720 = vrot.slane %v3682, 4
    %v3721 = vsel %vm1120, %v3712, %v3720
    %v3722 = vrot.slane %v3683, 4
    %v3723 = vsel %vm1120, %v3714, %v3722
    %v3724 = vrot.slane %v3684, 4
    %v3725 = vsel %vm1120, %v3716, %v3724
    %v3726 = vrot.slane %v3685, 4
    %v3727 = vsel %vm1120, %v3718, %v3726
    %v3728 = vrot.slane %v3686, 4
    %v3729 = vsel %vm1120, %v3720, %v3728
    %v3730 = vrot.slane %v3687, 4
    %v3731 = vsel %vm1120, %v3722, %v3730
    %3748 = vst [vmem:[#allocation3 + $0x300] sm:$0xf0] %v3704
    %3749 = vst [vmem:[#allocation3 + $0x308] sm:$0xf0] %v3705
    %3750 = vst [vmem:[#allocation3 + $0x310] sm:$0xf0] %v3706
    %3751 = vst [vmem:[#allocation3 + $0x318] sm:$0xf0] %v3707
    %3752 = vst [vmem:[#allocation3 + $0x320] sm:$0xff] %v3709
    %3753 = vst [vmem:[#allocation3 + $0x328] sm:$0xff] %v3711
    %3754 = vst [vmem:[#allocation3 + $0x330] sm:$0xff] %v3713
    %3755 = vst [vmem:[#allocation3 + $0x338] sm:$0xff] %v3715
    %3756 = vst [vmem:[#allocation3 + $0x340] sm:$0xff] %v3717
    %3757 = vst [vmem:[#allocation3 + $0x348] sm:$0xff] %v3719
    %3758 = vst [vmem:[#allocation3 + $0x350] sm:$0xff] %v3721
    %3759 = vst [vmem:[#allocation3 + $0x358] sm:$0xff] %v3723
    %3760 = vst [vmem:[#allocation3 + $0x360] sm:$0xff] %v3725
    %3761 = vst [vmem:[#allocation3 + $0x368] sm:$0xff] %v3727
    %3762 = vst [vmem:[#allocation3 + $0x370] sm:$0xff] %v3729
    %3763 = vst [vmem:[#allocation3 + $0x378] sm:$0xff] %v3731
    %3764 = vrot.lane.b32.xlu0 %v2868, 30
    %v3765 = vpop.permute.xlu0 %3764
    %3766 = vrot.lane.b32.xlu0 %v2872, 30
    %v3767 = vpop.permute.xlu0 %3766
    %3768 = vrot.lane.b32.xlu0 %v2876, 30
    %v3769 = vpop.permute.xlu0 %3768
    %3770 = vrot.lane.b32.xlu0 %v2880, 30
    %v3771 = vpop.permute.xlu0 %3770
    %3772 = vrot.lane.b32.xlu0 %v2869, 30
    %v3773 = vpop.permute.xlu0 %3772
    %3774 = vrot.lane.b32.xlu0 %v2873, 30
    %v3775 = vpop.permute.xlu0 %3774
    %3776 = vrot.lane.b32.xlu0 %v2877, 30
    %v3777 = vpop.permute.xlu0 %3776
    %3778 = vrot.lane.b32.xlu0 %v2881, 30
    %v3779 = vpop.permute.xlu0 %3778
    %3780 = vrot.lane.b32.xlu0 %v2870, 30
    %v3781 = vpop.permute.xlu0 %3780
    %3782 = vrot.lane.b32.xlu0 %v2874, 30
    %v3783 = vpop.permute.xlu0 %3782
    %3784 = vrot.lane.b32.xlu0 %v2878, 30
    %v3785 = vpop.permute.xlu0 %3784
    %3786 = vrot.lane.b32.xlu0 %v2882, 30
    %v3787 = vpop.permute.xlu0 %3786
    %3788 = vrot.lane.b32.xlu0 %v2871, 30
    %v3789 = vpop.permute.xlu0 %3788
    %3790 = vrot.lane.b32.xlu0 %v2875, 30
    %v3791 = vpop.permute.xlu0 %3790
    %3792 = vrot.lane.b32.xlu0 %v2879, 30
    %v3793 = vpop.permute.xlu0 %3792
    %3794 = vrot.lane.b32.xlu0 %v2883, 30
    %v3795 = vpop.permute.xlu0 %3794
    %v3796 = vsel %vm686, %v3781, %v3789
    %v3797 = vsel %vm686, %v3783, %v3791
    %v3798 = vsel %vm686, %v3785, %v3793
    %v3799 = vsel %vm686, %v3787, %v3795
    %v3800 = vsel %vm686, %v3773, %v3781
    %v3801 = vsel %vm686, %v3775, %v3783
    %v3802 = vsel %vm686, %v3777, %v3785
    %v3803 = vsel %vm686, %v3779, %v3787
    %v3804 = vsel %vm686, %v3765, %v3773
    %v3805 = vsel %vm686, %v3767, %v3775
    %v3806 = vsel %vm686, %v3769, %v3777
    %v3807 = vsel %vm686, %v3771, %v3779
    %v3808 = vsel %vm686, %v3789, %v3765
    %v3809 = vsel %vm686, %v3791, %v3767
    %v3810 = vsel %vm686, %v3793, %v3769
    %v3811 = vsel %vm686, %v3795, %v3771
    %v3812 = vmul.f32 %v3808, %v200
    %v3813 = vmul.f32 %v3804, %v201
    %v3814 = vmul.f32 %v3800, %v202
    %v3815 = vmul.f32 %v3796, %v203
    %v3816 = vmul.f32 %v3809, %v200
    %v3817 = vmul.f32 %v3805, %v201
    %v3818 = vmul.f32 %v3801, %v202
    %v3819 = vmul.f32 %v3797, %v203
    %v3820 = vmul.f32 %v3810, %v200
    %v3821 = vmul.f32 %v3806, %v201
    %v3822 = vmul.f32 %v3802, %v202
    %v3823 = vmul.f32 %v3798, %v203
    %v3824 = vmul.f32 %v3811, %v200
    %v3825 = vmul.f32 %v3807, %v201
    %v3826 = vmul.f32 %v3803, %v202
    %v3827 = vmul.f32 %v3799, %v203
    %3828 = vst [vmem:[#allocation3 + $0x380] sm:$0xff] %v3812
    %3829 = vst [vmem:[#allocation3 + $0x388] sm:$0xff] %v3813
    %3830 = vst [vmem:[#allocation3 + $0x390] sm:$0xff] %v3814
    %3831 = vst [vmem:[#allocation3 + $0x398] sm:$0xff] %v3815
    %3832 = vst [vmem:[#allocation3 + $0x3a0] sm:$0xff] %v3816
    %3833 = vst [vmem:[#allocation3 + $0x3a8] sm:$0xff] %v3817
    %3834 = vst [vmem:[#allocation3 + $0x3b0] sm:$0xff] %v3818
    %3835 = vst [vmem:[#allocation3 + $0x3b8] sm:$0xff] %v3819
    %3836 = vst [vmem:[#allocation3 + $0x3c0] sm:$0xff] %v3820
    %3837 = vst [vmem:[#allocation3 + $0x3c8] sm:$0xff] %v3821
    %3838 = vst [vmem:[#allocation3 + $0x3d0] sm:$0xff] %v3822
    %3839 = vst [vmem:[#allocation3 + $0x3d8] sm:$0xff] %v3823
    %3840 = vst [vmem:[#allocation3 + $0x3e0] sm:$0xf] %v3824
    %3841 = vst [vmem:[#allocation3 + $0x3e8] sm:$0xf] %v3825
    %3842 = vst [vmem:[#allocation3 + $0x3f0] sm:$0xf] %v3826
    %3843 = vst [vmem:[#allocation3 + $0x3f8] sm:$0xf] %v3827
    %3844 = vrot.lane.b32.xlu0 %v2868, 28
    %v3845 = vpop.permute.xlu0 %3844
    %3846 = vrot.lane.b32.xlu0 %v2872, 28
    %v3847 = vpop.permute.xlu0 %3846
    %3848 = vrot.lane.b32.xlu0 %v2876, 28
    %v3849 = vpop.permute.xlu0 %3848
    %3850 = vrot.lane.b32.xlu0 %v2880, 28
    %v3851 = vpop.permute.xlu0 %3850
    %3852 = vrot.lane.b32.xlu0 %v2869, 28
    %v3853 = vpop.permute.xlu0 %3852
    %3854 = vrot.lane.b32.xlu0 %v2873, 28
    %v3855 = vpop.permute.xlu0 %3854
    %3856 = vrot.lane.b32.xlu0 %v2877, 28
    %v3857 = vpop.permute.xlu0 %3856
    %3858 = vrot.lane.b32.xlu0 %v2881, 28
    %v3859 = vpop.permute.xlu0 %3858
    %3860 = vrot.lane.b32.xlu0 %v2870, 28
    %v3861 = vpop.permute.xlu0 %3860
    %3862 = vrot.lane.b32.xlu0 %v2874, 28
    %v3863 = vpop.permute.xlu0 %3862
    %3864 = vrot.lane.b32.xlu0 %v2878, 28
    %v3865 = vpop.permute.xlu0 %3864
    %3866 = vrot.lane.b32.xlu0 %v2882, 28
    %v3867 = vpop.permute.xlu0 %3866
    %3868 = vrot.lane.b32.xlu0 %v2871, 28
    %v3869 = vpop.permute.xlu0 %3868
    %3870 = vrot.lane.b32.xlu0 %v2875, 28
    %v3871 = vpop.permute.xlu0 %3870
    %3872 = vrot.lane.b32.xlu0 %v2879, 28
    %v3873 = vpop.permute.xlu0 %3872
    %3874 = vrot.lane.b32.xlu0 %v2883, 28
    %v3875 = vpop.permute.xlu0 %3874
    %v3876 = vsel %vm707, %v3861, %v3869
    %v3877 = vsel %vm707, %v3863, %v3871
    %v3878 = vsel %vm707, %v3865, %v3873
    %v3879 = vsel %vm707, %v3867, %v3875
    %v3880 = vsel %vm707, %v3853, %v3861
    %v3881 = vsel %vm707, %v3855, %v3863
    %v3882 = vsel %vm707, %v3857, %v3865
    %v3883 = vsel %vm707, %v3859, %v3867
    %v3884 = vsel %vm707, %v3845, %v3853
    %v3885 = vsel %vm707, %v3847, %v3855
    %v3886 = vsel %vm707, %v3849, %v3857
    %v3887 = vsel %vm707, %v3851, %v3859
    %v3888 = vsel %vm707, %v3869, %v3845
    %v3889 = vsel %vm707, %v3871, %v3847
    %v3890 = vsel %vm707, %v3873, %v3849
    %v3891 = vsel %vm707, %v3875, %v3851
    %v3892 = vmul.f32 %v3888, %v212
    %v3893 = vmul.f32 %v3884, %v213
    %v3894 = vmul.f32 %v3880, %v214
    %v3895 = vmul.f32 %v3876, %v215
    %v3896 = vmul.f32 %v3889, %v212
    %v3897 = vmul.f32 %v3885, %v213
    %v3898 = vmul.f32 %v3881, %v214
    %v3899 = vmul.f32 %v3877, %v215
    %v3900 = vmul.f32 %v3890, %v212
    %v3901 = vmul.f32 %v3886, %v213
    %v3902 = vmul.f32 %v3882, %v214
    %v3903 = vmul.f32 %v3878, %v215
    %v3904 = vmul.f32 %v3891, %v212
    %v3905 = vmul.f32 %v3887, %v213
    %v3906 = vmul.f32 %v3883, %v214
    %v3907 = vmul.f32 %v3879, %v215
    %v3924 = vrot.slane %v3892, 4
    %v3925 = vrot.slane %v3893, 4
    %v3926 = vrot.slane %v3894, 4
    %v3927 = vrot.slane %v3895, 4
    %v3928 = vrot.slane %v3896, 4
    %v3929 = vsel %vm1120, %v3924, %v3928
    %v3930 = vrot.slane %v3897, 4
    %v3931 = vsel %vm1120, %v3925, %v3930
    %v3932 = vrot.slane %v3898, 4
    %v3933 = vsel %vm1120, %v3926, %v3932
    %v3934 = vrot.slane %v3899, 4
    %v3935 = vsel %vm1120, %v3927, %v3934
    %v3936 = vrot.slane %v3900, 4
    %v3937 = vsel %vm1120, %v3928, %v3936
    %v3938 = vrot.slane %v3901, 4
    %v3939 = vsel %vm1120, %v3930, %v3938
    %v3940 = vrot.slane %v3902, 4
    %v3941 = vsel %vm1120, %v3932, %v3940
    %v3942 = vrot.slane %v3903, 4
    %v3943 = vsel %vm1120, %v3934, %v3942
    %v3944 = vrot.slane %v3904, 4
    %v3945 = vsel %vm1120, %v3936, %v3944
    %v3946 = vrot.slane %v3905, 4
    %v3947 = vsel %vm1120, %v3938, %v3946
    %v3948 = vrot.slane %v3906, 4
    %v3949 = vsel %vm1120, %v3940, %v3948
    %v3950 = vrot.slane %v3907, 4
    %v3951 = vsel %vm1120, %v3942, %v3950
    %3968 = vst [vmem:[#allocation3 + $0x3e0] sm:$0xf0] %v3924
    %3969 = vst [vmem:[#allocation3 + $0x3e8] sm:$0xf0] %v3925
    %3970 = vst [vmem:[#allocation3 + $0x3f0] sm:$0xf0] %v3926
    %3971 = vst [vmem:[#allocation3 + $0x3f8] sm:$0xf0] %v3927
    %3972 = vst [vmem:[#allocation3 + $0x400] sm:$0xff] %v3929
    %3973 = vst [vmem:[#allocation3 + $0x408] sm:$0xff] %v3931
    %3974 = vst [vmem:[#allocation3 + $0x410] sm:$0xff] %v3933
    %3975 = vst [vmem:[#allocation3 + $0x418] sm:$0xff] %v3935
    %3976 = vst [vmem:[#allocation3 + $0x420] sm:$0xff] %v3937
    %3977 = vst [vmem:[#allocation3 + $0x428] sm:$0xff] %v3939
    %3978 = vst [vmem:[#allocation3 + $0x430] sm:$0xff] %v3941
    %3979 = vst [vmem:[#allocation3 + $0x438] sm:$0xff] %v3943
    %3980 = vst [vmem:[#allocation3 + $0x440] sm:$0xff] %v3945
    %3981 = vst [vmem:[#allocation3 + $0x448] sm:$0xff] %v3947
    %3982 = vst [vmem:[#allocation3 + $0x450] sm:$0xff] %v3949
    %3983 = vst [vmem:[#allocation3 + $0x458] sm:$0xff] %v3951
    %3984 = vrot.lane.b32.xlu0 %v2868, 4
    %v3985 = vpop.permute.xlu0 %3984
    %3986 = vrot.lane.b32.xlu0 %v2872, 4
    %v3987 = vpop.permute.xlu0 %3986
    %3988 = vrot.lane.b32.xlu0 %v2876, 4
    %v3989 = vpop.permute.xlu0 %3988
    %3990 = vrot.lane.b32.xlu0 %v2880, 4
    %v3991 = vpop.permute.xlu0 %3990
    %3992 = vrot.lane.b32.xlu0 %v2869, 4
    %v3993 = vpop.permute.xlu0 %3992
    %3994 = vrot.lane.b32.xlu0 %v2873, 4
    %v3995 = vpop.permute.xlu0 %3994
    %3996 = vrot.lane.b32.xlu0 %v2877, 4
    %v3997 = vpop.permute.xlu0 %3996
    %3998 = vrot.lane.b32.xlu0 %v2881, 4
    %v3999 = vpop.permute.xlu0 %3998
    %4000 = vrot.lane.b32.xlu0 %v2870, 4
    %v4001 = vpop.permute.xlu0 %4000
    %4002 = vrot.lane.b32.xlu0 %v2874, 4
    %v4003 = vpop.permute.xlu0 %4002
    %4004 = vrot.lane.b32.xlu0 %v2878, 4
    %v4005 = vpop.permute.xlu0 %4004
    %4006 = vrot.lane.b32.xlu0 %v2882, 4
    %v4007 = vpop.permute.xlu0 %4006
    %4008 = vrot.lane.b32.xlu0 %v2871, 4
    %v4009 = vpop.permute.xlu0 %4008
    %4010 = vrot.lane.b32.xlu0 %v2875, 4
    %v4011 = vpop.permute.xlu0 %4010
    %4012 = vrot.lane.b32.xlu0 %v2879, 4
    %v4013 = vpop.permute.xlu0 %4012
    %4014 = vrot.lane.b32.xlu0 %v2883, 4
    %v4015 = vpop.permute.xlu0 %4014
    %v4016 = vsel %vm740, %v4001, %v4009
    %v4017 = vsel %vm740, %v4003, %v4011
    %v4018 = vsel %vm740, %v4005, %v4013
    %v4019 = vsel %vm740, %v4007, %v4015
    %v4020 = vsel %vm740, %v3993, %v4001
    %v4021 = vsel %vm740, %v3995, %v4003
    %v4022 = vsel %vm740, %v3997, %v4005
    %v4023 = vsel %vm740, %v3999, %v4007
    %v4024 = vsel %vm740, %v3985, %v3993
    %v4025 = vsel %vm740, %v3987, %v3995
    %v4026 = vsel %vm740, %v3989, %v3997
    %v4027 = vsel %vm740, %v3991, %v3999
    %v4028 = vsel %vm740, %v4009, %v3985
    %v4029 = vsel %vm740, %v4011, %v3987
    %v4030 = vsel %vm740, %v4013, %v3989
    %v4031 = vsel %vm740, %v4015, %v3991
    %v4032 = vmul.f32 %v4028, %v236
    %v4033 = vmul.f32 %v4024, %v237
    %v4034 = vmul.f32 %v4020, %v238
    %v4035 = vmul.f32 %v4016, %v239
    %v4036 = vmul.f32 %v4029, %v236
    %v4037 = vmul.f32 %v4025, %v237
    %v4038 = vmul.f32 %v4021, %v238
    %v4039 = vmul.f32 %v4017, %v239
    %v4040 = vmul.f32 %v4030, %v236
    %v4041 = vmul.f32 %v4026, %v237
    %v4042 = vmul.f32 %v4022, %v238
    %v4043 = vmul.f32 %v4018, %v239
    %v4044 = vmul.f32 %v4031, %v236
    %v4045 = vmul.f32 %v4027, %v237
    %v4046 = vmul.f32 %v4023, %v238
    %v4047 = vmul.f32 %v4019, %v239
    %4048 = vst [vmem:[#allocation3 + $0x460] sm:$0xff] %v4032
    %4049 = vst [vmem:[#allocation3 + $0x468] sm:$0xff] %v4033
    %4050 = vst [vmem:[#allocation3 + $0x470] sm:$0xff] %v4034
    %4051 = vst [vmem:[#allocation3 + $0x478] sm:$0xff] %v4035
    %4052 = vst [vmem:[#allocation3 + $0x480] sm:$0xff] %v4036
    %4053 = vst [vmem:[#allocation3 + $0x488] sm:$0xff] %v4037
    %4054 = vst [vmem:[#allocation3 + $0x490] sm:$0xff] %v4038
    %4055 = vst [vmem:[#allocation3 + $0x498] sm:$0xff] %v4039
    %4056 = vst [vmem:[#allocation3 + $0x4a0] sm:$0xff] %v4040
    %4057 = vst [vmem:[#allocation3 + $0x4a8] sm:$0xff] %v4041
    %4058 = vst [vmem:[#allocation3 + $0x4b0] sm:$0xff] %v4042
    %4059 = vst [vmem:[#allocation3 + $0x4b8] sm:$0xff] %v4043
    %4060 = vst [vmem:[#allocation3 + $0x4c0] sm:$0xf] %v4044
    %4061 = vst [vmem:[#allocation3 + $0x4c8] sm:$0xf] %v4045
    %4062 = vst [vmem:[#allocation3 + $0x4d0] sm:$0xf] %v4046
    %4063 = vst [vmem:[#allocation3 + $0x4d8] sm:$0xf] %v4047
    %4064 = vrot.lane.b32.xlu0 %v2868, 2
    %v4065 = vpop.permute.xlu0 %4064
    %4066 = vrot.lane.b32.xlu0 %v2872, 2
    %v4067 = vpop.permute.xlu0 %4066
    %4068 = vrot.lane.b32.xlu0 %v2876, 2
    %v4069 = vpop.permute.xlu0 %4068
    %4070 = vrot.lane.b32.xlu0 %v2880, 2
    %v4071 = vpop.permute.xlu0 %4070
    %4072 = vrot.lane.b32.xlu0 %v2869, 2
    %v4073 = vpop.permute.xlu0 %4072
    %4074 = vrot.lane.b32.xlu0 %v2873, 2
    %v4075 = vpop.permute.xlu0 %4074
    %4076 = vrot.lane.b32.xlu0 %v2877, 2
    %v4077 = vpop.permute.xlu0 %4076
    %4078 = vrot.lane.b32.xlu0 %v2881, 2
    %v4079 = vpop.permute.xlu0 %4078
    %4080 = vrot.lane.b32.xlu0 %v2870, 2
    %v4081 = vpop.permute.xlu0 %4080
    %4082 = vrot.lane.b32.xlu0 %v2874, 2
    %v4083 = vpop.permute.xlu0 %4082
    %4084 = vrot.lane.b32.xlu0 %v2878, 2
    %v4085 = vpop.permute.xlu0 %4084
    %4086 = vrot.lane.b32.xlu0 %v2882, 2
    %v4087 = vpop.permute.xlu0 %4086
    %4088 = vrot.lane.b32.xlu0 %v2871, 2
    %v4089 = vpop.permute.xlu0 %4088
    %4090 = vrot.lane.b32.xlu0 %v2875, 2
    %v4091 = vpop.permute.xlu0 %4090
    %4092 = vrot.lane.b32.xlu0 %v2879, 2
    %v4093 = vpop.permute.xlu0 %4092
    %4094 = vrot.lane.b32.xlu0 %v2883, 2
    %v4095 = vpop.permute.xlu0 %4094
    %v4096 = vsel %vm761, %v4081, %v4089
    %v4097 = vsel %vm761, %v4083, %v4091
    %v4098 = vsel %vm761, %v4085, %v4093
    %v4099 = vsel %vm761, %v4087, %v4095
    %v4100 = vsel %vm761, %v4073, %v4081
    %v4101 = vsel %vm761, %v4075, %v4083
    %v4102 = vsel %vm761, %v4077, %v4085
    %v4103 = vsel %vm761, %v4079, %v4087
    %v4104 = vsel %vm761, %v4065, %v4073
    %v4105 = vsel %vm761, %v4067, %v4075
    %v4106 = vsel %vm761, %v4069, %v4077
    %v4107 = vsel %vm761, %v4071, %v4079
    %v4108 = vsel %vm761, %v4089, %v4065
    %v4109 = vsel %vm761, %v4091, %v4067
    %v4110 = vsel %vm761, %v4093, %v4069
    %v4111 = vsel %vm761, %v4095, %v4071
    %v4112 = vmul.f32 %v4108, %v248
    %v4113 = vmul.f32 %v4104, %v249
    %v4114 = vmul.f32 %v4100, %v250
    %v4115 = vmul.f32 %v4096, %v251
    %v4116 = vmul.f32 %v4109, %v248
    %v4117 = vmul.f32 %v4105, %v249
    %v4118 = vmul.f32 %v4101, %v250
    %v4119 = vmul.f32 %v4097, %v251
    %v4120 = vmul.f32 %v4110, %v248
    %v4121 = vmul.f32 %v4106, %v249
    %v4122 = vmul.f32 %v4102, %v250
    %v4123 = vmul.f32 %v4098, %v251
    %v4124 = vmul.f32 %v4111, %v248
    %v4125 = vmul.f32 %v4107, %v249
    %v4126 = vmul.f32 %v4103, %v250
    %v4127 = vmul.f32 %v4099, %v251
    %v4144 = vrot.slane %v4112, 4
    %v4145 = vrot.slane %v4113, 4
    %v4146 = vrot.slane %v4114, 4
    %v4147 = vrot.slane %v4115, 4
    %v4148 = vrot.slane %v4116, 4
    %v4149 = vsel %vm1120, %v4144, %v4148
    %v4150 = vrot.slane %v4117, 4
    %v4151 = vsel %vm1120, %v4145, %v4150
    %v4152 = vrot.slane %v4118, 4
    %v4153 = vsel %vm1120, %v4146, %v4152
    %v4154 = vrot.slane %v4119, 4
    %v4155 = vsel %vm1120, %v4147, %v4154
    %v4156 = vrot.slane %v4120, 4
    %v4157 = vsel %vm1120, %v4148, %v4156
    %v4158 = vrot.slane %v4121, 4
    %v4159 = vsel %vm1120, %v4150, %v4158
    %v4160 = vrot.slane %v4122, 4
    %v4161 = vsel %vm1120, %v4152, %v4160
    %v4162 = vrot.slane %v4123, 4
    %v4163 = vsel %vm1120, %v4154, %v4162
    %v4164 = vrot.slane %v4124, 4
    %v4165 = vsel %vm1120, %v4156, %v4164
    %v4166 = vrot.slane %v4125, 4
    %v4167 = vsel %vm1120, %v4158, %v4166
    %v4168 = vrot.slane %v4126, 4
    %v4169 = vsel %vm1120, %v4160, %v4168
    %v4170 = vrot.slane %v4127, 4
    %v4171 = vsel %vm1120, %v4162, %v4170
    %4188 = vst [vmem:[#allocation3 + $0x4c0] sm:$0xf0] %v4144
    %4189 = vst [vmem:[#allocation3 + $0x4c8] sm:$0xf0] %v4145
    %4190 = vst [vmem:[#allocation3 + $0x4d0] sm:$0xf0] %v4146
    %4191 = vst [vmem:[#allocation3 + $0x4d8] sm:$0xf0] %v4147
    %4192 = vst [vmem:[#allocation3 + $0x4e0] sm:$0xff] %v4149
    %4193 = vst [vmem:[#allocation3 + $0x4e8] sm:$0xff] %v4151
    %4194 = vst [vmem:[#allocation3 + $0x4f0] sm:$0xff] %v4153
    %4195 = vst [vmem:[#allocation3 + $0x4f8] sm:$0xff] %v4155
    %4196 = vst [vmem:[#allocation3 + $0x500] sm:$0xff] %v4157
    %4197 = vst [vmem:[#allocation3 + $0x508] sm:$0xff] %v4159
    %4198 = vst [vmem:[#allocation3 + $0x510] sm:$0xff] %v4161
    %4199 = vst [vmem:[#allocation3 + $0x518] sm:$0xff] %v4163
    %4200 = vst [vmem:[#allocation3 + $0x520] sm:$0xff] %v4165
    %4201 = vst [vmem:[#allocation3 + $0x528] sm:$0xff] %v4167
    %4202 = vst [vmem:[#allocation3 + $0x530] sm:$0xff] %v4169
    %4203 = vst [vmem:[#allocation3 + $0x538] sm:$0xff] %v4171
    %4204 = vst [vmem:[#allocation3 + $0x540] sm:$0xff] %v2868
    %4205 = vst [vmem:[#allocation3 + $0x548] sm:$0xff] %v2869
    %4206 = vst [vmem:[#allocation3 + $0x550] sm:$0xff] %v2870
    %4207 = vst [vmem:[#allocation3 + $0x558] sm:$0xff] %v2871
    %4208 = vst [vmem:[#allocation3 + $0x560] sm:$0xff] %v2872
    %4209 = vst [vmem:[#allocation3 + $0x568] sm:$0xff] %v2873
    %4210 = vst [vmem:[#allocation3 + $0x570] sm:$0xff] %v2874
    %4211 = vst [vmem:[#allocation3 + $0x578] sm:$0xff] %v2875
    %4212 = vst [vmem:[#allocation3 + $0x580] sm:$0xff] %v2876
    %4213 = vst [vmem:[#allocation3 + $0x588] sm:$0xff] %v2877
    %4214 = vst [vmem:[#allocation3 + $0x590] sm:$0xff] %v2878
    %4215 = vst [vmem:[#allocation3 + $0x598] sm:$0xff] %v2879
    %4216 = vst [vmem:[#allocation3 + $0x5a0] sm:$0xf] %v2880
    %4217 = vst [vmem:[#allocation3 + $0x5a8] sm:$0xf] %v2881
    %4218 = vst [vmem:[#allocation3 + $0x5b0] sm:$0xf] %v2882
    %4219 = vst [vmem:[#allocation3 + $0x5b8] sm:$0xf] %v2883
    %4220 = vrot.lane.b32.xlu0 %v2868, 126
    %v4221 = vpop.permute.xlu0 %4220
    %4222 = vrot.lane.b32.xlu0 %v2872, 126
    %v4223 = vpop.permute.xlu0 %4222
    %4224 = vrot.lane.b32.xlu0 %v2876, 126
    %v4225 = vpop.permute.xlu0 %4224
    %4226 = vrot.lane.b32.xlu0 %v2880, 126
    %v4227 = vpop.permute.xlu0 %4226
    %4228 = vrot.lane.b32.xlu0 %v2869, 126
    %v4229 = vpop.permute.xlu0 %4228
    %4230 = vrot.lane.b32.xlu0 %v2873, 126
    %v4231 = vpop.permute.xlu0 %4230
    %4232 = vrot.lane.b32.xlu0 %v2877, 126
    %v4233 = vpop.permute.xlu0 %4232
    %4234 = vrot.lane.b32.xlu0 %v2881, 126
    %v4235 = vpop.permute.xlu0 %4234
    %4236 = vrot.lane.b32.xlu0 %v2870, 126
    %v4237 = vpop.permute.xlu0 %4236
    %4238 = vrot.lane.b32.xlu0 %v2874, 126
    %v4239 = vpop.permute.xlu0 %4238
    %4240 = vrot.lane.b32.xlu0 %v2878, 126
    %v4241 = vpop.permute.xlu0 %4240
    %4242 = vrot.lane.b32.xlu0 %v2882, 126
    %v4243 = vpop.permute.xlu0 %4242
    %4244 = vrot.lane.b32.xlu0 %v2871, 126
    %v4245 = vpop.permute.xlu0 %4244
    %4246 = vrot.lane.b32.xlu0 %v2875, 126
    %v4247 = vpop.permute.xlu0 %4246
    %4248 = vrot.lane.b32.xlu0 %v2879, 126
    %v4249 = vpop.permute.xlu0 %4248
    %4250 = vrot.lane.b32.xlu0 %v2883, 126
    %v4251 = vpop.permute.xlu0 %4250
    %v4252 = vsel %vm798, %v4237, %v4245
    %v4253 = vsel %vm798, %v4239, %v4247
    %v4254 = vsel %vm798, %v4241, %v4249
    %v4255 = vsel %vm798, %v4243, %v4251
    %v4256 = vsel %vm798, %v4229, %v4237
    %v4257 = vsel %vm798, %v4231, %v4239
    %v4258 = vsel %vm798, %v4233, %v4241
    %v4259 = vsel %vm798, %v4235, %v4243
    %v4260 = vsel %vm798, %v4221, %v4229
    %v4261 = vsel %vm798, %v4223, %v4231
    %v4262 = vsel %vm798, %v4225, %v4233
    %v4263 = vsel %vm798, %v4227, %v4235
    %v4264 = vsel %vm798, %v4245, %v4221
    %v4265 = vsel %vm798, %v4247, %v4223
    %v4266 = vsel %vm798, %v4249, %v4225
    %v4267 = vsel %vm798, %v4251, %v4227
    %v4268 = vmul.f32 %v4260, %v260
    %v4269 = vmul.f32 %v4256, %v261
    %v4270 = vmul.f32 %v4252, %v262
    %v4271 = vmul.f32 %v4264, %v263
    %v4272 = vmul.f32 %v4261, %v260
    %v4273 = vmul.f32 %v4257, %v261
    %v4274 = vmul.f32 %v4253, %v262
    %v4275 = vmul.f32 %v4265, %v263
    %v4276 = vmul.f32 %v4262, %v260
    %v4277 = vmul.f32 %v4258, %v261
    %v4278 = vmul.f32 %v4254, %v262
    %v4279 = vmul.f32 %v4266, %v263
    %v4280 = vmul.f32 %v4263, %v260
    %v4281 = vmul.f32 %v4259, %v261
    %v4282 = vmul.f32 %v4255, %v262
    %v4283 = vmul.f32 %v4267, %v263
    %v4300 = vrot.slane %v4268, 4
    %v4301 = vrot.slane %v4269, 4
    %v4302 = vrot.slane %v4270, 4
    %v4303 = vrot.slane %v4271, 4
    %v4304 = vrot.slane %v4272, 4
    %v4305 = vsel %vm1120, %v4300, %v4304
    %v4306 = vrot.slane %v4273, 4
    %v4307 = vsel %vm1120, %v4301, %v4306
    %v4308 = vrot.slane %v4274, 4
    %v4309 = vsel %vm1120, %v4302, %v4308
    %v4310 = vrot.slane %v4275, 4
    %v4311 = vsel %vm1120, %v4303, %v4310
    %v4312 = vrot.slane %v4276, 4
    %v4313 = vsel %vm1120, %v4304, %v4312
    %v4314 = vrot.slane %v4277, 4
    %v4315 = vsel %vm1120, %v4306, %v4314
    %v4316 = vrot.slane %v4278, 4
    %v4317 = vsel %vm1120, %v4308, %v4316
    %v4318 = vrot.slane %v4279, 4
    %v4319 = vsel %vm1120, %v4310, %v4318
    %v4320 = vrot.slane %v4280, 4
    %v4321 = vsel %vm1120, %v4312, %v4320
    %v4322 = vrot.slane %v4281, 4
    %v4323 = vsel %vm1120, %v4314, %v4322
    %v4324 = vrot.slane %v4282, 4
    %v4325 = vsel %vm1120, %v4316, %v4324
    %v4326 = vrot.slane %v4283, 4
    %v4327 = vsel %vm1120, %v4318, %v4326
    %4344 = vst [vmem:[#allocation3 + $0x5a0] sm:$0xf0] %v4300
    %4345 = vst [vmem:[#allocation3 + $0x5a8] sm:$0xf0] %v4301
    %4346 = vst [vmem:[#allocation3 + $0x5b0] sm:$0xf0] %v4302
    %4347 = vst [vmem:[#allocation3 + $0x5b8] sm:$0xf0] %v4303
    %4348 = vst [vmem:[#allocation3 + $0x5c0] sm:$0xff] %v4305
    %4349 = vst [vmem:[#allocation3 + $0x5c8] sm:$0xff] %v4307
    %4350 = vst [vmem:[#allocation3 + $0x5d0] sm:$0xff] %v4309
    %4351 = vst [vmem:[#allocation3 + $0x5d8] sm:$0xff] %v4311
    %4352 = vst [vmem:[#allocation3 + $0x5e0] sm:$0xff] %v4313
    %4353 = vst [vmem:[#allocation3 + $0x5e8] sm:$0xff] %v4315
    %4354 = vst [vmem:[#allocation3 + $0x5f0] sm:$0xff] %v4317
    %4355 = vst [vmem:[#allocation3 + $0x5f8] sm:$0xff] %v4319
    %4356 = vst [vmem:[#allocation3 + $0x600] sm:$0xff] %v4321
    %4357 = vst [vmem:[#allocation3 + $0x608] sm:$0xff] %v4323
    %4358 = vst [vmem:[#allocation3 + $0x610] sm:$0xff] %v4325
    %4359 = vst [vmem:[#allocation3 + $0x618] sm:$0xff] %v4327
    %4360 = vrot.lane.b32.xlu0 %v2868, 124
    %v4361 = vpop.permute.xlu0 %4360
    %4362 = vrot.lane.b32.xlu0 %v2872, 124
    %v4363 = vpop.permute.xlu0 %4362
    %4364 = vrot.lane.b32.xlu0 %v2876, 124
    %v4365 = vpop.permute.xlu0 %4364
    %4366 = vrot.lane.b32.xlu0 %v2880, 124
    %v4367 = vpop.permute.xlu0 %4366
    %4368 = vrot.lane.b32.xlu0 %v2869, 124
    %v4369 = vpop.permute.xlu0 %4368
    %4370 = vrot.lane.b32.xlu0 %v2873, 124
    %v4371 = vpop.permute.xlu0 %4370
    %4372 = vrot.lane.b32.xlu0 %v2877, 124
    %v4373 = vpop.permute.xlu0 %4372
    %4374 = vrot.lane.b32.xlu0 %v2881, 124
    %v4375 = vpop.permute.xlu0 %4374
    %4376 = vrot.lane.b32.xlu0 %v2870, 124
    %v4377 = vpop.permute.xlu0 %4376
    %4378 = vrot.lane.b32.xlu0 %v2874, 124
    %v4379 = vpop.permute.xlu0 %4378
    %4380 = vrot.lane.b32.xlu0 %v2878, 124
    %v4381 = vpop.permute.xlu0 %4380
    %4382 = vrot.lane.b32.xlu0 %v2882, 124
    %v4383 = vpop.permute.xlu0 %4382
    %4384 = vrot.lane.b32.xlu0 %v2871, 124
    %v4385 = vpop.permute.xlu0 %4384
    %4386 = vrot.lane.b32.xlu0 %v2875, 124
    %v4387 = vpop.permute.xlu0 %4386
    %4388 = vrot.lane.b32.xlu0 %v2879, 124
    %v4389 = vpop.permute.xlu0 %4388
    %4390 = vrot.lane.b32.xlu0 %v2883, 124
    %v4391 = vpop.permute.xlu0 %4390
    %v4392 = vsel %vm831, %v4377, %v4385
    %v4393 = vsel %vm831, %v4379, %v4387
    %v4394 = vsel %vm831, %v4381, %v4389
    %v4395 = vsel %vm831, %v4383, %v4391
    %v4396 = vsel %vm831, %v4369, %v4377
    %v4397 = vsel %vm831, %v4371, %v4379
    %v4398 = vsel %vm831, %v4373, %v4381
    %v4399 = vsel %vm831, %v4375, %v4383
    %v4400 = vsel %vm831, %v4361, %v4369
    %v4401 = vsel %vm831, %v4363, %v4371
    %v4402 = vsel %vm831, %v4365, %v4373
    %v4403 = vsel %vm831, %v4367, %v4375
    %v4404 = vsel %vm831, %v4385, %v4361
    %v4405 = vsel %vm831, %v4387, %v4363
    %v4406 = vsel %vm831, %v4389, %v4365
    %v4407 = vsel %vm831, %v4391, %v4367
    %v4408 = vmul.f32 %v4400, %v272
    %v4409 = vmul.f32 %v4396, %v273
    %v4410 = vmul.f32 %v4392, %v274
    %v4411 = vmul.f32 %v4404, %v275
    %v4412 = vmul.f32 %v4401, %v272
    %v4413 = vmul.f32 %v4397, %v273
    %v4414 = vmul.f32 %v4393, %v274
    %v4415 = vmul.f32 %v4405, %v275
    %v4416 = vmul.f32 %v4402, %v272
    %v4417 = vmul.f32 %v4398, %v273
    %v4418 = vmul.f32 %v4394, %v274
    %v4419 = vmul.f32 %v4406, %v275
    %v4420 = vmul.f32 %v4403, %v272
    %v4421 = vmul.f32 %v4399, %v273
    %v4422 = vmul.f32 %v4395, %v274
    %v4423 = vmul.f32 %v4407, %v275
    %4424 = vst [vmem:[#allocation3 + $0x620] sm:$0xff] %v4408
    %4425 = vst [vmem:[#allocation3 + $0x628] sm:$0xff] %v4409
    %4426 = vst [vmem:[#allocation3 + $0x630] sm:$0xff] %v4410
    %4427 = vst [vmem:[#allocation3 + $0x638] sm:$0xff] %v4411
    %4428 = vst [vmem:[#allocation3 + $0x640] sm:$0xff] %v4412
    %4429 = vst [vmem:[#allocation3 + $0x648] sm:$0xff] %v4413
    %4430 = vst [vmem:[#allocation3 + $0x650] sm:$0xff] %v4414
    %4431 = vst [vmem:[#allocation3 + $0x658] sm:$0xff] %v4415
    %4432 = vst [vmem:[#allocation3 + $0x660] sm:$0xff] %v4416
    %4433 = vst [vmem:[#allocation3 + $0x668] sm:$0xff] %v4417
    %4434 = vst [vmem:[#allocation3 + $0x670] sm:$0xff] %v4418
    %4435 = vst [vmem:[#allocation3 + $0x678] sm:$0xff] %v4419
    %4436 = vst [vmem:[#allocation3 + $0x680] sm:$0xf] %v4420
    %4437 = vst [vmem:[#allocation3 + $0x688] sm:$0xf] %v4421
    %4438 = vst [vmem:[#allocation3 + $0x690] sm:$0xf] %v4422
    %4439 = vst [vmem:[#allocation3 + $0x698] sm:$0xf] %v4423
    %4440 = vrot.lane.b32.xlu0 %v2868, 100
    %v4441 = vpop.permute.xlu0 %4440
    %4442 = vrot.lane.b32.xlu0 %v2872, 100
    %v4443 = vpop.permute.xlu0 %4442
    %4444 = vrot.lane.b32.xlu0 %v2876, 100
    %v4445 = vpop.permute.xlu0 %4444
    %4446 = vrot.lane.b32.xlu0 %v2880, 100
    %v4447 = vpop.permute.xlu0 %4446
    %4448 = vrot.lane.b32.xlu0 %v2869, 100
    %v4449 = vpop.permute.xlu0 %4448
    %4450 = vrot.lane.b32.xlu0 %v2873, 100
    %v4451 = vpop.permute.xlu0 %4450
    %4452 = vrot.lane.b32.xlu0 %v2877, 100
    %v4453 = vpop.permute.xlu0 %4452
    %4454 = vrot.lane.b32.xlu0 %v2881, 100
    %v4455 = vpop.permute.xlu0 %4454
    %4456 = vrot.lane.b32.xlu0 %v2870, 100
    %v4457 = vpop.permute.xlu0 %4456
    %4458 = vrot.lane.b32.xlu0 %v2874, 100
    %v4459 = vpop.permute.xlu0 %4458
    %4460 = vrot.lane.b32.xlu0 %v2878, 100
    %v4461 = vpop.permute.xlu0 %4460
    %4462 = vrot.lane.b32.xlu0 %v2882, 100
    %v4463 = vpop.permute.xlu0 %4462
    %4464 = vrot.lane.b32.xlu0 %v2871, 100
    %v4465 = vpop.permute.xlu0 %4464
    %4466 = vrot.lane.b32.xlu0 %v2875, 100
    %v4467 = vpop.permute.xlu0 %4466
    %4468 = vrot.lane.b32.xlu0 %v2879, 100
    %v4469 = vpop.permute.xlu0 %4468
    %4470 = vrot.lane.b32.xlu0 %v2883, 100
    %v4471 = vpop.permute.xlu0 %4470
    %v4472 = vsel %vm852, %v4457, %v4465
    %v4473 = vsel %vm852, %v4459, %v4467
    %v4474 = vsel %vm852, %v4461, %v4469
    %v4475 = vsel %vm852, %v4463, %v4471
    %v4476 = vsel %vm852, %v4449, %v4457
    %v4477 = vsel %vm852, %v4451, %v4459
    %v4478 = vsel %vm852, %v4453, %v4461
    %v4479 = vsel %vm852, %v4455, %v4463
    %v4480 = vsel %vm852, %v4441, %v4449
    %v4481 = vsel %vm852, %v4443, %v4451
    %v4482 = vsel %vm852, %v4445, %v4453
    %v4483 = vsel %vm852, %v4447, %v4455
    %v4484 = vsel %vm852, %v4465, %v4441
    %v4485 = vsel %vm852, %v4467, %v4443
    %v4486 = vsel %vm852, %v4469, %v4445
    %v4487 = vsel %vm852, %v4471, %v4447
    %v4488 = vmul.f32 %v4480, %v296
    %v4489 = vmul.f32 %v4476, %v297
    %v4490 = vmul.f32 %v4472, %v298
    %v4491 = vmul.f32 %v4484, %v299
    %v4492 = vmul.f32 %v4481, %v296
    %v4493 = vmul.f32 %v4477, %v297
    %v4494 = vmul.f32 %v4473, %v298
    %v4495 = vmul.f32 %v4485, %v299
    %v4496 = vmul.f32 %v4482, %v296
    %v4497 = vmul.f32 %v4478, %v297
    %v4498 = vmul.f32 %v4474, %v298
    %v4499 = vmul.f32 %v4486, %v299
    %v4500 = vmul.f32 %v4483, %v296
    %v4501 = vmul.f32 %v4479, %v297
    %v4502 = vmul.f32 %v4475, %v298
    %v4503 = vmul.f32 %v4487, %v299
    %v4520 = vrot.slane %v4488, 4
    %v4521 = vrot.slane %v4489, 4
    %v4522 = vrot.slane %v4490, 4
    %v4523 = vrot.slane %v4491, 4
    %v4524 = vrot.slane %v4492, 4
    %v4525 = vsel %vm1120, %v4520, %v4524
    %v4526 = vrot.slane %v4493, 4
    %v4527 = vsel %vm1120, %v4521, %v4526
    %v4528 = vrot.slane %v4494, 4
    %v4529 = vsel %vm1120, %v4522, %v4528
    %v4530 = vrot.slane %v4495, 4
    %v4531 = vsel %vm1120, %v4523, %v4530
    %v4532 = vrot.slane %v4496, 4
    %v4533 = vsel %vm1120, %v4524, %v4532
    %v4534 = vrot.slane %v4497, 4
    %v4535 = vsel %vm1120, %v4526, %v4534
    %v4536 = vrot.slane %v4498, 4
    %v4537 = vsel %vm1120, %v4528, %v4536
    %v4538 = vrot.slane %v4499, 4
    %v4539 = vsel %vm1120, %v4530, %v4538
    %v4540 = vrot.slane %v4500, 4
    %v4541 = vsel %vm1120, %v4532, %v4540
    %v4542 = vrot.slane %v4501, 4
    %v4543 = vsel %vm1120, %v4534, %v4542
    %v4544 = vrot.slane %v4502, 4
    %v4545 = vsel %vm1120, %v4536, %v4544
    %v4546 = vrot.slane %v4503, 4
    %v4547 = vsel %vm1120, %v4538, %v4546
    %4564 = vst [vmem:[#allocation3 + $0x680] sm:$0xf0] %v4520
    %4565 = vst [vmem:[#allocation3 + $0x688] sm:$0xf0] %v4521
    %4566 = vst [vmem:[#allocation3 + $0x690] sm:$0xf0] %v4522
    %4567 = vst [vmem:[#allocation3 + $0x698] sm:$0xf0] %v4523
    %4568 = vst [vmem:[#allocation3 + $0x6a0] sm:$0xff] %v4525
    %4569 = vst [vmem:[#allocation3 + $0x6a8] sm:$0xff] %v4527
    %4570 = vst [vmem:[#allocation3 + $0x6b0] sm:$0xff] %v4529
    %4571 = vst [vmem:[#allocation3 + $0x6b8] sm:$0xff] %v4531
    %4572 = vst [vmem:[#allocation3 + $0x6c0] sm:$0xff] %v4533
    %4573 = vst [vmem:[#allocation3 + $0x6c8] sm:$0xff] %v4535
    %4574 = vst [vmem:[#allocation3 + $0x6d0] sm:$0xff] %v4537
    %4575 = vst [vmem:[#allocation3 + $0x6d8] sm:$0xff] %v4539
    %4576 = vst [vmem:[#allocation3 + $0x6e0] sm:$0xff] %v4541
    %4577 = vst [vmem:[#allocation3 + $0x6e8] sm:$0xff] %v4543
    %4578 = vst [vmem:[#allocation3 + $0x6f0] sm:$0xff] %v4545
    %4579 = vst [vmem:[#allocation3 + $0x6f8] sm:$0xff] %v4547
    %4580 = vrot.lane.b32.xlu0 %v2868, 98
    %v4581 = vpop.permute.xlu0 %4580
    %4582 = vrot.lane.b32.xlu0 %v2872, 98
    %v4583 = vpop.permute.xlu0 %4582
    %4584 = vrot.lane.b32.xlu0 %v2876, 98
    %v4585 = vpop.permute.xlu0 %4584
    %4586 = vrot.lane.b32.xlu0 %v2880, 98
    %v4587 = vpop.permute.xlu0 %4586
    %4588 = vrot.lane.b32.xlu0 %v2869, 98
    %v4589 = vpop.permute.xlu0 %4588
    %4590 = vrot.lane.b32.xlu0 %v2873, 98
    %v4591 = vpop.permute.xlu0 %4590
    %4592 = vrot.lane.b32.xlu0 %v2877, 98
    %v4593 = vpop.permute.xlu0 %4592
    %4594 = vrot.lane.b32.xlu0 %v2881, 98
    %v4595 = vpop.permute.xlu0 %4594
    %4596 = vrot.lane.b32.xlu0 %v2870, 98
    %v4597 = vpop.permute.xlu0 %4596
    %4598 = vrot.lane.b32.xlu0 %v2874, 98
    %v4599 = vpop.permute.xlu0 %4598
    %4600 = vrot.lane.b32.xlu0 %v2878, 98
    %v4601 = vpop.permute.xlu0 %4600
    %4602 = vrot.lane.b32.xlu0 %v2882, 98
    %v4603 = vpop.permute.xlu0 %4602
    %4604 = vrot.lane.b32.xlu0 %v2871, 98
    %v4605 = vpop.permute.xlu0 %4604
    %4606 = vrot.lane.b32.xlu0 %v2875, 98
    %v4607 = vpop.permute.xlu0 %4606
    %4608 = vrot.lane.b32.xlu0 %v2879, 98
    %v4609 = vpop.permute.xlu0 %4608
    %4610 = vrot.lane.b32.xlu0 %v2883, 98
    %v4611 = vpop.permute.xlu0 %4610
    %v4612 = vsel %vm885, %v4597, %v4605
    %v4613 = vsel %vm885, %v4599, %v4607
    %v4614 = vsel %vm885, %v4601, %v4609
    %v4615 = vsel %vm885, %v4603, %v4611
    %v4616 = vsel %vm885, %v4589, %v4597
    %v4617 = vsel %vm885, %v4591, %v4599
    %v4618 = vsel %vm885, %v4593, %v4601
    %v4619 = vsel %vm885, %v4595, %v4603
    %v4620 = vsel %vm885, %v4581, %v4589
    %v4621 = vsel %vm885, %v4583, %v4591
    %v4622 = vsel %vm885, %v4585, %v4593
    %v4623 = vsel %vm885, %v4587, %v4595
    %v4624 = vsel %vm885, %v4605, %v4581
    %v4625 = vsel %vm885, %v4607, %v4583
    %v4626 = vsel %vm885, %v4609, %v4585
    %v4627 = vsel %vm885, %v4611, %v4587
    %v4628 = vmul.f32 %v4620, %v308
    %v4629 = vmul.f32 %v4616, %v309
    %v4630 = vmul.f32 %v4612, %v310
    %v4631 = vmul.f32 %v4624, %v311
    %v4632 = vmul.f32 %v4621, %v308
    %v4633 = vmul.f32 %v4617, %v309
    %v4634 = vmul.f32 %v4613, %v310
    %v4635 = vmul.f32 %v4625, %v311
    %v4636 = vmul.f32 %v4622, %v308
    %v4637 = vmul.f32 %v4618, %v309
    %v4638 = vmul.f32 %v4614, %v310
    %v4639 = vmul.f32 %v4626, %v311
    %v4640 = vmul.f32 %v4623, %v308
    %v4641 = vmul.f32 %v4619, %v309
    %v4642 = vmul.f32 %v4615, %v310
    %v4643 = vmul.f32 %v4627, %v311
    %4644 = vst [vmem:[#allocation3 + $0x700] sm:$0xff] %v4628
    %4645 = vst [vmem:[#allocation3 + $0x708] sm:$0xff] %v4629
    %4646 = vst [vmem:[#allocation3 + $0x710] sm:$0xff] %v4630
    %4647 = vst [vmem:[#allocation3 + $0x718] sm:$0xff] %v4631
    %4648 = vst [vmem:[#allocation3 + $0x720] sm:$0xff] %v4632
    %4649 = vst [vmem:[#allocation3 + $0x728] sm:$0xff] %v4633
    %4650 = vst [vmem:[#allocation3 + $0x730] sm:$0xff] %v4634
    %4651 = vst [vmem:[#allocation3 + $0x738] sm:$0xff] %v4635
    %4652 = vst [vmem:[#allocation3 + $0x740] sm:$0xff] %v4636
    %4653 = vst [vmem:[#allocation3 + $0x748] sm:$0xff] %v4637
    %4654 = vst [vmem:[#allocation3 + $0x750] sm:$0xff] %v4638
    %4655 = vst [vmem:[#allocation3 + $0x758] sm:$0xff] %v4639
    %4656 = vst [vmem:[#allocation3 + $0x760] sm:$0xf] %v4640
    %4657 = vst [vmem:[#allocation3 + $0x768] sm:$0xf] %v4641
    %4658 = vst [vmem:[#allocation3 + $0x770] sm:$0xf] %v4642
    %4659 = vst [vmem:[#allocation3 + $0x778] sm:$0xf] %v4643
    %4660 = vrot.lane.b32.xlu0 %v2868, 96
    %v4661 = vpop.permute.xlu0 %4660
    %4662 = vrot.lane.b32.xlu0 %v2872, 96
    %v4663 = vpop.permute.xlu0 %4662
    %4664 = vrot.lane.b32.xlu0 %v2876, 96
    %v4665 = vpop.permute.xlu0 %4664
    %4666 = vrot.lane.b32.xlu0 %v2880, 96
    %v4667 = vpop.permute.xlu0 %4666
    %4668 = vrot.lane.b32.xlu0 %v2869, 96
    %v4669 = vpop.permute.xlu0 %4668
    %4670 = vrot.lane.b32.xlu0 %v2873, 96
    %v4671 = vpop.permute.xlu0 %4670
    %4672 = vrot.lane.b32.xlu0 %v2877, 96
    %v4673 = vpop.permute.xlu0 %4672
    %4674 = vrot.lane.b32.xlu0 %v2881, 96
    %v4675 = vpop.permute.xlu0 %4674
    %4676 = vrot.lane.b32.xlu0 %v2870, 96
    %v4677 = vpop.permute.xlu0 %4676
    %4678 = vrot.lane.b32.xlu0 %v2874, 96
    %v4679 = vpop.permute.xlu0 %4678
    %4680 = vrot.lane.b32.xlu0 %v2878, 96
    %v4681 = vpop.permute.xlu0 %4680
    %4682 = vrot.lane.b32.xlu0 %v2882, 96
    %v4683 = vpop.permute.xlu0 %4682
    %4684 = vrot.lane.b32.xlu0 %v2871, 96
    %v4685 = vpop.permute.xlu0 %4684
    %4686 = vrot.lane.b32.xlu0 %v2875, 96
    %v4687 = vpop.permute.xlu0 %4686
    %4688 = vrot.lane.b32.xlu0 %v2879, 96
    %v4689 = vpop.permute.xlu0 %4688
    %4690 = vrot.lane.b32.xlu0 %v2883, 96
    %v4691 = vpop.permute.xlu0 %4690
    %v4692 = vsel %vm906, %v4677, %v4685
    %v4693 = vsel %vm906, %v4679, %v4687
    %v4694 = vsel %vm906, %v4681, %v4689
    %v4695 = vsel %vm906, %v4683, %v4691
    %v4696 = vsel %vm906, %v4669, %v4677
    %v4697 = vsel %vm906, %v4671, %v4679
    %v4698 = vsel %vm906, %v4673, %v4681
    %v4699 = vsel %vm906, %v4675, %v4683
    %v4700 = vsel %vm906, %v4661, %v4669
    %v4701 = vsel %vm906, %v4663, %v4671
    %v4702 = vsel %vm906, %v4665, %v4673
    %v4703 = vsel %vm906, %v4667, %v4675
    %v4704 = vsel %vm906, %v4685, %v4661
    %v4705 = vsel %vm906, %v4687, %v4663
    %v4706 = vsel %vm906, %v4689, %v4665
    %v4707 = vsel %vm906, %v4691, %v4667
    %v4708 = vmul.f32 %v4700, %v320
    %v4709 = vmul.f32 %v4696, %v321
    %v4710 = vmul.f32 %v4692, %v322
    %v4711 = vmul.f32 %v4704, %v323
    %v4712 = vmul.f32 %v4701, %v320
    %v4713 = vmul.f32 %v4697, %v321
    %v4714 = vmul.f32 %v4693, %v322
    %v4715 = vmul.f32 %v4705, %v323
    %v4716 = vmul.f32 %v4702, %v320
    %v4717 = vmul.f32 %v4698, %v321
    %v4718 = vmul.f32 %v4694, %v322
    %v4719 = vmul.f32 %v4706, %v323
    %v4720 = vmul.f32 %v4703, %v320
    %v4721 = vmul.f32 %v4699, %v321
    %v4722 = vmul.f32 %v4695, %v322
    %v4723 = vmul.f32 %v4707, %v323
    %v4740 = vrot.slane %v4708, 4
    %v4741 = vrot.slane %v4709, 4
    %v4742 = vrot.slane %v4710, 4
    %v4743 = vrot.slane %v4711, 4
    %v4744 = vrot.slane %v4712, 4
    %v4745 = vsel %vm1120, %v4740, %v4744
    %v4746 = vrot.slane %v4713, 4
    %v4747 = vsel %vm1120, %v4741, %v4746
    %v4748 = vrot.slane %v4714, 4
    %v4749 = vsel %vm1120, %v4742, %v4748
    %v4750 = vrot.slane %v4715, 4
    %v4751 = vsel %vm1120, %v4743, %v4750
    %v4752 = vrot.slane %v4716, 4
    %v4753 = vsel %vm1120, %v4744, %v4752
    %v4754 = vrot.slane %v4717, 4
    %v4755 = vsel %vm1120, %v4746, %v4754
    %v4756 = vrot.slane %v4718, 4
    %v4757 = vsel %vm1120, %v4748, %v4756
    %v4758 = vrot.slane %v4719, 4
    %v4759 = vsel %vm1120, %v4750, %v4758
    %v4760 = vrot.slane %v4720, 4
    %v4761 = vsel %vm1120, %v4752, %v4760
    %v4762 = vrot.slane %v4721, 4
    %v4763 = vsel %vm1120, %v4754, %v4762
    %v4764 = vrot.slane %v4722, 4
    %v4765 = vsel %vm1120, %v4756, %v4764
    %v4766 = vrot.slane %v4723, 4
    %v4767 = vsel %vm1120, %v4758, %v4766
    %4784 = vst [vmem:[#allocation3 + $0x760] sm:$0xf0] %v4740
    %4785 = vst [vmem:[#allocation3 + $0x768] sm:$0xf0] %v4741
    %4786 = vst [vmem:[#allocation3 + $0x770] sm:$0xf0] %v4742
    %4787 = vst [vmem:[#allocation3 + $0x778] sm:$0xf0] %v4743
    %4788 = vst [vmem:[#allocation3 + $0x780] sm:$0xff] %v4745
    %4789 = vst [vmem:[#allocation3 + $0x788] sm:$0xff] %v4747
    %4790 = vst [vmem:[#allocation3 + $0x790] sm:$0xff] %v4749
    %4791 = vst [vmem:[#allocation3 + $0x798] sm:$0xff] %v4751
    %4792 = vst [vmem:[#allocation3 + $0x7a0] sm:$0xff] %v4753
    %4793 = vst [vmem:[#allocation3 + $0x7a8] sm:$0xff] %v4755
    %4794 = vst [vmem:[#allocation3 + $0x7b0] sm:$0xff] %v4757
    %4795 = vst [vmem:[#allocation3 + $0x7b8] sm:$0xff] %v4759
    %4796 = vst [vmem:[#allocation3 + $0x7c0] sm:$0xff] %v4761
    %4797 = vst [vmem:[#allocation3 + $0x7c8] sm:$0xff] %v4763
    %4798 = vst [vmem:[#allocation3 + $0x7d0] sm:$0xff] %v4765
    %4799 = vst [vmem:[#allocation3 + $0x7d8] sm:$0xff] %v4767
    %4800 = vrot.lane.b32.xlu0 %v2868, 94
    %v4801 = vpop.permute.xlu0 %4800
    %4802 = vrot.lane.b32.xlu0 %v2872, 94
    %v4803 = vpop.permute.xlu0 %4802
    %4804 = vrot.lane.b32.xlu0 %v2876, 94
    %v4805 = vpop.permute.xlu0 %4804
    %4806 = vrot.lane.b32.xlu0 %v2880, 94
    %v4807 = vpop.permute.xlu0 %4806
    %4808 = vrot.lane.b32.xlu0 %v2869, 94
    %v4809 = vpop.permute.xlu0 %4808
    %4810 = vrot.lane.b32.xlu0 %v2873, 94
    %v4811 = vpop.permute.xlu0 %4810
    %4812 = vrot.lane.b32.xlu0 %v2877, 94
    %v4813 = vpop.permute.xlu0 %4812
    %4814 = vrot.lane.b32.xlu0 %v2881, 94
    %v4815 = vpop.permute.xlu0 %4814
    %4816 = vrot.lane.b32.xlu0 %v2870, 94
    %v4817 = vpop.permute.xlu0 %4816
    %4818 = vrot.lane.b32.xlu0 %v2874, 94
    %v4819 = vpop.permute.xlu0 %4818
    %4820 = vrot.lane.b32.xlu0 %v2878, 94
    %v4821 = vpop.permute.xlu0 %4820
    %4822 = vrot.lane.b32.xlu0 %v2882, 94
    %v4823 = vpop.permute.xlu0 %4822
    %4824 = vrot.lane.b32.xlu0 %v2871, 94
    %v4825 = vpop.permute.xlu0 %4824
    %4826 = vrot.lane.b32.xlu0 %v2875, 94
    %v4827 = vpop.permute.xlu0 %4826
    %4828 = vrot.lane.b32.xlu0 %v2879, 94
    %v4829 = vpop.permute.xlu0 %4828
    %4830 = vrot.lane.b32.xlu0 %v2883, 94
    %v4831 = vpop.permute.xlu0 %4830
    %v4832 = vsel %vm939, %v4817, %v4825
    %v4833 = vsel %vm939, %v4819, %v4827
    %v4834 = vsel %vm939, %v4821, %v4829
    %v4835 = vsel %vm939, %v4823, %v4831
    %v4836 = vsel %vm939, %v4809, %v4817
    %v4837 = vsel %vm939, %v4811, %v4819
    %v4838 = vsel %vm939, %v4813, %v4821
    %v4839 = vsel %vm939, %v4815, %v4823
    %v4840 = vsel %vm939, %v4801, %v4809
    %v4841 = vsel %vm939, %v4803, %v4811
    %v4842 = vsel %vm939, %v4805, %v4813
    %v4843 = vsel %vm939, %v4807, %v4815
    %v4844 = vsel %vm939, %v4825, %v4801
    %v4845 = vsel %vm939, %v4827, %v4803
    %v4846 = vsel %vm939, %v4829, %v4805
    %v4847 = vsel %vm939, %v4831, %v4807
    %v4848 = vmul.f32 %v4840, %v332
    %v4849 = vmul.f32 %v4836, %v333
    %v4850 = vmul.f32 %v4832, %v334
    %v4851 = vmul.f32 %v4844, %v335
    %v4852 = vmul.f32 %v4841, %v332
    %v4853 = vmul.f32 %v4837, %v333
    %v4854 = vmul.f32 %v4833, %v334
    %v4855 = vmul.f32 %v4845, %v335
    %v4856 = vmul.f32 %v4842, %v332
    %v4857 = vmul.f32 %v4838, %v333
    %v4858 = vmul.f32 %v4834, %v334
    %v4859 = vmul.f32 %v4846, %v335
    %v4860 = vmul.f32 %v4843, %v332
    %v4861 = vmul.f32 %v4839, %v333
    %v4862 = vmul.f32 %v4835, %v334
    %v4863 = vmul.f32 %v4847, %v335
    %4864 = vst [vmem:[#allocation3 + $0x7e0] sm:$0xff] %v4848
    %4865 = vst [vmem:[#allocation3 + $0x7e8] sm:$0xff] %v4849
    %4866 = vst [vmem:[#allocation3 + $0x7f0] sm:$0xff] %v4850
    %4867 = vst [vmem:[#allocation3 + $0x7f8] sm:$0xff] %v4851
    %4868 = vst [vmem:[#allocation3 + $0x800] sm:$0xff] %v4852
    %4869 = vst [vmem:[#allocation3 + $0x808] sm:$0xff] %v4853
    %4870 = vst [vmem:[#allocation3 + $0x810] sm:$0xff] %v4854
    %4871 = vst [vmem:[#allocation3 + $0x818] sm:$0xff] %v4855
    %4872 = vst [vmem:[#allocation3 + $0x820] sm:$0xff] %v4856
    %4873 = vst [vmem:[#allocation3 + $0x828] sm:$0xff] %v4857
    %4874 = vst [vmem:[#allocation3 + $0x830] sm:$0xff] %v4858
    %4875 = vst [vmem:[#allocation3 + $0x838] sm:$0xff] %v4859
    %4876 = vst [vmem:[#allocation3 + $0x840] sm:$0xf] %v4860
    %4877 = vst [vmem:[#allocation3 + $0x848] sm:$0xf] %v4861
    %4878 = vst [vmem:[#allocation3 + $0x850] sm:$0xf] %v4862
    %4879 = vst [vmem:[#allocation3 + $0x858] sm:$0xf] %v4863
    %4880 = vrot.lane.b32.xlu0 %v2868, 92
    %v4881 = vpop.permute.xlu0 %4880
    %4882 = vrot.lane.b32.xlu0 %v2872, 92
    %v4883 = vpop.permute.xlu0 %4882
    %4884 = vrot.lane.b32.xlu0 %v2876, 92
    %v4885 = vpop.permute.xlu0 %4884
    %4886 = vrot.lane.b32.xlu0 %v2880, 92
    %v4887 = vpop.permute.xlu0 %4886
    %4888 = vrot.lane.b32.xlu0 %v2869, 92
    %v4889 = vpop.permute.xlu0 %4888
    %4890 = vrot.lane.b32.xlu0 %v2873, 92
    %v4891 = vpop.permute.xlu0 %4890
    %4892 = vrot.lane.b32.xlu0 %v2877, 92
    %v4893 = vpop.permute.xlu0 %4892
    %4894 = vrot.lane.b32.xlu0 %v2881, 92
    %v4895 = vpop.permute.xlu0 %4894
    %4896 = vrot.lane.b32.xlu0 %v2870, 92
    %v4897 = vpop.permute.xlu0 %4896
    %4898 = vrot.lane.b32.xlu0 %v2874, 92
    %v4899 = vpop.permute.xlu0 %4898
    %4900 = vrot.lane.b32.xlu0 %v2878, 92
    %v4901 = vpop.permute.xlu0 %4900
    %4902 = vrot.lane.b32.xlu0 %v2882, 92
    %v4903 = vpop.permute.xlu0 %4902
    %4904 = vrot.lane.b32.xlu0 %v2871, 92
    %v4905 = vpop.permute.xlu0 %4904
    %4906 = vrot.lane.b32.xlu0 %v2875, 92
    %v4907 = vpop.permute.xlu0 %4906
    %4908 = vrot.lane.b32.xlu0 %v2879, 92
    %v4909 = vpop.permute.xlu0 %4908
    %4910 = vrot.lane.b32.xlu0 %v2883, 92
    %v4911 = vpop.permute.xlu0 %4910
    %v4912 = vsel %vm960, %v4897, %v4905
    %v4913 = vsel %vm960, %v4899, %v4907
    %v4914 = vsel %vm960, %v4901, %v4909
    %v4915 = vsel %vm960, %v4903, %v4911
    %v4916 = vsel %vm960, %v4889, %v4897
    %v4917 = vsel %vm960, %v4891, %v4899
    %v4918 = vsel %vm960, %v4893, %v4901
    %v4919 = vsel %vm960, %v4895, %v4903
    %v4920 = vsel %vm960, %v4881, %v4889
    %v4921 = vsel %vm960, %v4883, %v4891
    %v4922 = vsel %vm960, %v4885, %v4893
    %v4923 = vsel %vm960, %v4887, %v4895
    %v4924 = vsel %vm960, %v4905, %v4881
    %v4925 = vsel %vm960, %v4907, %v4883
    %v4926 = vsel %vm960, %v4909, %v4885
    %v4927 = vsel %vm960, %v4911, %v4887
    %v4928 = vmul.f32 %v4920, %v344
    %v4929 = vmul.f32 %v4916, %v345
    %v4930 = vmul.f32 %v4912, %v346
    %v4931 = vmul.f32 %v4924, %v347
    %v4932 = vmul.f32 %v4921, %v344
    %v4933 = vmul.f32 %v4917, %v345
    %v4934 = vmul.f32 %v4913, %v346
    %v4935 = vmul.f32 %v4925, %v347
    %v4936 = vmul.f32 %v4922, %v344
    %v4937 = vmul.f32 %v4918, %v345
    %v4938 = vmul.f32 %v4914, %v346
    %v4939 = vmul.f32 %v4926, %v347
    %v4940 = vmul.f32 %v4923, %v344
    %v4941 = vmul.f32 %v4919, %v345
    %v4942 = vmul.f32 %v4915, %v346
    %v4943 = vmul.f32 %v4927, %v347
    %v4960 = vrot.slane %v4928, 4
    %v4961 = vrot.slane %v4929, 4
    %v4962 = vrot.slane %v4930, 4
    %v4963 = vrot.slane %v4931, 4
    %v4964 = vrot.slane %v4932, 4
    %v4965 = vsel %vm1120, %v4960, %v4964
    %v4966 = vrot.slane %v4933, 4
    %v4967 = vsel %vm1120, %v4961, %v4966
    %v4968 = vrot.slane %v4934, 4
    %v4969 = vsel %vm1120, %v4962, %v4968
    %v4970 = vrot.slane %v4935, 4
    %v4971 = vsel %vm1120, %v4963, %v4970
    %v4972 = vrot.slane %v4936, 4
    %v4973 = vsel %vm1120, %v4964, %v4972
    %v4974 = vrot.slane %v4937, 4
    %v4975 = vsel %vm1120, %v4966, %v4974
    %v4976 = vrot.slane %v4938, 4
    %v4977 = vsel %vm1120, %v4968, %v4976
    %v4978 = vrot.slane %v4939, 4
    %v4979 = vsel %vm1120, %v4970, %v4978
    %v4980 = vrot.slane %v4940, 4
    %v4981 = vsel %vm1120, %v4972, %v4980
    %v4982 = vrot.slane %v4941, 4
    %v4983 = vsel %vm1120, %v4974, %v4982
    %v4984 = vrot.slane %v4942, 4
    %v4985 = vsel %vm1120, %v4976, %v4984
    %v4986 = vrot.slane %v4943, 4
    %v4987 = vsel %vm1120, %v4978, %v4986
    %5004 = vst [vmem:[#allocation3 + $0x840] sm:$0xf0] %v4960
    %5005 = vst [vmem:[#allocation3 + $0x848] sm:$0xf0] %v4961
    %5006 = vst [vmem:[#allocation3 + $0x850] sm:$0xf0] %v4962
    %5007 = vst [vmem:[#allocation3 + $0x858] sm:$0xf0] %v4963
    %5008 = vst [vmem:[#allocation3 + $0x860] sm:$0xff] %v4965
    %5009 = vst [vmem:[#allocation3 + $0x868] sm:$0xff] %v4967
    %5010 = vst [vmem:[#allocation3 + $0x870] sm:$0xff] %v4969
    %5011 = vst [vmem:[#allocation3 + $0x878] sm:$0xff] %v4971
    %5012 = vst [vmem:[#allocation3 + $0x880] sm:$0xff] %v4973
    %5013 = vst [vmem:[#allocation3 + $0x888] sm:$0xff] %v4975
    %5014 = vst [vmem:[#allocation3 + $0x890] sm:$0xff] %v4977
    %5015 = vst [vmem:[#allocation3 + $0x898] sm:$0xff] %v4979
    %5016 = vst [vmem:[#allocation3 + $0x8a0] sm:$0xff] %v4981
    %5017 = vst [vmem:[#allocation3 + $0x8a8] sm:$0xff] %v4983
    %5018 = vst [vmem:[#allocation3 + $0x8b0] sm:$0xff] %v4985
    %5019 = vst [vmem:[#allocation3 + $0x8b8] sm:$0xff] %v4987
    %v5020 = vmul.f32 %v2924, %v368
    %v5021 = vmul.f32 %v2920, %v369
    %v5022 = vmul.f32 %v2916, %v370
    %v5023 = vmul.f32 %v2928, %v371
    %v5024 = vmul.f32 %v2925, %v368
    %v5025 = vmul.f32 %v2921, %v369
    %v5026 = vmul.f32 %v2917, %v370
    %v5027 = vmul.f32 %v2929, %v371
    %v5028 = vmul.f32 %v2926, %v368
    %v5029 = vmul.f32 %v2922, %v369
    %v5030 = vmul.f32 %v2918, %v370
    %v5031 = vmul.f32 %v2930, %v371
    %v5032 = vmul.f32 %v2927, %v368
    %v5033 = vmul.f32 %v2923, %v369
    %v5034 = vmul.f32 %v2919, %v370
    %v5035 = vmul.f32 %v2931, %v371
    %5036 = vst [vmem:[#allocation3 + $0x8c0] sm:$0xff] %v5020
    %5037 = vst [vmem:[#allocation3 + $0x8c8] sm:$0xff] %v5021
    %5038 = vst [vmem:[#allocation3 + $0x8d0] sm:$0xff] %v5022
    %5039 = vst [vmem:[#allocation3 + $0x8d8] sm:$0xff] %v5023
    %5040 = vst [vmem:[#allocation3 + $0x8e0] sm:$0xff] %v5024
    %5041 = vst [vmem:[#allocation3 + $0x8e8] sm:$0xff] %v5025
    %5042 = vst [vmem:[#allocation3 + $0x8f0] sm:$0xff] %v5026
    %5043 = vst [vmem:[#allocation3 + $0x8f8] sm:$0xff] %v5027
    %5044 = vst [vmem:[#allocation3 + $0x900] sm:$0xff] %v5028
    %5045 = vst [vmem:[#allocation3 + $0x908] sm:$0xff] %v5029
    %5046 = vst [vmem:[#allocation3 + $0x910] sm:$0xff] %v5030
    %5047 = vst [vmem:[#allocation3 + $0x918] sm:$0xff] %v5031
    %5048 = vst [vmem:[#allocation3 + $0x920] sm:$0xf] %v5032
    %5049 = vst [vmem:[#allocation3 + $0x928] sm:$0xf] %v5033
    %5050 = vst [vmem:[#allocation3 + $0x930] sm:$0xf] %v5034
    %5051 = vst [vmem:[#allocation3 + $0x938] sm:$0xf] %v5035
    %v5052 = vmul.f32 %v3004, %v380
    %v5053 = vmul.f32 %v3000, %v381
    %v5054 = vmul.f32 %v2996, %v382
    %v5055 = vmul.f32 %v3008, %v383
    %v5056 = vmul.f32 %v3005, %v380
    %v5057 = vmul.f32 %v3001, %v381
    %v5058 = vmul.f32 %v2997, %v382
    %v5059 = vmul.f32 %v3009, %v383
    %v5060 = vmul.f32 %v3006, %v380
    %v5061 = vmul.f32 %v3002, %v381
    %v5062 = vmul.f32 %v2998, %v382
    %v5063 = vmul.f32 %v3010, %v383
    %v5064 = vmul.f32 %v3007, %v380
    %v5065 = vmul.f32 %v3003, %v381
    %v5066 = vmul.f32 %v2999, %v382
    %v5067 = vmul.f32 %v3011, %v383
    %v5084 = vrot.slane %v5052, 4
    %v5085 = vrot.slane %v5053, 4
    %v5086 = vrot.slane %v5054, 4
    %v5087 = vrot.slane %v5055, 4
    %v5088 = vrot.slane %v5056, 4
    %v5089 = vsel %vm1120, %v5084, %v5088
    %v5090 = vrot.slane %v5057, 4
    %v5091 = vsel %vm1120, %v5085, %v5090
    %v5092 = vrot.slane %v5058, 4
    %v5093 = vsel %vm1120, %v5086, %v5092
    %v5094 = vrot.slane %v5059, 4
    %v5095 = vsel %vm1120, %v5087, %v5094
    %v5096 = vrot.slane %v5060, 4
    %v5097 = vsel %vm1120, %v5088, %v5096
    %v5098 = vrot.slane %v5061, 4
    %v5099 = vsel %vm1120, %v5090, %v5098
    %v5100 = vrot.slane %v5062, 4
    %v5101 = vsel %vm1120, %v5092, %v5100
    %v5102 = vrot.slane %v5063, 4
    %v5103 = vsel %vm1120, %v5094, %v5102
    %v5104 = vrot.slane %v5064, 4
    %v5105 = vsel %vm1120, %v5096, %v5104
    %v5106 = vrot.slane %v5065, 4
    %v5107 = vsel %vm1120, %v5098, %v5106
    %v5108 = vrot.slane %v5066, 4
    %v5109 = vsel %vm1120, %v5100, %v5108
    %v5110 = vrot.slane %v5067, 4
    %v5111 = vsel %vm1120, %v5102, %v5110
    %5128 = vst [vmem:[#allocation3 + $0x920] sm:$0xf0] %v5084
    %5129 = vst [vmem:[#allocation3 + $0x928] sm:$0xf0] %v5085
    %5130 = vst [vmem:[#allocation3 + $0x930] sm:$0xf0] %v5086
    %5131 = vst [vmem:[#allocation3 + $0x938] sm:$0xf0] %v5087
    %5132 = vst [vmem:[#allocation3 + $0x940] sm:$0xff] %v5089
    %5133 = vst [vmem:[#allocation3 + $0x948] sm:$0xff] %v5091
    %5134 = vst [vmem:[#allocation3 + $0x950] sm:$0xff] %v5093
    %5135 = vst [vmem:[#allocation3 + $0x958] sm:$0xff] %v5095
    %5136 = vst [vmem:[#allocation3 + $0x960] sm:$0xff] %v5097
    %5137 = vst [vmem:[#allocation3 + $0x968] sm:$0xff] %v5099
    %5138 = vst [vmem:[#allocation3 + $0x970] sm:$0xff] %v5101
    %5139 = vst [vmem:[#allocation3 + $0x978] sm:$0xff] %v5103
    %5140 = vst [vmem:[#allocation3 + $0x980] sm:$0xff] %v5105
    %5141 = vst [vmem:[#allocation3 + $0x988] sm:$0xff] %v5107
    %5142 = vst [vmem:[#allocation3 + $0x990] sm:$0xff] %v5109
    %5143 = vst [vmem:[#allocation3 + $0x998] sm:$0xff] %v5111
    %v5144 = vmul.f32 %v3144, %v392
    %v5145 = vmul.f32 %v3140, %v393
    %v5146 = vmul.f32 %v3136, %v394
    %v5147 = vmul.f32 %v3148, %v395
    %v5148 = vmul.f32 %v3145, %v392
    %v5149 = vmul.f32 %v3141, %v393
    %v5150 = vmul.f32 %v3137, %v394
    %v5151 = vmul.f32 %v3149, %v395
    %v5152 = vmul.f32 %v3146, %v392
    %v5153 = vmul.f32 %v3142, %v393
    %v5154 = vmul.f32 %v3138, %v394
    %v5155 = vmul.f32 %v3150, %v395
    %v5156 = vmul.f32 %v3147, %v392
    %v5157 = vmul.f32 %v3143, %v393
    %v5158 = vmul.f32 %v3139, %v394
    %v5159 = vmul.f32 %v3151, %v395
    %5160 = vst [vmem:[#allocation3 + $0x9a0] sm:$0xff] %v5144
    %5161 = vst [vmem:[#allocation3 + $0x9a8] sm:$0xff] %v5145
    %5162 = vst [vmem:[#allocation3 + $0x9b0] sm:$0xff] %v5146
    %5163 = vst [vmem:[#allocation3 + $0x9b8] sm:$0xff] %v5147
    %5164 = vst [vmem:[#allocation3 + $0x9c0] sm:$0xff] %v5148
    %5165 = vst [vmem:[#allocation3 + $0x9c8] sm:$0xff] %v5149
    %5166 = vst [vmem:[#allocation3 + $0x9d0] sm:$0xff] %v5150
    %5167 = vst [vmem:[#allocation3 + $0x9d8] sm:$0xff] %v5151
    %5168 = vst [vmem:[#allocation3 + $0x9e0] sm:$0xff] %v5152
    %5169 = vst [vmem:[#allocation3 + $0x9e8] sm:$0xff] %v5153
    %5170 = vst [vmem:[#allocation3 + $0x9f0] sm:$0xff] %v5154
    %5171 = vst [vmem:[#allocation3 + $0x9f8] sm:$0xff] %v5155
    %5172 = vst [vmem:[#allocation3 + $0xa00] sm:$0xf] %v5156
    %5173 = vst [vmem:[#allocation3 + $0xa08] sm:$0xf] %v5157
    %5174 = vst [vmem:[#allocation3 + $0xa10] sm:$0xf] %v5158
    %5175 = vst [vmem:[#allocation3 + $0xa18] sm:$0xf] %v5159
    %v5176 = vmul.f32 %v3224, %v404
    %v5177 = vmul.f32 %v3220, %v405
    %v5178 = vmul.f32 %v3216, %v406
    %v5179 = vmul.f32 %v3228, %v407
    %v5180 = vmul.f32 %v3225, %v404
    %v5181 = vmul.f32 %v3221, %v405
    %v5182 = vmul.f32 %v3217, %v406
    %v5183 = vmul.f32 %v3229, %v407
    %v5184 = vmul.f32 %v3226, %v404
    %v5185 = vmul.f32 %v3222, %v405
    %v5186 = vmul.f32 %v3218, %v406
    %v5187 = vmul.f32 %v3230, %v407
    %v5188 = vmul.f32 %v3227, %v404
    %v5189 = vmul.f32 %v3223, %v405
    %v5190 = vmul.f32 %v3219, %v406
    %v5191 = vmul.f32 %v3231, %v407
    %v5208 = vrot.slane %v5176, 4
    %v5209 = vrot.slane %v5177, 4
    %v5210 = vrot.slane %v5178, 4
    %v5211 = vrot.slane %v5179, 4
    %v5212 = vrot.slane %v5180, 4
    %v5213 = vsel %vm1120, %v5208, %v5212
    %v5214 = vrot.slane %v5181, 4
    %v5215 = vsel %vm1120, %v5209, %v5214
    %v5216 = vrot.slane %v5182, 4
    %v5217 = vsel %vm1120, %v5210, %v5216
    %v5218 = vrot.slane %v5183, 4
    %v5219 = vsel %vm1120, %v5211, %v5218
    %v5220 = vrot.slane %v5184, 4
    %v5221 = vsel %vm1120, %v5212, %v5220
    %v5222 = vrot.slane %v5185, 4
    %v5223 = vsel %vm1120, %v5214, %v5222
    %v5224 = vrot.slane %v5186, 4
    %v5225 = vsel %vm1120, %v5216, %v5224
    %v5226 = vrot.slane %v5187, 4
    %v5227 = vsel %vm1120, %v5218, %v5226
    %v5228 = vrot.slane %v5188, 4
    %v5229 = vsel %vm1120, %v5220, %v5228
    %v5230 = vrot.slane %v5189, 4
    %v5231 = vsel %vm1120, %v5222, %v5230
    %v5232 = vrot.slane %v5190, 4
    %v5233 = vsel %vm1120, %v5224, %v5232
    %v5234 = vrot.slane %v5191, 4
    %v5235 = vsel %vm1120, %v5226, %v5234
    %5252 = vst [vmem:[#allocation3 + $0xa00] sm:$0xf0] %v5208
    %5253 = vst [vmem:[#allocation3 + $0xa08] sm:$0xf0] %v5209
    %5254 = vst [vmem:[#allocation3 + $0xa10] sm:$0xf0] %v5210
    %5255 = vst [vmem:[#allocation3 + $0xa18] sm:$0xf0] %v5211
    %5256 = vst [vmem:[#allocation3 + $0xa20] sm:$0xff] %v5213
    %5257 = vst [vmem:[#allocation3 + $0xa28] sm:$0xff] %v5215
    %5258 = vst [vmem:[#allocation3 + $0xa30] sm:$0xff] %v5217
    %5259 = vst [vmem:[#allocation3 + $0xa38] sm:$0xff] %v5219
    %5260 = vst [vmem:[#allocation3 + $0xa40] sm:$0xff] %v5221
    %5261 = vst [vmem:[#allocation3 + $0xa48] sm:$0xff] %v5223
    %5262 = vst [vmem:[#allocation3 + $0xa50] sm:$0xff] %v5225
    %5263 = vst [vmem:[#allocation3 + $0xa58] sm:$0xff] %v5227
    %5264 = vst [vmem:[#allocation3 + $0xa60] sm:$0xff] %v5229
    %5265 = vst [vmem:[#allocation3 + $0xa68] sm:$0xff] %v5231
    %5266 = vst [vmem:[#allocation3 + $0xa70] sm:$0xff] %v5233
    %5267 = vst [vmem:[#allocation3 + $0xa78] sm:$0xff] %v5235
    %v5268 = vmul.f32 %v3364, %v416
    %v5269 = vmul.f32 %v3360, %v417
    %v5270 = vmul.f32 %v3356, %v418
    %v5271 = vmul.f32 %v3368, %v419
    %v5272 = vmul.f32 %v3365, %v416
    %v5273 = vmul.f32 %v3361, %v417
    %v5274 = vmul.f32 %v3357, %v418
    %v5275 = vmul.f32 %v3369, %v419
    %v5276 = vmul.f32 %v3366, %v416
    %v5277 = vmul.f32 %v3362, %v417
    %v5278 = vmul.f32 %v3358, %v418
    %v5279 = vmul.f32 %v3370, %v419
    %v5280 = vmul.f32 %v3367, %v416
    %v5281 = vmul.f32 %v3363, %v417
    %v5282 = vmul.f32 %v3359, %v418
    %v5283 = vmul.f32 %v3371, %v419
    %5284 = vst [vmem:[#allocation3 + $0xa80] sm:$0xff] %v5268
    %5285 = vst [vmem:[#allocation3 + $0xa88] sm:$0xff] %v5269
    %5286 = vst [vmem:[#allocation3 + $0xa90] sm:$0xff] %v5270
    %5287 = vst [vmem:[#allocation3 + $0xa98] sm:$0xff] %v5271
    %5288 = vst [vmem:[#allocation3 + $0xaa0] sm:$0xff] %v5272
    %5289 = vst [vmem:[#allocation3 + $0xaa8] sm:$0xff] %v5273
    %5290 = vst [vmem:[#allocation3 + $0xab0] sm:$0xff] %v5274
    %5291 = vst [vmem:[#allocation3 + $0xab8] sm:$0xff] %v5275
    %5292 = vst [vmem:[#allocation3 + $0xac0] sm:$0xff] %v5276
    %5293 = vst [vmem:[#allocation3 + $0xac8] sm:$0xff] %v5277
    %5294 = vst [vmem:[#allocation3 + $0xad0] sm:$0xff] %v5278
    %5295 = vst [vmem:[#allocation3 + $0xad8] sm:$0xff] %v5279
    %5296 = vst [vmem:[#allocation3 + $0xae0] sm:$0xf] %v5280
    %5297 = vst [vmem:[#allocation3 + $0xae8] sm:$0xf] %v5281
    %5298 = vst [vmem:[#allocation3 + $0xaf0] sm:$0xf] %v5282
    %5299 = vst [vmem:[#allocation3 + $0xaf8] sm:$0xf] %v5283
    %v5300 = vld [vmem:[%s1 + $0x28] sm:$0xff]
    %v5301 = vld [vmem:[%s1 + $0x30] sm:$0xff]
    %v5302 = vld [vmem:[%s1 + $0x38] sm:$0xff]
    %v5303 = vld [vmem:[%s1 + $0x40] sm:$0xff]
    %v5304 = vld [vmem:[%s1 + $0x48] sm:$0xff]
    %v5305 = vld [vmem:[%s1 + $0x50] sm:$0xff]
    %v5306 = vld [vmem:[%s1 + $0x88] sm:$0xf]
    %v5307 = vld [vmem:[%s1 + $0x90] sm:$0xf]
    %v5308 = vld [vmem:[%s1 + $0x98] sm:$0xf]
    %v5309 = vld [vmem:[%s1 + $0xa0] sm:$0xf]
    %v5310 = vld [vmem:[%s1 + $0xa8] sm:$0xf]
    %v5311 = vld [vmem:[%s1 + $0xb0] sm:$0xf]
    %v5312 = vld [vmem:[#allocation3] sm:$0xff]
    %v5313 = vld [vmem:[#allocation3 + $0x8] sm:$0xff]
    %v5314 = vld [vmem:[#allocation3 + $0x10] sm:$0xff]
    %v5315 = vld [vmem:[#allocation3 + $0x18] sm:$0xff]
    %v5316 = vld [vmem:[#allocation3 + $0x20] sm:$0xff]
    %v5317 = vld [vmem:[#allocation3 + $0x28] sm:$0xff]
    %v5318 = vld [vmem:[#allocation3 + $0x30] sm:$0xff]
    %v5319 = vld [vmem:[#allocation3 + $0x38] sm:$0xff]
    %v5320 = vld [vmem:[#allocation3 + $0x40] sm:$0xff]
    %v5321 = vld [vmem:[#allocation3 + $0x48] sm:$0xff]
    %v5322 = vld [vmem:[#allocation3 + $0x50] sm:$0xff]
    %v5323 = vld [vmem:[#allocation3 + $0x58] sm:$0xff]
    %v5324 = vld [vmem:[#allocation3 + $0x60] sm:$0xff]
    %v5325 = vld [vmem:[#allocation3 + $0x68] sm:$0xff]
    %v5326 = vld [vmem:[#allocation3 + $0x70] sm:$0xff]
    %v5327 = vld [vmem:[#allocation3 + $0x78] sm:$0xff]
    %v5328 = vld [vmem:[#allocation3 + $0x80] sm:$0xff]
    %v5329 = vld [vmem:[#allocation3 + $0x88] sm:$0xff]
    %v5330 = vld [vmem:[#allocation3 + $0x90] sm:$0xff]
    %v5331 = vld [vmem:[#allocation3 + $0x98] sm:$0xff]
    %v5332 = vld [vmem:[#allocation3 + $0xa0] sm:$0xff]
    %v5333 = vld [vmem:[#allocation3 + $0xa8] sm:$0xff]
    %v5334 = vld [vmem:[#allocation3 + $0xb0] sm:$0xff]
    %v5335 = vld [vmem:[#allocation3 + $0xb8] sm:$0xff]
    %v5336 = vld [vmem:[#allocation3 + $0xc0] sm:$0xff]
    %v5337 = vld [vmem:[#allocation3 + $0xc8] sm:$0xff]
    %v5338 = vld [vmem:[#allocation3 + $0xd0] sm:$0xff]
    %v5339 = vld [vmem:[#allocation3 + $0xd8] sm:$0xff]
    %v5340 = vld [vmem:[#allocation3 + $0xe0] sm:$0xff]
    %v5341 = vld [vmem:[#allocation3 + $0xe8] sm:$0xff]
    %v5342 = vld [vmem:[#allocation3 + $0xf0] sm:$0xff]
    %v5343 = vld [vmem:[#allocation3 + $0xf8] sm:$0xff]
    %v5344 = vld [vmem:[#allocation3 + $0x100] sm:$0xff]
    %v5345 = vld [vmem:[#allocation3 + $0x108] sm:$0xff]
    %v5346 = vld [vmem:[#allocation3 + $0x110] sm:$0xff]
    %v5347 = vld [vmem:[#allocation3 + $0x118] sm:$0xff]
    %v5348 = vld [vmem:[#allocation3 + $0x120] sm:$0xff]
    %v5349 = vld [vmem:[#allocation3 + $0x128] sm:$0xff]
    %v5350 = vld [vmem:[#allocation3 + $0x130] sm:$0xff]
    %v5351 = vld [vmem:[#allocation3 + $0x138] sm:$0xff]
    %v5352 = vld [vmem:[#allocation3 + $0x140] sm:$0xff]
    %v5353 = vld [vmem:[#allocation3 + $0x148] sm:$0xff]
    %v5354 = vld [vmem:[#allocation3 + $0x150] sm:$0xff]
    %v5355 = vld [vmem:[#allocation3 + $0x158] sm:$0xff]
    %v5356 = vld [vmem:[#allocation3 + $0x160] sm:$0xff]
    %v5357 = vld [vmem:[#allocation3 + $0x168] sm:$0xff]
    %v5358 = vld [vmem:[#allocation3 + $0x170] sm:$0xff]
    %v5359 = vld [vmem:[#allocation3 + $0x178] sm:$0xff]
    %v5360 = vld [vmem:[#allocation3 + $0x180] sm:$0xff]
    %v5361 = vld [vmem:[#allocation3 + $0x188] sm:$0xff]
    %v5362 = vld [vmem:[#allocation3 + $0x190] sm:$0xff]
    %v5363 = vld [vmem:[#allocation3 + $0x198] sm:$0xff]
    %v5364 = vld [vmem:[#allocation3 + $0x1a0] sm:$0xff]
    %v5365 = vld [vmem:[#allocation3 + $0x1a8] sm:$0xff]
    %v5366 = vld [vmem:[#allocation3 + $0x1b0] sm:$0xff]
    %v5367 = vld [vmem:[#allocation3 + $0x1b8] sm:$0xff]
    %v5368 = vld [vmem:[#allocation3 + $0x1c0] sm:$0xff]
    %v5369 = vld [vmem:[#allocation3 + $0x1c8] sm:$0xff]
    %v5370 = vld [vmem:[#allocation3 + $0x1d0] sm:$0xff]
    %v5371 = vld [vmem:[#allocation3 + $0x1d8] sm:$0xff]
    %v5372 = vld [vmem:[#allocation3 + $0x1e0] sm:$0xff]
    %v5373 = vld [vmem:[#allocation3 + $0x1e8] sm:$0xff]
    %v5374 = vld [vmem:[#allocation3 + $0x1f0] sm:$0xff]
    %v5375 = vld [vmem:[#allocation3 + $0x1f8] sm:$0xff]
    %v5376 = vld [vmem:[#allocation3 + $0x200] sm:$0xff]
    %v5377 = vld [vmem:[#allocation3 + $0x208] sm:$0xff]
    %v5378 = vld [vmem:[#allocation3 + $0x210] sm:$0xff]
    %v5379 = vld [vmem:[#allocation3 + $0x218] sm:$0xff]
    %v5380 = vld [vmem:[#allocation3 + $0x220] sm:$0xff]
    %v5381 = vld [vmem:[#allocation3 + $0x228] sm:$0xff]
    %v5382 = vld [vmem:[#allocation3 + $0x230] sm:$0xff]
    %v5383 = vld [vmem:[#allocation3 + $0x238] sm:$0xff]
    %v5384 = vld [vmem:[#allocation3 + $0x240] sm:$0xff]
    %v5385 = vld [vmem:[#allocation3 + $0x248] sm:$0xff]
    %v5386 = vld [vmem:[#allocation3 + $0x250] sm:$0xff]
    %v5387 = vld [vmem:[#allocation3 + $0x258] sm:$0xff]
    %v5388 = vld [vmem:[#allocation3 + $0x260] sm:$0xff]
    %v5389 = vld [vmem:[#allocation3 + $0x268] sm:$0xff]
    %v5390 = vld [vmem:[#allocation3 + $0x270] sm:$0xff]
    %v5391 = vld [vmem:[#allocation3 + $0x278] sm:$0xff]
    %v5392 = vld [vmem:[#allocation3 + $0x280] sm:$0xff]
    %v5393 = vld [vmem:[#allocation3 + $0x288] sm:$0xff]
    %v5394 = vld [vmem:[#allocation3 + $0x290] sm:$0xff]
    %v5395 = vld [vmem:[#allocation3 + $0x298] sm:$0xff]
    %v5396 = vld [vmem:[#allocation3 + $0x2a0] sm:$0xff]
    %v5397 = vld [vmem:[#allocation3 + $0x2a8] sm:$0xff]
    %v5398 = vld [vmem:[#allocation3 + $0x2b0] sm:$0xff]
    %v5399 = vld [vmem:[#allocation3 + $0x2b8] sm:$0xff]
    %v5400 = vld [vmem:[#allocation3 + $0x2c0] sm:$0xff]
    %v5401 = vld [vmem:[#allocation3 + $0x2c8] sm:$0xff]
    %v5402 = vld [vmem:[#allocation3 + $0x2d0] sm:$0xff]
    %v5403 = vld [vmem:[#allocation3 + $0x2d8] sm:$0xff]
    %v5404 = vld [vmem:[#allocation3 + $0x2e0] sm:$0xff]
    %v5405 = vld [vmem:[#allocation3 + $0x2e8] sm:$0xff]
    %v5406 = vld [vmem:[#allocation3 + $0x2f0] sm:$0xff]
    %v5407 = vld [vmem:[#allocation3 + $0x2f8] sm:$0xff]
    %v5408 = vld [vmem:[#allocation3 + $0x300] sm:$0xff]
    %v5409 = vld [vmem:[#allocation3 + $0x308] sm:$0xff]
    %v5410 = vld [vmem:[#allocation3 + $0x310] sm:$0xff]
    %v5411 = vld [vmem:[#allocation3 + $0x318] sm:$0xff]
    %v5412 = vld [vmem:[#allocation3 + $0x320] sm:$0xff]
    %v5413 = vld [vmem:[#allocation3 + $0x328] sm:$0xff]
    %v5414 = vld [vmem:[#allocation3 + $0x330] sm:$0xff]
    %v5415 = vld [vmem:[#allocation3 + $0x338] sm:$0xff]
    %v5416 = vld [vmem:[#allocation3 + $0x340] sm:$0xff]
    %v5417 = vld [vmem:[#allocation3 + $0x348] sm:$0xff]
    %v5418 = vld [vmem:[#allocation3 + $0x350] sm:$0xff]
    %v5419 = vld [vmem:[#allocation3 + $0x358] sm:$0xff]
    %v5420 = vld [vmem:[#allocation3 + $0x360] sm:$0xff]
    %v5421 = vld [vmem:[#allocation3 + $0x368] sm:$0xff]
    %v5422 = vld [vmem:[#allocation3 + $0x370] sm:$0xff]
    %v5423 = vld [vmem:[#allocation3 + $0x378] sm:$0xff]
    %v5424 = vld [vmem:[#allocation3 + $0x380] sm:$0xff]
    %v5425 = vld [vmem:[#allocation3 + $0x388] sm:$0xff]
    %v5426 = vld [vmem:[#allocation3 + $0x390] sm:$0xff]
    %v5427 = vld [vmem:[#allocation3 + $0x398] sm:$0xff]
    %v5428 = vld [vmem:[#allocation3 + $0x3a0] sm:$0xff]
    %v5429 = vld [vmem:[#allocation3 + $0x3a8] sm:$0xff]
    %v5430 = vld [vmem:[#allocation3 + $0x3b0] sm:$0xff]
    %v5431 = vld [vmem:[#allocation3 + $0x3b8] sm:$0xff]
    %v5432 = vld [vmem:[#allocation3 + $0x3c0] sm:$0xff]
    %v5433 = vld [vmem:[#allocation3 + $0x3c8] sm:$0xff]
    %v5434 = vld [vmem:[#allocation3 + $0x3d0] sm:$0xff]
    %v5435 = vld [vmem:[#allocation3 + $0x3d8] sm:$0xff]
    %v5436 = vld [vmem:[#allocation3 + $0x3e0] sm:$0xff]
    %v5437 = vld [vmem:[#allocation3 + $0x3e8] sm:$0xff]
    %v5438 = vld [vmem:[#allocation3 + $0x3f0] sm:$0xff]
    %v5439 = vld [vmem:[#allocation3 + $0x3f8] sm:$0xff]
    %v5440 = vld [vmem:[#allocation3 + $0x400] sm:$0xff]
    %v5441 = vld [vmem:[#allocation3 + $0x408] sm:$0xff]
    %v5442 = vld [vmem:[#allocation3 + $0x410] sm:$0xff]
    %v5443 = vld [vmem:[#allocation3 + $0x418] sm:$0xff]
    %v5444 = vld [vmem:[#allocation3 + $0x420] sm:$0xff]
    %v5445 = vld [vmem:[#allocation3 + $0x428] sm:$0xff]
    %v5446 = vld [vmem:[#allocation3 + $0x430] sm:$0xff]
    %v5447 = vld [vmem:[#allocation3 + $0x438] sm:$0xff]
    %v5448 = vld [vmem:[#allocation3 + $0x440] sm:$0xff]
    %v5449 = vld [vmem:[#allocation3 + $0x448] sm:$0xff]
    %v5450 = vld [vmem:[#allocation3 + $0x450] sm:$0xff]
    %v5451 = vld [vmem:[#allocation3 + $0x458] sm:$0xff]
    %v5452 = vld [vmem:[#allocation3 + $0x460] sm:$0xff]
    %v5453 = vld [vmem:[#allocation3 + $0x468] sm:$0xff]
    %v5454 = vld [vmem:[#allocation3 + $0x470] sm:$0xff]
    %v5455 = vld [vmem:[#allocation3 + $0x478] sm:$0xff]
    %v5456 = vld [vmem:[#allocation3 + $0x480] sm:$0xff]
    %v5457 = vld [vmem:[#allocation3 + $0x488] sm:$0xff]
    %v5458 = vld [vmem:[#allocation3 + $0x490] sm:$0xff]
    %v5459 = vld [vmem:[#allocation3 + $0x498] sm:$0xff]
    %v5460 = vld [vmem:[#allocation3 + $0x4a0] sm:$0xff]
    %v5461 = vld [vmem:[#allocation3 + $0x4a8] sm:$0xff]
    %v5462 = vld [vmem:[#allocation3 + $0x4b0] sm:$0xff]
    %v5463 = vld [vmem:[#allocation3 + $0x4b8] sm:$0xff]
    %v5464 = vld [vmem:[#allocation3 + $0x4c0] sm:$0xff]
    %v5465 = vld [vmem:[#allocation3 + $0x4c8] sm:$0xff]
    %v5466 = vld [vmem:[#allocation3 + $0x4d0] sm:$0xff]
    %v5467 = vld [vmem:[#allocation3 + $0x4d8] sm:$0xff]
    %v5468 = vld [vmem:[#allocation3 + $0x4e0] sm:$0xff]
    %v5469 = vld [vmem:[#allocation3 + $0x4e8] sm:$0xff]
    %v5470 = vld [vmem:[#allocation3 + $0x4f0] sm:$0xff]
    %v5471 = vld [vmem:[#allocation3 + $0x4f8] sm:$0xff]
    %v5472 = vld [vmem:[#allocation3 + $0x500] sm:$0xff]
    %v5473 = vld [vmem:[#allocation3 + $0x508] sm:$0xff]
    %v5474 = vld [vmem:[#allocation3 + $0x510] sm:$0xff]
    %v5475 = vld [vmem:[#allocation3 + $0x518] sm:$0xff]
    %v5476 = vld [vmem:[#allocation3 + $0x520] sm:$0xff]
    %v5477 = vld [vmem:[#allocation3 + $0x528] sm:$0xff]
    %v5478 = vld [vmem:[#allocation3 + $0x530] sm:$0xff]
    %v5479 = vld [vmem:[#allocation3 + $0x538] sm:$0xff]
    %v5480 = vld [vmem:[#allocation3 + $0x540] sm:$0xff]
    %v5481 = vld [vmem:[#allocation3 + $0x548] sm:$0xff]
    %v5482 = vld [vmem:[#allocation3 + $0x550] sm:$0xff]
    %v5483 = vld [vmem:[#allocation3 + $0x558] sm:$0xff]
    %v5484 = vld [vmem:[#allocation3 + $0x560] sm:$0xff]
    %v5485 = vld [vmem:[#allocation3 + $0x568] sm:$0xff]
    %v5486 = vld [vmem:[#allocation3 + $0x570] sm:$0xff]
    %v5487 = vld [vmem:[#allocation3 + $0x578] sm:$0xff]
    %v5488 = vld [vmem:[#allocation3 + $0x580] sm:$0xff]
    %v5489 = vld [vmem:[#allocation3 + $0x588] sm:$0xff]
    %v5490 = vld [vmem:[#allocation3 + $0x590] sm:$0xff]
    %v5491 = vld [vmem:[#allocation3 + $0x598] sm:$0xff]
    %v5492 = vld [vmem:[#allocation3 + $0x5a0] sm:$0xff]
    %v5493 = vld [vmem:[#allocation3 + $0x5a8] sm:$0xff]
    %v5494 = vld [vmem:[#allocation3 + $0x5b0] sm:$0xff]
    %v5495 = vld [vmem:[#allocation3 + $0x5b8] sm:$0xff]
    %v5496 = vld [vmem:[#allocation3 + $0x5c0] sm:$0xff]
    %v5497 = vld [vmem:[#allocation3 + $0x5c8] sm:$0xff]
    %v5498 = vld [vmem:[#allocation3 + $0x5d0] sm:$0xff]
    %v5499 = vld [vmem:[#allocation3 + $0x5d8] sm:$0xff]
    %v5500 = vld [vmem:[#allocation3 + $0x5e0] sm:$0xff]
    %v5501 = vld [vmem:[#allocation3 + $0x5e8] sm:$0xff]
    %v5502 = vld [vmem:[#allocation3 + $0x5f0] sm:$0xff]
    %v5503 = vld [vmem:[#allocation3 + $0x5f8] sm:$0xff]
    %v5504 = vld [vmem:[#allocation3 + $0x600] sm:$0xff]
    %v5505 = vld [vmem:[#allocation3 + $0x608] sm:$0xff]
    %v5506 = vld [vmem:[#allocation3 + $0x610] sm:$0xff]
    %v5507 = vld [vmem:[#allocation3 + $0x618] sm:$0xff]
    %v5508 = vld [vmem:[#allocation3 + $0x620] sm:$0xff]
    %v5509 = vld [vmem:[#allocation3 + $0x628] sm:$0xff]
    %v5510 = vld [vmem:[#allocation3 + $0x630] sm:$0xff]
    %v5511 = vld [vmem:[#allocation3 + $0x638] sm:$0xff]
    %v5512 = vld [vmem:[#allocation3 + $0x640] sm:$0xff]
    %v5513 = vld [vmem:[#allocation3 + $0x648] sm:$0xff]
    %v5514 = vld [vmem:[#allocation3 + $0x650] sm:$0xff]
    %v5515 = vld [vmem:[#allocation3 + $0x658] sm:$0xff]
    %v5516 = vld [vmem:[#allocation3 + $0x660] sm:$0xff]
    %v5517 = vld [vmem:[#allocation3 + $0x668] sm:$0xff]
    %v5518 = vld [vmem:[#allocation3 + $0x670] sm:$0xff]
    %v5519 = vld [vmem:[#allocation3 + $0x678] sm:$0xff]
    %v5520 = vld [vmem:[#allocation3 + $0x680] sm:$0xff]
    %v5521 = vld [vmem:[#allocation3 + $0x688] sm:$0xff]
    %v5522 = vld [vmem:[#allocation3 + $0x690] sm:$0xff]
    %v5523 = vld [vmem:[#allocation3 + $0x698] sm:$0xff]
    %v5524 = vld [vmem:[#allocation3 + $0x6a0] sm:$0xff]
    %v5525 = vld [vmem:[#allocation3 + $0x6a8] sm:$0xff]
    %v5526 = vld [vmem:[#allocation3 + $0x6b0] sm:$0xff]
    %v5527 = vld [vmem:[#allocation3 + $0x6b8] sm:$0xff]
    %v5528 = vld [vmem:[#allocation3 + $0x6c0] sm:$0xff]
    %v5529 = vld [vmem:[#allocation3 + $0x6c8] sm:$0xff]
    %v5530 = vld [vmem:[#allocation3 + $0x6d0] sm:$0xff]
    %v5531 = vld [vmem:[#allocation3 + $0x6d8] sm:$0xff]
    %v5532 = vld [vmem:[#allocation3 + $0x6e0] sm:$0xff]
    %v5533 = vld [vmem:[#allocation3 + $0x6e8] sm:$0xff]
    %v5534 = vld [vmem:[#allocation3 + $0x6f0] sm:$0xff]
    %v5535 = vld [vmem:[#allocation3 + $0x6f8] sm:$0xff]
    %v5536 = vld [vmem:[#allocation3 + $0x700] sm:$0xff]
    %v5537 = vld [vmem:[#allocation3 + $0x708] sm:$0xff]
    %v5538 = vld [vmem:[#allocation3 + $0x710] sm:$0xff]
    %v5539 = vld [vmem:[#allocation3 + $0x718] sm:$0xff]
    %v5540 = vld [vmem:[#allocation3 + $0x720] sm:$0xff]
    %v5541 = vld [vmem:[#allocation3 + $0x728] sm:$0xff]
    %v5542 = vld [vmem:[#allocation3 + $0x730] sm:$0xff]
    %v5543 = vld [vmem:[#allocation3 + $0x738] sm:$0xff]
    %v5544 = vld [vmem:[#allocation3 + $0x740] sm:$0xff]
    %v5545 = vld [vmem:[#allocation3 + $0x748] sm:$0xff]
    %v5546 = vld [vmem:[#allocation3 + $0x750] sm:$0xff]
    %v5547 = vld [vmem:[#allocation3 + $0x758] sm:$0xff]
    %v5548 = vld [vmem:[#allocation3 + $0x760] sm:$0xff]
    %v5549 = vld [vmem:[#allocation3 + $0x768] sm:$0xff]
    %v5550 = vld [vmem:[#allocation3 + $0x770] sm:$0xff]
    %v5551 = vld [vmem:[#allocation3 + $0x778] sm:$0xff]
    %v5552 = vld [vmem:[#allocation3 + $0x780] sm:$0xff]
    %v5553 = vld [vmem:[#allocation3 + $0x788] sm:$0xff]
    %v5554 = vld [vmem:[#allocation3 + $0x790] sm:$0xff]
    %v5555 = vld [vmem:[#allocation3 + $0x798] sm:$0xff]
    %v5556 = vld [vmem:[#allocation3 + $0x7a0] sm:$0xff]
    %v5557 = vld [vmem:[#allocation3 + $0x7a8] sm:$0xff]
    %v5558 = vld [vmem:[#allocation3 + $0x7b0] sm:$0xff]
    %v5559 = vld [vmem:[#allocation3 + $0x7b8] sm:$0xff]
    %v5560 = vld [vmem:[#allocation3 + $0x7c0] sm:$0xff]
    %v5561 = vld [vmem:[#allocation3 + $0x7c8] sm:$0xff]
    %v5562 = vld [vmem:[#allocation3 + $0x7d0] sm:$0xff]
    %v5563 = vld [vmem:[#allocation3 + $0x7d8] sm:$0xff]
    %v5564 = vld [vmem:[#allocation3 + $0x7e0] sm:$0xff]
    %v5565 = vld [vmem:[#allocation3 + $0x7e8] sm:$0xff]
    %v5566 = vld [vmem:[#allocation3 + $0x7f0] sm:$0xff]
    %v5567 = vld [vmem:[#allocation3 + $0x7f8] sm:$0xff]
    %v5568 = vld [vmem:[#allocation3 + $0x800] sm:$0xff]
    %v5569 = vld [vmem:[#allocation3 + $0x808] sm:$0xff]
    %v5570 = vld [vmem:[#allocation3 + $0x810] sm:$0xff]
    %v5571 = vld [vmem:[#allocation3 + $0x818] sm:$0xff]
    %v5572 = vld [vmem:[#allocation3 + $0x820] sm:$0xff]
    %v5573 = vld [vmem:[#allocation3 + $0x828] sm:$0xff]
    %v5574 = vld [vmem:[#allocation3 + $0x830] sm:$0xff]
    %v5575 = vld [vmem:[#allocation3 + $0x838] sm:$0xff]
    %v5576 = vld [vmem:[#allocation3 + $0x840] sm:$0xff]
    %v5577 = vld [vmem:[#allocation3 + $0x848] sm:$0xff]
    %v5578 = vld [vmem:[#allocation3 + $0x850] sm:$0xff]
    %v5579 = vld [vmem:[#allocation3 + $0x858] sm:$0xff]
    %v5580 = vld [vmem:[#allocation3 + $0x860] sm:$0xff]
    %v5581 = vld [vmem:[#allocation3 + $0x868] sm:$0xff]
    %v5582 = vld [vmem:[#allocation3 + $0x870] sm:$0xff]
    %v5583 = vld [vmem:[#allocation3 + $0x878] sm:$0xff]
    %v5584 = vld [vmem:[#allocation3 + $0x880] sm:$0xff]
    %v5585 = vld [vmem:[#allocation3 + $0x888] sm:$0xff]
    %v5586 = vld [vmem:[#allocation3 + $0x890] sm:$0xff]
    %v5587 = vld [vmem:[#allocation3 + $0x898] sm:$0xff]
    %v5588 = vld [vmem:[#allocation3 + $0x8a0] sm:$0xff]
    %v5589 = vld [vmem:[#allocation3 + $0x8a8] sm:$0xff]
    %v5590 = vld [vmem:[#allocation3 + $0x8b0] sm:$0xff]
    %v5591 = vld [vmem:[#allocation3 + $0x8b8] sm:$0xff]
    %v5592 = vld [vmem:[#allocation3 + $0x8c0] sm:$0xff]
    %v5593 = vld [vmem:[#allocation3 + $0x8c8] sm:$0xff]
    %v5594 = vld [vmem:[#allocation3 + $0x8d0] sm:$0xff]
    %v5595 = vld [vmem:[#allocation3 + $0x8d8] sm:$0xff]
    %v5596 = vld [vmem:[#allocation3 + $0x8e0] sm:$0xff]
    %v5597 = vld [vmem:[#allocation3 + $0x8e8] sm:$0xff]
    %v5598 = vld [vmem:[#allocation3 + $0x8f0] sm:$0xff]
    %v5599 = vld [vmem:[#allocation3 + $0x8f8] sm:$0xff]
    %v5600 = vld [vmem:[#allocation3 + $0x900] sm:$0xff]
    %v5601 = vld [vmem:[#allocation3 + $0x908] sm:$0xff]
    %v5602 = vld [vmem:[#allocation3 + $0x910] sm:$0xff]
    %v5603 = vld [vmem:[#allocation3 + $0x918] sm:$0xff]
    %v5604 = vld [vmem:[#allocation3 + $0x920] sm:$0xff]
    %v5605 = vld [vmem:[#allocation3 + $0x928] sm:$0xff]
    %v5606 = vld [vmem:[#allocation3 + $0x930] sm:$0xff]
    %v5607 = vld [vmem:[#allocation3 + $0x938] sm:$0xff]
    %v5608 = vld [vmem:[#allocation3 + $0x940] sm:$0xff]
    %v5609 = vld [vmem:[#allocation3 + $0x948] sm:$0xff]
    %v5610 = vld [vmem:[#allocation3 + $0x950] sm:$0xff]
    %v5611 = vld [vmem:[#allocation3 + $0x958] sm:$0xff]
    %v5612 = vld [vmem:[#allocation3 + $0x960] sm:$0xff]
    %v5613 = vld [vmem:[#allocation3 + $0x968] sm:$0xff]
    %v5614 = vld [vmem:[#allocation3 + $0x970] sm:$0xff]
    %v5615 = vld [vmem:[#allocation3 + $0x978] sm:$0xff]
    %v5616 = vld [vmem:[#allocation3 + $0x980] sm:$0xff]
    %v5617 = vld [vmem:[#allocation3 + $0x988] sm:$0xff]
    %v5618 = vld [vmem:[#allocation3 + $0x990] sm:$0xff]
    %v5619 = vld [vmem:[#allocation3 + $0x998] sm:$0xff]
    %v5620 = vld [vmem:[#allocation3 + $0x9a0] sm:$0xff]
    %v5621 = vld [vmem:[#allocation3 + $0x9a8] sm:$0xff]
    %v5622 = vld [vmem:[#allocation3 + $0x9b0] sm:$0xff]
    %v5623 = vld [vmem:[#allocation3 + $0x9b8] sm:$0xff]
    %v5624 = vld [vmem:[#allocation3 + $0x9c0] sm:$0xff]
    %v5625 = vld [vmem:[#allocation3 + $0x9c8] sm:$0xff]
    %v5626 = vld [vmem:[#allocation3 + $0x9d0] sm:$0xff]
    %v5627 = vld [vmem:[#allocation3 + $0x9d8] sm:$0xff]
    %v5628 = vld [vmem:[#allocation3 + $0x9e0] sm:$0xff]
    %v5629 = vld [vmem:[#allocation3 + $0x9e8] sm:$0xff]
    %v5630 = vld [vmem:[#allocation3 + $0x9f0] sm:$0xff]
    %v5631 = vld [vmem:[#allocation3 + $0x9f8] sm:$0xff]
    %v5632 = vld [vmem:[#allocation3 + $0xa00] sm:$0xff]
    %v5633 = vld [vmem:[#allocation3 + $0xa08] sm:$0xff]
    %v5634 = vld [vmem:[#allocation3 + $0xa10] sm:$0xff]
    %v5635 = vld [vmem:[#allocation3 + $0xa18] sm:$0xff]
    %v5636 = vld [vmem:[#allocation3 + $0xa20] sm:$0xff]
    %v5637 = vld [vmem:[#allocation3 + $0xa28] sm:$0xff]
    %v5638 = vld [vmem:[#allocation3 + $0xa30] sm:$0xff]
    %v5639 = vld [vmem:[#allocation3 + $0xa38] sm:$0xff]
    %v5640 = vld [vmem:[#allocation3 + $0xa40] sm:$0xff]
    %v5641 = vld [vmem:[#allocation3 + $0xa48] sm:$0xff]
    %v5642 = vld [vmem:[#allocation3 + $0xa50] sm:$0xff]
    %v5643 = vld [vmem:[#allocation3 + $0xa58] sm:$0xff]
    %v5644 = vld [vmem:[#allocation3 + $0xa60] sm:$0xff]
    %v5645 = vld [vmem:[#allocation3 + $0xa68] sm:$0xff]
    %v5646 = vld [vmem:[#allocation3 + $0xa70] sm:$0xff]
    %v5647 = vld [vmem:[#allocation3 + $0xa78] sm:$0xff]
    %v5648 = vld [vmem:[#allocation3 + $0xa80] sm:$0xff]
    %v5649 = vld [vmem:[#allocation3 + $0xa88] sm:$0xff]
    %v5650 = vld [vmem:[#allocation3 + $0xa90] sm:$0xff]
    %v5651 = vld [vmem:[#allocation3 + $0xa98] sm:$0xff]
    %v5652 = vld [vmem:[#allocation3 + $0xaa0] sm:$0xff]
    %v5653 = vld [vmem:[#allocation3 + $0xaa8] sm:$0xff]
    %v5654 = vld [vmem:[#allocation3 + $0xab0] sm:$0xff]
    %v5655 = vld [vmem:[#allocation3 + $0xab8] sm:$0xff]
    %v5656 = vld [vmem:[#allocation3 + $0xac0] sm:$0xff]
    %v5657 = vld [vmem:[#allocation3 + $0xac8] sm:$0xff]
    %v5658 = vld [vmem:[#allocation3 + $0xad0] sm:$0xff]
    %v5659 = vld [vmem:[#allocation3 + $0xad8] sm:$0xff]
    %v5660 = vld [vmem:[#allocation3 + $0xae0] sm:$0xf]
    %v5661 = vld [vmem:[#allocation3 + $0xae8] sm:$0xf]
    %v5662 = vld [vmem:[#allocation3 + $0xaf0] sm:$0xf]
    %v5663 = vld [vmem:[#allocation3 + $0xaf8] sm:$0xf]
    %5665 = vset.pattern.permute.xlu0 0
    %5666 = vperm.xlu0 %5665, %v2778
    %v5667 = vpop.permute.xlu0 %5666
    %5670 = vset.pattern.permute.xlu0 0
    %5671 = vperm.xlu0 %5670, %v2779
    %v5672 = vpop.permute.xlu0 %5671
    %vm5674 = vcmask 490496
    %v5676 = vsel %vm5674, %v5305, 0
    %v5679 = vsel %vm5674, %v5311, 0
    %v5682 = vsel %vm1120, %v5660, 0
    %v5685 = vsel %vm1120, %v5661, 0
    %v5688 = vsel %vm1120, %v5662, 0
    %v5691 = vsel %vm1120, %v5663, 0
    %5693 = vmatprep.subr.mxu0 %v5313
    %5694 = vmatpush1.msra.mxu0 %v5312
    %5695 = vmatprep.subr.mxu0 %v5317
    %5696 = vmatpush1.msra.mxu0 %v5316
    %5697 = vmatprep.subr.mxu0 %v5321
    %5698 = vmatpush1.msra.mxu0 %v5320
    %5699 = vmatprep.subr.mxu0 %v5325
    %5700 = vmatpush1.msra.mxu0 %v5324
    %5701 = vmatprep.subr.mxu0 %v5329
    %5702 = vmatpush1.msra.mxu0 %v5328
    %5703 = vmatprep.subr.mxu0 %v5333
    %5704 = vmatpush1.msra.mxu0 %v5332
    %5705 = vmatprep.subr.mxu0 %v5337
    %5706 = vmatpush1.msra.mxu0 %v5336
    %5707 = vmatprep.subr.mxu0 %v5341
    %5708 = vmatpush1.msra.mxu0 %v5340
    %5709 = vmatprep.subr.mxu0 %v5345
    %5710 = vmatpush1.msra.mxu0 %v5344
    %5711 = vmatprep.subr.mxu0 %v5349
    %5712 = vmatpush1.msra.mxu0 %v5348
    %5713 = vmatprep.subr.mxu0 %v5353
    %5714 = vmatpush1.msra.mxu0 %v5352
    %5715 = vmatprep.subr.mxu0 %v5357
    %5716 = vmatpush1.msra.mxu0 %v5356
    %5717 = vmatprep.subr.mxu0 %v5361
    %5718 = vmatpush1.msra.mxu0 %v5360
    %5719 = vmatprep.subr.mxu0 %v5365
    %5720 = vmatpush1.msra.mxu0 %v5364
    %5721 = vmatprep.subr.mxu0 %v5369
    %5722 = vmatpush1.msra.mxu0 %v5368
    %5723 = vmatprep.subr.mxu0 %v5373
    %5724 = vmatpush1.msra.mxu0 %v5372
    %5725 = vmatprep.subr.mxu0 %v5377
    %5726 = vmatpush1.msra.mxu0 %v5376
    %5727 = vmatprep.subr.mxu0 %v5381
    %5728 = vmatpush1.msra.mxu0 %v5380
    %5729 = vmatprep.subr.mxu0 %v5385
    %5730 = vmatpush1.msra.mxu0 %v5384
    %5731 = vmatprep.subr.mxu0 %v5389
    %5732 = vmatpush1.msra.mxu0 %v5388
    %5733 = vmatprep.subr.mxu0 %v5393
    %5734 = vmatpush1.msra.mxu0 %v5392
    %5735 = vmatprep.subr.mxu0 %v5397
    %5736 = vmatpush1.msra.mxu0 %v5396
    %5737 = vmatprep.subr.mxu0 %v5401
    %5738 = vmatpush1.msra.mxu0 %v5400
    %5739 = vmatprep.subr.mxu0 %v5405
    %5740 = vmatpush1.msra.mxu0 %v5404
    %5741 = vmatprep.subr.mxu0 %v5409
    %5742 = vmatpush1.msra.mxu0 %v5408
    %5743 = vmatprep.subr.mxu0 %v5413
    %5744 = vmatpush1.msra.mxu0 %v5412
    %5745 = vmatprep.subr.mxu0 %v5417
    %5746 = vmatpush1.msra.mxu0 %v5416
    %5747 = vmatprep.subr.mxu0 %v5421
    %5748 = vmatpush1.msra.mxu0 %v5420
    %5749 = vmatprep.subr.mxu0 %v5425
    %5750 = vmatpush1.msra.mxu0 %v5424
    %5751 = vmatprep.subr.mxu0 %v5429
    %5752 = vmatpush1.msra.mxu0 %v5428
    %5753 = vmatprep.subr.mxu0 %v5433
    %5754 = vmatpush1.msra.mxu0 %v5432
    %5755 = vmatprep.subr.mxu0 %v5437
    %5756 = vmatpush1.msra.mxu0 %v5436
    %5757 = vmatprep.mubr.f32.mxu0 %v5301
    %5758 = vmatmul.mubr.f32.gmra.mrb[0].mxu0 %v5300
    %v5759 = vpop.f32.mrb[0].mxu0
    %v5760 = vadd.f32 %v5667, %v5759
    %v5761 = vpop.f32.mrb[0].mxu0
    %v5762 = vadd.f32 %v5667, %v5761
    %5763 = vmatprep.mubr.f32.mxu0 %v5307
    %5764 = vmatmul.mubr.f32.gmra.mrb[0].mxu0 %v5306
    %v5765 = vpop.f32.mrb[0].mxu0
    %v5766 = vadd.f32 %v5672, %v5765
    %v5767 = vpop.f32.mrb[0].mxu0
    %v5768 = vadd.f32 %v5672, %v5767
    %5769 = vdwg.mxu0
    %5770 = vmatprep.subr.mxu0 %v5441
    %5771 = vmatpush1.msra.mxu0 %v5440
    %5772 = vmatprep.subr.mxu0 %v5445
    %5773 = vmatpush1.msra.mxu0 %v5444
    %5774 = vmatprep.subr.mxu0 %v5449
    %5775 = vmatpush1.msra.mxu0 %v5448
    %5776 = vmatprep.subr.mxu0 %v5453
    %5777 = vmatpush1.msra.mxu0 %v5452
    %5778 = vmatprep.subr.mxu0 %v5457
    %5779 = vmatpush1.msra.mxu0 %v5456
    %5780 = vmatprep.subr.mxu0 %v5461
    %5781 = vmatpush1.msra.mxu0 %v5460
    %5782 = vmatprep.subr.mxu0 %v5465
    %5783 = vmatpush1.msra.mxu0 %v5464
    %5784 = vmatprep.subr.mxu0 %v5469
    %5785 = vmatpush1.msra.mxu0 %v5468
    %5786 = vmatprep.subr.mxu0 %v5473
    %5787 = vmatpush1.msra.mxu0 %v5472
    %5788 = vmatprep.subr.mxu0 %v5477
    %5789 = vmatpush1.msra.mxu0 %v5476
    %5790 = vmatprep.subr.mxu0 %v5481
    %5791 = vmatpush1.msra.mxu0 %v5480
    %5792 = vmatprep.subr.mxu0 %v5485
    %5793 = vmatpush1.msra.mxu0 %v5484
    %5794 = vmatprep.subr.mxu0 %v5489
    %5795 = vmatpush1.msra.mxu0 %v5488
    %5796 = vmatprep.subr.mxu0 %v5493
    %5797 = vmatpush1.msra.mxu0 %v5492
    %5798 = vmatprep.subr.mxu0 %v5497
    %5799 = vmatpush1.msra.mxu0 %v5496
    %5800 = vmatprep.subr.mxu0 %v5501
    %5801 = vmatpush1.msra.mxu0 %v5500
    %5802 = vmatprep.subr.mxu0 %v5505
    %5803 = vmatpush1.msra.mxu0 %v5504
    %5804 = vmatprep.subr.mxu0 %v5509
    %5805 = vmatpush1.msra.mxu0 %v5508
    %5806 = vmatprep.subr.mxu0 %v5513
    %5807 = vmatpush1.msra.mxu0 %v5512
    %5808 = vmatprep.subr.mxu0 %v5517
    %5809 = vmatpush1.msra.mxu0 %v5516
    %5810 = vmatprep.subr.mxu0 %v5521
    %5811 = vmatpush1.msra.mxu0 %v5520
    %5812 = vmatprep.subr.mxu0 %v5525
    %5813 = vmatpush1.msra.mxu0 %v5524
    %5814 = vmatprep.subr.mxu0 %v5529
    %5815 = vmatpush1.msra.mxu0 %v5528
    %5816 = vmatprep.subr.mxu0 %v5533
    %5817 = vmatpush1.msra.mxu0 %v5532
    %5818 = vmatprep.subr.mxu0 %v5537
    %5819 = vmatpush1.msra.mxu0 %v5536
    %5820 = vmatprep.subr.mxu0 %v5541
    %5821 = vmatpush1.msra.mxu0 %v5540
    %5822 = vmatprep.subr.mxu0 %v5545
    %5823 = vmatpush1.msra.mxu0 %v5544
    %5824 = vmatprep.subr.mxu0 %v5549
    %5825 = vmatpush1.msra.mxu0 %v5548
    %5826 = vmatprep.subr.mxu0 %v5553
    %5827 = vmatpush1.msra.mxu0 %v5552
    %5828 = vmatprep.subr.mxu0 %v5557
    %5829 = vmatpush1.msra.mxu0 %v5556
    %5830 = vmatprep.subr.mxu0 %v5561
    %5831 = vmatpush1.msra.mxu0 %v5560
    %5832 = vmatprep.subr.mxu0 %v5565
    %5833 = vmatpush1.msra.mxu0 %v5564
    %5834 = vmatprep.mubr.f32.mxu0 %v5303
    %5835 = vmatmul.mubr.f32.gmra.mrb[0].mxu0 %v5302
    %v5836 = vpop.f32.mrb[0].mxu0
    %v5837 = vadd.f32 %v5760, %v5836
    %v5838 = vpop.f32.mrb[0].mxu0
    %v5839 = vadd.f32 %v5762, %v5838
    %5840 = vmatprep.mubr.f32.mxu0 %v5309
    %5841 = vmatmul.mubr.f32.gmra.mrb[0].mxu0 %v5308
    %v5842 = vpop.f32.mrb[0].mxu0
    %v5843 = vadd.f32 %v5766, %v5842
    %v5844 = vpop.f32.mrb[0].mxu0
    %v5845 = vadd.f32 %v5768, %v5844
    %5846 = vdwg.mxu0
    %5847 = vmatprep.subr.mxu0 %v5569
    %5848 = vmatpush1.msra.mxu0 %v5568
    %5849 = vmatprep.subr.mxu0 %v5573
    %5850 = vmatpush1.msra.mxu0 %v5572
    %5851 = vmatprep.subr.mxu0 %v5577
    %5852 = vmatpush1.msra.mxu0 %v5576
    %5853 = vmatprep.subr.mxu0 %v5581
    %5854 = vmatpush1.msra.mxu0 %v5580
    %5855 = vmatprep.subr.mxu0 %v5585
    %5856 = vmatpush1.msra.mxu0 %v5584
    %5857 = vmatprep.subr.mxu0 %v5589
    %5858 = vmatpush1.msra.mxu0 %v5588
    %5859 = vmatprep.subr.mxu0 %v5593
    %5860 = vmatpush1.msra.mxu0 %v5592
    %5861 = vmatprep.subr.mxu0 %v5597
    %5862 = vmatpush1.msra.mxu0 %v5596
    %5863 = vmatprep.subr.mxu0 %v5601
    %5864 = vmatpush1.msra.mxu0 %v5600
    %5865 = vmatprep.subr.mxu0 %v5605
    %5866 = vmatpush1.msra.mxu0 %v5604
    %5867 = vmatprep.subr.mxu0 %v5609
    %5868 = vmatpush1.msra.mxu0 %v5608
    %5869 = vmatprep.subr.mxu0 %v5613
    %5870 = vmatpush1.msra.mxu0 %v5612
    %5871 = vmatprep.subr.mxu0 %v5617
    %5872 = vmatpush1.msra.mxu0 %v5616
    %5873 = vmatprep.subr.mxu0 %v5621
    %5874 = vmatpush1.msra.mxu0 %v5620
    %5875 = vmatprep.subr.mxu0 %v5625
    %5876 = vmatpush1.msra.mxu0 %v5624
    %5877 = vmatprep.subr.mxu0 %v5629
    %5878 = vmatpush1.msra.mxu0 %v5628
    %5879 = vmatprep.subr.mxu0 %v5633
    %5880 = vmatpush1.msra.mxu0 %v5632
    %5881 = vmatprep.subr.mxu0 %v5637
    %5882 = vmatpush1.msra.mxu0 %v5636
    %5883 = vmatprep.subr.mxu0 %v5641
    %5884 = vmatpush1.msra.mxu0 %v5640
    %5885 = vmatprep.subr.mxu0 %v5645
    %5886 = vmatpush1.msra.mxu0 %v5644
    %5887 = vmatprep.subr.mxu0 %v5649
    %5888 = vmatpush1.msra.mxu0 %v5648
    %5889 = vmatprep.subr.mxu0 %v5653
    %5890 = vmatpush1.msra.mxu0 %v5652
    %5891 = vmatprep.subr.mxu0 %v5657
    %5892 = vmatpush1.msra.mxu0 %v5656
    %5893 = vmatprep.subr.mxu0 %v5685
    %5894 = vmatpush1.msra.mxu0 %v5682
    %5895 = vmatprep.subr.mxu0 0.0
    %5896 = vmatpush1.msra.mxu0 0.0
    %5897 = vmatprep.subr.mxu0 0.0
    %5898 = vmatpush1.msra.mxu0 0.0
    %5899 = vmatprep.subr.mxu0 0.0
    %5900 = vmatpush1.msra.mxu0 0.0
    %5901 = vmatprep.subr.mxu0 0.0
    %5902 = vmatpush1.msra.mxu0 0.0
    %5903 = vmatprep.subr.mxu0 0.0
    %5904 = vmatpush1.msra.mxu0 0.0
    %5905 = vmatprep.subr.mxu0 0.0
    %5906 = vmatpush1.msra.mxu0 0.0
    %5907 = vmatprep.subr.mxu0 0.0
    %5908 = vmatpush1.msra.mxu0 0.0
    %5909 = vmatprep.subr.mxu0 0.0
    %5910 = vmatpush1.msra.mxu0 0.0
    %5911 = vmatprep.mubr.f32.mxu0 %v5676
    %5912 = vmatmul.mubr.f32.gmra.mrb[0].mxu0 %v5304
    %v5913 = vpop.f32.mrb[0].mxu0
    %v5914 = vadd.f32 %v5837, %v5913
    %v5915 = vpop.f32.mrb[0].mxu0
    %v5916 = vadd.f32 %v5839, %v5915
    %5917 = vmatprep.mubr.f32.mxu0 %v5679
    %5918 = vmatmul.mubr.f32.gmra.mrb[0].mxu0 %v5310
    %v5919 = vpop.f32.mrb[0].mxu0
    %v5920 = vadd.f32 %v5843, %v5919
    %v5921 = vpop.f32.mrb[0].mxu0
    %v5922 = vadd.f32 %v5845, %v5921
    %5923 = vdwg.mxu0
    %5924 = vmatprep.subr.mxu0 %v5315
    %5925 = vmatpush1.msra.mxu0 %v5314
    %5926 = vmatprep.subr.mxu0 %v5319
    %5927 = vmatpush1.msra.mxu0 %v5318
    %5928 = vmatprep.subr.mxu0 %v5323
    %5929 = vmatpush1.msra.mxu0 %v5322
    %5930 = vmatprep.subr.mxu0 %v5327
    %5931 = vmatpush1.msra.mxu0 %v5326
    %5932 = vmatprep.subr.mxu0 %v5331
    %5933 = vmatpush1.msra.mxu0 %v5330
    %5934 = vmatprep.subr.mxu0 %v5335
    %5935 = vmatpush1.msra.mxu0 %v5334
    %5936 = vmatprep.subr.mxu0 %v5339
    %5937 = vmatpush1.msra.mxu0 %v5338
    %5938 = vmatprep.subr.mxu0 %v5343
    %5939 = vmatpush1.msra.mxu0 %v5342
    %5940 = vmatprep.subr.mxu0 %v5347
    %5941 = vmatpush1.msra.mxu0 %v5346
    %5942 = vmatprep.subr.mxu0 %v5351
    %5943 = vmatpush1.msra.mxu0 %v5350
    %5944 = vmatprep.subr.mxu0 %v5355
    %5945 = vmatpush1.msra.mxu0 %v5354
    %5946 = vmatprep.subr.mxu0 %v5359
    %5947 = vmatpush1.msra.mxu0 %v5358
    %5948 = vmatprep.subr.mxu0 %v5363
    %5949 = vmatpush1.msra.mxu0 %v5362
    %5950 = vmatprep.subr.mxu0 %v5367
    %5951 = vmatpush1.msra.mxu0 %v5366
    %5952 = vmatprep.subr.mxu0 %v5371
    %5953 = vmatpush1.msra.mxu0 %v5370
    %5954 = vmatprep.subr.mxu0 %v5375
    %5955 = vmatpush1.msra.mxu0 %v5374
    %5956 = vmatprep.subr.mxu0 %v5379
    %5957 = vmatpush1.msra.mxu0 %v5378
    %5958 = vmatprep.subr.mxu0 %v5383
    %5959 = vmatpush1.msra.mxu0 %v5382
    %5960 = vmatprep.subr.mxu0 %v5387
    %5961 = vmatpush1.msra.mxu0 %v5386
    %5962 = vmatprep.subr.mxu0 %v5391
    %5963 = vmatpush1.msra.mxu0 %v5390
    %5964 = vmatprep.subr.mxu0 %v5395
    %5965 = vmatpush1.msra.mxu0 %v5394
    %5966 = vmatprep.subr.mxu0 %v5399
    %5967 = vmatpush1.msra.mxu0 %v5398
    %5968 = vmatprep.subr.mxu0 %v5403
    %5969 = vmatpush1.msra.mxu0 %v5402
    %5970 = vmatprep.subr.mxu0 %v5407
    %5971 = vmatpush1.msra.mxu0 %v5406
    %5972 = vmatprep.subr.mxu0 %v5411
    %5973 = vmatpush1.msra.mxu0 %v5410
    %5974 = vmatprep.subr.mxu0 %v5415
    %5975 = vmatpush1.msra.mxu0 %v5414
    %5976 = vmatprep.subr.mxu0 %v5419
    %5977 = vmatpush1.msra.mxu0 %v5418
    %5978 = vmatprep.subr.mxu0 %v5423
    %5979 = vmatpush1.msra.mxu0 %v5422
    %5980 = vmatprep.subr.mxu0 %v5427
    %5981 = vmatpush1.msra.mxu0 %v5426
    %5982 = vmatprep.subr.mxu0 %v5431
    %5983 = vmatpush1.msra.mxu0 %v5430
    %5984 = vmatprep.subr.mxu0 %v5435
    %5985 = vmatpush1.msra.mxu0 %v5434
    %5986 = vmatprep.subr.mxu0 %v5439
    %5987 = vmatpush1.msra.mxu0 %v5438
    %5988 = vmatprep.mubr.f32.mxu0 %v5301
    %5989 = vmatmul.mubr.f32.gmra.mrb[0].mxu0 %v5300
    %v5990 = vpop.f32.mrb[0].mxu0
    %v5991 = vadd.f32 %v5667, %v5990
    %v5992 = vpop.f32.mrb[0].mxu0
    %v5993 = vadd.f32 %v5667, %v5992
    %5994 = vmatprep.mubr.f32.mxu0 %v5307
    %5995 = vmatmul.mubr.f32.gmra.mrb[0].mxu0 %v5306
    %v5996 = vpop.f32.mrb[0].mxu0
    %v5997 = vadd.f32 %v5672, %v5996
    %v5998 = vpop.f32.mrb[0].mxu0
    %v5999 = vadd.f32 %v5672, %v5998
    %6000 = vdwg.mxu0
    %6001 = vmatprep.subr.mxu0 %v5443
    %6002 = vmatpush1.msra.mxu0 %v5442
    %6003 = vmatprep.subr.mxu0 %v5447
    %6004 = vmatpush1.msra.mxu0 %v5446
    %6005 = vmatprep.subr.mxu0 %v5451
    %6006 = vmatpush1.msra.mxu0 %v5450
    %6007 = vmatprep.subr.mxu0 %v5455
    %6008 = vmatpush1.msra.mxu0 %v5454
    %6009 = vmatprep.subr.mxu0 %v5459
    %6010 = vmatpush1.msra.mxu0 %v5458
    %6011 = vmatprep.subr.mxu0 %v5463
    %6012 = vmatpush1.msra.mxu0 %v5462
    %6013 = vmatprep.subr.mxu0 %v5467
    %6014 = vmatpush1.msra.mxu0 %v5466
    %6015 = vmatprep.subr.mxu0 %v5471
    %6016 = vmatpush1.msra.mxu0 %v5470
    %6017 = vmatprep.subr.mxu0 %v5475
    %6018 = vmatpush1.msra.mxu0 %v5474
    %6019 = vmatprep.subr.mxu0 %v5479
    %6020 = vmatpush1.msra.mxu0 %v5478
    %6021 = vmatprep.subr.mxu0 %v5483
    %6022 = vmatpush1.msra.mxu0 %v5482
    %6023 = vmatprep.subr.mxu0 %v5487
    %6024 = vmatpush1.msra.mxu0 %v5486
    %6025 = vmatprep.subr.mxu0 %v5491
    %6026 = vmatpush1.msra.mxu0 %v5490
    %6027 = vmatprep.subr.mxu0 %v5495
    %6028 = vmatpush1.msra.mxu0 %v5494
    %6029 = vmatprep.subr.mxu0 %v5499
    %6030 = vmatpush1.msra.mxu0 %v5498
    %6031 = vmatprep.subr.mxu0 %v5503
    %6032 = vmatpush1.msra.mxu0 %v5502
    %6033 = vmatprep.subr.mxu0 %v5507
    %6034 = vmatpush1.msra.mxu0 %v5506
    %6035 = vmatprep.subr.mxu0 %v5511
    %6036 = vmatpush1.msra.mxu0 %v5510
    %6037 = vmatprep.subr.mxu0 %v5515
    %6038 = vmatpush1.msra.mxu0 %v5514
    %6039 = vmatprep.subr.mxu0 %v5519
    %6040 = vmatpush1.msra.mxu0 %v5518
    %6041 = vmatprep.subr.mxu0 %v5523
    %6042 = vmatpush1.msra.mxu0 %v5522
    %6043 = vmatprep.subr.mxu0 %v5527
    %6044 = vmatpush1.msra.mxu0 %v5526
    %6045 = vmatprep.subr.mxu0 %v5531
    %6046 = vmatpush1.msra.mxu0 %v5530
    %6047 = vmatprep.subr.mxu0 %v5535
    %6048 = vmatpush1.msra.mxu0 %v5534
    %6049 = vmatprep.subr.mxu0 %v5539
    %6050 = vmatpush1.msra.mxu0 %v5538
    %6051 = vmatprep.subr.mxu0 %v5543
    %6052 = vmatpush1.msra.mxu0 %v5542
    %6053 = vmatprep.subr.mxu0 %v5547
    %6054 = vmatpush1.msra.mxu0 %v5546
    %6055 = vmatprep.subr.mxu0 %v5551
    %6056 = vmatpush1.msra.mxu0 %v5550
    %6057 = vmatprep.subr.mxu0 %v5555
    %6058 = vmatpush1.msra.mxu0 %v5554
    %6059 = vmatprep.subr.mxu0 %v5559
    %6060 = vmatpush1.msra.mxu0 %v5558
    %6061 = vmatprep.subr.mxu0 %v5563
    %6062 = vmatpush1.msra.mxu0 %v5562
    %6063 = vmatprep.subr.mxu0 %v5567
    %6064 = vmatpush1.msra.mxu0 %v5566
    %6065 = vmatprep.mubr.f32.mxu0 %v5303
    %6066 = vmatmul.mubr.f32.gmra.mrb[0].mxu0 %v5302
    %v6067 = vpop.f32.mrb[0].mxu0
    %v6068 = vadd.f32 %v5991, %v6067
    %v6069 = vpop.f32.mrb[0].mxu0
    %v6070 = vadd.f32 %v5993, %v6069
    %6071 = vmatprep.mubr.f32.mxu0 %v5309
    %6072 = vmatmul.mubr.f32.gmra.mrb[0].mxu0 %v5308
    %v6073 = vpop.f32.mrb[0].mxu0
    %v6074 = vadd.f32 %v5997, %v6073
    %v6075 = vpop.f32.mrb[0].mxu0
    %v6076 = vadd.f32 %v5999, %v6075
    %6077 = vdwg.mxu0
    %6078 = vmatprep.subr.mxu0 %v5571
    %6079 = vmatpush1.msra.mxu0 %v5570
    %6080 = vmatprep.subr.mxu0 %v5575
    %6081 = vmatpush1.msra.mxu0 %v5574
    %6082 = vmatprep.subr.mxu0 %v5579
    %6083 = vmatpush1.msra.mxu0 %v5578
    %6084 = vmatprep.subr.mxu0 %v5583
    %6085 = vmatpush1.msra.mxu0 %v5582
    %6086 = vmatprep.subr.mxu0 %v5587
    %6087 = vmatpush1.msra.mxu0 %v5586
    %6088 = vmatprep.subr.mxu0 %v5591
    %6089 = vmatpush1.msra.mxu0 %v5590
    %6090 = vmatprep.subr.mxu0 %v5595
    %6091 = vmatpush1.msra.mxu0 %v5594
    %6092 = vmatprep.subr.mxu0 %v5599
    %6093 = vmatpush1.msra.mxu0 %v5598
    %6094 = vmatprep.subr.mxu0 %v5603
    %6095 = vmatpush1.msra.mxu0 %v5602
    %6096 = vmatprep.subr.mxu0 %v5607
    %6097 = vmatpush1.msra.mxu0 %v5606
    %6098 = vmatprep.subr.mxu0 %v5611
    %6099 = vmatpush1.msra.mxu0 %v5610
    %6100 = vmatprep.subr.mxu0 %v5615
    %6101 = vmatpush1.msra.mxu0 %v5614
    %6102 = vmatprep.subr.mxu0 %v5619
    %6103 = vmatpush1.msra.mxu0 %v5618
    %6104 = vmatprep.subr.mxu0 %v5623
    %6105 = vmatpush1.msra.mxu0 %v5622
    %6106 = vmatprep.subr.mxu0 %v5627
    %6107 = vmatpush1.msra.mxu0 %v5626
    %6108 = vmatprep.subr.mxu0 %v5631
    %6109 = vmatpush1.msra.mxu0 %v5630
    %6110 = vmatprep.subr.mxu0 %v5635
    %6111 = vmatpush1.msra.mxu0 %v5634
    %6112 = vmatprep.subr.mxu0 %v5639
    %6113 = vmatpush1.msra.mxu0 %v5638
    %6114 = vmatprep.subr.mxu0 %v5643
    %6115 = vmatpush1.msra.mxu0 %v5642
    %6116 = vmatprep.subr.mxu0 %v5647
    %6117 = vmatpush1.msra.mxu0 %v5646
    %6118 = vmatprep.subr.mxu0 %v5651
    %6119 = vmatpush1.msra.mxu0 %v5650
    %6120 = vmatprep.subr.mxu0 %v5655
    %6121 = vmatpush1.msra.mxu0 %v5654
    %6122 = vmatprep.subr.mxu0 %v5659
    %6123 = vmatpush1.msra.mxu0 %v5658
    %6124 = vmatprep.subr.mxu0 %v5691
    %6125 = vmatpush1.msra.mxu0 %v5688
    %6126 = vmatprep.subr.mxu0 0.0
    %6127 = vmatpush1.msra.mxu0 0.0
    %6128 = vmatprep.subr.mxu0 0.0
    %6129 = vmatpush1.msra.mxu0 0.0
    %6130 = vmatprep.subr.mxu0 0.0
    %6131 = vmatpush1.msra.mxu0 0.0
    %6132 = vmatprep.subr.mxu0 0.0
    %6133 = vmatpush1.msra.mxu0 0.0
    %6134 = vmatprep.subr.mxu0 0.0
    %6135 = vmatpush1.msra.mxu0 0.0
    %6136 = vmatprep.subr.mxu0 0.0
    %6137 = vmatpush1.msra.mxu0 0.0
    %6138 = vmatprep.subr.mxu0 0.0
    %6139 = vmatpush1.msra.mxu0 0.0
    %6140 = vmatprep.subr.mxu0 0.0
    %6141 = vmatpush1.msra.mxu0 0.0
    %6142 = vmatprep.mubr.f32.mxu0 %v5676
    %6143 = vmatmul.mubr.f32.gmra.mrb[0].mxu0 %v5304
    %v6144 = vpop.f32.mrb[0].mxu0
    %v6145 = vadd.f32 %v6068, %v6144
    %v6146 = vpop.f32.mrb[0].mxu0
    %v6147 = vadd.f32 %v6070, %v6146
    %6148 = vmatprep.mubr.f32.mxu0 %v5679
    %6149 = vmatmul.mubr.f32.gmra.mrb[0].mxu0 %v5310
    %v6150 = vpop.f32.mrb[0].mxu0
    %v6151 = vadd.f32 %v6074, %v6150
    %v6152 = vpop.f32.mrb[0].mxu0
    %v6153 = vadd.f32 %v6076, %v6152
    %6154 = vdwg.mxu0
    %v6163 = vrot.slane %v5914, 4
    %v6164 = vrot.slane %v5916, 4
    %v6165 = vrot.slane %v6145, 4
    %v6166 = vrot.slane %v6147, 4
    %v6167 = vrot.slane %v5920, 4
    %v6168 = vsel %vm1120, %v6163, %v6167
    %v6169 = vrot.slane %v5922, 4
    %v6170 = vsel %vm1120, %v6164, %v6169
    %v6171 = vrot.slane %v6151, 4
    %v6172 = vsel %vm1120, %v6165, %v6171
    %v6173 = vrot.slane %v6153, 4
    %v6174 = vsel %vm1120, %v6166, %v6173
    %6183 = vst [vmem:[#allocation2 + $0x60] sm:$0xf0] %v6163
    %6184 = vst [vmem:[#allocation2 + $0x68] sm:$0xf0] %v6164
    %6185 = vst [vmem:[#allocation2 + $0x70] sm:$0xf0] %v6165
    %6186 = vst [vmem:[#allocation2 + $0x78] sm:$0xf0] %v6166
    %6187 = vst [vmem:[#allocation2 + $0x80] sm:$0xff] %v6168
    %6188 = vst [vmem:[#allocation2 + $0x88] sm:$0xff] %v6170
    %6189 = vst [vmem:[#allocation2 + $0x90] sm:$0xff] %v6172
    %6190 = vst [vmem:[#allocation2 + $0x98] sm:$0xff] %v6174
    %v6191 = vld [vmem:[%s2 + $0x70] sm:$0xff]
    %v6192 = vld [vmem:[%s2 + $0x78] sm:$0xff]
    %v6193 = vld [vmem:[%s2 + $0x80] sm:$0xff]
    %v6194 = vld [vmem:[%s2 + $0x88] sm:$0xff]
    %v6195 = vld [vmem:[%s2 + $0x90] sm:$0xff]
    %v6196 = vld [vmem:[%s2 + $0x98] sm:$0xff]
    %v6197 = vld [vmem:[%s2 + $0xa0] sm:$0xff]
    %v6198 = vld [vmem:[%s2 + $0xa8] sm:$0xff]
    %v6199 = vld [vmem:[%s2 + $0xb0] sm:$0xff]
    %v6200 = vld [vmem:[%s2 + $0xb8] sm:$0xff]
    %v6201 = vld [vmem:[%s2 + $0xf0] sm:$0xff]
    %v6202 = vld [vmem:[#allocation2] sm:$0xff]
    %v6203 = vld [vmem:[#allocation2 + $0x8] sm:$0xff]
    %v6204 = vld [vmem:[#allocation2 + $0x10] sm:$0xff]
    %v6205 = vld [vmem:[#allocation2 + $0x18] sm:$0xff]
    %v6206 = vld [vmem:[#allocation2 + $0x20] sm:$0xff]
    %v6207 = vld [vmem:[#allocation2 + $0x28] sm:$0xff]
    %v6208 = vld [vmem:[#allocation2 + $0x30] sm:$0xff]
    %v6209 = vld [vmem:[#allocation2 + $0x38] sm:$0xff]
    %v6210 = vld [vmem:[#allocation2 + $0x40] sm:$0xff]
    %v6211 = vld [vmem:[#allocation2 + $0x48] sm:$0xff]
    %v6212 = vld [vmem:[#allocation2 + $0x50] sm:$0xff]
    %v6213 = vld [vmem:[#allocation2 + $0x58] sm:$0xff]
    %v6214 = vld [vmem:[#allocation2 + $0x60] sm:$0xff]
    %v6215 = vld [vmem:[#allocation2 + $0x68] sm:$0xff]
    %v6216 = vld [vmem:[#allocation2 + $0x70] sm:$0xff]
    %v6217 = vld [vmem:[#allocation2 + $0x78] sm:$0xff]
    %v6218 = vld [vmem:[#allocation2 + $0x80] sm:$0xff]
    %v6219 = vld [vmem:[#allocation2 + $0x88] sm:$0xff]
    %v6220 = vld [vmem:[#allocation2 + $0x90] sm:$0xff]
    %v6221 = vld [vmem:[#allocation2 + $0x98] sm:$0xff]
    %6223 = vset.pattern.permute.xlu0 0
    %6224 = vperm.xlu0 %6223, %v6191
    %v6225 = vpop.permute.xlu0 %6224
    %6228 = vset.pattern.permute.xlu0 0
    %6229 = vperm.xlu0 %6228, %v6192
    %v6230 = vpop.permute.xlu0 %6229
    %6233 = vset.pattern.permute.xlu0 0
    %6234 = vperm.xlu0 %6233, %v6193
    %v6235 = vpop.permute.xlu0 %6234
    %6238 = vset.pattern.permute.xlu0 0
    %6239 = vperm.xlu0 %6238, %v6194
    %v6240 = vpop.permute.xlu0 %6239
    %6243 = vset.pattern.permute.xlu0 0
    %6244 = vperm.xlu0 %6243, %v6195
    %v6245 = vpop.permute.xlu0 %6244
    %v6247 = vmul.f32 %v6202, %v6225
    %v6248 = vmul.f32 %v6203, %v6225
    %v6249 = vmul.f32 %v6204, %v6225
    %v6250 = vmul.f32 %v6205, %v6225
    %v6251 = vmul.f32 %v6206, %v6230
    %v6252 = vmul.f32 %v6207, %v6230
    %v6253 = vmul.f32 %v6208, %v6230
    %v6254 = vmul.f32 %v6209, %v6230
    %v6255 = vmul.f32 %v6210, %v6235
    %v6256 = vmul.f32 %v6211, %v6235
    %v6257 = vmul.f32 %v6212, %v6235
    %v6258 = vmul.f32 %v6213, %v6235
    %v6259 = vmul.f32 %v6214, %v6240
    %v6260 = vmul.f32 %v6215, %v6240
    %v6261 = vmul.f32 %v6216, %v6240
    %v6262 = vmul.f32 %v6217, %v6240
    %v6263 = vmul.f32 %v6218, %v6245
    %v6264 = vmul.f32 %v6219, %v6245
    %v6265 = vmul.f32 %v6220, %v6245
    %v6266 = vmul.f32 %v6221, %v6245
    %6268 = vset.pattern.permute.xlu0 0
    %6269 = vperm.xlu0 %6268, %v6196
    %v6270 = vpop.permute.xlu0 %6269
    %6273 = vset.pattern.permute.xlu0 0
    %6274 = vperm.xlu0 %6273, %v6197
    %v6275 = vpop.permute.xlu0 %6274
    %6278 = vset.pattern.permute.xlu0 0
    %6279 = vperm.xlu0 %6278, %v6198
    %v6280 = vpop.permute.xlu0 %6279
    %6283 = vset.pattern.permute.xlu0 0
    %6284 = vperm.xlu0 %6283, %v6199
    %v6285 = vpop.permute.xlu0 %6284
    %6288 = vset.pattern.permute.xlu0 0
    %6289 = vperm.xlu0 %6288, %v6200
    %v6290 = vpop.permute.xlu0 %6289
    %v6292 = vadd.f32 %v6247, %v6270
    %v6293 = vadd.f32 %v6248, %v6270
    %v6294 = vadd.f32 %v6249, %v6270
    %v6295 = vadd.f32 %v6250, %v6270
    %v6296 = vadd.f32 %v6251, %v6275
    %v6297 = vadd.f32 %v6252, %v6275
    %v6298 = vadd.f32 %v6253, %v6275
    %v6299 = vadd.f32 %v6254, %v6275
    %v6300 = vadd.f32 %v6255, %v6280
    %v6301 = vadd.f32 %v6256, %v6280
    %v6302 = vadd.f32 %v6257, %v6280
    %v6303 = vadd.f32 %v6258, %v6280
    %v6304 = vadd.f32 %v6259, %v6285
    %v6305 = vadd.f32 %v6260, %v6285
    %v6306 = vadd.f32 %v6261, %v6285
    %v6307 = vadd.f32 %v6262, %v6285
    %v6308 = vadd.f32 %v6263, %v6290
    %v6309 = vadd.f32 %v6264, %v6290
    %v6310 = vadd.f32 %v6265, %v6290
    %v6311 = vadd.f32 %v6266, %v6290
    %v6312 = vmax.f32 %v6292, 0.0
    %v6313 = vmax.f32 %v6293, 0.0
    %v6314 = vmax.f32 %v6294, 0.0
    %v6315 = vmax.f32 %v6295, 0.0
    %v6316 = vmax.f32 %v6296, 0.0
    %v6317 = vmax.f32 %v6297, 0.0
    %v6318 = vmax.f32 %v6298, 0.0
    %v6319 = vmax.f32 %v6299, 0.0
    %v6320 = vmax.f32 %v6300, 0.0
    %v6321 = vmax.f32 %v6301, 0.0
    %v6322 = vmax.f32 %v6302, 0.0
    %v6323 = vmax.f32 %v6303, 0.0
    %v6324 = vmax.f32 %v6304, 0.0
    %v6325 = vmax.f32 %v6305, 0.0
    %v6326 = vmax.f32 %v6306, 0.0
    %v6327 = vmax.f32 %v6307, 0.0
    %v6328 = vmax.f32 %v6308, 0.0
    %v6329 = vmax.f32 %v6309, 0.0
    %v6330 = vmax.f32 %v6310, 0.0
    %v6331 = vmax.f32 %v6311, 0.0
    %v6332 = vld [vmem:[%s1 + $0x58] sm:$0xff]
    %6334 = vset.pattern.permute.xlu0 0
    %6335 = vperm.xlu0 %6334, %v6201
    %v6336 = vpop.permute.xlu0 %6335
    %vm6338 = vcmask 326656
    %v6340 = vsel %vm6338, %v6332, 0
    %6342 = vmatprep.subr.mxu0 %v6313
    %6343 = vmatpush1.msra.mxu0 %v6312
    %6344 = vmatprep.subr.mxu0 %v6317
    %6345 = vmatpush1.msra.mxu0 %v6316
    %6346 = vmatprep.subr.mxu0 %v6321
    %6347 = vmatpush1.msra.mxu0 %v6320
    %6348 = vmatprep.subr.mxu0 %v6325
    %6349 = vmatpush1.msra.mxu0 %v6324
    %6350 = vmatprep.subr.mxu0 %v6329
    %6351 = vmatpush1.msra.mxu0 %v6328
    %6352 = vmatprep.subr.mxu0 0.0
    %6353 = vmatpush1.msra.mxu0 0.0
    %6354 = vmatprep.subr.mxu0 0.0
    %6355 = vmatpush1.msra.mxu0 0.0
    %6356 = vmatprep.subr.mxu0 0.0
    %6357 = vmatpush1.msra.mxu0 0.0
    %6358 = vmatprep.subr.mxu0 0.0
    %6359 = vmatpush1.msra.mxu0 0.0
    %6360 = vmatprep.subr.mxu0 0.0
    %6361 = vmatpush1.msra.mxu0 0.0
    %6362 = vmatprep.subr.mxu0 0.0
    %6363 = vmatpush1.msra.mxu0 0.0
    %6364 = vmatprep.subr.mxu0 0.0
    %6365 = vmatpush1.msra.mxu0 0.0
    %6366 = vmatprep.subr.mxu0 0.0
    %6367 = vmatpush1.msra.mxu0 0.0
    %6368 = vmatprep.subr.mxu0 0.0
    %6369 = vmatpush1.msra.mxu0 0.0
    %6370 = vmatprep.subr.mxu0 0.0
    %6371 = vmatpush1.msra.mxu0 0.0
    %6372 = vmatprep.subr.mxu0 0.0
    %6373 = vmatpush1.msra.mxu0 0.0
    %6374 = vmatprep.subr.mxu0 0.0
    %6375 = vmatpush1.msra.mxu0 0.0
    %6376 = vmatprep.subr.mxu0 0.0
    %6377 = vmatpush1.msra.mxu0 0.0
    %6378 = vmatprep.subr.mxu0 0.0
    %6379 = vmatpush1.msra.mxu0 0.0
    %6380 = vmatprep.subr.mxu0 0.0
    %6381 = vmatpush1.msra.mxu0 0.0
    %6382 = vmatprep.subr.mxu0 0.0
    %6383 = vmatpush1.msra.mxu0 0.0
    %6384 = vmatprep.subr.mxu0 0.0
    %6385 = vmatpush1.msra.mxu0 0.0
    %6386 = vmatprep.subr.mxu0 0.0
    %6387 = vmatpush1.msra.mxu0 0.0
    %6388 = vmatprep.subr.mxu0 0.0
    %6389 = vmatpush1.msra.mxu0 0.0
    %6390 = vmatprep.subr.mxu0 0.0
    %6391 = vmatpush1.msra.mxu0 0.0
    %6392 = vmatprep.subr.mxu0 0.0
    %6393 = vmatpush1.msra.mxu0 0.0
    %6394 = vmatprep.subr.mxu0 0.0
    %6395 = vmatpush1.msra.mxu0 0.0
    %6396 = vmatprep.subr.mxu0 0.0
    %6397 = vmatpush1.msra.mxu0 0.0
    %6398 = vmatprep.subr.mxu0 0.0
    %6399 = vmatpush1.msra.mxu0 0.0
    %6400 = vmatprep.subr.mxu0 0.0
    %6401 = vmatpush1.msra.mxu0 0.0
    %6402 = vmatprep.subr.mxu0 0.0
    %6403 = vmatpush1.msra.mxu0 0.0
    %6404 = vmatprep.subr.mxu0 0.0
    %6405 = vmatpush1.msra.mxu0 0.0
    %6406 = vmatprep.mubr.f32.mxu0 0.0
    %6407 = vmatmul.mubr.f32.gmra.mrb[0].mxu0 %v6340
    %v6408 = vpop.f32.mrb[0].mxu0
    %v6409 = vadd.f32 %v6336, %v6408
    %v6410 = vpop.f32.mrb[0].mxu0
    %v6411 = vadd.f32 %v6336, %v6410
    %6412 = vdwg.mxu0
    %6413 = vmatprep.subr.mxu0 %v6315
    %6414 = vmatpush1.msra.mxu0 %v6314
    %6415 = vmatprep.subr.mxu0 %v6319
    %6416 = vmatpush1.msra.mxu0 %v6318
    %6417 = vmatprep.subr.mxu0 %v6323
    %6418 = vmatpush1.msra.mxu0 %v6322
    %6419 = vmatprep.subr.mxu0 %v6327
    %6420 = vmatpush1.msra.mxu0 %v6326
    %6421 = vmatprep.subr.mxu0 %v6331
    %6422 = vmatpush1.msra.mxu0 %v6330
    %6423 = vmatprep.subr.mxu0 0.0
    %6424 = vmatpush1.msra.mxu0 0.0
    %6425 = vmatprep.subr.mxu0 0.0
    %6426 = vmatpush1.msra.mxu0 0.0
    %6427 = vmatprep.subr.mxu0 0.0
    %6428 = vmatpush1.msra.mxu0 0.0
    %6429 = vmatprep.subr.mxu0 0.0
    %6430 = vmatpush1.msra.mxu0 0.0
    %6431 = vmatprep.subr.mxu0 0.0
    %6432 = vmatpush1.msra.mxu0 0.0
    %6433 = vmatprep.subr.mxu0 0.0
    %6434 = vmatpush1.msra.mxu0 0.0
    %6435 = vmatprep.subr.mxu0 0.0
    %6436 = vmatpush1.msra.mxu0 0.0
    %6437 = vmatprep.subr.mxu0 0.0
    %6438 = vmatpush1.msra.mxu0 0.0
    %6439 = vmatprep.subr.mxu0 0.0
    %6440 = vmatpush1.msra.mxu0 0.0
    %6441 = vmatprep.subr.mxu0 0.0
    %6442 = vmatpush1.msra.mxu0 0.0
    %6443 = vmatprep.subr.mxu0 0.0
    %6444 = vmatpush1.msra.mxu0 0.0
    %6445 = vmatprep.subr.mxu0 0.0
    %6446 = vmatpush1.msra.mxu0 0.0
    %6447 = vmatprep.subr.mxu0 0.0
    %6448 = vmatpush1.msra.mxu0 0.0
    %6449 = vmatprep.subr.mxu0 0.0
    %6450 = vmatpush1.msra.mxu0 0.0
    %6451 = vmatprep.subr.mxu0 0.0
    %6452 = vmatpush1.msra.mxu0 0.0
    %6453 = vmatprep.subr.mxu0 0.0
    %6454 = vmatpush1.msra.mxu0 0.0
    %6455 = vmatprep.subr.mxu0 0.0
    %6456 = vmatpush1.msra.mxu0 0.0
    %6457 = vmatprep.subr.mxu0 0.0
    %6458 = vmatpush1.msra.mxu0 0.0
    %6459 = vmatprep.subr.mxu0 0.0
    %6460 = vmatpush1.msra.mxu0 0.0
    %6461 = vmatprep.subr.mxu0 0.0
    %6462 = vmatpush1.msra.mxu0 0.0
    %6463 = vmatprep.subr.mxu0 0.0
    %6464 = vmatpush1.msra.mxu0 0.0
    %6465 = vmatprep.subr.mxu0 0.0
    %6466 = vmatpush1.msra.mxu0 0.0
    %6467 = vmatprep.subr.mxu0 0.0
    %6468 = vmatpush1.msra.mxu0 0.0
    %6469 = vmatprep.subr.mxu0 0.0
    %6470 = vmatpush1.msra.mxu0 0.0
    %6471 = vmatprep.subr.mxu0 0.0
    %6472 = vmatpush1.msra.mxu0 0.0
    %6473 = vmatprep.subr.mxu0 0.0
    %6474 = vmatpush1.msra.mxu0 0.0
    %6475 = vmatprep.subr.mxu0 0.0
    %6476 = vmatpush1.msra.mxu0 0.0
    %6477 = vmatprep.mubr.f32.mxu0 0.0
    %6478 = vmatmul.mubr.f32.gmra.mrb[0].mxu0 %v6340
    %v6479 = vpop.f32.mrb[0].mxu0
    %v6480 = vadd.f32 %v6336, %v6479
    %v6481 = vpop.f32.mrb[0].mxu0
    %v6482 = vadd.f32 %v6336, %v6481
    %6483 = vdwg.mxu0
    %v6484 = vlaneseq
    %v6485 = vshrl.u32 %v6484, 7
    %v6486 = vadd.s32 %v6485, 8
    %v6487 = vadd.s32 %v6485, 16
    %v6488 = vadd.s32 %v6485, 24
    %v6489 = vadd.s32 %v6485, 32
    %v6490 = vadd.s32 %v6485, 40
    %v6491 = vadd.s32 %v6485, 48
    %v6492 = vadd.s32 %v6485, 56
    %v6493 = vadd.s32 %v6485, 64
    %v6494 = vadd.s32 %v6485, 72
    %v6495 = vadd.s32 %v6485, 80
    %v6496 = vadd.s32 %v6485, 88
    %v6497 = vadd.s32 %v6485, 96
    %v6498 = vadd.s32 %v6485, 104
    %v6499 = vadd.s32 %v6485, 112
    %v6500 = vadd.s32 %v6485, 120
    %v6501 = vadd.s32 %v6485, 128
    %v6502 = vadd.s32 %v6485, 136
    %v6503 = vadd.s32 %v6485, 144
    %v6504 = vadd.s32 %v6485, 152
    %v6505 = vadd.s32 %v6485, 160
    %v6506 = vadd.s32 %v6485, 168
    %v6507 = vadd.s32 %v6485, 176
    %v6508 = vadd.s32 %v6485, 184
    %v6509 = vadd.s32 %v6485, 192
    %v6510 = vadd.s32 %v6485, 200
    %v6511 = vadd.s32 %v6485, 208
    %v6512 = vadd.s32 %v6485, 216
    %v6513 = vadd.s32 %v6485, 224
    %v6514 = vadd.s32 %v6485, 232
    %v6515 = vadd.s32 %v6485, 240
    %v6516 = vadd.s32 %v6485, 248
    %v6517 = vadd.s32 %v6485, 256
    %v6518 = vadd.s32 %v6485, 264
    %v6519 = vadd.s32 %v6485, 272
    %v6520 = vadd.s32 %v6485, 280
    %v6521 = vadd.s32 %v6485, 288
    %v6522 = vadd.s32 %v6485, 296
    %v6523 = vadd.s32 %v6485, 304
    %v6524 = vadd.s32 %v6485, 312
    %v6525 = vadd.s32 %v6485, 320
    %v6526 = vadd.s32 %v6485, 328
    %v6527 = vadd.s32 %v6485, 336
    %v6528 = vadd.s32 %v6485, 344
    %v6529 = vadd.s32 %v6485, 352
    %v6530 = vadd.s32 %v6485, 360
    %v6531 = vadd.s32 %v6485, 368
    %v6532 = vadd.s32 %v6485, 376
    %v6533 = vadd.s32 %v6485, 384
    %v6534 = vadd.s32 %v6485, 392
    %v6535 = vadd.s32 %v6485, 400
    %v6536 = vadd.s32 %v6485, 408
    %v6537 = vadd.s32 %v6485, 416
    %v6538 = vadd.s32 %v6485, 424
    %v6539 = vadd.s32 %v6485, 432
    %v6540 = vadd.s32 %v6485, 440
    %v6541 = vadd.s32 %v6485, 448
    %v6542 = vadd.s32 %v6485, 456
    %v6543 = vadd.s32 %v6485, 464
    %v6544 = vadd.s32 %v6485, 472
    %v6545 = vadd.s32 %v6485, 480
    %v6546 = vadd.s32 %v6485, 488
    %v6547 = vadd.s32 %v6485, 496
    %v6548 = vadd.s32 %v6485, 504
    %v6549 = vshra.s32 %v6485, 8
    %v6550 = vshra.s32 %v6486, 8
    %v6551 = vshra.s32 %v6487, 8
    %v6552 = vshra.s32 %v6488, 8
    %v6553 = vshra.s32 %v6489, 8
    %v6554 = vshra.s32 %v6490, 8
    %v6555 = vshra.s32 %v6491, 8
    %v6556 = vshra.s32 %v6492, 8
    %v6557 = vshra.s32 %v6493, 8
    %v6558 = vshra.s32 %v6494, 8
    %v6559 = vshra.s32 %v6495, 8
    %v6560 = vshra.s32 %v6496, 8
    %v6561 = vshra.s32 %v6497, 8
    %v6562 = vshra.s32 %v6498, 8
    %v6563 = vshra.s32 %v6499, 8
    %v6564 = vshra.s32 %v6500, 8
    %v6565 = vshra.s32 %v6501, 8
    %v6566 = vshra.s32 %v6502, 8
    %v6567 = vshra.s32 %v6503, 8
    %v6568 = vshra.s32 %v6504, 8
    %v6569 = vshra.s32 %v6505, 8
    %v6570 = vshra.s32 %v6506, 8
    %v6571 = vshra.s32 %v6507, 8
    %v6572 = vshra.s32 %v6508, 8
    %v6573 = vshra.s32 %v6509, 8
    %v6574 = vshra.s32 %v6510, 8
    %v6575 = vshra.s32 %v6511, 8
    %v6576 = vshra.s32 %v6512, 8
    %v6577 = vshra.s32 %v6513, 8
    %v6578 = vshra.s32 %v6514, 8
    %v6579 = vshra.s32 %v6515, 8
    %v6580 = vshra.s32 %v6516, 8
    %v6581 = vshra.s32 %v6517, 8
    %v6582 = vshra.s32 %v6518, 8
    %v6583 = vshra.s32 %v6519, 8
    %v6584 = vshra.s32 %v6520, 8
    %v6585 = vshra.s32 %v6521, 8
    %v6586 = vshra.s32 %v6522, 8
    %v6587 = vshra.s32 %v6523, 8
    %v6588 = vshra.s32 %v6524, 8
    %v6589 = vshra.s32 %v6525, 8
    %v6590 = vshra.s32 %v6526, 8
    %v6591 = vshra.s32 %v6527, 8
    %v6592 = vshra.s32 %v6528, 8
    %v6593 = vshra.s32 %v6529, 8
    %v6594 = vshra.s32 %v6530, 8
    %v6595 = vshra.s32 %v6531, 8
    %v6596 = vshra.s32 %v6532, 8
    %v6597 = vshra.s32 %v6533, 8
    %v6598 = vshra.s32 %v6534, 8
    %v6599 = vshra.s32 %v6535, 8
    %v6600 = vshra.s32 %v6536, 8
    %v6601 = vshra.s32 %v6537, 8
    %v6602 = vshra.s32 %v6538, 8
    %v6603 = vshra.s32 %v6539, 8
    %v6604 = vshra.s32 %v6540, 8
    %v6605 = vshra.s32 %v6541, 8
    %v6606 = vshra.s32 %v6542, 8
    %v6607 = vshra.s32 %v6543, 8
    %v6608 = vshra.s32 %v6544, 8
    %v6609 = vshra.s32 %v6545, 8
    %v6610 = vshra.s32 %v6546, 8
    %v6611 = vshra.s32 %v6547, 8
    %v6612 = vshra.s32 %v6548, 8
    %v6613 = vshra.s32 %v6485, 4
    %v6614 = vshra.s32 %v6486, 4
    %v6615 = vshra.s32 %v6487, 4
    %v6616 = vshra.s32 %v6488, 4
    %v6617 = vshra.s32 %v6489, 4
    %v6618 = vshra.s32 %v6490, 4
    %v6619 = vshra.s32 %v6491, 4
    %v6620 = vshra.s32 %v6492, 4
    %v6621 = vshra.s32 %v6493, 4
    %v6622 = vshra.s32 %v6494, 4
    %v6623 = vshra.s32 %v6495, 4
    %v6624 = vshra.s32 %v6496, 4
    %v6625 = vshra.s32 %v6497, 4
    %v6626 = vshra.s32 %v6498, 4
    %v6627 = vshra.s32 %v6499, 4
    %v6628 = vshra.s32 %v6500, 4
    %v6629 = vshra.s32 %v6501, 4
    %v6630 = vshra.s32 %v6502, 4
    %v6631 = vshra.s32 %v6503, 4
    %v6632 = vshra.s32 %v6504, 4
    %v6633 = vshra.s32 %v6505, 4
    %v6634 = vshra.s32 %v6506, 4
    %v6635 = vshra.s32 %v6507, 4
    %v6636 = vshra.s32 %v6508, 4
    %v6637 = vshra.s32 %v6509, 4
    %v6638 = vshra.s32 %v6510, 4
    %v6639 = vshra.s32 %v6511, 4
    %v6640 = vshra.s32 %v6512, 4
    %v6641 = vshra.s32 %v6513, 4
    %v6642 = vshra.s32 %v6514, 4
    %v6643 = vshra.s32 %v6515, 4
    %v6644 = vshra.s32 %v6516, 4
    %v6645 = vshra.s32 %v6517, 4
    %v6646 = vshra.s32 %v6518, 4
    %v6647 = vshra.s32 %v6519, 4
    %v6648 = vshra.s32 %v6520, 4
    %v6649 = vshra.s32 %v6521, 4
    %v6650 = vshra.s32 %v6522, 4
    %v6651 = vshra.s32 %v6523, 4
    %v6652 = vshra.s32 %v6524, 4
    %v6653 = vshra.s32 %v6525, 4
    %v6654 = vshra.s32 %v6526, 4
    %v6655 = vshra.s32 %v6527, 4
    %v6656 = vshra.s32 %v6528, 4
    %v6657 = vshra.s32 %v6529, 4
    %v6658 = vshra.s32 %v6530, 4
    %v6659 = vshra.s32 %v6531, 4
    %v6660 = vshra.s32 %v6532, 4
    %v6661 = vshra.s32 %v6533, 4
    %v6662 = vshra.s32 %v6534, 4
    %v6663 = vshra.s32 %v6535, 4
    %v6664 = vshra.s32 %v6536, 4
    %v6665 = vshra.s32 %v6537, 4
    %v6666 = vshra.s32 %v6538, 4
    %v6667 = vshra.s32 %v6539, 4
    %v6668 = vshra.s32 %v6540, 4
    %v6669 = vshra.s32 %v6541, 4
    %v6670 = vshra.s32 %v6542, 4
    %v6671 = vshra.s32 %v6543, 4
    %v6672 = vshra.s32 %v6544, 4
    %v6673 = vshra.s32 %v6545, 4
    %v6674 = vshra.s32 %v6546, 4
    %v6675 = vshra.s32 %v6547, 4
    %v6676 = vshra.s32 %v6548, 4
    %v6677 = vand.u32 %v6613, 15
    %v6678 = vand.u32 %v6614, 15
    %v6679 = vand.u32 %v6615, 15
    %v6680 = vand.u32 %v6616, 15
    %v6681 = vand.u32 %v6617, 15
    %v6682 = vand.u32 %v6618, 15
    %v6683 = vand.u32 %v6619, 15
    %v6684 = vand.u32 %v6620, 15
    %v6685 = vand.u32 %v6621, 15
    %v6686 = vand.u32 %v6622, 15
    %v6687 = vand.u32 %v6623, 15
    %v6688 = vand.u32 %v6624, 15
    %v6689 = vand.u32 %v6625, 15
    %v6690 = vand.u32 %v6626, 15
    %v6691 = vand.u32 %v6627, 15
    %v6692 = vand.u32 %v6628, 15
    %v6693 = vand.u32 %v6629, 15
    %v6694 = vand.u32 %v6630, 15
    %v6695 = vand.u32 %v6631, 15
    %v6696 = vand.u32 %v6632, 15
    %v6697 = vand.u32 %v6633, 15
    %v6698 = vand.u32 %v6634, 15
    %v6699 = vand.u32 %v6635, 15
    %v6700 = vand.u32 %v6636, 15
    %v6701 = vand.u32 %v6637, 15
    %v6702 = vand.u32 %v6638, 15
    %v6703 = vand.u32 %v6639, 15
    %v6704 = vand.u32 %v6640, 15
    %v6705 = vand.u32 %v6641, 15
    %v6706 = vand.u32 %v6642, 15
    %v6707 = vand.u32 %v6643, 15
    %v6708 = vand.u32 %v6644, 15
    %v6709 = vand.u32 %v6645, 15
    %v6710 = vand.u32 %v6646, 15
    %v6711 = vand.u32 %v6647, 15
    %v6712 = vand.u32 %v6648, 15
    %v6713 = vand.u32 %v6649, 15
    %v6714 = vand.u32 %v6650, 15
    %v6715 = vand.u32 %v6651, 15
    %v6716 = vand.u32 %v6652, 15
    %v6717 = vand.u32 %v6653, 15
    %v6718 = vand.u32 %v6654, 15
    %v6719 = vand.u32 %v6655, 15
    %v6720 = vand.u32 %v6656, 15
    %v6721 = vand.u32 %v6657, 15
    %v6722 = vand.u32 %v6658, 15
    %v6723 = vand.u32 %v6659, 15
    %v6724 = vand.u32 %v6660, 15
    %v6725 = vand.u32 %v6661, 15
    %v6726 = vand.u32 %v6662, 15
    %v6727 = vand.u32 %v6663, 15
    %v6728 = vand.u32 %v6664, 15
    %v6729 = vand.u32 %v6665, 15
    %v6730 = vand.u32 %v6666, 15
    %v6731 = vand.u32 %v6667, 15
    %v6732 = vand.u32 %v6668, 15
    %v6733 = vand.u32 %v6669, 15
    %v6734 = vand.u32 %v6670, 15
    %v6735 = vand.u32 %v6671, 15
    %v6736 = vand.u32 %v6672, 15
    %v6737 = vand.u32 %v6673, 15
    %v6738 = vand.u32 %v6674, 15
    %v6739 = vand.u32 %v6675, 15
    %v6740 = vand.u32 %v6676, 15
    %v6741 = vand.u32 %v6485, 15
    %v6742 = vand.u32 %v6486, 15
    %v6743 = vand.u32 %v6487, 15
    %v6744 = vand.u32 %v6488, 15
    %v6745 = vand.u32 %v6489, 15
    %v6746 = vand.u32 %v6490, 15
    %v6747 = vand.u32 %v6491, 15
    %v6748 = vand.u32 %v6492, 15
    %v6749 = vand.u32 %v6493, 15
    %v6750 = vand.u32 %v6494, 15
    %v6751 = vand.u32 %v6495, 15
    %v6752 = vand.u32 %v6496, 15
    %v6753 = vand.u32 %v6497, 15
    %v6754 = vand.u32 %v6498, 15
    %v6755 = vand.u32 %v6499, 15
    %v6756 = vand.u32 %v6500, 15
    %v6757 = vand.u32 %v6501, 15
    %v6758 = vand.u32 %v6502, 15
    %v6759 = vand.u32 %v6503, 15
    %v6760 = vand.u32 %v6504, 15
    %v6761 = vand.u32 %v6505, 15
    %v6762 = vand.u32 %v6506, 15
    %v6763 = vand.u32 %v6507, 15
    %v6764 = vand.u32 %v6508, 15
    %v6765 = vand.u32 %v6509, 15
    %v6766 = vand.u32 %v6510, 15
    %v6767 = vand.u32 %v6511, 15
    %v6768 = vand.u32 %v6512, 15
    %v6769 = vand.u32 %v6513, 15
    %v6770 = vand.u32 %v6514, 15
    %v6771 = vand.u32 %v6515, 15
    %v6772 = vand.u32 %v6516, 15
    %v6773 = vand.u32 %v6517, 15
    %v6774 = vand.u32 %v6518, 15
    %v6775 = vand.u32 %v6519, 15
    %v6776 = vand.u32 %v6520, 15
    %v6777 = vand.u32 %v6521, 15
    %v6778 = vand.u32 %v6522, 15
    %v6779 = vand.u32 %v6523, 15
    %v6780 = vand.u32 %v6524, 15
    %v6781 = vand.u32 %v6525, 15
    %v6782 = vand.u32 %v6526, 15
    %v6783 = vand.u32 %v6527, 15
    %v6784 = vand.u32 %v6528, 15
    %v6785 = vand.u32 %v6529, 15
    %v6786 = vand.u32 %v6530, 15
    %v6787 = vand.u32 %v6531, 15
    %v6788 = vand.u32 %v6532, 15
    %v6789 = vand.u32 %v6533, 15
    %v6790 = vand.u32 %v6534, 15
    %v6791 = vand.u32 %v6535, 15
    %v6792 = vand.u32 %v6536, 15
    %v6793 = vand.u32 %v6537, 15
    %v6794 = vand.u32 %v6538, 15
    %v6795 = vand.u32 %v6539, 15
    %v6796 = vand.u32 %v6540, 15
    %v6797 = vand.u32 %v6541, 15
    %v6798 = vand.u32 %v6542, 15
    %v6799 = vand.u32 %v6543, 15
    %v6800 = vand.u32 %v6544, 15
    %v6801 = vand.u32 %v6545, 15
    %v6802 = vand.u32 %v6546, 15
    %v6803 = vand.u32 %v6547, 15
    %v6804 = vand.u32 %v6548, 15
    %v6805 = vshll.u32 %v6549, 6
    %v6806 = vshll.u32 %v6550, 6
    %v6807 = vshll.u32 %v6551, 6
    %v6808 = vshll.u32 %v6552, 6
    %v6809 = vshll.u32 %v6553, 6
    %v6810 = vshll.u32 %v6554, 6
    %v6811 = vshll.u32 %v6555, 6
    %v6812 = vshll.u32 %v6556, 6
    %v6813 = vshll.u32 %v6557, 6
    %v6814 = vshll.u32 %v6558, 6
    %v6815 = vshll.u32 %v6559, 6
    %v6816 = vshll.u32 %v6560, 6
    %v6817 = vshll.u32 %v6561, 6
    %v6818 = vshll.u32 %v6562, 6
    %v6819 = vshll.u32 %v6563, 6
    %v6820 = vshll.u32 %v6564, 6
    %v6821 = vshll.u32 %v6565, 6
    %v6822 = vshll.u32 %v6566, 6
    %v6823 = vshll.u32 %v6567, 6
    %v6824 = vshll.u32 %v6568, 6
    %v6825 = vshll.u32 %v6569, 6
    %v6826 = vshll.u32 %v6570, 6
    %v6827 = vshll.u32 %v6571, 6
    %v6828 = vshll.u32 %v6572, 6
    %v6829 = vshll.u32 %v6573, 6
    %v6830 = vshll.u32 %v6574, 6
    %v6831 = vshll.u32 %v6575, 6
    %v6832 = vshll.u32 %v6576, 6
    %v6833 = vshll.u32 %v6577, 6
    %v6834 = vshll.u32 %v6578, 6
    %v6835 = vshll.u32 %v6579, 6
    %v6836 = vshll.u32 %v6580, 6
    %v6837 = vshll.u32 %v6581, 6
    %v6838 = vshll.u32 %v6582, 6
    %v6839 = vshll.u32 %v6583, 6
    %v6840 = vshll.u32 %v6584, 6
    %v6841 = vshll.u32 %v6585, 6
    %v6842 = vshll.u32 %v6586, 6
    %v6843 = vshll.u32 %v6587, 6
    %v6844 = vshll.u32 %v6588, 6
    %v6845 = vshll.u32 %v6589, 6
    %v6846 = vshll.u32 %v6590, 6
    %v6847 = vshll.u32 %v6591, 6
    %v6848 = vshll.u32 %v6592, 6
    %v6849 = vshll.u32 %v6593, 6
    %v6850 = vshll.u32 %v6594, 6
    %v6851 = vshll.u32 %v6595, 6
    %v6852 = vshll.u32 %v6596, 6
    %v6853 = vshll.u32 %v6597, 6
    %v6854 = vshll.u32 %v6598, 6
    %v6855 = vshll.u32 %v6599, 6
    %v6856 = vshll.u32 %v6600, 6
    %v6857 = vshll.u32 %v6601, 6
    %v6858 = vshll.u32 %v6602, 6
    %v6859 = vshll.u32 %v6603, 6
    %v6860 = vshll.u32 %v6604, 6
    %v6861 = vshll.u32 %v6605, 6
    %v6862 = vshll.u32 %v6606, 6
    %v6863 = vshll.u32 %v6607, 6
    %v6864 = vshll.u32 %v6608, 6
    %v6865 = vshll.u32 %v6609, 6
    %v6866 = vshll.u32 %v6610, 6
    %v6867 = vshll.u32 %v6611, 6
    %v6868 = vshll.u32 %v6612, 6
    %v6869 = vshra.s32 %v6677, 1
    %v6870 = vshra.s32 %v6678, 1
    %v6871 = vshra.s32 %v6679, 1
    %v6872 = vshra.s32 %v6680, 1
    %v6873 = vshra.s32 %v6681, 1
    %v6874 = vshra.s32 %v6682, 1
    %v6875 = vshra.s32 %v6683, 1
    %v6876 = vshra.s32 %v6684, 1
    %v6877 = vshra.s32 %v6685, 1
    %v6878 = vshra.s32 %v6686, 1
    %v6879 = vshra.s32 %v6687, 1
    %v6880 = vshra.s32 %v6688, 1
    %v6881 = vshra.s32 %v6689, 1
    %v6882 = vshra.s32 %v6690, 1
    %v6883 = vshra.s32 %v6691, 1
    %v6884 = vshra.s32 %v6692, 1
    %v6885 = vshra.s32 %v6693, 1
    %v6886 = vshra.s32 %v6694, 1
    %v6887 = vshra.s32 %v6695, 1
    %v6888 = vshra.s32 %v6696, 1
    %v6889 = vshra.s32 %v6697, 1
    %v6890 = vshra.s32 %v6698, 1
    %v6891 = vshra.s32 %v6699, 1
    %v6892 = vshra.s32 %v6700, 1
    %v6893 = vshra.s32 %v6701, 1
    %v6894 = vshra.s32 %v6702, 1
    %v6895 = vshra.s32 %v6703, 1
    %v6896 = vshra.s32 %v6704, 1
    %v6897 = vshra.s32 %v6705, 1
    %v6898 = vshra.s32 %v6706, 1
    %v6899 = vshra.s32 %v6707, 1
    %v6900 = vshra.s32 %v6708, 1
    %v6901 = vshra.s32 %v6709, 1
    %v6902 = vshra.s32 %v6710, 1
    %v6903 = vshra.s32 %v6711, 1
    %v6904 = vshra.s32 %v6712, 1
    %v6905 = vshra.s32 %v6713, 1
    %v6906 = vshra.s32 %v6714, 1
    %v6907 = vshra.s32 %v6715, 1
    %v6908 = vshra.s32 %v6716, 1
    %v6909 = vshra.s32 %v6717, 1
    %v6910 = vshra.s32 %v6718, 1
    %v6911 = vshra.s32 %v6719, 1
    %v6912 = vshra.s32 %v6720, 1
    %v6913 = vshra.s32 %v6721, 1
    %v6914 = vshra.s32 %v6722, 1
    %v6915 = vshra.s32 %v6723, 1
    %v6916 = vshra.s32 %v6724, 1
    %v6917 = vshra.s32 %v6725, 1
    %v6918 = vshra.s32 %v6726, 1
    %v6919 = vshra.s32 %v6727, 1
    %v6920 = vshra.s32 %v6728, 1
    %v6921 = vshra.s32 %v6729, 1
    %v6922 = vshra.s32 %v6730, 1
    %v6923 = vshra.s32 %v6731, 1
    %v6924 = vshra.s32 %v6732, 1
    %v6925 = vshra.s32 %v6733, 1
    %v6926 = vshra.s32 %v6734, 1
    %v6927 = vshra.s32 %v6735, 1
    %v6928 = vshra.s32 %v6736, 1
    %v6929 = vshra.s32 %v6737, 1
    %v6930 = vshra.s32 %v6738, 1
    %v6931 = vshra.s32 %v6739, 1
    %v6932 = vshra.s32 %v6740, 1
    %v6933 = vshll.u32 %v6869, 3
    %v6934 = vshll.u32 %v6870, 3
    %v6935 = vshll.u32 %v6871, 3
    %v6936 = vshll.u32 %v6872, 3
    %v6937 = vshll.u32 %v6873, 3
    %v6938 = vshll.u32 %v6874, 3
    %v6939 = vshll.u32 %v6875, 3
    %v6940 = vshll.u32 %v6876, 3
    %v6941 = vshll.u32 %v6877, 3
    %v6942 = vshll.u32 %v6878, 3
    %v6943 = vshll.u32 %v6879, 3
    %v6944 = vshll.u32 %v6880, 3
    %v6945 = vshll.u32 %v6881, 3
    %v6946 = vshll.u32 %v6882, 3
    %v6947 = vshll.u32 %v6883, 3
    %v6948 = vshll.u32 %v6884, 3
    %v6949 = vshll.u32 %v6885, 3
    %v6950 = vshll.u32 %v6886, 3
    %v6951 = vshll.u32 %v6887, 3
    %v6952 = vshll.u32 %v6888, 3
    %v6953 = vshll.u32 %v6889, 3
    %v6954 = vshll.u32 %v6890, 3
    %v6955 = vshll.u32 %v6891, 3
    %v6956 = vshll.u32 %v6892, 3
    %v6957 = vshll.u32 %v6893, 3
    %v6958 = vshll.u32 %v6894, 3
    %v6959 = vshll.u32 %v6895, 3
    %v6960 = vshll.u32 %v6896, 3
    %v6961 = vshll.u32 %v6897, 3
    %v6962 = vshll.u32 %v6898, 3
    %v6963 = vshll.u32 %v6899, 3
    %v6964 = vshll.u32 %v6900, 3
    %v6965 = vshll.u32 %v6901, 3
    %v6966 = vshll.u32 %v6902, 3
    %v6967 = vshll.u32 %v6903, 3
    %v6968 = vshll.u32 %v6904, 3
    %v6969 = vshll.u32 %v6905, 3
    %v6970 = vshll.u32 %v6906, 3
    %v6971 = vshll.u32 %v6907, 3
    %v6972 = vshll.u32 %v6908, 3
    %v6973 = vshll.u32 %v6909, 3
    %v6974 = vshll.u32 %v6910, 3
    %v6975 = vshll.u32 %v6911, 3
    %v6976 = vshll.u32 %v6912, 3
    %v6977 = vshll.u32 %v6913, 3
    %v6978 = vshll.u32 %v6914, 3
    %v6979 = vshll.u32 %v6915, 3
    %v6980 = vshll.u32 %v6916, 3
    %v6981 = vshll.u32 %v6917, 3
    %v6982 = vshll.u32 %v6918, 3
    %v6983 = vshll.u32 %v6919, 3
    %v6984 = vshll.u32 %v6920, 3
    %v6985 = vshll.u32 %v6921, 3
    %v6986 = vshll.u32 %v6922, 3
    %v6987 = vshll.u32 %v6923, 3
    %v6988 = vshll.u32 %v6924, 3
    %v6989 = vshll.u32 %v6925, 3
    %v6990 = vshll.u32 %v6926, 3
    %v6991 = vshll.u32 %v6927, 3
    %v6992 = vshll.u32 %v6928, 3
    %v6993 = vshll.u32 %v6929, 3
    %v6994 = vshll.u32 %v6930, 3
    %v6995 = vshll.u32 %v6931, 3
    %v6996 = vshll.u32 %v6932, 3
    %v6997 = vadd.s32 %v6805, %v6933
    %v6998 = vadd.s32 %v6806, %v6934
    %v6999 = vadd.s32 %v6807, %v6935
    %v7000 = vadd.s32 %v6808, %v6936
    %v7001 = vadd.s32 %v6809, %v6937
    %v7002 = vadd.s32 %v6810, %v6938
    %v7003 = vadd.s32 %v6811, %v6939
    %v7004 = vadd.s32 %v6812, %v6940
    %v7005 = vadd.s32 %v6813, %v6941
    %v7006 = vadd.s32 %v6814, %v6942
    %v7007 = vadd.s32 %v6815, %v6943
    %v7008 = vadd.s32 %v6816, %v6944
    %v7009 = vadd.s32 %v6817, %v6945
    %v7010 = vadd.s32 %v6818, %v6946
    %v7011 = vadd.s32 %v6819, %v6947
    %v7012 = vadd.s32 %v6820, %v6948
    %v7013 = vadd.s32 %v6821, %v6949
    %v7014 = vadd.s32 %v6822, %v6950
    %v7015 = vadd.s32 %v6823, %v6951
    %v7016 = vadd.s32 %v6824, %v6952
    %v7017 = vadd.s32 %v6825, %v6953
    %v7018 = vadd.s32 %v6826, %v6954
    %v7019 = vadd.s32 %v6827, %v6955
    %v7020 = vadd.s32 %v6828, %v6956
    %v7021 = vadd.s32 %v6829, %v6957
    %v7022 = vadd.s32 %v6830, %v6958
    %v7023 = vadd.s32 %v6831, %v6959
    %v7024 = vadd.s32 %v6832, %v6960
    %v7025 = vadd.s32 %v6833, %v6961
    %v7026 = vadd.s32 %v6834, %v6962
    %v7027 = vadd.s32 %v6835, %v6963
    %v7028 = vadd.s32 %v6836, %v6964
    %v7029 = vadd.s32 %v6837, %v6965
    %v7030 = vadd.s32 %v6838, %v6966
    %v7031 = vadd.s32 %v6839, %v6967
    %v7032 = vadd.s32 %v6840, %v6968
    %v7033 = vadd.s32 %v6841, %v6969
    %v7034 = vadd.s32 %v6842, %v6970
    %v7035 = vadd.s32 %v6843, %v6971
    %v7036 = vadd.s32 %v6844, %v6972
    %v7037 = vadd.s32 %v6845, %v6973
    %v7038 = vadd.s32 %v6846, %v6974
    %v7039 = vadd.s32 %v6847, %v6975
    %v7040 = vadd.s32 %v6848, %v6976
    %v7041 = vadd.s32 %v6849, %v6977
    %v7042 = vadd.s32 %v6850, %v6978
    %v7043 = vadd.s32 %v6851, %v6979
    %v7044 = vadd.s32 %v6852, %v6980
    %v7045 = vadd.s32 %v6853, %v6981
    %v7046 = vadd.s32 %v6854, %v6982
    %v7047 = vadd.s32 %v6855, %v6983
    %v7048 = vadd.s32 %v6856, %v6984
    %v7049 = vadd.s32 %v6857, %v6985
    %v7050 = vadd.s32 %v6858, %v6986
    %v7051 = vadd.s32 %v6859, %v6987
    %v7052 = vadd.s32 %v6860, %v6988
    %v7053 = vadd.s32 %v6861, %v6989
    %v7054 = vadd.s32 %v6862, %v6990
    %v7055 = vadd.s32 %v6863, %v6991
    %v7056 = vadd.s32 %v6864, %v6992
    %v7057 = vadd.s32 %v6865, %v6993
    %v7058 = vadd.s32 %v6866, %v6994
    %v7059 = vadd.s32 %v6867, %v6995
    %v7060 = vadd.s32 %v6868, %v6996
    %v7061 = vshra.s32 %v6741, 1
    %v7062 = vshra.s32 %v6742, 1
    %v7063 = vshra.s32 %v6743, 1
    %v7064 = vshra.s32 %v6744, 1
    %v7065 = vshra.s32 %v6745, 1
    %v7066 = vshra.s32 %v6746, 1
    %v7067 = vshra.s32 %v6747, 1
    %v7068 = vshra.s32 %v6748, 1
    %v7069 = vshra.s32 %v6749, 1
    %v7070 = vshra.s32 %v6750, 1
    %v7071 = vshra.s32 %v6751, 1
    %v7072 = vshra.s32 %v6752, 1
    %v7073 = vshra.s32 %v6753, 1
    %v7074 = vshra.s32 %v6754, 1
    %v7075 = vshra.s32 %v6755, 1
    %v7076 = vshra.s32 %v6756, 1
    %v7077 = vshra.s32 %v6757, 1
    %v7078 = vshra.s32 %v6758, 1
    %v7079 = vshra.s32 %v6759, 1
    %v7080 = vshra.s32 %v6760, 1
    %v7081 = vshra.s32 %v6761, 1
    %v7082 = vshra.s32 %v6762, 1
    %v7083 = vshra.s32 %v6763, 1
    %v7084 = vshra.s32 %v6764, 1
    %v7085 = vshra.s32 %v6765, 1
    %v7086 = vshra.s32 %v6766, 1
    %v7087 = vshra.s32 %v6767, 1
    %v7088 = vshra.s32 %v6768, 1
    %v7089 = vshra.s32 %v6769, 1
    %v7090 = vshra.s32 %v6770, 1
    %v7091 = vshra.s32 %v6771, 1
    %v7092 = vshra.s32 %v6772, 1
    %v7093 = vshra.s32 %v6773, 1
    %v7094 = vshra.s32 %v6774, 1
    %v7095 = vshra.s32 %v6775, 1
    %v7096 = vshra.s32 %v6776, 1
    %v7097 = vshra.s32 %v6777, 1
    %v7098 = vshra.s32 %v6778, 1
    %v7099 = vshra.s32 %v6779, 1
    %v7100 = vshra.s32 %v6780, 1
    %v7101 = vshra.s32 %v6781, 1
    %v7102 = vshra.s32 %v6782, 1
    %v7103 = vshra.s32 %v6783, 1
    %v7104 = vshra.s32 %v6784, 1
    %v7105 = vshra.s32 %v6785, 1
    %v7106 = vshra.s32 %v6786, 1
    %v7107 = vshra.s32 %v6787, 1
    %v7108 = vshra.s32 %v6788, 1
    %v7109 = vshra.s32 %v6789, 1
    %v7110 = vshra.s32 %v6790, 1
    %v7111 = vshra.s32 %v6791, 1
    %v7112 = vshra.s32 %v6792, 1
    %v7113 = vshra.s32 %v6793, 1
    %v7114 = vshra.s32 %v6794, 1
    %v7115 = vshra.s32 %v6795, 1
    %v7116 = vshra.s32 %v6796, 1
    %v7117 = vshra.s32 %v6797, 1
    %v7118 = vshra.s32 %v6798, 1
    %v7119 = vshra.s32 %v6799, 1
    %v7120 = vshra.s32 %v6800, 1
    %v7121 = vshra.s32 %v6801, 1
    %v7122 = vshra.s32 %v6802, 1
    %v7123 = vshra.s32 %v6803, 1
    %v7124 = vshra.s32 %v6804, 1
    %v7125 = vadd.s32 %v6997, %v7061
    %v7126 = vadd.s32 %v6998, %v7062
    %v7127 = vadd.s32 %v6999, %v7063
    %v7128 = vadd.s32 %v7000, %v7064
    %v7129 = vadd.s32 %v7001, %v7065
    %v7130 = vadd.s32 %v7002, %v7066
    %v7131 = vadd.s32 %v7003, %v7067
    %v7132 = vadd.s32 %v7004, %v7068
    %v7133 = vadd.s32 %v7005, %v7069
    %v7134 = vadd.s32 %v7006, %v7070
    %v7135 = vadd.s32 %v7007, %v7071
    %v7136 = vadd.s32 %v7008, %v7072
    %v7137 = vadd.s32 %v7009, %v7073
    %v7138 = vadd.s32 %v7010, %v7074
    %v7139 = vadd.s32 %v7011, %v7075
    %v7140 = vadd.s32 %v7012, %v7076
    %v7141 = vadd.s32 %v7013, %v7077
    %v7142 = vadd.s32 %v7014, %v7078
    %v7143 = vadd.s32 %v7015, %v7079
    %v7144 = vadd.s32 %v7016, %v7080
    %v7145 = vadd.s32 %v7017, %v7081
    %v7146 = vadd.s32 %v7018, %v7082
    %v7147 = vadd.s32 %v7019, %v7083
    %v7148 = vadd.s32 %v7020, %v7084
    %v7149 = vadd.s32 %v7021, %v7085
    %v7150 = vadd.s32 %v7022, %v7086
    %v7151 = vadd.s32 %v7023, %v7087
    %v7152 = vadd.s32 %v7024, %v7088
    %v7153 = vadd.s32 %v7025, %v7089
    %v7154 = vadd.s32 %v7026, %v7090
    %v7155 = vadd.s32 %v7027, %v7091
    %v7156 = vadd.s32 %v7028, %v7092
    %v7157 = vadd.s32 %v7029, %v7093
    %v7158 = vadd.s32 %v7030, %v7094
    %v7159 = vadd.s32 %v7031, %v7095
    %v7160 = vadd.s32 %v7032, %v7096
    %v7161 = vadd.s32 %v7033, %v7097
    %v7162 = vadd.s32 %v7034, %v7098
    %v7163 = vadd.s32 %v7035, %v7099
    %v7164 = vadd.s32 %v7036, %v7100
    %v7165 = vadd.s32 %v7037, %v7101
    %v7166 = vadd.s32 %v7038, %v7102
    %v7167 = vadd.s32 %v7039, %v7103
    %v7168 = vadd.s32 %v7040, %v7104
    %v7169 = vadd.s32 %v7041, %v7105
    %v7170 = vadd.s32 %v7042, %v7106
    %v7171 = vadd.s32 %v7043, %v7107
    %v7172 = vadd.s32 %v7044, %v7108
    %v7173 = vadd.s32 %v7045, %v7109
    %v7174 = vadd.s32 %v7046, %v7110
    %v7175 = vadd.s32 %v7047, %v7111
    %v7176 = vadd.s32 %v7048, %v7112
    %v7177 = vadd.s32 %v7049, %v7113
    %v7178 = vadd.s32 %v7050, %v7114
    %v7179 = vadd.s32 %v7051, %v7115
    %v7180 = vadd.s32 %v7052, %v7116
    %v7181 = vadd.s32 %v7053, %v7117
    %v7182 = vadd.s32 %v7054, %v7118
    %v7183 = vadd.s32 %v7055, %v7119
    %v7184 = vadd.s32 %v7056, %v7120
    %v7185 = vadd.s32 %v7057, %v7121
    %v7186 = vadd.s32 %v7058, %v7122
    %v7187 = vadd.s32 %v7059, %v7123
    %v7188 = vadd.s32 %v7060, %v7124
    %vm7189 = vcmp.eq.s32.totalorder %v7125, %v16
    %vm7190 = vcmp.eq.s32.totalorder %v7126, %v16
    %vm7191 = vcmp.eq.s32.totalorder %v7127, %v16
    %vm7192 = vcmp.eq.s32.totalorder %v7128, %v16
    %vm7193 = vcmp.eq.s32.totalorder %v7129, %v16
    %vm7194 = vcmp.eq.s32.totalorder %v7130, %v16
    %vm7195 = vcmp.eq.s32.totalorder %v7131, %v16
    %vm7196 = vcmp.eq.s32.totalorder %v7132, %v16
    %vm7197 = vcmp.eq.s32.totalorder %v7133, %v16
    %vm7198 = vcmp.eq.s32.totalorder %v7134, %v16
    %vm7199 = vcmp.eq.s32.totalorder %v7135, %v16
    %vm7200 = vcmp.eq.s32.totalorder %v7136, %v16
    %vm7201 = vcmp.eq.s32.totalorder %v7137, %v16
    %vm7202 = vcmp.eq.s32.totalorder %v7138, %v16
    %vm7203 = vcmp.eq.s32.totalorder %v7139, %v16
    %vm7204 = vcmp.eq.s32.totalorder %v7140, %v16
    %vm7205 = vcmp.eq.s32.totalorder %v7141, %v16
    %vm7206 = vcmp.eq.s32.totalorder %v7142, %v16
    %vm7207 = vcmp.eq.s32.totalorder %v7143, %v16
    %vm7208 = vcmp.eq.s32.totalorder %v7144, %v16
    %vm7209 = vcmp.eq.s32.totalorder %v7145, %v16
    %vm7210 = vcmp.eq.s32.totalorder %v7146, %v16
    %vm7211 = vcmp.eq.s32.totalorder %v7147, %v16
    %vm7212 = vcmp.eq.s32.totalorder %v7148, %v16
    %vm7213 = vcmp.eq.s32.totalorder %v7149, %v16
    %vm7214 = vcmp.eq.s32.totalorder %v7150, %v16
    %vm7215 = vcmp.eq.s32.totalorder %v7151, %v16
    %vm7216 = vcmp.eq.s32.totalorder %v7152, %v16
    %vm7217 = vcmp.eq.s32.totalorder %v7153, %v16
    %vm7218 = vcmp.eq.s32.totalorder %v7154, %v16
    %vm7219 = vcmp.eq.s32.totalorder %v7155, %v16
    %vm7220 = vcmp.eq.s32.totalorder %v7156, %v16
    %vm7221 = vcmp.eq.s32.totalorder %v7157, %v16
    %vm7222 = vcmp.eq.s32.totalorder %v7158, %v16
    %vm7223 = vcmp.eq.s32.totalorder %v7159, %v16
    %vm7224 = vcmp.eq.s32.totalorder %v7160, %v16
    %vm7225 = vcmp.eq.s32.totalorder %v7161, %v16
    %vm7226 = vcmp.eq.s32.totalorder %v7162, %v16
    %vm7227 = vcmp.eq.s32.totalorder %v7163, %v16
    %vm7228 = vcmp.eq.s32.totalorder %v7164, %v16
    %vm7229 = vcmp.eq.s32.totalorder %v7165, %v16
    %vm7230 = vcmp.eq.s32.totalorder %v7166, %v16
    %vm7231 = vcmp.eq.s32.totalorder %v7167, %v16
    %vm7232 = vcmp.eq.s32.totalorder %v7168, %v16
    %vm7233 = vcmp.eq.s32.totalorder %v7169, %v16
    %vm7234 = vcmp.eq.s32.totalorder %v7170, %v16
    %vm7235 = vcmp.eq.s32.totalorder %v7171, %v16
    %vm7236 = vcmp.eq.s32.totalorder %v7172, %v16
    %vm7237 = vcmp.eq.s32.totalorder %v7173, %v16
    %vm7238 = vcmp.eq.s32.totalorder %v7174, %v16
    %vm7239 = vcmp.eq.s32.totalorder %v7175, %v16
    %vm7240 = vcmp.eq.s32.totalorder %v7176, %v16
    %vm7241 = vcmp.eq.s32.totalorder %v7177, %v16
    %vm7242 = vcmp.eq.s32.totalorder %v7178, %v16
    %vm7243 = vcmp.eq.s32.totalorder %v7179, %v16
    %vm7244 = vcmp.eq.s32.totalorder %v7180, %v16
    %vm7245 = vcmp.eq.s32.totalorder %v7181, %v16
    %vm7246 = vcmp.eq.s32.totalorder %v7182, %v16
    %vm7247 = vcmp.eq.s32.totalorder %v7183, %v16
    %vm7248 = vcmp.eq.s32.totalorder %v7184, %v16
    %vm7249 = vcmp.eq.s32.totalorder %v7185, %v16
    %vm7250 = vcmp.eq.s32.totalorder %v7186, %v16
    %vm7251 = vcmp.eq.s32.totalorder %v7187, %v16
    %vm7252 = vcmp.eq.s32.totalorder %v7188, %v16
    %v7253 = vsel %vm7189, 0.25, 0.0
    %v7254 = vsel %vm7190, 0.25, 0.0
    %v7255 = vsel %vm7191, 0.25, 0.0
    %v7256 = vsel %vm7192, 0.25, 0.0
    %v7257 = vsel %vm7193, 0.25, 0.0
    %v7258 = vsel %vm7194, 0.25, 0.0
    %v7259 = vsel %vm7195, 0.25, 0.0
    %v7260 = vsel %vm7196, 0.25, 0.0
    %v7261 = vsel %vm7197, 0.25, 0.0
    %v7262 = vsel %vm7198, 0.25, 0.0
    %v7263 = vsel %vm7199, 0.25, 0.0
    %v7264 = vsel %vm7200, 0.25, 0.0
    %v7265 = vsel %vm7201, 0.25, 0.0
    %v7266 = vsel %vm7202, 0.25, 0.0
    %v7267 = vsel %vm7203, 0.25, 0.0
    %v7268 = vsel %vm7204, 0.25, 0.0
    %v7269 = vsel %vm7205, 0.25, 0.0
    %v7270 = vsel %vm7206, 0.25, 0.0
    %v7271 = vsel %vm7207, 0.25, 0.0
    %v7272 = vsel %vm7208, 0.25, 0.0
    %v7273 = vsel %vm7209, 0.25, 0.0
    %v7274 = vsel %vm7210, 0.25, 0.0
    %v7275 = vsel %vm7211, 0.25, 0.0
    %v7276 = vsel %vm7212, 0.25, 0.0
    %v7277 = vsel %vm7213, 0.25, 0.0
    %v7278 = vsel %vm7214, 0.25, 0.0
    %v7279 = vsel %vm7215, 0.25, 0.0
    %v7280 = vsel %vm7216, 0.25, 0.0
    %v7281 = vsel %vm7217, 0.25, 0.0
    %v7282 = vsel %vm7218, 0.25, 0.0
    %v7283 = vsel %vm7219, 0.25, 0.0
    %v7284 = vsel %vm7220, 0.25, 0.0
    %v7285 = vsel %vm7221, 0.25, 0.0
    %v7286 = vsel %vm7222, 0.25, 0.0
    %v7287 = vsel %vm7223, 0.25, 0.0
    %v7288 = vsel %vm7224, 0.25, 0.0
    %v7289 = vsel %vm7225, 0.25, 0.0
    %v7290 = vsel %vm7226, 0.25, 0.0
    %v7291 = vsel %vm7227, 0.25, 0.0
    %v7292 = vsel %vm7228, 0.25, 0.0
    %v7293 = vsel %vm7229, 0.25, 0.0
    %v7294 = vsel %vm7230, 0.25, 0.0
    %v7295 = vsel %vm7231, 0.25, 0.0
    %v7296 = vsel %vm7232, 0.25, 0.0
    %v7297 = vsel %vm7233, 0.25, 0.0
    %v7298 = vsel %vm7234, 0.25, 0.0
    %v7299 = vsel %vm7235, 0.25, 0.0
    %v7300 = vsel %vm7236, 0.25, 0.0
    %v7301 = vsel %vm7237, 0.25, 0.0
    %v7302 = vsel %vm7238, 0.25, 0.0
    %v7303 = vsel %vm7239, 0.25, 0.0
    %v7304 = vsel %vm7240, 0.25, 0.0
    %v7305 = vsel %vm7241, 0.25, 0.0
    %v7306 = vsel %vm7242, 0.25, 0.0
    %v7307 = vsel %vm7243, 0.25, 0.0
    %v7308 = vsel %vm7244, 0.25, 0.0
    %v7309 = vsel %vm7245, 0.25, 0.0
    %v7310 = vsel %vm7246, 0.25, 0.0
    %v7311 = vsel %vm7247, 0.25, 0.0
    %v7312 = vsel %vm7248, 0.25, 0.0
    %v7313 = vsel %vm7249, 0.25, 0.0
    %v7314 = vsel %vm7250, 0.25, 0.0
    %v7315 = vsel %vm7251, 0.25, 0.0
    %v7316 = vsel %vm7252, 0.25, 0.0
    %7317 = vmatprep.subr.mxu0 0.0
    %7318 = vmatpush1.msra.mxu0 %v7253
    %7319 = vmatprep.subr.mxu0 0.0
    %7320 = vmatpush1.msra.mxu0 %v7254
    %7321 = vmatprep.subr.mxu0 0.0
    %7322 = vmatpush1.msra.mxu0 %v7255
    %7323 = vmatprep.subr.mxu0 0.0
    %7324 = vmatpush1.msra.mxu0 %v7256
    %7325 = vmatprep.subr.mxu0 0.0
    %7326 = vmatpush1.msra.mxu0 %v7257
    %7327 = vmatprep.subr.mxu0 0.0
    %7328 = vmatpush1.msra.mxu0 %v7258
    %7329 = vmatprep.subr.mxu0 0.0
    %7330 = vmatpush1.msra.mxu0 %v7259
    %7331 = vmatprep.subr.mxu0 0.0
    %7332 = vmatpush1.msra.mxu0 %v7260
    %7333 = vmatprep.subr.mxu0 0.0
    %7334 = vmatpush1.msra.mxu0 %v7261
    %7335 = vmatprep.subr.mxu0 0.0
    %7336 = vmatpush1.msra.mxu0 %v7262
    %7337 = vmatprep.subr.mxu0 0.0
    %7338 = vmatpush1.msra.mxu0 %v7263
    %7339 = vmatprep.subr.mxu0 0.0
    %7340 = vmatpush1.msra.mxu0 %v7264
    %7341 = vmatprep.subr.mxu0 0.0
    %7342 = vmatpush1.msra.mxu0 %v7265
    %7343 = vmatprep.subr.mxu0 0.0
    %7344 = vmatpush1.msra.mxu0 %v7266
    %7345 = vmatprep.subr.mxu0 0.0
    %7346 = vmatpush1.msra.mxu0 %v7267
    %7347 = vmatprep.subr.mxu0 0.0
    %7348 = vmatpush1.msra.mxu0 %v7268
    %7349 = vmatprep.subr.mxu0 0.0
    %7350 = vmatpush1.msra.mxu0 %v7269
    %7351 = vmatprep.subr.mxu0 0.0
    %7352 = vmatpush1.msra.mxu0 %v7270
    %7353 = vmatprep.subr.mxu0 0.0
    %7354 = vmatpush1.msra.mxu0 %v7271
    %7355 = vmatprep.subr.mxu0 0.0
    %7356 = vmatpush1.msra.mxu0 %v7272
    %7357 = vmatprep.subr.mxu0 0.0
    %7358 = vmatpush1.msra.mxu0 %v7273
    %7359 = vmatprep.subr.mxu0 0.0
    %7360 = vmatpush1.msra.mxu0 %v7274
    %7361 = vmatprep.subr.mxu0 0.0
    %7362 = vmatpush1.msra.mxu0 %v7275
    %7363 = vmatprep.subr.mxu0 0.0
    %7364 = vmatpush1.msra.mxu0 %v7276
    %7365 = vmatprep.subr.mxu0 0.0
    %7366 = vmatpush1.msra.mxu0 %v7277
    %7367 = vmatprep.subr.mxu0 0.0
    %7368 = vmatpush1.msra.mxu0 %v7278
    %7369 = vmatprep.subr.mxu0 0.0
    %7370 = vmatpush1.msra.mxu0 %v7279
    %7371 = vmatprep.subr.mxu0 0.0
    %7372 = vmatpush1.msra.mxu0 %v7280
    %7373 = vmatprep.subr.mxu0 0.0
    %7374 = vmatpush1.msra.mxu0 %v7281
    %7375 = vmatprep.subr.mxu0 0.0
    %7376 = vmatpush1.msra.mxu0 %v7282
    %7377 = vmatprep.subr.mxu0 0.0
    %7378 = vmatpush1.msra.mxu0 %v7283
    %7379 = vmatprep.subr.mxu0 0.0
    %7380 = vmatpush1.msra.mxu0 %v7284
    %7381 = vmatprep.mubr.f32.mxu0 %v6411
    %7382 = vmatmul.mubr.f32.gmra.mrb[0].mxu0 %v6409
    %v7383 = vpop.f32.mrb[0].mxu0
    %v7384 = vadd.f32 0.0, %v7383
    %v7385 = vpop.f32.mrb[0].mxu0
    %7386 = vdwg.mxu0
    %7387 = vmatprep.subr.mxu0 0.0
    %7388 = vmatpush1.msra.mxu0 %v7285
    %7389 = vmatprep.subr.mxu0 0.0
    %7390 = vmatpush1.msra.mxu0 %v7286
    %7391 = vmatprep.subr.mxu0 0.0
    %7392 = vmatpush1.msra.mxu0 %v7287
    %7393 = vmatprep.subr.mxu0 0.0
    %7394 = vmatpush1.msra.mxu0 %v7288
    %7395 = vmatprep.subr.mxu0 0.0
    %7396 = vmatpush1.msra.mxu0 %v7289
    %7397 = vmatprep.subr.mxu0 0.0
    %7398 = vmatpush1.msra.mxu0 %v7290
    %7399 = vmatprep.subr.mxu0 0.0
    %7400 = vmatpush1.msra.mxu0 %v7291
    %7401 = vmatprep.subr.mxu0 0.0
    %7402 = vmatpush1.msra.mxu0 %v7292
    %7403 = vmatprep.subr.mxu0 0.0
    %7404 = vmatpush1.msra.mxu0 %v7293
    %7405 = vmatprep.subr.mxu0 0.0
    %7406 = vmatpush1.msra.mxu0 %v7294
    %7407 = vmatprep.subr.mxu0 0.0
    %7408 = vmatpush1.msra.mxu0 %v7295
    %7409 = vmatprep.subr.mxu0 0.0
    %7410 = vmatpush1.msra.mxu0 %v7296
    %7411 = vmatprep.subr.mxu0 0.0
    %7412 = vmatpush1.msra.mxu0 %v7297
    %7413 = vmatprep.subr.mxu0 0.0
    %7414 = vmatpush1.msra.mxu0 %v7298
    %7415 = vmatprep.subr.mxu0 0.0
    %7416 = vmatpush1.msra.mxu0 %v7299
    %7417 = vmatprep.subr.mxu0 0.0
    %7418 = vmatpush1.msra.mxu0 %v7300
    %7419 = vmatprep.subr.mxu0 0.0
    %7420 = vmatpush1.msra.mxu0 %v7301
    %7421 = vmatprep.subr.mxu0 0.0
    %7422 = vmatpush1.msra.mxu0 %v7302
    %7423 = vmatprep.subr.mxu0 0.0
    %7424 = vmatpush1.msra.mxu0 %v7303
    %7425 = vmatprep.subr.mxu0 0.0
    %7426 = vmatpush1.msra.mxu0 %v7304
    %7427 = vmatprep.subr.mxu0 0.0
    %7428 = vmatpush1.msra.mxu0 %v7305
    %7429 = vmatprep.subr.mxu0 0.0
    %7430 = vmatpush1.msra.mxu0 %v7306
    %7431 = vmatprep.subr.mxu0 0.0
    %7432 = vmatpush1.msra.mxu0 %v7307
    %7433 = vmatprep.subr.mxu0 0.0
    %7434 = vmatpush1.msra.mxu0 %v7308
    %7435 = vmatprep.subr.mxu0 0.0
    %7436 = vmatpush1.msra.mxu0 %v7309
    %7437 = vmatprep.subr.mxu0 0.0
    %7438 = vmatpush1.msra.mxu0 %v7310
    %7439 = vmatprep.subr.mxu0 0.0
    %7440 = vmatpush1.msra.mxu0 %v7311
    %7441 = vmatprep.subr.mxu0 0.0
    %7442 = vmatpush1.msra.mxu0 %v7312
    %7443 = vmatprep.subr.mxu0 0.0
    %7444 = vmatpush1.msra.mxu0 %v7313
    %7445 = vmatprep.subr.mxu0 0.0
    %7446 = vmatpush1.msra.mxu0 %v7314
    %7447 = vmatprep.subr.mxu0 0.0
    %7448 = vmatpush1.msra.mxu0 %v7315
    %7449 = vmatprep.subr.mxu0 0.0
    %7450 = vmatpush1.msra.mxu0 %v7316
    %7451 = vmatprep.mubr.f32.mxu0 %v6482
    %7452 = vmatmul.mubr.f32.gmra.mrb[0].mxu0 %v6480
    %v7453 = vpop.f32.mrb[0].mxu0
    %v7454 = vadd.f32 %v7384, %v7453
    %v7455 = vpop.f32.mrb[0].mxu0
    %7456 = vdwg.mxu0
    %7457 = vst [vmem:[#allocation4] sm:$0xff] %v7454
    // Predicated region
    $region14: #{tpu_custom_call.1} parent=1 // pred_check
      _
    $region15: #{tpu_custom_call.1} parent=1 // pred_check_branch
      %7459 = sbr.rel (0) target = $region17
    $region16: #{tpu_custom_call.1} parent=1 // pred_region
      %s7461 = ssub.s32 128, 128
      %7462 = vsyncadd [#allocation5], %s7461
      %s7464 = sshll.u32 [#allocation4], 4
      %s7465 = int_to_ptr.vmem [resolvable:$true] %s7464
      %7467 = dma.vmem_to_hbm [thread:$0]  %s7465, 128, %s3, [#allocation5]
    $region17: #{tpu_custom_call.1} parent=1 // pred_fallthru
      _
    // Predicated region
    $region18: #{tpu_custom_call.1} parent=1 // pred_check
      _
    $region19: #{tpu_custom_call.1} parent=1 // pred_check_branch
      %7469 = sbr.rel (0) target = $region21
    $region20: #{tpu_custom_call.1} parent=1 // pred_region
      %7470 = dma.done [#allocation5], 128
    $region21: #{tpu_custom_call.1} parent=1 // pred_fallthru
      _
    %7471 = vsyncpa [#allocation5], 1

</llo_original>
